<compile_context>
chip_gen: v5e
topology: v5e:2x2
jax: 0.10.0
libtpu: 0.0.40
codegen_flags: <defaults>
</compile_context>

<pallas_src>
import functools
import math

import jax
import jax.numpy as jnp
from jax import lax
from jax.experimental import pallas as pl
from jax.experimental.pallas import tpu as pltpu

LANE = 128     # TPU lane width  -> trailing dims padded to multiples of this
SUBLANE = 8    # sublane width   -> second-to-last dims padded to this


def _round_up(x, m):
    return ((x + m - 1) // m) * m


def _pad_to(x, axis, target):
    pad = target - x.shape[axis]
    if pad == 0:
        return x
    widths = [(0, 0)] * x.ndim
    widths[axis] = (0, pad)
    return jnp.pad(x, widths)


# ----------------------------------------------------------------------------
# Kernel 1: hoisted input projection  gi = x @ W_ih^T + (b_ih [+ b_hh for r,z])
# One large tiled matmul (bf16 in, f32 acc) instead of T tiny per-step matmuls.
# ----------------------------------------------------------------------------
def _matmul_bias_kernel(x_ref, w_ref, b_ref, o_ref, acc_ref):
    k = pl.program_id(2)

    @pl.when(k == 0)
    def _():
        acc_ref[...] = jnp.zeros_like(acc_ref)

    acc_ref[...] += jnp.dot(x_ref[...], w_ref[...],
                            preferred_element_type=jnp.float32)

    @pl.when(k == pl.num_programs(2) - 1)
    def _():
        o_ref[...] = acc_ref[...] + b_ref[...]


def input_projection(x2d, w_t, bias, *, tm=128, tn=128, tk=128):
    """x2d: (R, K) bf16, w_t: (K, N) bf16, bias: (1, N) f32 -> (R, N) f32.

    R, K, N must be multiples of the tile sizes (callers pad to 128)."""
    R, K = x2d.shape
    N = w_t.shape[1]
    tm, tn, tk = min(tm, R), min(tn, N), min(tk, K)
    grid = (R // tm, N // tn, K // tk)
    return pl.pallas_call(
        _matmul_bias_kernel,
        out_shape=jax.ShapeDtypeStruct((R, N), jnp.float32),
        grid_spec=pltpu.PrefetchScalarGridSpec(
            num_scalar_prefetch=0,
            grid=grid,
            in_specs=[
                pl.BlockSpec((tm, tk), lambda i, j, k: (i, k)),
                pl.BlockSpec((tk, tn), lambda i, j, k: (k, j)),
                pl.BlockSpec((1, tn), lambda i, j, k: (0, j)),
            ],
            out_specs=pl.BlockSpec((tm, tn), lambda i, j, k: (i, j)),
            scratch_shapes=[pltpu.VMEM((tm, tn), jnp.float32)],
        ),
        compiler_params=pltpu.CompilerParams(
            dimension_semantics=("parallel", "parallel", "arbitrary")),
    )(x2d, w_t, bias)


# ----------------------------------------------------------------------------
# Kernel 2: GRU recurrence with the input projection pre-computed.
# grid over time-blocks; Tc timesteps per grid step (unrolled fori_loop);
# hidden state carried in VMEM scratch; only h @ W_hh^T on the serial path.
# ----------------------------------------------------------------------------
def _gru_rec_kernel(gi_ref, h0_ref, whh_ref, bhhn_ref, y_ref, hT_ref, h_scratch):
    tb = pl.program_id(0)
    Tc = y_ref.shape[0]
    Hp = h0_ref.shape[-1]

    @pl.when(tb == 0)
    def _():
        h_scratch[...] = h0_ref[...]

    whh = whh_ref[...]        # (Hp, 3Hp) bf16, resident across grid steps
    bhh_n = bhhn_ref[...]     # (1, Hp) f32 (n-gate hidden bias only)

    def step(t, h):
        gi = gi_ref[t]        # (B, 3Hp) f32; b_ih (+ b_hh for r,z) pre-folded
        gh = jnp.dot(h.astype(jnp.bfloat16), whh,
                     preferred_element_type=jnp.float32)     # (B, 3Hp)
        # gate slices are lane-aligned (Hp is a multiple of 128)
        r = jax.nn.sigmoid(gi[:, 0:Hp] + gh[:, 0:Hp])
        z = jax.nn.sigmoid(gi[:, Hp:2 * Hp] + gh[:, Hp:2 * Hp])
        n = jnp.tanh(gi[:, 2 * Hp:] + r * (gh[:, 2 * Hp:] + bhh_n))
        h_new = (1.0 - z) * n + z * h
        y_ref[t] = h_new
        return h_new

    h_fin = lax.fori_loop(0, Tc, step, h_scratch[...], unroll=True)
    h_scratch[...] = h_fin
    hT_ref[...] = h_fin       # unconditional: output block always valid


def gru_recurrence(gi, h0, whh_t, bhh_n, *, time_block):
    """gi: (T, Bp, 3Hp) f32, h0: (Bp, Hp) f32 -> (y: (T, Bp, Hp), hT: (Bp, Hp))."""
    T, Bp, N3 = gi.shape
    Hp = h0.shape[-1]
    grid = (T // time_block,)
    return pl.pallas_call(
        _gru_rec_kernel,
        out_shape=(jax.ShapeDtypeStruct((T, Bp, Hp), jnp.float32),
                   jax.ShapeDtypeStruct((Bp, Hp), jnp.float32)),
        grid_spec=pltpu.PrefetchScalarGridSpec(
            num_scalar_prefetch=0,
            grid=grid,
            in_specs=[
                pl.BlockSpec((time_block, Bp, N3), lambda t: (t, 0, 0)),
                pl.BlockSpec((Bp, Hp), lambda t: (0, 0)),
                pl.BlockSpec((Hp, N3), lambda t: (0, 0)),
                pl.BlockSpec((1, Hp), lambda t: (0, 0)),
            ],
            out_specs=[
                pl.BlockSpec((time_block, Bp, Hp), lambda t: (t, 0, 0)),
                pl.BlockSpec((Bp, Hp), lambda t: (0, 0)),
            ],
            scratch_shapes=[pltpu.VMEM((Bp, Hp), jnp.float32)],
        ),
        compiler_params=pltpu.CompilerParams(
            dimension_semantics=("arbitrary",)),   # time is serial
    )(gi, h0, whh_t, bhh_n)


# ----------------------------------------------------------------------------
# Weight preparation (trace-time, loop-invariant): pad gate blocks to Hp,
# transpose, cast MXU operands to bf16, fold r/z hidden-bias into the
# hoisted projection bias.
# ----------------------------------------------------------------------------
def _pad_gate_mat(w, H, Hp, din, dinp):
    out = jnp.zeros((3 * Hp, dinp), w.dtype)
    for g in range(3):
        out = out.at[g * Hp:g * Hp + H, :din].set(w[g * H:(g + 1) * H, :])
    return out


def _pad_gate_vec(b, H, Hp):
    out = jnp.zeros((3 * Hp,), b.dtype)
    for g in range(3):
        out = out.at[g * Hp:g * Hp + H].set(b[g * H:(g + 1) * H])
    return out


def prepare_gru_layer(p, H, Hp, din, dinp):
    wih = _pad_gate_mat(p["w_ih"], H, Hp, din, dinp)       # (3Hp, dinp)
    whh = _pad_gate_mat(p["w_hh"], H, Hp, H, Hp)           # (3Hp, Hp)
    bih = _pad_gate_vec(p["b_ih"], H, Hp)
    bhh = _pad_gate_vec(p["b_hh"], H, Hp)
    b_gi = bih.at[:2 * Hp].add(bhh[:2 * Hp])               # fold r,z hidden bias
    return dict(
        wih_t=wih.T.astype(jnp.bfloat16),                  # (dinp, 3Hp)
        whh_t=whh.T.astype(jnp.bfloat16),                  # (Hp, 3Hp)
        b_gi=b_gi[None, :].astype(jnp.float32),            # (1, 3Hp)
        bhh_n=bhh[2 * Hp:][None, :].astype(jnp.float32),   # (1, Hp)
    )


# ----------------------------------------------------------------------------
# Full GRUEncoder.forward (residual=False, bidirectional=False).
# ----------------------------------------------------------------------------
def gru_encoder_forward(params, x_ids, h0, dropout_key, *,
                        hidden_size, n_layers, dropout_p, training=True):
    """x_ids: (B, T) int ids (batch-first, as in the PyTorch module).
    h0: (n_layers, B, H). Returns (x: (T, B, H), h_t: (n_layers, B, H))."""
    B, T = x_ids.shape
    H = hidden_size
    E = params["embed"].shape[1]

    # glue: embedding gather + transpose(0,1) + dropout (F.dropout defaults to
    # training=True in the reference forward, so it is always applied).
    emb = jnp.take(params["embed"], x_ids, axis=0)            # (B, T, E)
    x = jnp.transpose(emb, (1, 0, 2)).astype(jnp.float32)     # (T, B, E)
    keys = jax.random.split(dropout_key, max(n_layers, 1))
    if dropout_p > 0.0:
        keep = jax.random.bernoulli(keys[0], 1.0 - dropout_p, x.shape)
        x = jnp.where(keep, x / (1.0 - dropout_p), 0.0)

    # pad to TPU-friendly shapes (lane-dense trailing dims, sublane batch)
    Hp = _round_up(H, LANE)
    Ep = _round_up(E, LANE)
    Bp = _round_up(B, SUBLANE)
    x = _pad_to(_pad_to(x, 1, Bp), 2, Ep)                     # (T, Bp, Ep)
    h0p = _pad_to(_pad_to(h0.astype(jnp.float32), 1, Bp), 2, Hp)

    # time-block size: amortize per-grid-step overhead (must divide T)
    tb = next(c for c in (16, 8, 4, 2, 1) if T % c == 0)

    prepped = []
    din, dinp = E, Ep
    for l in range(n_layers):
        prepped.append(prepare_gru_layer(params["gru"][l], H, Hp, din, dinp))
        din, dinp = H, Hp

    Rp = _round_up(T * Bp, 128)

    inp = x
    h_finals = []
    for l in range(n_layers):
        lp = prepped[l]
        # hoisted input projection: one big (T*B, din) x (din, 3Hp) matmul
        x2d = _pad_to(inp.reshape(T * Bp, inp.shape[-1]), 0, Rp)
        gi = input_projection(x2d.astype(jnp.bfloat16), lp["wih_t"], lp["b_gi"])
        gi = gi[:T * Bp].reshape(T, Bp, 3 * Hp)
        # serial recurrence: only h @ W_hh^T + gates per timestep
        y, hT = gru_recurrence(gi, h0p[l], lp["whh_t"], lp["bhh_n"],
                               time_block=tb)
        h_finals.append(hT[:B, :H])
        inp = y
        if training and dropout_p > 0.0 and l < n_layers - 1:
            # nn.GRU applies dropout between stacked layers in training mode
            keep = jax.random.bernoulli(keys[l + 1], 1.0 - dropout_p, y.shape)
            inp = jnp.where(keep, y / (1.0 - dropout_p), 0.0)

    out = inp[:, :B, :H]                     # (T, B, H)
    h_t = jnp.stack(h_finals, axis=0)        # (n_layers, B, H)
    return out, h_t


# ----------------------------------------------------------------------------
# Pure-JAX reference (no dropout) for a correctness check.
# ----------------------------------------------------------------------------
def gru_encoder_reference(params, x_ids, h0, *, hidden_size, n_layers):
    H = hidden_size
    emb = jnp.take(params["embed"], x_ids, axis=0)
    x = jnp.transpose(emb, (1, 0, 2)).astype(jnp.float32)
    hs = []
    for l in range(n_layers):
        p = params["gru"][l]

        def step(h, xt, p=p):
            gi = xt @ p["w_ih"].T + p["b_ih"]
            gh = h @ p["w_hh"].T + p["b_hh"]
            r = jax.nn.sigmoid(gi[:, :H] + gh[:, :H])
            z = jax.nn.sigmoid(gi[:, H:2 * H] + gh[:, H:2 * H])
            n = jnp.tanh(gi[:, 2 * H:] + r * gh[:, 2 * H:])
            h_new = (1.0 - z) * n + z * h
            return h_new, h_new

        hT, ys = lax.scan(step, h0[l], x)
        hs.append(hT)
        x = ys
    return x, jnp.stack(hs, axis=0)


# ----------------------------------------------------------------------------
# Deterministic parameter init (PyTorch-style uniform bounds).
# ----------------------------------------------------------------------------
def init_params(key, n_words, embedding_size, hidden_size, n_layers):
    E, H = embedding_size, hidden_size
    ks = jax.random.split(key, 1 + 4 * n_layers)
    embed = jax.random.normal(ks[0], (n_words, E), jnp.float32)
    grus = []
    bound = 1.0 / math.sqrt(H)
    for l in range(n_layers):
        din = E if l == 0 else H
        base = 1 + 4 * l
        grus.append(dict(
            w_ih=jax.random.uniform(ks[base + 0], (3 * H, din), jnp.float32, -bound, bound),
            w_hh=jax.random.uniform(ks[base + 1], (3 * H, H), jnp.float32, -bound, bound),
            b_ih=jax.random.uniform(ks[base + 2], (3 * H,), jnp.float32, -bound, bound),
            b_hh=jax.random.uniform(ks[base + 3], (3 * H,), jnp.float32, -bound, bound),
        ))
    return dict(embed=embed, gru=grus)


if __name__ == "__main__":
    B, T = 8, 16
    N_WORDS, EMB, HIDDEN = 64, 64, 64
    N_LAYERS = 2
    DROPOUT_P = 0.2

    key = jax.random.PRNGKey(0)
    k_param, k_ids, k_h0, k_drop = jax.random.split(key, 4)

    params = init_params(k_param, N_WORDS, EMB, HIDDEN, N_LAYERS)
    x_ids = jax.random.randint(k_ids, (B, T), 0, N_WORDS)
    # PyTorch init_hidden(): uniform(-1e-4, 1e-4)
    h0 = jax.random.uniform(k_h0, (N_LAYERS, B, HIDDEN), jnp.float32, -1e-4, 1e-4)

    # main run (training mode, dropout active — matches module defaults)
    fwd = jax.jit(functools.partial(
        gru_encoder_forward, hidden_size=HIDDEN, n_layers=N_LAYERS,
        dropout_p=DROPOUT_P, training=True))
    out, h_t = fwd(params, x_ids, h0, k_drop)
    out = jax.block_until_ready(out)
    h_t = jax.block_until_ready(h_t)

    assert out.shape == (T, B, HIDDEN)
    assert h_t.shape == (N_LAYERS, B, HIDDEN)
    assert bool(jnp.all(jnp.isfinite(out)))
    assert bool(jnp.all(jnp.isfinite(h_t)))

    # correctness check vs pure-JAX reference (dropout disabled; bf16 tolerance)
    fwd_nodrop = jax.jit(functools.partial(
        gru_encoder_forward, hidden_size=HIDDEN, n_layers=N_LAYERS,
        dropout_p=0.0, training=False))
    out_k, h_k = fwd_nodrop(params, x_ids, h0, k_drop)
    out_r, h_r = gru_encoder_reference(params, x_ids, h0,
                                       hidden_size=HIDDEN, n_layers=N_LAYERS)
    out_k = jax.block_until_ready(out_k)
    assert bool(jnp.max(jnp.abs(out_k - out_r)) < 5e-2)
    assert bool(jnp.max(jnp.abs(h_k - h_r)) < 5e-2)

    print("KERNEL_OK")
</pallas_src>

<mosaic_0001>
module attributes {stable_mosaic.version = 11 : i64} {
  func.func @_matmul_bias_kernel(%arg0: i32, %arg1: i32, %arg2: i32, %arg3: memref<128x128xbf16, #tpu.memory_space<vmem>>, %arg4: memref<128x128xbf16, #tpu.memory_space<vmem>>, %arg5: memref<1x128xf32, #tpu.memory_space<vmem>>, %arg6: memref<128x128xf32, #tpu.memory_space<vmem>>, %arg7: memref<128x128xf32, #tpu.memory_space<vmem>>) attributes {dimension_semantics = [#tpu.dimension_semantics<parallel>, #tpu.dimension_semantics<parallel>, #tpu.dimension_semantics<arbitrary>], iteration_bounds = array<i64: 1, 3, 1>, scalar_prefetch = 0 : i64, scratch_operands = 1 : i64, tpu.core_type = #tpu.core_type<tc>, window_params = [{transform_indices = @transform_0, window_bounds = array<i64: 128, 128>}, {transform_indices = @transform_1, window_bounds = array<i64: 128, 128>}, {transform_indices = @transform_2, window_bounds = array<i64: 1, 128>}, {transform_indices = @transform_3, window_bounds = array<i64: 128, 128>}]} {
    %c0_i32 = arith.constant 0 : i32
    %0 = arith.cmpi eq, %arg2, %c0_i32 : i32
    %1 = arith.extui %0 : i1 to i32
    %c0_i32_0 = arith.constant 0 : i32
    %2 = arith.cmpi ne, %1, %c0_i32_0 : i32
    scf.if %2 {
      %cst_10 = arith.constant 0.000000e+00 : f32
      %12 = vector.broadcast %cst_10 : f32 to vector<128x128xf32>
      %c0_11 = arith.constant 0 : index
      %c0_12 = arith.constant 0 : index
      %13 = vector.load %arg7[%c0_11, %c0_12] : memref<128x128xf32, #tpu.memory_space<vmem>>, vector<128x128xf32>
      tpu.vector_store %arg7[%c0_11, %c0_12], %12 {strides = array<i32>} : memref<128x128xf32, #tpu.memory_space<vmem>>, vector<128x128xf32>,
    } else {
    }
    %c0 = arith.constant 0 : index
    %c0_1 = arith.constant 0 : index
    %3 = vector.load %arg7[%c0, %c0_1] : memref<128x128xf32, #tpu.memory_space<vmem>>, vector<128x128xf32>
    %c0_2 = arith.constant 0 : index
    %c0_3 = arith.constant 0 : index
    %4 = vector.load %arg3[%c0_2, %c0_3] : memref<128x128xbf16, #tpu.memory_space<vmem>>, vector<128x128xbf16>
    %c0_4 = arith.constant 0 : index
    %c0_5 = arith.constant 0 : index
    %5 = vector.load %arg4[%c0_4, %c0_5] : memref<128x128xbf16, #tpu.memory_space<vmem>>, vector<128x128xbf16>
    %cst = arith.constant dense<0.000000e+00> : vector<128x128xf32>
    %6 = tpu.matmul %4, %5, %cst {dimension_numbers = #tpu.dot_dimension_numbers<[1], [0], [0], [1], [0, 0, 1, 1], [], []>} : vector<128x128xbf16>, vector<128x128xbf16>, vector<128x128xf32> -> vector<128x128xf32>
    %7 = arith.addf %3, %6 : vector<128x128xf32>
    %c0_6 = arith.constant 0 : index
    %c0_7 = arith.constant 0 : index
    %8 = vector.load %arg7[%c0_6, %c0_7] : memref<128x128xf32, #tpu.memory_space<vmem>>, vector<128x128xf32>
    tpu.vector_store %arg7[%c0_6, %c0_7], %7 {strides = array<i32>} : memref<128x128xf32, #tpu.memory_space<vmem>>, vector<128x128xf32>,
    %c0_i32_8 = arith.constant 0 : i32
    %9 = arith.cmpi eq, %arg2, %c0_i32_8 : i32
    %10 = arith.extui %9 : i1 to i32
    %c0_i32_9 = arith.constant 0 : i32
    %11 = arith.cmpi ne, %10, %c0_i32_9 : i32
    scf.if %11 {
      %c0_10 = arith.constant 0 : index
      %c0_11 = arith.constant 0 : index
      %12 = vector.load %arg7[%c0_10, %c0_11] : memref<128x128xf32, #tpu.memory_space<vmem>>, vector<128x128xf32>
      %c0_12 = arith.constant 0 : index
      %c0_13 = arith.constant 0 : index
      %13 = vector.load %arg5[%c0_12, %c0_13] : memref<1x128xf32, #tpu.memory_space<vmem>>, vector<1x128xf32>
      %14 = vector.broadcast %13 : vector<1x128xf32> to vector<128x128xf32>
      %15 = arith.addf %12, %14 : vector<128x128xf32>
      %c0_14 = arith.constant 0 : index
      %c0_15 = arith.constant 0 : index
      %16 = vector.load %arg6[%c0_14, %c0_15] : memref<128x128xf32, #tpu.memory_space<vmem>>, vector<128x128xf32>
      tpu.vector_store %arg6[%c0_14, %c0_15], %15 {strides = array<i32>} : memref<128x128xf32, #tpu.memory_space<vmem>>, vector<128x128xf32>,
    } else {
    }
    return
  }
  func.func @transform_0(%arg0: i32, %arg1: i32, %arg2: i32) -> (i32, i32) {
    %c0_i32 = arith.constant 0 : i32
    return %arg0, %arg2 : i32, i32
  }
  func.func @transform_1(%arg0: i32, %arg1: i32, %arg2: i32) -> (i32, i32) {
    %c0_i32 = arith.constant 0 : i32
    return %arg2, %arg1 : i32, i32
  }
  func.func @transform_2(%arg0: i32, %arg1: i32, %arg2: i32) -> (i32, i32) {
    %c0_i32 = arith.constant 0 : i32
    %c0_i32_0 = arith.constant 0 : i32
    return %c0_i32, %arg1 : i32, i32
  }
  func.func @transform_3(%arg0: i32, %arg1: i32, %arg2: i32) -> (i32, i32) {
    %c0_i32 = arith.constant 0 : i32
    return %arg0, %arg1 : i32, i32
  }
}

module attributes {stable_mosaic.version = 11 : i64} {
  func.func @_gru_rec_kernel(%arg0: i32, %arg1: memref<16x8x384xf32, #tpu.memory_space<vmem>>, %arg2: memref<8x128xf32, #tpu.memory_space<vmem>>, %arg3: memref<128x384xbf16, #tpu.memory_space<vmem>>, %arg4: memref<1x128xf32, #tpu.memory_space<vmem>>, %arg5: memref<16x8x128xf32, #tpu.memory_space<vmem>>, %arg6: memref<8x128xf32, #tpu.memory_space<vmem>>, %arg7: memref<8x128xf32, #tpu.memory_space<vmem>>) attributes {dimension_semantics = [#tpu.dimension_semantics<arbitrary>], iteration_bounds = array<i64: 1>, scalar_prefetch = 0 : i64, scratch_operands = 1 : i64, tpu.core_type = #tpu.core_type<tc>, window_params = [{transform_indices = @transform_0, window_bounds = array<i64: 16, 8, 384>}, {pipeline_mode = #tpu.pipeline_mode<synchronous>, transform_indices = @transform_1, window_bounds = array<i64: 8, 128>}, {pipeline_mode = #tpu.pipeline_mode<synchronous>, transform_indices = @transform_2, window_bounds = array<i64: 128, 384>}, {pipeline_mode = #tpu.pipeline_mode<synchronous>, transform_indices = @transform_3, window_bounds = array<i64: 1, 128>}, {transform_indices = @transform_4, window_bounds = array<i64: 16, 8, 128>}, {pipeline_mode = #tpu.pipeline_mode<synchronous>, transform_indices = @transform_5, window_bounds = array<i64: 8, 128>}]} {
    %c0_i32 = arith.constant 0 : i32
    %0 = arith.cmpi eq, %arg0, %c0_i32 : i32
    %1 = arith.extui %0 : i1 to i32
    %c0_i32_0 = arith.constant 0 : i32
    %2 = arith.cmpi ne, %1, %c0_i32_0 : i32
    scf.if %2 {
      %c0_138 = arith.constant 0 : index
      %c0_139 = arith.constant 0 : index
      %600 = vector.load %arg2[%c0_138, %c0_139] : memref<8x128xf32, #tpu.memory_space<vmem>>, vector<8x128xf32>
      %c0_140 = arith.constant 0 : index
      %c0_141 = arith.constant 0 : index
      %601 = vector.load %arg7[%c0_140, %c0_141] : memref<8x128xf32, #tpu.memory_space<vmem>>, vector<8x128xf32>
      tpu.vector_store %arg7[%c0_140, %c0_141], %600 {strides = array<i32>} : memref<8x128xf32, #tpu.memory_space<vmem>>, vector<8x128xf32>,
    } else {
    }
    %c0 = arith.constant 0 : index
    %c0_1 = arith.constant 0 : index
    %3 = vector.load %arg3[%c0, %c0_1] : memref<128x384xbf16, #tpu.memory_space<vmem>>, vector<128x384xbf16>
    %c0_2 = arith.constant 0 : index
    %c0_3 = arith.constant 0 : index
    %4 = vector.load %arg4[%c0_2, %c0_3] : memref<1x128xf32, #tpu.memory_space<vmem>>, vector<1x128xf32>
    %c0_4 = arith.constant 0 : index
    %c0_5 = arith.constant 0 : index
    %5 = vector.load %arg7[%c0_4, %c0_5] : memref<8x128xf32, #tpu.memory_space<vmem>>, vector<8x128xf32>
    %c0_i32_6 = arith.constant 0 : i32
    %6 = arith.index_cast %c0_i32_6 : i32 to index
    %c0_7 = arith.constant 0 : index
    %c0_8 = arith.constant 0 : index
    %7 = vector.load %arg1[%6, %c0_7, %c0_8] : memref<16x8x384xf32, #tpu.memory_space<vmem>>, vector<1x8x384xf32>
    %8 = vector.shape_cast %7 : vector<1x8x384xf32> to vector<8x384xf32>
    %9 = arith.truncf %5 : vector<8x128xf32> to vector<8x128xbf16>
    %cst = arith.constant dense<0.000000e+00> : vector<8x384xf32>
    %10 = tpu.matmul %9, %3, %cst {dimension_numbers = #tpu.dot_dimension_numbers<[1], [0], [0], [1], [0, 0, 1, 1], [], []>} : vector<8x128xbf16>, vector<128x384xbf16>, vector<8x384xf32> -> vector<8x384xf32>
    %11 = vector.extract_strided_slice %8 {offsets = [0, 0], sizes = [8, 128], strides = [1, 1]} : vector<8x384xf32> to vector<8x128xf32>
    %12 = vector.extract_strided_slice %10 {offsets = [0, 0], sizes = [8, 128], strides = [1, 1]} : vector<8x384xf32> to vector<8x128xf32>
    %13 = arith.addf %11, %12 : vector<8x128xf32>
    %14 = arith.negf %13 : vector<8x128xf32>
    %15 = math.exp %14 : vector<8x128xf32>
    %cst_9 = arith.constant 1.000000e+00 : f32
    %16 = vector.broadcast %cst_9 : f32 to vector<8x128xf32>
    %17 = arith.addf %16, %15 : vector<8x128xf32>
    %18 = arith.divf %16, %17 : vector<8x128xf32>
    %19 = vector.extract_strided_slice %8 {offsets = [0, 128], sizes = [8, 128], strides = [1, 1]} : vector<8x384xf32> to vector<8x128xf32>
    %20 = vector.extract_strided_slice %10 {offsets = [0, 128], sizes = [8, 128], strides = [1, 1]} : vector<8x384xf32> to vector<8x128xf32>
    %21 = arith.addf %19, %20 : vector<8x128xf32>
    %22 = arith.negf %21 : vector<8x128xf32>
    %23 = math.exp %22 : vector<8x128xf32>
    %cst_10 = arith.constant 1.000000e+00 : f32
    %24 = vector.broadcast %cst_10 : f32 to vector<8x128xf32>
    %25 = arith.addf %24, %23 : vector<8x128xf32>
    %26 = arith.divf %24, %25 : vector<8x128xf32>
    %27 = vector.extract_strided_slice %8 {offsets = [0, 256], sizes = [8, 128], strides = [1, 1]} : vector<8x384xf32> to vector<8x128xf32>
    %28 = vector.extract_strided_slice %10 {offsets = [0, 256], sizes = [8, 128], strides = [1, 1]} : vector<8x384xf32> to vector<8x128xf32>
    %29 = vector.broadcast %4 : vector<1x128xf32> to vector<8x128xf32>
    %30 = arith.addf %28, %29 : vector<8x128xf32>
    %31 = arith.mulf %18, %30 : vector<8x128xf32>
    %32 = arith.addf %27, %31 : vector<8x128xf32>
    %33 = math.tanh %32 : vector<8x128xf32>
    %cst_11 = arith.constant 1.000000e+00 : f32
    %34 = vector.broadcast %cst_11 : f32 to vector<8x128xf32>
    %35 = arith.subf %34, %26 : vector<8x128xf32>
    %36 = arith.mulf %35, %33 : vector<8x128xf32>
    %37 = arith.mulf %26, %5 : vector<8x128xf32>
    %38 = arith.addf %36, %37 : vector<8x128xf32>
    %39 = arith.index_cast %c0_i32_6 : i32 to index
    %c0_12 = arith.constant 0 : index
    %c0_13 = arith.constant 0 : index
    %40 = vector.load %arg5[%39, %c0_12, %c0_13] : memref<16x8x128xf32, #tpu.memory_space<vmem>>, vector<1x8x128xf32>
    %41 = vector.shape_cast %40 : vector<1x8x128xf32> to vector<8x128xf32>
    %42 = vector.shape_cast %38 : vector<8x128xf32> to vector<1x8x128xf32>
    tpu.vector_store %arg5[%39, %c0_12, %c0_13], %42 {strides = array<i32>} : memref<16x8x128xf32, #tpu.memory_space<vmem>>, vector<1x8x128xf32>,
    %c1_i32 = arith.constant 1 : i32
    %43 = arith.index_cast %c1_i32 : i32 to index
    %c0_14 = arith.constant 0 : index
    %c0_15 = arith.constant 0 : index
    %44 = vector.load %arg1[%43, %c0_14, %c0_15] : memref<16x8x384xf32, #tpu.memory_space<vmem>>, vector<1x8x384xf32>
    %45 = vector.shape_cast %44 : vector<1x8x384xf32> to vector<8x384xf32>
    %46 = arith.truncf %38 : vector<8x128xf32> to vector<8x128xbf16>
    %cst_16 = arith.constant dense<0.000000e+00> : vector<8x384xf32>
    %47 = tpu.matmul %46, %3, %cst_16 {dimension_numbers = #tpu.dot_dimension_numbers<[1], [0], [0], [1], [0, 0, 1, 1], [], []>} : vector<8x128xbf16>, vector<128x384xbf16>, vector<8x384xf32> -> vector<8x384xf32>
    %48 = vector.extract_strided_slice %45 {offsets = [0, 0], sizes = [8, 128], strides = [1, 1]} : vector<8x384xf32> to vector<8x128xf32>
    %49 = vector.extract_strided_slice %47 {offsets = [0, 0], sizes = [8, 128], strides = [1, 1]} : vector<8x384xf32> to vector<8x128xf32>
    %50 = arith.addf %48, %49 : vector<8x128xf32>
    %51 = arith.negf %50 : vector<8x128xf32>
    %52 = math.exp %51 : vector<8x128xf32>
    %cst_17 = arith.constant 1.000000e+00 : f32
    %53 = vector.broadcast %cst_17 : f32 to vector<8x128xf32>
    %54 = arith.addf %53, %52 : vector<8x128xf32>
    %55 = arith.divf %53, %54 : vector<8x128xf32>
    %56 = vector.extract_strided_slice %45 {offsets = [0, 128], sizes = [8, 128], strides = [1, 1]} : vector<8x384xf32> to vector<8x128xf32>
    %57 = vector.extract_strided_slice %47 {offsets = [0, 128], sizes = [8, 128], strides = [1, 1]} : vector<8x384xf32> to vector<8x128xf32>
    %58 = arith.addf %56, %57 : vector<8x128xf32>
    %59 = arith.negf %58 : vector<8x128xf32>
    %60 = math.exp %59 : vector<8x128xf32>
    %cst_18 = arith.constant 1.000000e+00 : f32
    %61 = vector.broadcast %cst_18 : f32 to vector<8x128xf32>
    %62 = arith.addf %61, %60 : vector<8x128xf32>
    %63 = arith.divf %61, %62 : vector<8x128xf32>
    %64 = vector.extract_strided_slice %45 {offsets = [0, 256], sizes = [8, 128], strides = [1, 1]} : vector<8x384xf32> to vector<8x128xf32>
    %65 = vector.extract_strided_slice %47 {offsets = [0, 256], sizes = [8, 128], strides = [1, 1]} : vector<8x384xf32> to vector<8x128xf32>
    %66 = vector.broadcast %4 : vector<1x128xf32> to vector<8x128xf32>
    %67 = arith.addf %65, %66 : vector<8x128xf32>
    %68 = arith.mulf %55, %67 : vector<8x128xf32>
    %69 = arith.addf %64, %68 : vector<8x128xf32>
    %70 = math.tanh %69 : vector<8x128xf32>
    %cst_19 = arith.constant 1.000000e+00 : f32
    %71 = vector.broadcast %cst_19 : f32 to vector<8x128xf32>
    %72 = arith.subf %71, %63 : vector<8x128xf32>
    %73 = arith.mulf %72, %70 : vector<8x128xf32>
    %74 = arith.mulf %63, %38 : vector<8x128xf32>
    %75 = arith.addf %73, %74 : vector<8x128xf32>
    %76 = arith.index_cast %c1_i32 : i32 to index
    %c0_20 = arith.constant 0 : index
    %c0_21 = arith.constant 0 : index
    %77 = vector.load %arg5[%76, %c0_20, %c0_21] : memref<16x8x128xf32, #tpu.memory_space<vmem>>, vector<1x8x128xf32>
    %78 = vector.shape_cast %77 : vector<1x8x128xf32> to vector<8x128xf32>
    %79 = vector.shape_cast %75 : vector<8x128xf32> to vector<1x8x128xf32>
    tpu.vector_store %arg5[%76, %c0_20, %c0_21], %79 {strides = array<i32>} : memref<16x8x128xf32, #tpu.memory_space<vmem>>, vector<1x8x128xf32>,
    %c2_i32 = arith.constant 2 : i32
    %80 = arith.index_cast %c2_i32 : i32 to index
    %c0_22 = arith.constant 0 : index
    %c0_23 = arith.constant 0 : index
    %81 = vector.load %arg1[%80, %c0_22, %c0_23] : memref<16x8x384xf32, #tpu.memory_space<vmem>>, vector<1x8x384xf32>
    %82 = vector.shape_cast %81 : vector<1x8x384xf32> to vector<8x384xf32>
    %83 = arith.truncf %75 : vector<8x128xf32> to vector<8x128xbf16>
    %cst_24 = arith.constant dense<0.000000e+00> : vector<8x384xf32>
    %84 = tpu.matmul %83, %3, %cst_24 {dimension_numbers = #tpu.dot_dimension_numbers<[1], [0], [0], [1], [0, 0, 1, 1], [], []>} : vector<8x128xbf16>, vector<128x384xbf16>, vector<8x384xf32> -> vector<8x384xf32>
    %85 = vector.extract_strided_slice %82 {offsets = [0, 0], sizes = [8, 128], strides = [1, 1]} : vector<8x384xf32> to vector<8x128xf32>
    %86 = vector.extract_strided_slice %84 {offsets = [0, 0], sizes = [8, 128], strides = [1, 1]} : vector<8x384xf32> to vector<8x128xf32>
    %87 = arith.addf %85, %86 : vector<8x128xf32>
    %88 = arith.negf %87 : vector<8x128xf32>
    %89 = math.exp %88 : vector<8x128xf32>
    %cst_25 = arith.constant 1.000000e+00 : f32
    %90 = vector.broadcast %cst_25 : f32 to vector<8x128xf32>
    %91 = arith.addf %90, %89 : vector<8x128xf32>
    %92 = arith.divf %90, %91 : vector<8x128xf32>
    %93 = vector.extract_strided_slice %82 {offsets = [0, 128], sizes = [8, 128], strides = [1, 1]} : vector<8x384xf32> to vector<8x128xf32>
    %94 = vector.extract_strided_slice %84 {offsets = [0, 128], sizes = [8, 128], strides = [1, 1]} : vector<8x384xf32> to vector<8x128xf32>
    %95 = arith.addf %93, %94 : vector<8x128xf32>
    %96 = arith.negf %95 : vector<8x128xf32>
    %97 = math.exp %96 : vector<8x128xf32>
    %cst_26 = arith.constant 1.000000e+00 : f32
    %98 = vector.broadcast %cst_26 : f32 to vector<8x128xf32>
    %99 = arith.addf %98, %97 : vector<8x128xf32>
    %100 = arith.divf %98, %99 : vector<8x128xf32>
    %101 = vector.extract_strided_slice %82 {offsets = [0, 256], sizes = [8, 128], strides = [1, 1]} : vector<8x384xf32> to vector<8x128xf32>
    %102 = vector.extract_strided_slice %84 {offsets = [0, 256], sizes = [8, 128], strides = [1, 1]} : vector<8x384xf32> to vector<8x128xf32>
    %103 = vector.broadcast %4 : vector<1x128xf32> to vector<8x128xf32>
    %104 = arith.addf %102, %103 : vector<8x128xf32>
    %105 = arith.mulf %92, %104 : vector<8x128xf32>
    %106 = arith.addf %101, %105 : vector<8x128xf32>
    %107 = math.tanh %106 : vector<8x128xf32>
    %cst_27 = arith.constant 1.000000e+00 : f32
    %108 = vector.broadcast %cst_27 : f32 to vector<8x128xf32>
    %109 = arith.subf %108, %100 : vector<8x128xf32>
    %110 = arith.mulf %109, %107 : vector<8x128xf32>
    %111 = arith.mulf %100, %75 : vector<8x128xf32>
    %112 = arith.addf %110, %111 : vector<8x128xf32>
    %113 = arith.index_cast %c2_i32 : i32 to index
    %c0_28 = arith.constant 0 : index
    %c0_29 = arith.constant 0 : index
    %114 = vector.load %arg5[%113, %c0_28, %c0_29] : memref<16x8x128xf32, #tpu.memory_space<vmem>>, vector<1x8x128xf32>
    %115 = vector.shape_cast %114 : vector<1x8x128xf32> to vector<8x128xf32>
    %116 = vector.shape_cast %112 : vector<8x128xf32> to vector<1x8x128xf32>
    tpu.vector_store %arg5[%113, %c0_28, %c0_29], %116 {strides = array<i32>} : memref<16x8x128xf32, #tpu.memory_space<vmem>>, vector<1x8x128xf32>,
    %c3_i32 = arith.constant 3 : i32
    %117 = arith.index_cast %c3_i32 : i32 to index
    %c0_30 = arith.constant 0 : index
    %c0_31 = arith.constant 0 : index
    %118 = vector.load %arg1[%117, %c0_30, %c0_31] : memref<16x8x384xf32, #tpu.memory_space<vmem>>, vector<1x8x384xf32>
    %119 = vector.shape_cast %118 : vector<1x8x384xf32> to vector<8x384xf32>
    %120 = arith.truncf %112 : vector<8x128xf32> to vector<8x128xbf16>
    %cst_32 = arith.constant dense<0.000000e+00> : vector<8x384xf32>
    %121 = tpu.matmul %120, %3, %cst_32 {dimension_numbers = #tpu.dot_dimension_numbers<[1], [0], [0], [1], [0, 0, 1, 1], [], []>} : vector<8x128xbf16>, vector<128x384xbf16>, vector<8x384xf32> -> vector<8x384xf32>
    %122 = vector.extract_strided_slice %119 {offsets = [0, 0], sizes = [8, 128], strides = [1, 1]} : vector<8x384xf32> to vector<8x128xf32>
    %123 = vector.extract_strided_slice %121 {offsets = [0, 0], sizes = [8, 128], strides = [1, 1]} : vector<8x384xf32> to vector<8x128xf32>
    %124 = arith.addf %122, %123 : vector<8x128xf32>
    %125 = arith.negf %124 : vector<8x128xf32>
    %126 = math.exp %125 : vector<8x128xf32>
    %cst_33 = arith.constant 1.000000e+00 : f32
    %127 = vector.broadcast %cst_33 : f32 to vector<8x128xf32>
    %128 = arith.addf %127, %126 : vector<8x128xf32>
    %129 = arith.divf %127, %128 : vector<8x128xf32>
    %130 = vector.extract_strided_slice %119 {offsets = [0, 128], sizes = [8, 128], strides = [1, 1]} : vector<8x384xf32> to vector<8x128xf32>
    %131 = vector.extract_strided_slice %121 {offsets = [0, 128], sizes = [8, 128], strides = [1, 1]} : vector<8x384xf32> to vector<8x128xf32>
    %132 = arith.addf %130, %131 : vector<8x128xf32>
    %133 = arith.negf %132 : vector<8x128xf32>
    %134 = math.exp %133 : vector<8x128xf32>
    %cst_34 = arith.constant 1.000000e+00 : f32
    %135 = vector.broadcast %cst_34 : f32 to vector<8x128xf32>
    %136 = arith.addf %135, %134 : vector<8x128xf32>
    %137 = arith.divf %135, %136 : vector<8x128xf32>
    %138 = vector.extract_strided_slice %119 {offsets = [0, 256], sizes = [8, 128], strides = [1, 1]} : vector<8x384xf32> to vector<8x128xf32>
    %139 = vector.extract_strided_slice %121 {offsets = [0, 256], sizes = [8, 128], strides = [1, 1]} : vector<8x384xf32> to vector<8x128xf32>
    %140 = vector.broadcast %4 : vector<1x128xf32> to vector<8x128xf32>
    %141 = arith.addf %139, %140 : vector<8x128xf32>
    %142 = arith.mulf %129, %141 : vector<8x128xf32>
    %143 = arith.addf %138, %142 : vector<8x128xf32>
    %144 = math.tanh %143 : vector<8x128xf32>
    %cst_35 = arith.constant 1.000000e+00 : f32
    %145 = vector.broadcast %cst_35 : f32 to vector<8x128xf32>
    %146 = arith.subf %145, %137 : vector<8x128xf32>
    %147 = arith.mulf %146, %144 : vector<8x128xf32>
    %148 = arith.mulf %137, %112 : vector<8x128xf32>
    %149 = arith.addf %147, %148 : vector<8x128xf32>
    %150 = arith.index_cast %c3_i32 : i32 to index
    %c0_36 = arith.constant 0 : index
    %c0_37 = arith.constant 0 : index
    %151 = vector.load %arg5[%150, %c0_36, %c0_37] : memref<16x8x128xf32, #tpu.memory_space<vmem>>, vector<1x8x128xf32>
    %152 = vector.shape_cast %151 : vector<1x8x128xf32> to vector<8x128xf32>
    %153 = vector.shape_cast %149 : vector<8x128xf32> to vector<1x8x128xf32>
    tpu.vector_store %arg5[%150, %c0_36, %c0_37], %153 {strides = array<i32>} : memref<16x8x128xf32, #tpu.memory_space<vmem>>, vector<1x8x128xf32>,
    %c4_i32 = arith.constant 4 : i32
    %154 = arith.index_cast %c4_i32 : i32 to index
    %c0_38 = arith.constant 0 : index
    %c0_39 = arith.constant 0 : index
    %155 = vector.load %arg1[%154, %c0_38, %c0_39] : memref<16x8x384xf32, #tpu.memory_space<vmem>>, vector<1x8x384xf32>
    %156 = vector.shape_cast %155 : vector<1x8x384xf32> to vector<8x384xf32>
    %157 = arith.truncf %149 : vector<8x128xf32> to vector<8x128xbf16>
    %cst_40 = arith.constant dense<0.000000e+00> : vector<8x384xf32>
    %158 = tpu.matmul %157, %3, %cst_40 {dimension_numbers = #tpu.dot_dimension_numbers<[1], [0], [0], [1], [0, 0, 1, 1], [], []>} : vector<8x128xbf16>, vector<128x384xbf16>, vector<8x384xf32> -> vector<8x384xf32>
    %159 = vector.extract_strided_slice %156 {offsets = [0, 0], sizes = [8, 128], strides = [1, 1]} : vector<8x384xf32> to vector<8x128xf32>
    %160 = vector.extract_strided_slice %158 {offsets = [0, 0], sizes = [8, 128], strides = [1, 1]} : vector<8x384xf32> to vector<8x128xf32>
    %161 = arith.addf %159, %160 : vector<8x128xf32>
    %162 = arith.negf %161 : vector<8x128xf32>
    %163 = math.exp %162 : vector<8x128xf32>
    %cst_41 = arith.constant 1.000000e+00 : f32
    %164 = vector.broadcast %cst_41 : f32 to vector<8x128xf32>
    %165 = arith.addf %164, %163 : vector<8x128xf32>
    %166 = arith.divf %164, %165 : vector<8x128xf32>
    %167 = vector.extract_strided_slice %156 {offsets = [0, 128], sizes = [8, 128], strides = [1, 1]} : vector<8x384xf32> to vector<8x128xf32>
    %168 = vector.extract_strided_slice %158 {offsets = [0, 128], sizes = [8, 128], strides = [1, 1]} : vector<8x384xf32> to vector<8x128xf32>
    %169 = arith.addf %167, %168 : vector<8x128xf32>
    %170 = arith.negf %169 : vector<8x128xf32>
    %171 = math.exp %170 : vector<8x128xf32>
    %cst_42 = arith.constant 1.000000e+00 : f32
    %172 = vector.broadcast %cst_42 : f32 to vector<8x128xf32>
    %173 = arith.addf %172, %171 : vector<8x128xf32>
    %174 = arith.divf %172, %173 : vector<8x128xf32>
    %175 = vector.extract_strided_slice %156 {offsets = [0, 256], sizes = [8, 128], strides = [1, 1]} : vector<8x384xf32> to vector<8x128xf32>
    %176 = vector.extract_strided_slice %158 {offsets = [0, 256], sizes = [8, 128], strides = [1, 1]} : vector<8x384xf32> to vector<8x128xf32>
    %177 = vector.broadcast %4 : vector<1x128xf32> to vector<8x128xf32>
    %178 = arith.addf %176, %177 : vector<8x128xf32>
    %179 = arith.mulf %166, %178 : vector<8x128xf32>
    %180 = arith.addf %175, %179 : vector<8x128xf32>
    %181 = math.tanh %180 : vector<8x128xf32>
    %cst_43 = arith.constant 1.000000e+00 : f32
    %182 = vector.broadcast %cst_43 : f32 to vector<8x128xf32>
    %183 = arith.subf %182, %174 : vector<8x128xf32>
    %184 = arith.mulf %183, %181 : vector<8x128xf32>
    %185 = arith.mulf %174, %149 : vector<8x128xf32>
    %186 = arith.addf %184, %185 : vector<8x128xf32>
    %187 = arith.index_cast %c4_i32 : i32 to index
    %c0_44 = arith.constant 0 : index
    %c0_45 = arith.constant 0 : index
    %188 = vector.load %arg5[%187, %c0_44, %c0_45] : memref<16x8x128xf32, #tpu.memory_space<vmem>>, vector<1x8x128xf32>
    %189 = vector.shape_cast %188 : vector<1x8x128xf32> to vector<8x128xf32>
    %190 = vector.shape_cast %186 : vector<8x128xf32> to vector<1x8x128xf32>
    tpu.vector_store %arg5[%187, %c0_44, %c0_45], %190 {strides = array<i32>} : memref<16x8x128xf32, #tpu.memory_space<vmem>>, vector<1x8x128xf32>,
    %c5_i32 = arith.constant 5 : i32
    %191 = arith.index_cast %c5_i32 : i32 to index
    %c0_46 = arith.constant 0 : index
    %c0_47 = arith.constant 0 : index
    %192 = vector.load %arg1[%191, %c0_46, %c0_47] : memref<16x8x384xf32, #tpu.memory_space<vmem>>, vector<1x8x384xf32>
    %193 = vector.shape_cast %192 : vector<1x8x384xf32> to vector<8x384xf32>
    %194 = arith.truncf %186 : vector<8x128xf32> to vector<8x128xbf16>
    %cst_48 = arith.constant dense<0.000000e+00> : vector<8x384xf32>
    %195 = tpu.matmul %194, %3, %cst_48 {dimension_numbers = #tpu.dot_dimension_numbers<[1], [0], [0], [1], [0, 0, 1, 1], [], []>} : vector<8x128xbf16>, vector<128x384xbf16>, vector<8x384xf32> -> vector<8x384xf32>
    %196 = vector.extract_strided_slice %193 {offsets = [0, 0], sizes = [8, 128], strides = [1, 1]} : vector<8x384xf32> to vector<8x128xf32>
    %197 = vector.extract_strided_slice %195 {offsets = [0, 0], sizes = [8, 128], strides = [1, 1]} : vector<8x384xf32> to vector<8x128xf32>
    %198 = arith.addf %196, %197 : vector<8x128xf32>
    %199 = arith.negf %198 : vector<8x128xf32>
    %200 = math.exp %199 : vector<8x128xf32>
    %cst_49 = arith.constant 1.000000e+00 : f32
    %201 = vector.broadcast %cst_49 : f32 to vector<8x128xf32>
    %202 = arith.addf %201, %200 : vector<8x128xf32>
    %203 = arith.divf %201, %202 : vector<8x128xf32>
    %204 = vector.extract_strided_slice %193 {offsets = [0, 128], sizes = [8, 128], strides = [1, 1]} : vector<8x384xf32> to vector<8x128xf32>
    %205 = vector.extract_strided_slice %195 {offsets = [0, 128], sizes = [8, 128], strides = [1, 1]} : vector<8x384xf32> to vector<8x128xf32>
    %206 = arith.addf %204, %205 : vector<8x128xf32>
    %207 = arith.negf %206 : vector<8x128xf32>
    %208 = math.exp %207 : vector<8x128xf32>
    %cst_50 = arith.constant 1.000000e+00 : f32
    %209 = vector.broadcast %cst_50 : f32 to vector<8x128xf32>
    %210 = arith.addf %209, %208 : vector<8x128xf32>
    %211 = arith.divf %209, %210 : vector<8x128xf32>
    %212 = vector.extract_strided_slice %193 {offsets = [0, 256], sizes = [8, 128], strides = [1, 1]} : vector<8x384xf32> to vector<8x128xf32>
    %213 = vector.extract_strided_slice %195 {offsets = [0, 256], sizes = [8, 128], strides = [1, 1]} : vector<8x384xf32> to vector<8x128xf32>
    %214 = vector.broadcast %4 : vector<1x128xf32> to vector<8x128xf32>
    %215 = arith.addf %213, %214 : vector<8x128xf32>
    %216 = arith.mulf %203, %215 : vector<8x128xf32>
    %217 = arith.addf %212, %216 : vector<8x128xf32>
    %218 = math.tanh %217 : vector<8x128xf32>
    %cst_51 = arith.constant 1.000000e+00 : f32
    %219 = vector.broadcast %cst_51 : f32 to vector<8x128xf32>
    %220 = arith.subf %219, %211 : vector<8x128xf32>
    %221 = arith.mulf %220, %218 : vector<8x128xf32>
    %222 = arith.mulf %211, %186 : vector<8x128xf32>
    %223 = arith.addf %221, %222 : vector<8x128xf32>
    %224 = arith.index_cast %c5_i32 : i32 to index
    %c0_52 = arith.constant 0 : index
    %c0_53 = arith.constant 0 : index
    %225 = vector.load %arg5[%224, %c0_52, %c0_53] : memref<16x8x128xf32, #tpu.memory_space<vmem>>, vector<1x8x128xf32>
    %226 = vector.shape_cast %225 : vector<1x8x128xf32> to vector<8x128xf32>
    %227 = vector.shape_cast %223 : vector<8x128xf32> to vector<1x8x128xf32>
    tpu.vector_store %arg5[%224, %c0_52, %c0_53], %227 {strides = array<i32>} : memref<16x8x128xf32, #tpu.memory_space<vmem>>, vector<1x8x128xf32>,
    %c6_i32 = arith.constant 6 : i32
    %228 = arith.index_cast %c6_i32 : i32 to index
    %c0_54 = arith.constant 0 : index
    %c0_55 = arith.constant 0 : index
    %229 = vector.load %arg1[%228, %c0_54, %c0_55] : memref<16x8x384xf32, #tpu.memory_space<vmem>>, vector<1x8x384xf32>
    %230 = vector.shape_cast %229 : vector<1x8x384xf32> to vector<8x384xf32>
    %231 = arith.truncf %223 : vector<8x128xf32> to vector<8x128xbf16>
    %cst_56 = arith.constant dense<0.000000e+00> : vector<8x384xf32>
    %232 = tpu.matmul %231, %3, %cst_56 {dimension_numbers = #tpu.dot_dimension_numbers<[1], [0], [0], [1], [0, 0, 1, 1], [], []>} : vector<8x128xbf16>, vector<128x384xbf16>, vector<8x384xf32> -> vector<8x384xf32>
    %233 = vector.extract_strided_slice %230 {offsets = [0, 0], sizes = [8, 128], strides = [1, 1]} : vector<8x384xf32> to vector<8x128xf32>
    %234 = vector.extract_strided_slice %232 {offsets = [0, 0], sizes = [8, 128], strides = [1, 1]} : vector<8x384xf32> to vector<8x128xf32>
    %235 = arith.addf %233, %234 : vector<8x128xf32>
    %236 = arith.negf %235 : vector<8x128xf32>
    %237 = math.exp %236 : vector<8x128xf32>
    %cst_57 = arith.constant 1.000000e+00 : f32
    %238 = vector.broadcast %cst_57 : f32 to vector<8x128xf32>
    %239 = arith.addf %238, %237 : vector<8x128xf32>
    %240 = arith.divf %238, %239 : vector<8x128xf32>
    %241 = vector.extract_strided_slice %230 {offsets = [0, 128], sizes = [8, 128], strides = [1, 1]} : vector<8x384xf32> to vector<8x128xf32>
    %242 = vector.extract_strided_slice %232 {offsets = [0, 128], sizes = [8, 128], strides = [1, 1]} : vector<8x384xf32> to vector<8x128xf32>
    %243 = arith.addf %241, %242 : vector<8x128xf32>
    %244 = arith.negf %243 : vector<8x128xf32>
    %245 = math.exp %244 : vector<8x128xf32>
    %cst_58 = arith.constant 1.000000e+00 : f32
    %246 = vector.broadcast %cst_58 : f32 to vector<8x128xf32>
    %247 = arith.addf %246, %245 : vector<8x128xf32>
    %248 = arith.divf %246, %247 : vector<8x128xf32>
    %249 = vector.extract_strided_slice %230 {offsets = [0, 256], sizes = [8, 128], strides = [1, 1]} : vector<8x384xf32> to vector<8x128xf32>
    %250 = vector.extract_strided_slice %232 {offsets = [0, 256], sizes = [8, 128], strides = [1, 1]} : vector<8x384xf32> to vector<8x128xf32>
    %251 = vector.broadcast %4 : vector<1x128xf32> to vector<8x128xf32>
    %252 = arith.addf %250, %251 : vector<8x128xf32>
    %253 = arith.mulf %240, %252 : vector<8x128xf32>
    %254 = arith.addf %249, %253 : vector<8x128xf32>
    %255 = math.tanh %254 : vector<8x128xf32>
    %cst_59 = arith.constant 1.000000e+00 : f32
    %256 = vector.broadcast %cst_59 : f32 to vector<8x128xf32>
    %257 = arith.subf %256, %248 : vector<8x128xf32>
    %258 = arith.mulf %257, %255 : vector<8x128xf32>
    %259 = arith.mulf %248, %223 : vector<8x128xf32>
    %260 = arith.addf %258, %259 : vector<8x128xf32>
    %261 = arith.index_cast %c6_i32 : i32 to index
    %c0_60 = arith.constant 0 : index
    %c0_61 = arith.constant 0 : index
    %262 = vector.load %arg5[%261, %c0_60, %c0_61] : memref<16x8x128xf32, #tpu.memory_space<vmem>>, vector<1x8x128xf32>
    %263 = vector.shape_cast %262 : vector<1x8x128xf32> to vector<8x128xf32>
    %264 = vector.shape_cast %260 : vector<8x128xf32> to vector<1x8x128xf32>
    tpu.vector_store %arg5[%261, %c0_60, %c0_61], %264 {strides = array<i32>} : memref<16x8x128xf32, #tpu.memory_space<vmem>>, vector<1x8x128xf32>,
    %c7_i32 = arith.constant 7 : i32
    %265 = arith.index_cast %c7_i32 : i32 to index
    %c0_62 = arith.constant 0 : index
    %c0_63 = arith.constant 0 : index
    %266 = vector.load %arg1[%265, %c0_62, %c0_63] : memref<16x8x384xf32, #tpu.memory_space<vmem>>, vector<1x8x384xf32>
    %267 = vector.shape_cast %266 : vector<1x8x384xf32> to vector<8x384xf32>
    %268 = arith.truncf %260 : vector<8x128xf32> to vector<8x128xbf16>
    %cst_64 = arith.constant dense<0.000000e+00> : vector<8x384xf32>
    %269 = tpu.matmul %268, %3, %cst_64 {dimension_numbers = #tpu.dot_dimension_numbers<[1], [0], [0], [1], [0, 0, 1, 1], [], []>} : vector<8x128xbf16>, vector<128x384xbf16>, vector<8x384xf32> -> vector<8x384xf32>
    %270 = vector.extract_strided_slice %267 {offsets = [0, 0], sizes = [8, 128], strides = [1, 1]} : vector<8x384xf32> to vector<8x128xf32>
    %271 = vector.extract_strided_slice %269 {offsets = [0, 0], sizes = [8, 128], strides = [1, 1]} : vector<8x384xf32> to vector<8x128xf32>
    %272 = arith.addf %270, %271 : vector<8x128xf32>
    %273 = arith.negf %272 : vector<8x128xf32>
    %274 = math.exp %273 : vector<8x128xf32>
    %cst_65 = arith.constant 1.000000e+00 : f32
    %275 = vector.broadcast %cst_65 : f32 to vector<8x128xf32>
    %276 = arith.addf %275, %274 : vector<8x128xf32>
    %277 = arith.divf %275, %276 : vector<8x128xf32>
    %278 = vector.extract_strided_slice %267 {offsets = [0, 128], sizes = [8, 128], strides = [1, 1]} : vector<8x384xf32> to vector<8x128xf32>
    %279 = vector.extract_strided_slice %269 {offsets = [0, 128], sizes = [8, 128], strides = [1, 1]} : vector<8x384xf32> to vector<8x128xf32>
    %280 = arith.addf %278, %279 : vector<8x128xf32>
    %281 = arith.negf %280 : vector<8x128xf32>
    %282 = math.exp %281 : vector<8x128xf32>
    %cst_66 = arith.constant 1.000000e+00 : f32
    %283 = vector.broadcast %cst_66 : f32 to vector<8x128xf32>
    %284 = arith.addf %283, %282 : vector<8x128xf32>
    %285 = arith.divf %283, %284 : vector<8x128xf32>
    %286 = vector.extract_strided_slice %267 {offsets = [0, 256], sizes = [8, 128], strides = [1, 1]} : vector<8x384xf32> to vector<8x128xf32>
    %287 = vector.extract_strided_slice %269 {offsets = [0, 256], sizes = [8, 128], strides = [1, 1]} : vector<8x384xf32> to vector<8x128xf32>
    %288 = vector.broadcast %4 : vector<1x128xf32> to vector<8x128xf32>
    %289 = arith.addf %287, %288 : vector<8x128xf32>
    %290 = arith.mulf %277, %289 : vector<8x128xf32>
    %291 = arith.addf %286, %290 : vector<8x128xf32>
    %292 = math.tanh %291 : vector<8x128xf32>
    %cst_67 = arith.constant 1.000000e+00 : f32
    %293 = vector.broadcast %cst_67 : f32 to vector<8x128xf32>
    %294 = arith.subf %293, %285 : vector<8x128xf32>
    %295 = arith.mulf %294, %292 : vector<8x128xf32>
    %296 = arith.mulf %285, %260 : vector<8x128xf32>
    %297 = arith.addf %295, %296 : vector<8x128xf32>
    %298 = arith.index_cast %c7_i32 : i32 to index
    %c0_68 = arith.constant 0 : index
    %c0_69 = arith.constant 0 : index
    %299 = vector.load %arg5[%298, %c0_68, %c0_69] : memref<16x8x128xf32, #tpu.memory_space<vmem>>, vector<1x8x128xf32>
    %300 = vector.shape_cast %299 : vector<1x8x128xf32> to vector<8x128xf32>
    %301 = vector.shape_cast %297 : vector<8x128xf32> to vector<1x8x128xf32>
    tpu.vector_store %arg5[%298, %c0_68, %c0_69], %301 {strides = array<i32>} : memref<16x8x128xf32, #tpu.memory_space<vmem>>, vector<1x8x128xf32>,
    %c8_i32 = arith.constant 8 : i32
    %302 = arith.index_cast %c8_i32 : i32 to index
    %c0_70 = arith.constant 0 : index
    %c0_71 = arith.constant 0 : index
    %303 = vector.load %arg1[%302, %c0_70, %c0_71] : memref<16x8x384xf32, #tpu.memory_space<vmem>>, vector<1x8x384xf32>
    %304 = vector.shape_cast %303 : vector<1x8x384xf32> to vector<8x384xf32>
    %305 = arith.truncf %297 : vector<8x128xf32> to vector<8x128xbf16>
    %cst_72 = arith.constant dense<0.000000e+00> : vector<8x384xf32>
    %306 = tpu.matmul %305, %3, %cst_72 {dimension_numbers = #tpu.dot_dimension_numbers<[1], [0], [0], [1], [0, 0, 1, 1], [], []>} : vector<8x128xbf16>, vector<128x384xbf16>, vector<8x384xf32> -> vector<8x384xf32>
    %307 = vector.extract_strided_slice %304 {offsets = [0, 0], sizes = [8, 128], strides = [1, 1]} : vector<8x384xf32> to vector<8x128xf32>
    %308 = vector.extract_strided_slice %306 {offsets = [0, 0], sizes = [8, 128], strides = [1, 1]} : vector<8x384xf32> to vector<8x128xf32>
    %309 = arith.addf %307, %308 : vector<8x128xf32>
    %310 = arith.negf %309 : vector<8x128xf32>
    %311 = math.exp %310 : vector<8x128xf32>
    %cst_73 = arith.constant 1.000000e+00 : f32
    %312 = vector.broadcast %cst_73 : f32 to vector<8x128xf32>
    %313 = arith.addf %312, %311 : vector<8x128xf32>
    %314 = arith.divf %312, %313 : vector<8x128xf32>
    %315 = vector.extract_strided_slice %304 {offsets = [0, 128], sizes = [8, 128], strides = [1, 1]} : vector<8x384xf32> to vector<8x128xf32>
    %316 = vector.extract_strided_slice %306 {offsets = [0, 128], sizes = [8, 128], strides = [1, 1]} : vector<8x384xf32> to vector<8x128xf32>
    %317 = arith.addf %315, %316 : vector<8x128xf32>
    %318 = arith.negf %317 : vector<8x128xf32>
    %319 = math.exp %318 : vector<8x128xf32>
    %cst_74 = arith.constant 1.000000e+00 : f32
    %320 = vector.broadcast %cst_74 : f32 to vector<8x128xf32>
    %321 = arith.addf %320, %319 : vector<8x128xf32>
    %322 = arith.divf %320, %321 : vector<8x128xf32>
    %323 = vector.extract_strided_slice %304 {offsets = [0, 256], sizes = [8, 128], strides = [1, 1]} : vector<8x384xf32> to vector<8x128xf32>
    %324 = vector.extract_strided_slice %306 {offsets = [0, 256], sizes = [8, 128], strides = [1, 1]} : vector<8x384xf32> to vector<8x128xf32>
    %325 = vector.broadcast %4 : vector<1x128xf32> to vector<8x128xf32>
    %326 = arith.addf %324, %325 : vector<8x128xf32>
    %327 = arith.mulf %314, %326 : vector<8x128xf32>
    %328 = arith.addf %323, %327 : vector<8x128xf32>
    %329 = math.tanh %328 : vector<8x128xf32>
    %cst_75 = arith.constant 1.000000e+00 : f32
    %330 = vector.broadcast %cst_75 : f32 to vector<8x128xf32>
    %331 = arith.subf %330, %322 : vector<8x128xf32>
    %332 = arith.mulf %331, %329 : vector<8x128xf32>
    %333 = arith.mulf %322, %297 : vector<8x128xf32>
    %334 = arith.addf %332, %333 : vector<8x128xf32>
    %335 = arith.index_cast %c8_i32 : i32 to index
    %c0_76 = arith.constant 0 : index
    %c0_77 = arith.constant 0 : index
    %336 = vector.load %arg5[%335, %c0_76, %c0_77] : memref<16x8x128xf32, #tpu.memory_space<vmem>>, vector<1x8x128xf32>
    %337 = vector.shape_cast %336 : vector<1x8x128xf32> to vector<8x128xf32>
    %338 = vector.shape_cast %334 : vector<8x128xf32> to vector<1x8x128xf32>
    tpu.vector_store %arg5[%335, %c0_76, %c0_77], %338 {strides = array<i32>} : memref<16x8x128xf32, #tpu.memory_space<vmem>>, vector<1x8x128xf32>,
    %c9_i32 = arith.constant 9 : i32
    %339 = arith.index_cast %c9_i32 : i32 to index
    %c0_78 = arith.constant 0 : index
    %c0_79 = arith.constant 0 : index
    %340 = vector.load %arg1[%339, %c0_78, %c0_79] : memref<16x8x384xf32, #tpu.memory_space<vmem>>, vector<1x8x384xf32>
    %341 = vector.shape_cast %340 : vector<1x8x384xf32> to vector<8x384xf32>
    %342 = arith.truncf %334 : vector<8x128xf32> to vector<8x128xbf16>
    %cst_80 = arith.constant dense<0.000000e+00> : vector<8x384xf32>
    %343 = tpu.matmul %342, %3, %cst_80 {dimension_numbers = #tpu.dot_dimension_numbers<[1], [0], [0], [1], [0, 0, 1, 1], [], []>} : vector<8x128xbf16>, vector<128x384xbf16>, vector<8x384xf32> -> vector<8x384xf32>
    %344 = vector.extract_strided_slice %341 {offsets = [0, 0], sizes = [8, 128], strides = [1, 1]} : vector<8x384xf32> to vector<8x128xf32>
    %345 = vector.extract_strided_slice %343 {offsets = [0, 0], sizes = [8, 128], strides = [1, 1]} : vector<8x384xf32> to vector<8x128xf32>
    %346 = arith.addf %344, %345 : vector<8x128xf32>
    %347 = arith.negf %346 : vector<8x128xf32>
    %348 = math.exp %347 : vector<8x128xf32>
    %cst_81 = arith.constant 1.000000e+00 : f32
    %349 = vector.broadcast %cst_81 : f32 to vector<8x128xf32>
    %350 = arith.addf %349, %348 : vector<8x128xf32>
    %351 = arith.divf %349, %350 : vector<8x128xf32>
    %352 = vector.extract_strided_slice %341 {offsets = [0, 128], sizes = [8, 128], strides = [1, 1]} : vector<8x384xf32> to vector<8x128xf32>
    %353 = vector.extract_strided_slice %343 {offsets = [0, 128], sizes = [8, 128], strides = [1, 1]} : vector<8x384xf32> to vector<8x128xf32>
    %354 = arith.addf %352, %353 : vector<8x128xf32>
    %355 = arith.negf %354 : vector<8x128xf32>
    %356 = math.exp %355 : vector<8x128xf32>
    %cst_82 = arith.constant 1.000000e+00 : f32
    %357 = vector.broadcast %cst_82 : f32 to vector<8x128xf32>
    %358 = arith.addf %357, %356 : vector<8x128xf32>
    %359 = arith.divf %357, %358 : vector<8x128xf32>
    %360 = vector.extract_strided_slice %341 {offsets = [0, 256], sizes = [8, 128], strides = [1, 1]} : vector<8x384xf32> to vector<8x128xf32>
    %361 = vector.extract_strided_slice %343 {offsets = [0, 256], sizes = [8, 128], strides = [1, 1]} : vector<8x384xf32> to vector<8x128xf32>
    %362 = vector.broadcast %4 : vector<1x128xf32> to vector<8x128xf32>
    %363 = arith.addf %361, %362 : vector<8x128xf32>
    %364 = arith.mulf %351, %363 : vector<8x128xf32>
    %365 = arith.addf %360, %364 : vector<8x128xf32>
    %366 = math.tanh %365 : vector<8x128xf32>
    %cst_83 = arith.constant 1.000000e+00 : f32
    %367 = vector.broadcast %cst_83 : f32 to vector<8x128xf32>
    %368 = arith.subf %367, %359 : vector<8x128xf32>
    %369 = arith.mulf %368, %366 : vector<8x128xf32>
    %370 = arith.mulf %359, %334 : vector<8x128xf32>
    %371 = arith.addf %369, %370 : vector<8x128xf32>
    %372 = arith.index_cast %c9_i32 : i32 to index
    %c0_84 = arith.constant 0 : index
    %c0_85 = arith.constant 0 : index
    %373 = vector.load %arg5[%372, %c0_84, %c0_85] : memref<16x8x128xf32, #tpu.memory_space<vmem>>, vector<1x8x128xf32>
    %374 = vector.shape_cast %373 : vector<1x8x128xf32> to vector<8x128xf32>
    %375 = vector.shape_cast %371 : vector<8x128xf32> to vector<1x8x128xf32>
    tpu.vector_store %arg5[%372, %c0_84, %c0_85], %375 {strides = array<i32>} : memref<16x8x128xf32, #tpu.memory_space<vmem>>, vector<1x8x128xf32>,
    %c10_i32 = arith.constant 10 : i32
    %376 = arith.index_cast %c10_i32 : i32 to index
    %c0_86 = arith.constant 0 : index
    %c0_87 = arith.constant 0 : index
    %377 = vector.load %arg1[%376, %c0_86, %c0_87] : memref<16x8x384xf32, #tpu.memory_space<vmem>>, vector<1x8x384xf32>
    %378 = vector.shape_cast %377 : vector<1x8x384xf32> to vector<8x384xf32>
    %379 = arith.truncf %371 : vector<8x128xf32> to vector<8x128xbf16>
    %cst_88 = arith.constant dense<0.000000e+00> : vector<8x384xf32>
    %380 = tpu.matmul %379, %3, %cst_88 {dimension_numbers = #tpu.dot_dimension_numbers<[1], [0], [0], [1], [0, 0, 1, 1], [], []>} : vector<8x128xbf16>, vector<128x384xbf16>, vector<8x384xf32> -> vector<8x384xf32>
    %381 = vector.extract_strided_slice %378 {offsets = [0, 0], sizes = [8, 128], strides = [1, 1]} : vector<8x384xf32> to vector<8x128xf32>
    %382 = vector.extract_strided_slice %380 {offsets = [0, 0], sizes = [8, 128], strides = [1, 1]} : vector<8x384xf32> to vector<8x128xf32>
    %383 = arith.addf %381, %382 : vector<8x128xf32>
    %384 = arith.negf %383 : vector<8x128xf32>
    %385 = math.exp %384 : vector<8x128xf32>
    %cst_89 = arith.constant 1.000000e+00 : f32
    %386 = vector.broadcast %cst_89 : f32 to vector<8x128xf32>
    %387 = arith.addf %386, %385 : vector<8x128xf32>
    %388 = arith.divf %386, %387 : vector<8x128xf32>
    %389 = vector.extract_strided_slice %378 {offsets = [0, 128], sizes = [8, 128], strides = [1, 1]} : vector<8x384xf32> to vector<8x128xf32>
    %390 = vector.extract_strided_slice %380 {offsets = [0, 128], sizes = [8, 128], strides = [1, 1]} : vector<8x384xf32> to vector<8x128xf32>
    %391 = arith.addf %389, %390 : vector<8x128xf32>
    %392 = arith.negf %391 : vector<8x128xf32>
    %393 = math.exp %392 : vector<8x128xf32>
    %cst_90 = arith.constant 1.000000e+00 : f32
    %394 = vector.broadcast %cst_90 : f32 to vector<8x128xf32>
    %395 = arith.addf %394, %393 : vector<8x128xf32>
    %396 = arith.divf %394, %395 : vector<8x128xf32>
    %397 = vector.extract_strided_slice %378 {offsets = [0, 256], sizes = [8, 128], strides = [1, 1]} : vector<8x384xf32> to vector<8x128xf32>
    %398 = vector.extract_strided_slice %380 {offsets = [0, 256], sizes = [8, 128], strides = [1, 1]} : vector<8x384xf32> to vector<8x128xf32>
    %399 = vector.broadcast %4 : vector<1x128xf32> to vector<8x128xf32>
    %400 = arith.addf %398, %399 : vector<8x128xf32>
    %401 = arith.mulf %388, %400 : vector<8x128xf32>
    %402 = arith.addf %397, %401 : vector<8x128xf32>
    %403 = math.tanh %402 : vector<8x128xf32>
    %cst_91 = arith.constant 1.000000e+00 : f32
    %404 = vector.broadcast %cst_91 : f32 to vector<8x128xf32>
    %405 = arith.subf %404, %396 : vector<8x128xf32>
    %406 = arith.mulf %405, %403 : vector<8x128xf32>
    %407 = arith.mulf %396, %371 : vector<8x128xf32>
    %408 = arith.addf %406, %407 : vector<8x128xf32>
    %409 = arith.index_cast %c10_i32 : i32 to index
    %c0_92 = arith.constant 0 : index
    %c0_93 = arith.constant 0 : index
    %410 = vector.load %arg5[%409, %c0_92, %c0_93] : memref<16x8x128xf32, #tpu.memory_space<vmem>>, vector<1x8x128xf32>
    %411 = vector.shape_cast %410 : vector<1x8x128xf32> to vector<8x128xf32>
    %412 = vector.shape_cast %408 : vector<8x128xf32> to vector<1x8x128xf32>
    tpu.vector_store %arg5[%409, %c0_92, %c0_93], %412 {strides = array<i32>} : memref<16x8x128xf32, #tpu.memory_space<vmem>>, vector<1x8x128xf32>,
    %c11_i32 = arith.constant 11 : i32
    %413 = arith.index_cast %c11_i32 : i32 to index
    %c0_94 = arith.constant 0 : index
    %c0_95 = arith.constant 0 : index
    %414 = vector.load %arg1[%413, %c0_94, %c0_95] : memref<16x8x384xf32, #tpu.memory_space<vmem>>, vector<1x8x384xf32>
    %415 = vector.shape_cast %414 : vector<1x8x384xf32> to vector<8x384xf32>
    %416 = arith.truncf %408 : vector<8x128xf32> to vector<8x128xbf16>
    %cst_96 = arith.constant dense<0.000000e+00> : vector<8x384xf32>
    %417 = tpu.matmul %416, %3, %cst_96 {dimension_numbers = #tpu.dot_dimension_numbers<[1], [0], [0], [1], [0, 0, 1, 1], [], []>} : vector<8x128xbf16>, vector<128x384xbf16>, vector<8x384xf32> -> vector<8x384xf32>
    %418 = vector.extract_strided_slice %415 {offsets = [0, 0], sizes = [8, 128], strides = [1, 1]} : vector<8x384xf32> to vector<8x128xf32>
    %419 = vector.extract_strided_slice %417 {offsets = [0, 0], sizes = [8, 128], strides = [1, 1]} : vector<8x384xf32> to vector<8x128xf32>
    %420 = arith.addf %418, %419 : vector<8x128xf32>
    %421 = arith.negf %420 : vector<8x128xf32>
    %422 = math.exp %421 : vector<8x128xf32>
    %cst_97 = arith.constant 1.000000e+00 : f32
    %423 = vector.broadcast %cst_97 : f32 to vector<8x128xf32>
    %424 = arith.addf %423, %422 : vector<8x128xf32>
    %425 = arith.divf %423, %424 : vector<8x128xf32>
    %426 = vector.extract_strided_slice %415 {offsets = [0, 128], sizes = [8, 128], strides = [1, 1]} : vector<8x384xf32> to vector<8x128xf32>
    %427 = vector.extract_strided_slice %417 {offsets = [0, 128], sizes = [8, 128], strides = [1, 1]} : vector<8x384xf32> to vector<8x128xf32>
    %428 = arith.addf %426, %427 : vector<8x128xf32>
    %429 = arith.negf %428 : vector<8x128xf32>
    %430 = math.exp %429 : vector<8x128xf32>
    %cst_98 = arith.constant 1.000000e+00 : f32
    %431 = vector.broadcast %cst_98 : f32 to vector<8x128xf32>
    %432 = arith.addf %431, %430 : vector<8x128xf32>
    %433 = arith.divf %431, %432 : vector<8x128xf32>
    %434 = vector.extract_strided_slice %415 {offsets = [0, 256], sizes = [8, 128], strides = [1, 1]} : vector<8x384xf32> to vector<8x128xf32>
    %435 = vector.extract_strided_slice %417 {offsets = [0, 256], sizes = [8, 128], strides = [1, 1]} : vector<8x384xf32> to vector<8x128xf32>
    %436 = vector.broadcast %4 : vector<1x128xf32> to vector<8x128xf32>
    %437 = arith.addf %435, %436 : vector<8x128xf32>
    %438 = arith.mulf %425, %437 : vector<8x128xf32>
    %439 = arith.addf %434, %438 : vector<8x128xf32>
    %440 = math.tanh %439 : vector<8x128xf32>
    %cst_99 = arith.constant 1.000000e+00 : f32
    %441 = vector.broadcast %cst_99 : f32 to vector<8x128xf32>
    %442 = arith.subf %441, %433 : vector<8x128xf32>
    %443 = arith.mulf %442, %440 : vector<8x128xf32>
    %444 = arith.mulf %433, %408 : vector<8x128xf32>
    %445 = arith.addf %443, %444 : vector<8x128xf32>
    %446 = arith.index_cast %c11_i32 : i32 to index
    %c0_100 = arith.constant 0 : index
    %c0_101 = arith.constant 0 : index
    %447 = vector.load %arg5[%446, %c0_100, %c0_101] : memref<16x8x128xf32, #tpu.memory_space<vmem>>, vector<1x8x128xf32>
    %448 = vector.shape_cast %447 : vector<1x8x128xf32> to vector<8x128xf32>
    %449 = vector.shape_cast %445 : vector<8x128xf32> to vector<1x8x128xf32>
    tpu.vector_store %arg5[%446, %c0_100, %c0_101], %449 {strides = array<i32>} : memref<16x8x128xf32, #tpu.memory_space<vmem>>, vector<1x8x128xf32>,
    %c12_i32 = arith.constant 12 : i32
    %450 = arith.index_cast %c12_i32 : i32 to index
    %c0_102 = arith.constant 0 : index
    %c0_103 = arith.constant 0 : index
    %451 = vector.load %arg1[%450, %c0_102, %c0_103] : memref<16x8x384xf32, #tpu.memory_space<vmem>>, vector<1x8x384xf32>
    %452 = vector.shape_cast %451 : vector<1x8x384xf32> to vector<8x384xf32>
    %453 = arith.truncf %445 : vector<8x128xf32> to vector<8x128xbf16>
    %cst_104 = arith.constant dense<0.000000e+00> : vector<8x384xf32>
    %454 = tpu.matmul %453, %3, %cst_104 {dimension_numbers = #tpu.dot_dimension_numbers<[1], [0], [0], [1], [0, 0, 1, 1], [], []>} : vector<8x128xbf16>, vector<128x384xbf16>, vector<8x384xf32> -> vector<8x384xf32>
    %455 = vector.extract_strided_slice %452 {offsets = [0, 0], sizes = [8, 128], strides = [1, 1]} : vector<8x384xf32> to vector<8x128xf32>
    %456 = vector.extract_strided_slice %454 {offsets = [0, 0], sizes = [8, 128], strides = [1, 1]} : vector<8x384xf32> to vector<8x128xf32>
    %457 = arith.addf %455, %456 : vector<8x128xf32>
    %458 = arith.negf %457 : vector<8x128xf32>
    %459 = math.exp %458 : vector<8x128xf32>
    %cst_105 = arith.constant 1.000000e+00 : f32
    %460 = vector.broadcast %cst_105 : f32 to vector<8x128xf32>
    %461 = arith.addf %460, %459 : vector<8x128xf32>
    %462 = arith.divf %460, %461 : vector<8x128xf32>
    %463 = vector.extract_strided_slice %452 {offsets = [0, 128], sizes = [8, 128], strides = [1, 1]} : vector<8x384xf32> to vector<8x128xf32>
    %464 = vector.extract_strided_slice %454 {offsets = [0, 128], sizes = [8, 128], strides = [1, 1]} : vector<8x384xf32> to vector<8x128xf32>
    %465 = arith.addf %463, %464 : vector<8x128xf32>
    %466 = arith.negf %465 : vector<8x128xf32>
    %467 = math.exp %466 : vector<8x128xf32>
    %cst_106 = arith.constant 1.000000e+00 : f32
    %468 = vector.broadcast %cst_106 : f32 to vector<8x128xf32>
    %469 = arith.addf %468, %467 : vector<8x128xf32>
    %470 = arith.divf %468, %469 : vector<8x128xf32>
    %471 = vector.extract_strided_slice %452 {offsets = [0, 256], sizes = [8, 128], strides = [1, 1]} : vector<8x384xf32> to vector<8x128xf32>
    %472 = vector.extract_strided_slice %454 {offsets = [0, 256], sizes = [8, 128], strides = [1, 1]} : vector<8x384xf32> to vector<8x128xf32>
    %473 = vector.broadcast %4 : vector<1x128xf32> to vector<8x128xf32>
    %474 = arith.addf %472, %473 : vector<8x128xf32>
    %475 = arith.mulf %462, %474 : vector<8x128xf32>
    %476 = arith.addf %471, %475 : vector<8x128xf32>
    %477 = math.tanh %476 : vector<8x128xf32>
    %cst_107 = arith.constant 1.000000e+00 : f32
    %478 = vector.broadcast %cst_107 : f32 to vector<8x128xf32>
    %479 = arith.subf %478, %470 : vector<8x128xf32>
    %480 = arith.mulf %479, %477 : vector<8x128xf32>
    %481 = arith.mulf %470, %445 : vector<8x128xf32>
    %482 = arith.addf %480, %481 : vector<8x128xf32>
    %483 = arith.index_cast %c12_i32 : i32 to index
    %c0_108 = arith.constant 0 : index
    %c0_109 = arith.constant 0 : index
    %484 = vector.load %arg5[%483, %c0_108, %c0_109] : memref<16x8x128xf32, #tpu.memory_space<vmem>>, vector<1x8x128xf32>
    %485 = vector.shape_cast %484 : vector<1x8x128xf32> to vector<8x128xf32>
    %486 = vector.shape_cast %482 : vector<8x128xf32> to vector<1x8x128xf32>
    tpu.vector_store %arg5[%483, %c0_108, %c0_109], %486 {strides = array<i32>} : memref<16x8x128xf32, #tpu.memory_space<vmem>>, vector<1x8x128xf32>,
    %c13_i32 = arith.constant 13 : i32
    %487 = arith.index_cast %c13_i32 : i32 to index
    %c0_110 = arith.constant 0 : index
    %c0_111 = arith.constant 0 : index
    %488 = vector.load %arg1[%487, %c0_110, %c0_111] : memref<16x8x384xf32, #tpu.memory_space<vmem>>, vector<1x8x384xf32>
    %489 = vector.shape_cast %488 : vector<1x8x384xf32> to vector<8x384xf32>
    %490 = arith.truncf %482 : vector<8x128xf32> to vector<8x128xbf16>
    %cst_112 = arith.constant dense<0.000000e+00> : vector<8x384xf32>
    %491 = tpu.matmul %490, %3, %cst_112 {dimension_numbers = #tpu.dot_dimension_numbers<[1], [0], [0], [1], [0, 0, 1, 1], [], []>} : vector<8x128xbf16>, vector<128x384xbf16>, vector<8x384xf32> -> vector<8x384xf32>
    %492 = vector.extract_strided_slice %489 {offsets = [0, 0], sizes = [8, 128], strides = [1, 1]} : vector<8x384xf32> to vector<8x128xf32>
    %493 = vector.extract_strided_slice %491 {offsets = [0, 0], sizes = [8, 128], strides = [1, 1]} : vector<8x384xf32> to vector<8x128xf32>
    %494 = arith.addf %492, %493 : vector<8x128xf32>
    %495 = arith.negf %494 : vector<8x128xf32>
    %496 = math.exp %495 : vector<8x128xf32>
    %cst_113 = arith.constant 1.000000e+00 : f32
    %497 = vector.broadcast %cst_113 : f32 to vector<8x128xf32>
    %498 = arith.addf %497, %496 : vector<8x128xf32>
    %499 = arith.divf %497, %498 : vector<8x128xf32>
    %500 = vector.extract_strided_slice %489 {offsets = [0, 128], sizes = [8, 128], strides = [1, 1]} : vector<8x384xf32> to vector<8x128xf32>
    %501 = vector.extract_strided_slice %491 {offsets = [0, 128], sizes = [8, 128], strides = [1, 1]} : vector<8x384xf32> to vector<8x128xf32>
    %502 = arith.addf %500, %501 : vector<8x128xf32>
    %503 = arith.negf %502 : vector<8x128xf32>
    %504 = math.exp %503 : vector<8x128xf32>
    %cst_114 = arith.constant 1.000000e+00 : f32
    %505 = vector.broadcast %cst_114 : f32 to vector<8x128xf32>
    %506 = arith.addf %505, %504 : vector<8x128xf32>
    %507 = arith.divf %505, %506 : vector<8x128xf32>
    %508 = vector.extract_strided_slice %489 {offsets = [0, 256], sizes = [8, 128], strides = [1, 1]} : vector<8x384xf32> to vector<8x128xf32>
    %509 = vector.extract_strided_slice %491 {offsets = [0, 256], sizes = [8, 128], strides = [1, 1]} : vector<8x384xf32> to vector<8x128xf32>
    %510 = vector.broadcast %4 : vector<1x128xf32> to vector<8x128xf32>
    %511 = arith.addf %509, %510 : vector<8x128xf32>
    %512 = arith.mulf %499, %511 : vector<8x128xf32>
    %513 = arith.addf %508, %512 : vector<8x128xf32>
    %514 = math.tanh %513 : vector<8x128xf32>
    %cst_115 = arith.constant 1.000000e+00 : f32
    %515 = vector.broadcast %cst_115 : f32 to vector<8x128xf32>
    %516 = arith.subf %515, %507 : vector<8x128xf32>
    %517 = arith.mulf %516, %514 : vector<8x128xf32>
    %518 = arith.mulf %507, %482 : vector<8x128xf32>
    %519 = arith.addf %517, %518 : vector<8x128xf32>
    %520 = arith.index_cast %c13_i32 : i32 to index
    %c0_116 = arith.constant 0 : index
    %c0_117 = arith.constant 0 : index
    %521 = vector.load %arg5[%520, %c0_116, %c0_117] : memref<16x8x128xf32, #tpu.memory_space<vmem>>, vector<1x8x128xf32>
    %522 = vector.shape_cast %521 : vector<1x8x128xf32> to vector<8x128xf32>
    %523 = vector.shape_cast %519 : vector<8x128xf32> to vector<1x8x128xf32>
    tpu.vector_store %arg5[%520, %c0_116, %c0_117], %523 {strides = array<i32>} : memref<16x8x128xf32, #tpu.memory_space<vmem>>, vector<1x8x128xf32>,
    %c14_i32 = arith.constant 14 : i32
    %524 = arith.index_cast %c14_i32 : i32 to index
    %c0_118 = arith.constant 0 : index
    %c0_119 = arith.constant 0 : index
    %525 = vector.load %arg1[%524, %c0_118, %c0_119] : memref<16x8x384xf32, #tpu.memory_space<vmem>>, vector<1x8x384xf32>
    %526 = vector.shape_cast %525 : vector<1x8x384xf32> to vector<8x384xf32>
    %527 = arith.truncf %519 : vector<8x128xf32> to vector<8x128xbf16>
    %cst_120 = arith.constant dense<0.000000e+00> : vector<8x384xf32>
    %528 = tpu.matmul %527, %3, %cst_120 {dimension_numbers = #tpu.dot_dimension_numbers<[1], [0], [0], [1], [0, 0, 1, 1], [], []>} : vector<8x128xbf16>, vector<128x384xbf16>, vector<8x384xf32> -> vector<8x384xf32>
    %529 = vector.extract_strided_slice %526 {offsets = [0, 0], sizes = [8, 128], strides = [1, 1]} : vector<8x384xf32> to vector<8x128xf32>
    %530 = vector.extract_strided_slice %528 {offsets = [0, 0], sizes = [8, 128], strides = [1, 1]} : vector<8x384xf32> to vector<8x128xf32>
    %531 = arith.addf %529, %530 : vector<8x128xf32>
    %532 = arith.negf %531 : vector<8x128xf32>
    %533 = math.exp %532 : vector<8x128xf32>
    %cst_121 = arith.constant 1.000000e+00 : f32
    %534 = vector.broadcast %cst_121 : f32 to vector<8x128xf32>
    %535 = arith.addf %534, %533 : vector<8x128xf32>
    %536 = arith.divf %534, %535 : vector<8x128xf32>
    %537 = vector.extract_strided_slice %526 {offsets = [0, 128], sizes = [8, 128], strides = [1, 1]} : vector<8x384xf32> to vector<8x128xf32>
    %538 = vector.extract_strided_slice %528 {offsets = [0, 128], sizes = [8, 128], strides = [1, 1]} : vector<8x384xf32> to vector<8x128xf32>
    %539 = arith.addf %537, %538 : vector<8x128xf32>
    %540 = arith.negf %539 : vector<8x128xf32>
    %541 = math.exp %540 : vector<8x128xf32>
    %cst_122 = arith.constant 1.000000e+00 : f32
    %542 = vector.broadcast %cst_122 : f32 to vector<8x128xf32>
    %543 = arith.addf %542, %541 : vector<8x128xf32>
    %544 = arith.divf %542, %543 : vector<8x128xf32>
    %545 = vector.extract_strided_slice %526 {offsets = [0, 256], sizes = [8, 128], strides = [1, 1]} : vector<8x384xf32> to vector<8x128xf32>
    %546 = vector.extract_strided_slice %528 {offsets = [0, 256], sizes = [8, 128], strides = [1, 1]} : vector<8x384xf32> to vector<8x128xf32>
    %547 = vector.broadcast %4 : vector<1x128xf32> to vector<8x128xf32>
    %548 = arith.addf %546, %547 : vector<8x128xf32>
    %549 = arith.mulf %536, %548 : vector<8x128xf32>
    %550 = arith.addf %545, %549 : vector<8x128xf32>
    %551 = math.tanh %550 : vector<8x128xf32>
    %cst_123 = arith.constant 1.000000e+00 : f32
    %552 = vector.broadcast %cst_123 : f32 to vector<8x128xf32>
    %553 = arith.subf %552, %544 : vector<8x128xf32>
    %554 = arith.mulf %553, %551 : vector<8x128xf32>
    %555 = arith.mulf %544, %519 : vector<8x128xf32>
    %556 = arith.addf %554, %555 : vector<8x128xf32>
    %557 = arith.index_cast %c14_i32 : i32 to index
    %c0_124 = arith.constant 0 : index
    %c0_125 = arith.constant 0 : index
    %558 = vector.load %arg5[%557, %c0_124, %c0_125] : memref<16x8x128xf32, #tpu.memory_space<vmem>>, vector<1x8x128xf32>
    %559 = vector.shape_cast %558 : vector<1x8x128xf32> to vector<8x128xf32>
    %560 = vector.shape_cast %556 : vector<8x128xf32> to vector<1x8x128xf32>
    tpu.vector_store %arg5[%557, %c0_124, %c0_125], %560 {strides = array<i32>} : memref<16x8x128xf32, #tpu.memory_space<vmem>>, vector<1x8x128xf32>,
    %c15_i32 = arith.constant 15 : i32
    %561 = arith.index_cast %c15_i32 : i32 to index
    %c0_126 = arith.constant 0 : index
    %c0_127 = arith.constant 0 : index
    %562 = vector.load %arg1[%561, %c0_126, %c0_127] : memref<16x8x384xf32, #tpu.memory_space<vmem>>, vector<1x8x384xf32>
    %563 = vector.shape_cast %562 : vector<1x8x384xf32> to vector<8x384xf32>
    %564 = arith.truncf %556 : vector<8x128xf32> to vector<8x128xbf16>
    %cst_128 = arith.constant dense<0.000000e+00> : vector<8x384xf32>
    %565 = tpu.matmul %564, %3, %cst_128 {dimension_numbers = #tpu.dot_dimension_numbers<[1], [0], [0], [1], [0, 0, 1, 1], [], []>} : vector<8x128xbf16>, vector<128x384xbf16>, vector<8x384xf32> -> vector<8x384xf32>
    %566 = vector.extract_strided_slice %563 {offsets = [0, 0], sizes = [8, 128], strides = [1, 1]} : vector<8x384xf32> to vector<8x128xf32>
    %567 = vector.extract_strided_slice %565 {offsets = [0, 0], sizes = [8, 128], strides = [1, 1]} : vector<8x384xf32> to vector<8x128xf32>
    %568 = arith.addf %566, %567 : vector<8x128xf32>
    %569 = arith.negf %568 : vector<8x128xf32>
    %570 = math.exp %569 : vector<8x128xf32>
    %cst_129 = arith.constant 1.000000e+00 : f32
    %571 = vector.broadcast %cst_129 : f32 to vector<8x128xf32>
    %572 = arith.addf %571, %570 : vector<8x128xf32>
    %573 = arith.divf %571, %572 : vector<8x128xf32>
    %574 = vector.extract_strided_slice %563 {offsets = [0, 128], sizes = [8, 128], strides = [1, 1]} : vector<8x384xf32> to vector<8x128xf32>
    %575 = vector.extract_strided_slice %565 {offsets = [0, 128], sizes = [8, 128], strides = [1, 1]} : vector<8x384xf32> to vector<8x128xf32>
    %576 = arith.addf %574, %575 : vector<8x128xf32>
    %577 = arith.negf %576 : vector<8x128xf32>
    %578 = math.exp %577 : vector<8x128xf32>
    %cst_130 = arith.constant 1.000000e+00 : f32
    %579 = vector.broadcast %cst_130 : f32 to vector<8x128xf32>
    %580 = arith.addf %579, %578 : vector<8x128xf32>
    %581 = arith.divf %579, %580 : vector<8x128xf32>
    %582 = vector.extract_strided_slice %563 {offsets = [0, 256], sizes = [8, 128], strides = [1, 1]} : vector<8x384xf32> to vector<8x128xf32>
    %583 = vector.extract_strided_slice %565 {offsets = [0, 256], sizes = [8, 128], strides = [1, 1]} : vector<8x384xf32> to vector<8x128xf32>
    %584 = vector.broadcast %4 : vector<1x128xf32> to vector<8x128xf32>
    %585 = arith.addf %583, %584 : vector<8x128xf32>
    %586 = arith.mulf %573, %585 : vector<8x128xf32>
    %587 = arith.addf %582, %586 : vector<8x128xf32>
    %588 = math.tanh %587 : vector<8x128xf32>
    %cst_131 = arith.constant 1.000000e+00 : f32
    %589 = vector.broadcast %cst_131 : f32 to vector<8x128xf32>
    %590 = arith.subf %589, %581 : vector<8x128xf32>
    %591 = arith.mulf %590, %588 : vector<8x128xf32>
    %592 = arith.mulf %581, %556 : vector<8x128xf32>
    %593 = arith.addf %591, %592 : vector<8x128xf32>
    %594 = arith.index_cast %c15_i32 : i32 to index
    %c0_132 = arith.constant 0 : index
    %c0_133 = arith.constant 0 : index
    %595 = vector.load %arg5[%594, %c0_132, %c0_133] : memref<16x8x128xf32, #tpu.memory_space<vmem>>, vector<1x8x128xf32>
    %596 = vector.shape_cast %595 : vector<1x8x128xf32> to vector<8x128xf32>
    %597 = vector.shape_cast %593 : vector<8x128xf32> to vector<1x8x128xf32>
    tpu.vector_store %arg5[%594, %c0_132, %c0_133], %597 {strides = array<i32>} : memref<16x8x128xf32, #tpu.memory_space<vmem>>, vector<1x8x128xf32>,
    %c16_i32 = arith.constant 16 : i32
    %c0_134 = arith.constant 0 : index
    %c0_135 = arith.constant 0 : index
    %598 = vector.load %arg7[%c0_134, %c0_135] : memref<8x128xf32, #tpu.memory_space<vmem>>, vector<8x128xf32>
    tpu.vector_store %arg7[%c0_134, %c0_135], %593 {strides = array<i32>} : memref<8x128xf32, #tpu.memory_space<vmem>>, vector<8x128xf32>,
    %c0_136 = arith.constant 0 : index
    %c0_137 = arith.constant 0 : index
    %599 = vector.load %arg6[%c0_136, %c0_137] : memref<8x128xf32, #tpu.memory_space<vmem>>, vector<8x128xf32>
    tpu.vector_store %arg6[%c0_136, %c0_137], %593 {strides = array<i32>} : memref<8x128xf32, #tpu.memory_space<vmem>>, vector<8x128xf32>,
    return
  }
  func.func @transform_0(%arg0: i32) -> (i32, i32, i32) {
    %c0_i32 = arith.constant 0 : i32
    %c0_i32_0 = arith.constant 0 : i32
    %c0_i32_1 = arith.constant 0 : i32
    return %arg0, %c0_i32, %c0_i32_0 : i32, i32, i32
  }
  func.func @transform_1(%arg0: i32) -> (i32, i32) {
    %c0_i32 = arith.constant 0 : i32
    %c0_i32_0 = arith.constant 0 : i32
    %c0_i32_1 = arith.constant 0 : i32
    return %c0_i32, %c0_i32_0 : i32, i32
  }
  func.func @transform_2(%arg0: i32) -> (i32, i32) {
    %c0_i32 = arith.constant 0 : i32
    %c0_i32_0 = arith.constant 0 : i32
    %c0_i32_1 = arith.constant 0 : i32
    return %c0_i32, %c0_i32_0 : i32, i32
  }
  func.func @transform_3(%arg0: i32) -> (i32, i32) {
    %c0_i32 = arith.constant 0 : i32
    %c0_i32_0 = arith.constant 0 : i32
    %c0_i32_1 = arith.constant 0 : i32
    return %c0_i32, %c0_i32_0 : i32, i32
  }
  func.func @transform_4(%arg0: i32) -> (i32, i32, i32) {
    %c0_i32 = arith.constant 0 : i32
    %c0_i32_0 = arith.constant 0 : i32
    %c0_i32_1 = arith.constant 0 : i32
    return %arg0, %c0_i32, %c0_i32_0 : i32, i32, i32
  }
  func.func @transform_5(%arg0: i32) -> (i32, i32) {
    %c0_i32 = arith.constant 0 : i32
    %c0_i32_0 = arith.constant 0 : i32
    %c0_i32_1 = arith.constant 0 : i32
    return %c0_i32, %c0_i32_0 : i32, i32
  }
}

module attributes {stable_mosaic.version = 11 : i64} {
  func.func @_gru_rec_kernel(%arg0: i32, %arg1: memref<16x8x384xf32, #tpu.memory_space<vmem>>, %arg2: memref<8x128xf32, #tpu.memory_space<vmem>>, %arg3: memref<128x384xbf16, #tpu.memory_space<vmem>>, %arg4: memref<1x128xf32, #tpu.memory_space<vmem>>, %arg5: memref<16x8x128xf32, #tpu.memory_space<vmem>>, %arg6: memref<8x128xf32, #tpu.memory_space<vmem>>, %arg7: memref<8x128xf32, #tpu.memory_space<vmem>>) attributes {dimension_semantics = [#tpu.dimension_semantics<arbitrary>], iteration_bounds = array<i64: 1>, scalar_prefetch = 0 : i64, scratch_operands = 1 : i64, tpu.core_type = #tpu.core_type<tc>, window_params = [{transform_indices = @transform_0, window_bounds = array<i64: 16, 8, 384>}, {pipeline_mode = #tpu.pipeline_mode<synchronous>, transform_indices = @transform_1, window_bounds = array<i64: 8, 128>}, {pipeline_mode = #tpu.pipeline_mode<synchronous>, transform_indices = @transform_2, window_bounds = array<i64: 128, 384>}, {pipeline_mode = #tpu.pipeline_mode<synchronous>, transform_indices = @transform_3, window_bounds = array<i64: 1, 128>}, {transform_indices = @transform_4, window_bounds = array<i64: 16, 8, 128>}, {pipeline_mode = #tpu.pipeline_mode<synchronous>, transform_indices = @transform_5, window_bounds = array<i64: 8, 128>}]} {
    %c0_i32 = arith.constant 0 : i32
    %0 = arith.cmpi eq, %arg0, %c0_i32 : i32
    %1 = arith.extui %0 : i1 to i32
    %c0_i32_0 = arith.constant 0 : i32
    %2 = arith.cmpi ne, %1, %c0_i32_0 : i32
    scf.if %2 {
      %c0_138 = arith.constant 0 : index
      %c0_139 = arith.constant 0 : index
      %600 = vector.load %arg2[%c0_138, %c0_139] : memref<8x128xf32, #tpu.memory_space<vmem>>, vector<8x128xf32>
      %c0_140 = arith.constant 0 : index
      %c0_141 = arith.constant 0 : index
      %601 = vector.load %arg7[%c0_140, %c0_141] : memref<8x128xf32, #tpu.memory_space<vmem>>, vector<8x128xf32>
      tpu.vector_store %arg7[%c0_140, %c0_141], %600 {strides = array<i32>} : memref<8x128xf32, #tpu.memory_space<vmem>>, vector<8x128xf32>,
    } else {
    }
    %c0 = arith.constant 0 : index
    %c0_1 = arith.constant 0 : index
    %3 = vector.load %arg3[%c0, %c0_1] : memref<128x384xbf16, #tpu.memory_space<vmem>>, vector<128x384xbf16>
    %c0_2 = arith.constant 0 : index
    %c0_3 = arith.constant 0 : index
    %4 = vector.load %arg4[%c0_2, %c0_3] : memref<1x128xf32, #tpu.memory_space<vmem>>, vector<1x128xf32>
    %c0_4 = arith.constant 0 : index
    %c0_5 = arith.constant 0 : index
    %5 = vector.load %arg7[%c0_4, %c0_5] : memref<8x128xf32, #tpu.memory_space<vmem>>, vector<8x128xf32>
    %c0_i32_6 = arith.constant 0 : i32
    %6 = arith.index_cast %c0_i32_6 : i32 to index
    %c0_7 = arith.constant 0 : index
    %c0_8 = arith.constant 0 : index
    %7 = vector.load %arg1[%6, %c0_7, %c0_8] : memref<16x8x384xf32, #tpu.memory_space<vmem>>, vector<1x8x384xf32>
    %8 = vector.shape_cast %7 : vector<1x8x384xf32> to vector<8x384xf32>
    %9 = arith.truncf %5 : vector<8x128xf32> to vector<8x128xbf16>
    %cst = arith.constant dense<0.000000e+00> : vector<8x384xf32>
    %10 = tpu.matmul %9, %3, %cst {dimension_numbers = #tpu.dot_dimension_numbers<[1], [0], [0], [1], [0, 0, 1, 1], [], []>} : vector<8x128xbf16>, vector<128x384xbf16>, vector<8x384xf32> -> vector<8x384xf32>
    %11 = vector.extract_strided_slice %8 {offsets = [0, 0], sizes = [8, 128], strides = [1, 1]} : vector<8x384xf32> to vector<8x128xf32>
    %12 = vector.extract_strided_slice %10 {offsets = [0, 0], sizes = [8, 128], strides = [1, 1]} : vector<8x384xf32> to vector<8x128xf32>
    %13 = arith.addf %11, %12 : vector<8x128xf32>
    %14 = arith.negf %13 : vector<8x128xf32>
    %15 = math.exp %14 : vector<8x128xf32>
    %cst_9 = arith.constant 1.000000e+00 : f32
    %16 = vector.broadcast %cst_9 : f32 to vector<8x128xf32>
    %17 = arith.addf %16, %15 : vector<8x128xf32>
    %18 = arith.divf %16, %17 : vector<8x128xf32>
    %19 = vector.extract_strided_slice %8 {offsets = [0, 128], sizes = [8, 128], strides = [1, 1]} : vector<8x384xf32> to vector<8x128xf32>
    %20 = vector.extract_strided_slice %10 {offsets = [0, 128], sizes = [8, 128], strides = [1, 1]} : vector<8x384xf32> to vector<8x128xf32>
    %21 = arith.addf %19, %20 : vector<8x128xf32>
    %22 = arith.negf %21 : vector<8x128xf32>
    %23 = math.exp %22 : vector<8x128xf32>
    %cst_10 = arith.constant 1.000000e+00 : f32
    %24 = vector.broadcast %cst_10 : f32 to vector<8x128xf32>
    %25 = arith.addf %24, %23 : vector<8x128xf32>
    %26 = arith.divf %24, %25 : vector<8x128xf32>
    %27 = vector.extract_strided_slice %8 {offsets = [0, 256], sizes = [8, 128], strides = [1, 1]} : vector<8x384xf32> to vector<8x128xf32>
    %28 = vector.extract_strided_slice %10 {offsets = [0, 256], sizes = [8, 128], strides = [1, 1]} : vector<8x384xf32> to vector<8x128xf32>
    %29 = vector.broadcast %4 : vector<1x128xf32> to vector<8x128xf32>
    %30 = arith.addf %28, %29 : vector<8x128xf32>
    %31 = arith.mulf %18, %30 : vector<8x128xf32>
    %32 = arith.addf %27, %31 : vector<8x128xf32>
    %33 = math.tanh %32 : vector<8x128xf32>
    %cst_11 = arith.constant 1.000000e+00 : f32
    %34 = vector.broadcast %cst_11 : f32 to vector<8x128xf32>
    %35 = arith.subf %34, %26 : vector<8x128xf32>
    %36 = arith.mulf %35, %33 : vector<8x128xf32>
    %37 = arith.mulf %26, %5 : vector<8x128xf32>
    %38 = arith.addf %36, %37 : vector<8x128xf32>
    %39 = arith.index_cast %c0_i32_6 : i32 to index
    %c0_12 = arith.constant 0 : index
    %c0_13 = arith.constant 0 : index
    %40 = vector.load %arg5[%39, %c0_12, %c0_13] : memref<16x8x128xf32, #tpu.memory_space<vmem>>, vector<1x8x128xf32>
    %41 = vector.shape_cast %40 : vector<1x8x128xf32> to vector<8x128xf32>
    %42 = vector.shape_cast %38 : vector<8x128xf32> to vector<1x8x128xf32>
    tpu.vector_store %arg5[%39, %c0_12, %c0_13], %42 {strides = array<i32>} : memref<16x8x128xf32, #tpu.memory_space<vmem>>, vector<1x8x128xf32>,
    %c1_i32 = arith.constant 1 : i32
    %43 = arith.index_cast %c1_i32 : i32 to index
    %c0_14 = arith.constant 0 : index
    %c0_15 = arith.constant 0 : index
    %44 = vector.load %arg1[%43, %c0_14, %c0_15] : memref<16x8x384xf32, #tpu.memory_space<vmem>>, vector<1x8x384xf32>
    %45 = vector.shape_cast %44 : vector<1x8x384xf32> to vector<8x384xf32>
    %46 = arith.truncf %38 : vector<8x128xf32> to vector<8x128xbf16>
    %cst_16 = arith.constant dense<0.000000e+00> : vector<8x384xf32>
    %47 = tpu.matmul %46, %3, %cst_16 {dimension_numbers = #tpu.dot_dimension_numbers<[1], [0], [0], [1], [0, 0, 1, 1], [], []>} : vector<8x128xbf16>, vector<128x384xbf16>, vector<8x384xf32> -> vector<8x384xf32>
    %48 = vector.extract_strided_slice %45 {offsets = [0, 0], sizes = [8, 128], strides = [1, 1]} : vector<8x384xf32> to vector<8x128xf32>
    %49 = vector.extract_strided_slice %47 {offsets = [0, 0], sizes = [8, 128], strides = [1, 1]} : vector<8x384xf32> to vector<8x128xf32>
    %50 = arith.addf %48, %49 : vector<8x128xf32>
    %51 = arith.negf %50 : vector<8x128xf32>
    %52 = math.exp %51 : vector<8x128xf32>
    %cst_17 = arith.constant 1.000000e+00 : f32
    %53 = vector.broadcast %cst_17 : f32 to vector<8x128xf32>
    %54 = arith.addf %53, %52 : vector<8x128xf32>
    %55 = arith.divf %53, %54 : vector<8x128xf32>
    %56 = vector.extract_strided_slice %45 {offsets = [0, 128], sizes = [8, 128], strides = [1, 1]} : vector<8x384xf32> to vector<8x128xf32>
    %57 = vector.extract_strided_slice %47 {offsets = [0, 128], sizes = [8, 128], strides = [1, 1]} : vector<8x384xf32> to vector<8x128xf32>
    %58 = arith.addf %56, %57 : vector<8x128xf32>
    %59 = arith.negf %58 : vector<8x128xf32>
    %60 = math.exp %59 : vector<8x128xf32>
    %cst_18 = arith.constant 1.000000e+00 : f32
    %61 = vector.broadcast %cst_18 : f32 to vector<8x128xf32>
    %62 = arith.addf %61, %60 : vector<8x128xf32>
    %63 = arith.divf %61, %62 : vector<8x128xf32>
    %64 = vector.extract_strided_slice %45 {offsets = [0, 256], sizes = [8, 128], strides = [1, 1]} : vector<8x384xf32> to vector<8x128xf32>
    %65 = vector.extract_strided_slice %47 {offsets = [0, 256], sizes = [8, 128], strides = [1, 1]} : vector<8x384xf32> to vector<8x128xf32>
    %66 = vector.broadcast %4 : vector<1x128xf32> to vector<8x128xf32>
    %67 = arith.addf %65, %66 : vector<8x128xf32>
    %68 = arith.mulf %55, %67 : vector<8x128xf32>
    %69 = arith.addf %64, %68 : vector<8x128xf32>
    %70 = math.tanh %69 : vector<8x128xf32>
    %cst_19 = arith.constant 1.000000e+00 : f32
    %71 = vector.broadcast %cst_19 : f32 to vector<8x128xf32>
    %72 = arith.subf %71, %63 : vector<8x128xf32>
    %73 = arith.mulf %72, %70 : vector<8x128xf32>
    %74 = arith.mulf %63, %38 : vector<8x128xf32>
    %75 = arith.addf %73, %74 : vector<8x128xf32>
    %76 = arith.index_cast %c1_i32 : i32 to index
    %c0_20 = arith.constant 0 : index
    %c0_21 = arith.constant 0 : index
    %77 = vector.load %arg5[%76, %c0_20, %c0_21] : memref<16x8x128xf32, #tpu.memory_space<vmem>>, vector<1x8x128xf32>
    %78 = vector.shape_cast %77 : vector<1x8x128xf32> to vector<8x128xf32>
    %79 = vector.shape_cast %75 : vector<8x128xf32> to vector<1x8x128xf32>
    tpu.vector_store %arg5[%76, %c0_20, %c0_21], %79 {strides = array<i32>} : memref<16x8x128xf32, #tpu.memory_space<vmem>>, vector<1x8x128xf32>,
    %c2_i32 = arith.constant 2 : i32
    %80 = arith.index_cast %c2_i32 : i32 to index
    %c0_22 = arith.constant 0 : index
    %c0_23 = arith.constant 0 : index
    %81 = vector.load %arg1[%80, %c0_22, %c0_23] : memref<16x8x384xf32, #tpu.memory_space<vmem>>, vector<1x8x384xf32>
    %82 = vector.shape_cast %81 : vector<1x8x384xf32> to vector<8x384xf32>
    %83 = arith.truncf %75 : vector<8x128xf32> to vector<8x128xbf16>
    %cst_24 = arith.constant dense<0.000000e+00> : vector<8x384xf32>
    %84 = tpu.matmul %83, %3, %cst_24 {dimension_numbers = #tpu.dot_dimension_numbers<[1], [0], [0], [1], [0, 0, 1, 1], [], []>} : vector<8x128xbf16>, vector<128x384xbf16>, vector<8x384xf32> -> vector<8x384xf32>
    %85 = vector.extract_strided_slice %82 {offsets = [0, 0], sizes = [8, 128], strides = [1, 1]} : vector<8x384xf32> to vector<8x128xf32>
    %86 = vector.extract_strided_slice %84 {offsets = [0, 0], sizes = [8, 128], strides = [1, 1]} : vector<8x384xf32> to vector<8x128xf32>
    %87 = arith.addf %85, %86 : vector<8x128xf32>
    %88 = arith.negf %87 : vector<8x128xf32>
    %89 = math.exp %88 : vector<8x128xf32>
    %cst_25 = arith.constant 1.000000e+00 : f32
    %90 = vector.broadcast %cst_25 : f32 to vector<8x128xf32>
    %91 = arith.addf %90, %89 : vector<8x128xf32>
    %92 = arith.divf %90, %91 : vector<8x128xf32>
    %93 = vector.extract_strided_slice %82 {offsets = [0, 128], sizes = [8, 128], strides = [1, 1]} : vector<8x384xf32> to vector<8x128xf32>
    %94 = vector.extract_strided_slice %84 {offsets = [0, 128], sizes = [8, 128], strides = [1, 1]} : vector<8x384xf32> to vector<8x128xf32>
    %95 = arith.addf %93, %94 : vector<8x128xf32>
    %96 = arith.negf %95 : vector<8x128xf32>
    %97 = math.exp %96 : vector<8x128xf32>
    %cst_26 = arith.constant 1.000000e+00 : f32
    %98 = vector.broadcast %cst_26 : f32 to vector<8x128xf32>
    %99 = arith.addf %98, %97 : vector<8x128xf32>
    %100 = arith.divf %98, %99 : vector<8x128xf32>
    %101 = vector.extract_strided_slice %82 {offsets = [0, 256], sizes = [8, 128], strides = [1, 1]} : vector<8x384xf32> to vector<8x128xf32>
    %102 = vector.extract_strided_slice %84 {offsets = [0, 256], sizes = [8, 128], strides = [1, 1]} : vector<8x384xf32> to vector<8x128xf32>
    %103 = vector.broadcast %4 : vector<1x128xf32> to vector<8x128xf32>
    %104 = arith.addf %102, %103 : vector<8x128xf32>
    %105 = arith.mulf %92, %104 : vector<8x128xf32>
    %106 = arith.addf %101, %105 : vector<8x128xf32>
    %107 = math.tanh %106 : vector<8x128xf32>
    %cst_27 = arith.constant 1.000000e+00 : f32
    %108 = vector.broadcast %cst_27 : f32 to vector<8x128xf32>
    %109 = arith.subf %108, %100 : vector<8x128xf32>
    %110 = arith.mulf %109, %107 : vector<8x128xf32>
    %111 = arith.mulf %100, %75 : vector<8x128xf32>
    %112 = arith.addf %110, %111 : vector<8x128xf32>
    %113 = arith.index_cast %c2_i32 : i32 to index
    %c0_28 = arith.constant 0 : index
    %c0_29 = arith.constant 0 : index
    %114 = vector.load %arg5[%113, %c0_28, %c0_29] : memref<16x8x128xf32, #tpu.memory_space<vmem>>, vector<1x8x128xf32>
    %115 = vector.shape_cast %114 : vector<1x8x128xf32> to vector<8x128xf32>
    %116 = vector.shape_cast %112 : vector<8x128xf32> to vector<1x8x128xf32>
    tpu.vector_store %arg5[%113, %c0_28, %c0_29], %116 {strides = array<i32>} : memref<16x8x128xf32, #tpu.memory_space<vmem>>, vector<1x8x128xf32>,
    %c3_i32 = arith.constant 3 : i32
    %117 = arith.index_cast %c3_i32 : i32 to index
    %c0_30 = arith.constant 0 : index
    %c0_31 = arith.constant 0 : index
    %118 = vector.load %arg1[%117, %c0_30, %c0_31] : memref<16x8x384xf32, #tpu.memory_space<vmem>>, vector<1x8x384xf32>
    %119 = vector.shape_cast %118 : vector<1x8x384xf32> to vector<8x384xf32>
    %120 = arith.truncf %112 : vector<8x128xf32> to vector<8x128xbf16>
    %cst_32 = arith.constant dense<0.000000e+00> : vector<8x384xf32>
    %121 = tpu.matmul %120, %3, %cst_32 {dimension_numbers = #tpu.dot_dimension_numbers<[1], [0], [0], [1], [0, 0, 1, 1], [], []>} : vector<8x128xbf16>, vector<128x384xbf16>, vector<8x384xf32> -> vector<8x384xf32>
    %122 = vector.extract_strided_slice %119 {offsets = [0, 0], sizes = [8, 128], strides = [1, 1]} : vector<8x384xf32> to vector<8x128xf32>
    %123 = vector.extract_strided_slice %121 {offsets = [0, 0], sizes = [8, 128], strides = [1, 1]} : vector<8x384xf32> to vector<8x128xf32>
    %124 = arith.addf %122, %123 : vector<8x128xf32>
    %125 = arith.negf %124 : vector<8x128xf32>
    %126 = math.exp %125 : vector<8x128xf32>
    %cst_33 = arith.constant 1.000000e+00 : f32
    %127 = vector.broadcast %cst_33 : f32 to vector<8x128xf32>
    %128 = arith.addf %127, %126 : vector<8x128xf32>
    %129 = arith.divf %127, %128 : vector<8x128xf32>
    %130 = vector.extract_strided_slice %119 {offsets = [0, 128], sizes = [8, 128], strides = [1, 1]} : vector<8x384xf32> to vector<8x128xf32>
    %131 = vector.extract_strided_slice %121 {offsets = [0, 128], sizes = [8, 128], strides = [1, 1]} : vector<8x384xf32> to vector<8x128xf32>
    %132 = arith.addf %130, %131 : vector<8x128xf32>
    %133 = arith.negf %132 : vector<8x128xf32>
    %134 = math.exp %133 : vector<8x128xf32>
    %cst_34 = arith.constant 1.000000e+00 : f32
    %135 = vector.broadcast %cst_34 : f32 to vector<8x128xf32>
    %136 = arith.addf %135, %134 : vector<8x128xf32>
    %137 = arith.divf %135, %136 : vector<8x128xf32>
    %138 = vector.extract_strided_slice %119 {offsets = [0, 256], sizes = [8, 128], strides = [1, 1]} : vector<8x384xf32> to vector<8x128xf32>
    %139 = vector.extract_strided_slice %121 {offsets = [0, 256], sizes = [8, 128], strides = [1, 1]} : vector<8x384xf32> to vector<8x128xf32>
    %140 = vector.broadcast %4 : vector<1x128xf32> to vector<8x128xf32>
    %141 = arith.addf %139, %140 : vector<8x128xf32>
    %142 = arith.mulf %129, %141 : vector<8x128xf32>
    %143 = arith.addf %138, %142 : vector<8x128xf32>
    %144 = math.tanh %143 : vector<8x128xf32>
    %cst_35 = arith.constant 1.000000e+00 : f32
    %145 = vector.broadcast %cst_35 : f32 to vector<8x128xf32>
    %146 = arith.subf %145, %137 : vector<8x128xf32>
    %147 = arith.mulf %146, %144 : vector<8x128xf32>
    %148 = arith.mulf %137, %112 : vector<8x128xf32>
    %149 = arith.addf %147, %148 : vector<8x128xf32>
    %150 = arith.index_cast %c3_i32 : i32 to index
    %c0_36 = arith.constant 0 : index
    %c0_37 = arith.constant 0 : index
    %151 = vector.load %arg5[%150, %c0_36, %c0_37] : memref<16x8x128xf32, #tpu.memory_space<vmem>>, vector<1x8x128xf32>
    %152 = vector.shape_cast %151 : vector<1x8x128xf32> to vector<8x128xf32>
    %153 = vector.shape_cast %149 : vector<8x128xf32> to vector<1x8x128xf32>
    tpu.vector_store %arg5[%150, %c0_36, %c0_37], %153 {strides = array<i32>} : memref<16x8x128xf32, #tpu.memory_space<vmem>>, vector<1x8x128xf32>,
    %c4_i32 = arith.constant 4 : i32
    %154 = arith.index_cast %c4_i32 : i32 to index
    %c0_38 = arith.constant 0 : index
    %c0_39 = arith.constant 0 : index
    %155 = vector.load %arg1[%154, %c0_38, %c0_39] : memref<16x8x384xf32, #tpu.memory_space<vmem>>, vector<1x8x384xf32>
    %156 = vector.shape_cast %155 : vector<1x8x384xf32> to vector<8x384xf32>
    %157 = arith.truncf %149 : vector<8x128xf32> to vector<8x128xbf16>
    %cst_40 = arith.constant dense<0.000000e+00> : vector<8x384xf32>
    %158 = tpu.matmul %157, %3, %cst_40 {dimension_numbers = #tpu.dot_dimension_numbers<[1], [0], [0], [1], [0, 0, 1, 1], [], []>} : vector<8x128xbf16>, vector<128x384xbf16>, vector<8x384xf32> -> vector<8x384xf32>
    %159 = vector.extract_strided_slice %156 {offsets = [0, 0], sizes = [8, 128], strides = [1, 1]} : vector<8x384xf32> to vector<8x128xf32>
    %160 = vector.extract_strided_slice %158 {offsets = [0, 0], sizes = [8, 128], strides = [1, 1]} : vector<8x384xf32> to vector<8x128xf32>
    %161 = arith.addf %159, %160 : vector<8x128xf32>
    %162 = arith.negf %161 : vector<8x128xf32>
    %163 = math.exp %162 : vector<8x128xf32>
    %cst_41 = arith.constant 1.000000e+00 : f32
    %164 = vector.broadcast %cst_41 : f32 to vector<8x128xf32>
    %165 = arith.addf %164, %163 : vector<8x128xf32>
    %166 = arith.divf %164, %165 : vector<8x128xf32>
    %167 = vector.extract_strided_slice %156 {offsets = [0, 128], sizes = [8, 128], strides = [1, 1]} : vector<8x384xf32> to vector<8x128xf32>
    %168 = vector.extract_strided_slice %158 {offsets = [0, 128], sizes = [8, 128], strides = [1, 1]} : vector<8x384xf32> to vector<8x128xf32>
    %169 = arith.addf %167, %168 : vector<8x128xf32>
    %170 = arith.negf %169 : vector<8x128xf32>
    %171 = math.exp %170 : vector<8x128xf32>
    %cst_42 = arith.constant 1.000000e+00 : f32
    %172 = vector.broadcast %cst_42 : f32 to vector<8x128xf32>
    %173 = arith.addf %172, %171 : vector<8x128xf32>
    %174 = arith.divf %172, %173 : vector<8x128xf32>
    %175 = vector.extract_strided_slice %156 {offsets = [0, 256], sizes = [8, 128], strides = [1, 1]} : vector<8x384xf32> to vector<8x128xf32>
    %176 = vector.extract_strided_slice %158 {offsets = [0, 256], sizes = [8, 128], strides = [1, 1]} : vector<8x384xf32> to vector<8x128xf32>
    %177 = vector.broadcast %4 : vector<1x128xf32> to vector<8x128xf32>
    %178 = arith.addf %176, %177 : vector<8x128xf32>
    %179 = arith.mulf %166, %178 : vector<8x128xf32>
    %180 = arith.addf %175, %179 : vector<8x128xf32>
    %181 = math.tanh %180 : vector<8x128xf32>
    %cst_43 = arith.constant 1.000000e+00 : f32
    %182 = vector.broadcast %cst_43 : f32 to vector<8x128xf32>
    %183 = arith.subf %182, %174 : vector<8x128xf32>
    %184 = arith.mulf %183, %181 : vector<8x128xf32>
    %185 = arith.mulf %174, %149 : vector<8x128xf32>
    %186 = arith.addf %184, %185 : vector<8x128xf32>
    %187 = arith.index_cast %c4_i32 : i32 to index
    %c0_44 = arith.constant 0 : index
    %c0_45 = arith.constant 0 : index
    %188 = vector.load %arg5[%187, %c0_44, %c0_45] : memref<16x8x128xf32, #tpu.memory_space<vmem>>, vector<1x8x128xf32>
    %189 = vector.shape_cast %188 : vector<1x8x128xf32> to vector<8x128xf32>
    %190 = vector.shape_cast %186 : vector<8x128xf32> to vector<1x8x128xf32>
    tpu.vector_store %arg5[%187, %c0_44, %c0_45], %190 {strides = array<i32>} : memref<16x8x128xf32, #tpu.memory_space<vmem>>, vector<1x8x128xf32>,
    %c5_i32 = arith.constant 5 : i32
    %191 = arith.index_cast %c5_i32 : i32 to index
    %c0_46 = arith.constant 0 : index
    %c0_47 = arith.constant 0 : index
    %192 = vector.load %arg1[%191, %c0_46, %c0_47] : memref<16x8x384xf32, #tpu.memory_space<vmem>>, vector<1x8x384xf32>
    %193 = vector.shape_cast %192 : vector<1x8x384xf32> to vector<8x384xf32>
    %194 = arith.truncf %186 : vector<8x128xf32> to vector<8x128xbf16>
    %cst_48 = arith.constant dense<0.000000e+00> : vector<8x384xf32>
    %195 = tpu.matmul %194, %3, %cst_48 {dimension_numbers = #tpu.dot_dimension_numbers<[1], [0], [0], [1], [0, 0, 1, 1], [], []>} : vector<8x128xbf16>, vector<128x384xbf16>, vector<8x384xf32> -> vector<8x384xf32>
    %196 = vector.extract_strided_slice %193 {offsets = [0, 0], sizes = [8, 128], strides = [1, 1]} : vector<8x384xf32> to vector<8x128xf32>
    %197 = vector.extract_strided_slice %195 {offsets = [0, 0], sizes = [8, 128], strides = [1, 1]} : vector<8x384xf32> to vector<8x128xf32>
    %198 = arith.addf %196, %197 : vector<8x128xf32>
    %199 = arith.negf %198 : vector<8x128xf32>
    %200 = math.exp %199 : vector<8x128xf32>
    %cst_49 = arith.constant 1.000000e+00 : f32
    %201 = vector.broadcast %cst_49 : f32 to vector<8x128xf32>
    %202 = arith.addf %201, %200 : vector<8x128xf32>
    %203 = arith.divf %201, %202 : vector<8x128xf32>
    %204 = vector.extract_strided_slice %193 {offsets = [0, 128], sizes = [8, 128], strides = [1, 1]} : vector<8x384xf32> to vector<8x128xf32>
    %205 = vector.extract_strided_slice %195 {offsets = [0, 128], sizes = [8, 128], strides = [1, 1]} : vector<8x384xf32> to vector<8x128xf32>
    %206 = arith.addf %204, %205 : vector<8x128xf32>
    %207 = arith.negf %206 : vector<8x128xf32>
    %208 = math.exp %207 : vector<8x128xf32>
    %cst_50 = arith.constant 1.000000e+00 : f32
    %209 = vector.broadcast %cst_50 : f32 to vector<8x128xf32>
    %210 = arith.addf %209, %208 : vector<8x128xf32>
    %211 = arith.divf %209, %210 : vector<8x128xf32>
    %212 = vector.extract_strided_slice %193 {offsets = [0, 256], sizes = [8, 128], strides = [1, 1]} : vector<8x384xf32> to vector<8x128xf32>
    %213 = vector.extract_strided_slice %195 {offsets = [0, 256], sizes = [8, 128], strides = [1, 1]} : vector<8x384xf32> to vector<8x128xf32>
    %214 = vector.broadcast %4 : vector<1x128xf32> to vector<8x128xf32>
    %215 = arith.addf %213, %214 : vector<8x128xf32>
    %216 = arith.mulf %203, %215 : vector<8x128xf32>
    %217 = arith.addf %212, %216 : vector<8x128xf32>
    %218 = math.tanh %217 : vector<8x128xf32>
    %cst_51 = arith.constant 1.000000e+00 : f32
    %219 = vector.broadcast %cst_51 : f32 to vector<8x128xf32>
    %220 = arith.subf %219, %211 : vector<8x128xf32>
    %221 = arith.mulf %220, %218 : vector<8x128xf32>
    %222 = arith.mulf %211, %186 : vector<8x128xf32>
    %223 = arith.addf %221, %222 : vector<8x128xf32>
    %224 = arith.index_cast %c5_i32 : i32 to index
    %c0_52 = arith.constant 0 : index
    %c0_53 = arith.constant 0 : index
    %225 = vector.load %arg5[%224, %c0_52, %c0_53] : memref<16x8x128xf32, #tpu.memory_space<vmem>>, vector<1x8x128xf32>
    %226 = vector.shape_cast %225 : vector<1x8x128xf32> to vector<8x128xf32>
    %227 = vector.shape_cast %223 : vector<8x128xf32> to vector<1x8x128xf32>
    tpu.vector_store %arg5[%224, %c0_52, %c0_53], %227 {strides = array<i32>} : memref<16x8x128xf32, #tpu.memory_space<vmem>>, vector<1x8x128xf32>,
    %c6_i32 = arith.constant 6 : i32
    %228 = arith.index_cast %c6_i32 : i32 to index
    %c0_54 = arith.constant 0 : index
    %c0_55 = arith.constant 0 : index
    %229 = vector.load %arg1[%228, %c0_54, %c0_55] : memref<16x8x384xf32, #tpu.memory_space<vmem>>, vector<1x8x384xf32>
    %230 = vector.shape_cast %229 : vector<1x8x384xf32> to vector<8x384xf32>
    %231 = arith.truncf %223 : vector<8x128xf32> to vector<8x128xbf16>
    %cst_56 = arith.constant dense<0.000000e+00> : vector<8x384xf32>
    %232 = tpu.matmul %231, %3, %cst_56 {dimension_numbers = #tpu.dot_dimension_numbers<[1], [0], [0], [1], [0, 0, 1, 1], [], []>} : vector<8x128xbf16>, vector<128x384xbf16>, vector<8x384xf32> -> vector<8x384xf32>
    %233 = vector.extract_strided_slice %230 {offsets = [0, 0], sizes = [8, 128], strides = [1, 1]} : vector<8x384xf32> to vector<8x128xf32>
    %234 = vector.extract_strided_slice %232 {offsets = [0, 0], sizes = [8, 128], strides = [1, 1]} : vector<8x384xf32> to vector<8x128xf32>
    %235 = arith.addf %233, %234 : vector<8x128xf32>
    %236 = arith.negf %235 : vector<8x128xf32>
    %237 = math.exp %236 : vector<8x128xf32>
    %cst_57 = arith.constant 1.000000e+00 : f32
    %238 = vector.broadcast %cst_57 : f32 to vector<8x128xf32>
    %239 = arith.addf %238, %237 : vector<8x128xf32>
    %240 = arith.divf %238, %239 : vector<8x128xf32>
    %241 = vector.extract_strided_slice %230 {offsets = [0, 128], sizes = [8, 128], strides = [1, 1]} : vector<8x384xf32> to vector<8x128xf32>
    %242 = vector.extract_strided_slice %232 {offsets = [0, 128], sizes = [8, 128], strides = [1, 1]} : vector<8x384xf32> to vector<8x128xf32>
    %243 = arith.addf %241, %242 : vector<8x128xf32>
    %244 = arith.negf %243 : vector<8x128xf32>
    %245 = math.exp %244 : vector<8x128xf32>
    %cst_58 = arith.constant 1.000000e+00 : f32
    %246 = vector.broadcast %cst_58 : f32 to vector<8x128xf32>
    %247 = arith.addf %246, %245 : vector<8x128xf32>
    %248 = arith.divf %246, %247 : vector<8x128xf32>
    %249 = vector.extract_strided_slice %230 {offsets = [0, 256], sizes = [8, 128], strides = [1, 1]} : vector<8x384xf32> to vector<8x128xf32>
    %250 = vector.extract_strided_slice %232 {offsets = [0, 256], sizes = [8, 128], strides = [1, 1]} : vector<8x384xf32> to vector<8x128xf32>
    %251 = vector.broadcast %4 : vector<1x128xf32> to vector<8x128xf32>
    %252 = arith.addf %250, %251 : vector<8x128xf32>
    %253 = arith.mulf %240, %252 : vector<8x128xf32>
    %254 = arith.addf %249, %253 : vector<8x128xf32>
    %255 = math.tanh %254 : vector<8x128xf32>
    %cst_59 = arith.constant 1.000000e+00 : f32
    %256 = vector.broadcast %cst_59 : f32 to vector<8x128xf32>
    %257 = arith.subf %256, %248 : vector<8x128xf32>
    %258 = arith.mulf %257, %255 : vector<8x128xf32>
    %259 = arith.mulf %248, %223 : vector<8x128xf32>
    %260 = arith.addf %258, %259 : vector<8x128xf32>
    %261 = arith.index_cast %c6_i32 : i32 to index
    %c0_60 = arith.constant 0 : index
    %c0_61 = arith.constant 0 : index
    %262 = vector.load %arg5[%261, %c0_60, %c0_61] : memref<16x8x128xf32, #tpu.memory_space<vmem>>, vector<1x8x128xf32>
    %263 = vector.shape_cast %262 : vector<1x8x128xf32> to vector<8x128xf32>
    %264 = vector.shape_cast %260 : vector<8x128xf32> to vector<1x8x128xf32>
    tpu.vector_store %arg5[%261, %c0_60, %c0_61], %264 {strides = array<i32>} : memref<16x8x128xf32, #tpu.memory_space<vmem>>, vector<1x8x128xf32>,
    %c7_i32 = arith.constant 7 : i32
    %265 = arith.index_cast %c7_i32 : i32 to index
    %c0_62 = arith.constant 0 : index
    %c0_63 = arith.constant 0 : index
    %266 = vector.load %arg1[%265, %c0_62, %c0_63] : memref<16x8x384xf32, #tpu.memory_space<vmem>>, vector<1x8x384xf32>
    %267 = vector.shape_cast %266 : vector<1x8x384xf32> to vector<8x384xf32>
    %268 = arith.truncf %260 : vector<8x128xf32> to vector<8x128xbf16>
    %cst_64 = arith.constant dense<0.000000e+00> : vector<8x384xf32>
    %269 = tpu.matmul %268, %3, %cst_64 {dimension_numbers = #tpu.dot_dimension_numbers<[1], [0], [0], [1], [0, 0, 1, 1], [], []>} : vector<8x128xbf16>, vector<128x384xbf16>, vector<8x384xf32> -> vector<8x384xf32>
    %270 = vector.extract_strided_slice %267 {offsets = [0, 0], sizes = [8, 128], strides = [1, 1]} : vector<8x384xf32> to vector<8x128xf32>
    %271 = vector.extract_strided_slice %269 {offsets = [0, 0], sizes = [8, 128], strides = [1, 1]} : vector<8x384xf32> to vector<8x128xf32>
    %272 = arith.addf %270, %271 : vector<8x128xf32>
    %273 = arith.negf %272 : vector<8x128xf32>
    %274 = math.exp %273 : vector<8x128xf32>
    %cst_65 = arith.constant 1.000000e+00 : f32
    %275 = vector.broadcast %cst_65 : f32 to vector<8x128xf32>
    %276 = arith.addf %275, %274 : vector<8x128xf32>
    %277 = arith.divf %275, %276 : vector<8x128xf32>
    %278 = vector.extract_strided_slice %267 {offsets = [0, 128], sizes = [8, 128], strides = [1, 1]} : vector<8x384xf32> to vector<8x128xf32>
    %279 = vector.extract_strided_slice %269 {offsets = [0, 128], sizes = [8, 128], strides = [1, 1]} : vector<8x384xf32> to vector<8x128xf32>
    %280 = arith.addf %278, %279 : vector<8x128xf32>
    %281 = arith.negf %280 : vector<8x128xf32>
    %282 = math.exp %281 : vector<8x128xf32>
    %cst_66 = arith.constant 1.000000e+00 : f32
    %283 = vector.broadcast %cst_66 : f32 to vector<8x128xf32>
    %284 = arith.addf %283, %282 : vector<8x128xf32>
    %285 = arith.divf %283, %284 : vector<8x128xf32>
    %286 = vector.extract_strided_slice %267 {offsets = [0, 256], sizes = [8, 128], strides = [1, 1]} : vector<8x384xf32> to vector<8x128xf32>
    %287 = vector.extract_strided_slice %269 {offsets = [0, 256], sizes = [8, 128], strides = [1, 1]} : vector<8x384xf32> to vector<8x128xf32>
    %288 = vector.broadcast %4 : vector<1x128xf32> to vector<8x128xf32>
    %289 = arith.addf %287, %288 : vector<8x128xf32>
    %290 = arith.mulf %277, %289 : vector<8x128xf32>
    %291 = arith.addf %286, %290 : vector<8x128xf32>
    %292 = math.tanh %291 : vector<8x128xf32>
    %cst_67 = arith.constant 1.000000e+00 : f32
    %293 = vector.broadcast %cst_67 : f32 to vector<8x128xf32>
    %294 = arith.subf %293, %285 : vector<8x128xf32>
    %295 = arith.mulf %294, %292 : vector<8x128xf32>
    %296 = arith.mulf %285, %260 : vector<8x128xf32>
    %297 = arith.addf %295, %296 : vector<8x128xf32>
    %298 = arith.index_cast %c7_i32 : i32 to index
    %c0_68 = arith.constant 0 : index
    %c0_69 = arith.constant 0 : index
    %299 = vector.load %arg5[%298, %c0_68, %c0_69] : memref<16x8x128xf32, #tpu.memory_space<vmem>>, vector<1x8x128xf32>
    %300 = vector.shape_cast %299 : vector<1x8x128xf32> to vector<8x128xf32>
    %301 = vector.shape_cast %297 : vector<8x128xf32> to vector<1x8x128xf32>
    tpu.vector_store %arg5[%298, %c0_68, %c0_69], %301 {strides = array<i32>} : memref<16x8x128xf32, #tpu.memory_space<vmem>>, vector<1x8x128xf32>,
    %c8_i32 = arith.constant 8 : i32
    %302 = arith.index_cast %c8_i32 : i32 to index
    %c0_70 = arith.constant 0 : index
    %c0_71 = arith.constant 0 : index
    %303 = vector.load %arg1[%302, %c0_70, %c0_71] : memref<16x8x384xf32, #tpu.memory_space<vmem>>, vector<1x8x384xf32>
    %304 = vector.shape_cast %303 : vector<1x8x384xf32> to vector<8x384xf32>
    %305 = arith.truncf %297 : vector<8x128xf32> to vector<8x128xbf16>
    %cst_72 = arith.constant dense<0.000000e+00> : vector<8x384xf32>
    %306 = tpu.matmul %305, %3, %cst_72 {dimension_numbers = #tpu.dot_dimension_numbers<[1], [0], [0], [1], [0, 0, 1, 1], [], []>} : vector<8x128xbf16>, vector<128x384xbf16>, vector<8x384xf32> -> vector<8x384xf32>
    %307 = vector.extract_strided_slice %304 {offsets = [0, 0], sizes = [8, 128], strides = [1, 1]} : vector<8x384xf32> to vector<8x128xf32>
    %308 = vector.extract_strided_slice %306 {offsets = [0, 0], sizes = [8, 128], strides = [1, 1]} : vector<8x384xf32> to vector<8x128xf32>
    %309 = arith.addf %307, %308 : vector<8x128xf32>
    %310 = arith.negf %309 : vector<8x128xf32>
    %311 = math.exp %310 : vector<8x128xf32>
    %cst_73 = arith.constant 1.000000e+00 : f32
    %312 = vector.broadcast %cst_73 : f32 to vector<8x128xf32>
    %313 = arith.addf %312, %311 : vector<8x128xf32>
    %314 = arith.divf %312, %313 : vector<8x128xf32>
    %315 = vector.extract_strided_slice %304 {offsets = [0, 128], sizes = [8, 128], strides = [1, 1]} : vector<8x384xf32> to vector<8x128xf32>
    %316 = vector.extract_strided_slice %306 {offsets = [0, 128], sizes = [8, 128], strides = [1, 1]} : vector<8x384xf32> to vector<8x128xf32>
    %317 = arith.addf %315, %316 : vector<8x128xf32>
    %318 = arith.negf %317 : vector<8x128xf32>
    %319 = math.exp %318 : vector<8x128xf32>
    %cst_74 = arith.constant 1.000000e+00 : f32
    %320 = vector.broadcast %cst_74 : f32 to vector<8x128xf32>
    %321 = arith.addf %320, %319 : vector<8x128xf32>
    %322 = arith.divf %320, %321 : vector<8x128xf32>
    %323 = vector.extract_strided_slice %304 {offsets = [0, 256], sizes = [8, 128], strides = [1, 1]} : vector<8x384xf32> to vector<8x128xf32>
    %324 = vector.extract_strided_slice %306 {offsets = [0, 256], sizes = [8, 128], strides = [1, 1]} : vector<8x384xf32> to vector<8x128xf32>
    %325 = vector.broadcast %4 : vector<1x128xf32> to vector<8x128xf32>
    %326 = arith.addf %324, %325 : vector<8x128xf32>
    %327 = arith.mulf %314, %326 : vector<8x128xf32>
    %328 = arith.addf %323, %327 : vector<8x128xf32>
    %329 = math.tanh %328 : vector<8x128xf32>
    %cst_75 = arith.constant 1.000000e+00 : f32
    %330 = vector.broadcast %cst_75 : f32 to vector<8x128xf32>
    %331 = arith.subf %330, %322 : vector<8x128xf32>
    %332 = arith.mulf %331, %329 : vector<8x128xf32>
    %333 = arith.mulf %322, %297 : vector<8x128xf32>
    %334 = arith.addf %332, %333 : vector<8x128xf32>
    %335 = arith.index_cast %c8_i32 : i32 to index
    %c0_76 = arith.constant 0 : index
    %c0_77 = arith.constant 0 : index
    %336 = vector.load %arg5[%335, %c0_76, %c0_77] : memref<16x8x128xf32, #tpu.memory_space<vmem>>, vector<1x8x128xf32>
    %337 = vector.shape_cast %336 : vector<1x8x128xf32> to vector<8x128xf32>
    %338 = vector.shape_cast %334 : vector<8x128xf32> to vector<1x8x128xf32>
    tpu.vector_store %arg5[%335, %c0_76, %c0_77], %338 {strides = array<i32>} : memref<16x8x128xf32, #tpu.memory_space<vmem>>, vector<1x8x128xf32>,
    %c9_i32 = arith.constant 9 : i32
    %339 = arith.index_cast %c9_i32 : i32 to index
    %c0_78 = arith.constant 0 : index
    %c0_79 = arith.constant 0 : index
    %340 = vector.load %arg1[%339, %c0_78, %c0_79] : memref<16x8x384xf32, #tpu.memory_space<vmem>>, vector<1x8x384xf32>
    %341 = vector.shape_cast %340 : vector<1x8x384xf32> to vector<8x384xf32>
    %342 = arith.truncf %334 : vector<8x128xf32> to vector<8x128xbf16>
    %cst_80 = arith.constant dense<0.000000e+00> : vector<8x384xf32>
    %343 = tpu.matmul %342, %3, %cst_80 {dimension_numbers = #tpu.dot_dimension_numbers<[1], [0], [0], [1], [0, 0, 1, 1], [], []>} : vector<8x128xbf16>, vector<128x384xbf16>, vector<8x384xf32> -> vector<8x384xf32>
    %344 = vector.extract_strided_slice %341 {offsets = [0, 0], sizes = [8, 128], strides = [1, 1]} : vector<8x384xf32> to vector<8x128xf32>
    %345 = vector.extract_strided_slice %343 {offsets = [0, 0], sizes = [8, 128], strides = [1, 1]} : vector<8x384xf32> to vector<8x128xf32>
    %346 = arith.addf %344, %345 : vector<8x128xf32>
    %347 = arith.negf %346 : vector<8x128xf32>
    %348 = math.exp %347 : vector<8x128xf32>
    %cst_81 = arith.constant 1.000000e+00 : f32
    %349 = vector.broadcast %cst_81 : f32 to vector<8x128xf32>
    %350 = arith.addf %349, %348 : vector<8x128xf32>
    %351 = arith.divf %349, %350 : vector<8x128xf32>
    %352 = vector.extract_strided_slice %341 {offsets = [0, 128], sizes = [8, 128], strides = [1, 1]} : vector<8x384xf32> to vector<8x128xf32>
    %353 = vector.extract_strided_slice %343 {offsets = [0, 128], sizes = [8, 128], strides = [1, 1]} : vector<8x384xf32> to vector<8x128xf32>
    %354 = arith.addf %352, %353 : vector<8x128xf32>
    %355 = arith.negf %354 : vector<8x128xf32>
    %356 = math.exp %355 : vector<8x128xf32>
    %cst_82 = arith.constant 1.000000e+00 : f32
    %357 = vector.broadcast %cst_82 : f32 to vector<8x128xf32>
    %358 = arith.addf %357, %356 : vector<8x128xf32>
    %359 = arith.divf %357, %358 : vector<8x128xf32>
    %360 = vector.extract_strided_slice %341 {offsets = [0, 256], sizes = [8, 128], strides = [1, 1]} : vector<8x384xf32> to vector<8x128xf32>
    %361 = vector.extract_strided_slice %343 {offsets = [0, 256], sizes = [8, 128], strides = [1, 1]} : vector<8x384xf32> to vector<8x128xf32>
    %362 = vector.broadcast %4 : vector<1x128xf32> to vector<8x128xf32>
    %363 = arith.addf %361, %362 : vector<8x128xf32>
    %364 = arith.mulf %351, %363 : vector<8x128xf32>
    %365 = arith.addf %360, %364 : vector<8x128xf32>
    %366 = math.tanh %365 : vector<8x128xf32>
    %cst_83 = arith.constant 1.000000e+00 : f32
    %367 = vector.broadcast %cst_83 : f32 to vector<8x128xf32>
    %368 = arith.subf %367, %359 : vector<8x128xf32>
    %369 = arith.mulf %368, %366 : vector<8x128xf32>
    %370 = arith.mulf %359, %334 : vector<8x128xf32>
    %371 = arith.addf %369, %370 : vector<8x128xf32>
    %372 = arith.index_cast %c9_i32 : i32 to index
    %c0_84 = arith.constant 0 : index
    %c0_85 = arith.constant 0 : index
    %373 = vector.load %arg5[%372, %c0_84, %c0_85] : memref<16x8x128xf32, #tpu.memory_space<vmem>>, vector<1x8x128xf32>
    %374 = vector.shape_cast %373 : vector<1x8x128xf32> to vector<8x128xf32>
    %375 = vector.shape_cast %371 : vector<8x128xf32> to vector<1x8x128xf32>
    tpu.vector_store %arg5[%372, %c0_84, %c0_85], %375 {strides = array<i32>} : memref<16x8x128xf32, #tpu.memory_space<vmem>>, vector<1x8x128xf32>,
    %c10_i32 = arith.constant 10 : i32
    %376 = arith.index_cast %c10_i32 : i32 to index
    %c0_86 = arith.constant 0 : index
    %c0_87 = arith.constant 0 : index
    %377 = vector.load %arg1[%376, %c0_86, %c0_87] : memref<16x8x384xf32, #tpu.memory_space<vmem>>, vector<1x8x384xf32>
    %378 = vector.shape_cast %377 : vector<1x8x384xf32> to vector<8x384xf32>
    %379 = arith.truncf %371 : vector<8x128xf32> to vector<8x128xbf16>
    %cst_88 = arith.constant dense<0.000000e+00> : vector<8x384xf32>
    %380 = tpu.matmul %379, %3, %cst_88 {dimension_numbers = #tpu.dot_dimension_numbers<[1], [0], [0], [1], [0, 0, 1, 1], [], []>} : vector<8x128xbf16>, vector<128x384xbf16>, vector<8x384xf32> -> vector<8x384xf32>
    %381 = vector.extract_strided_slice %378 {offsets = [0, 0], sizes = [8, 128], strides = [1, 1]} : vector<8x384xf32> to vector<8x128xf32>
    %382 = vector.extract_strided_slice %380 {offsets = [0, 0], sizes = [8, 128], strides = [1, 1]} : vector<8x384xf32> to vector<8x128xf32>
    %383 = arith.addf %381, %382 : vector<8x128xf32>
    %384 = arith.negf %383 : vector<8x128xf32>
    %385 = math.exp %384 : vector<8x128xf32>
    %cst_89 = arith.constant 1.000000e+00 : f32
    %386 = vector.broadcast %cst_89 : f32 to vector<8x128xf32>
    %387 = arith.addf %386, %385 : vector<8x128xf32>
    %388 = arith.divf %386, %387 : vector<8x128xf32>
    %389 = vector.extract_strided_slice %378 {offsets = [0, 128], sizes = [8, 128], strides = [1, 1]} : vector<8x384xf32> to vector<8x128xf32>
    %390 = vector.extract_strided_slice %380 {offsets = [0, 128], sizes = [8, 128], strides = [1, 1]} : vector<8x384xf32> to vector<8x128xf32>
    %391 = arith.addf %389, %390 : vector<8x128xf32>
    %392 = arith.negf %391 : vector<8x128xf32>
    %393 = math.exp %392 : vector<8x128xf32>
    %cst_90 = arith.constant 1.000000e+00 : f32
    %394 = vector.broadcast %cst_90 : f32 to vector<8x128xf32>
    %395 = arith.addf %394, %393 : vector<8x128xf32>
    %396 = arith.divf %394, %395 : vector<8x128xf32>
    %397 = vector.extract_strided_slice %378 {offsets = [0, 256], sizes = [8, 128], strides = [1, 1]} : vector<8x384xf32> to vector<8x128xf32>
    %398 = vector.extract_strided_slice %380 {offsets = [0, 256], sizes = [8, 128], strides = [1, 1]} : vector<8x384xf32> to vector<8x128xf32>
    %399 = vector.broadcast %4 : vector<1x128xf32> to vector<8x128xf32>
    %400 = arith.addf %398, %399 : vector<8x128xf32>
    %401 = arith.mulf %388, %400 : vector<8x128xf32>
    %402 = arith.addf %397, %401 : vector<8x128xf32>
    %403 = math.tanh %402 : vector<8x128xf32>
    %cst_91 = arith.constant 1.000000e+00 : f32
    %404 = vector.broadcast %cst_91 : f32 to vector<8x128xf32>
    %405 = arith.subf %404, %396 : vector<8x128xf32>
    %406 = arith.mulf %405, %403 : vector<8x128xf32>
    %407 = arith.mulf %396, %371 : vector<8x128xf32>
    %408 = arith.addf %406, %407 : vector<8x128xf32>
    %409 = arith.index_cast %c10_i32 : i32 to index
    %c0_92 = arith.constant 0 : index
    %c0_93 = arith.constant 0 : index
    %410 = vector.load %arg5[%409, %c0_92, %c0_93] : memref<16x8x128xf32, #tpu.memory_space<vmem>>, vector<1x8x128xf32>
    %411 = vector.shape_cast %410 : vector<1x8x128xf32> to vector<8x128xf32>
    %412 = vector.shape_cast %408 : vector<8x128xf32> to vector<1x8x128xf32>
    tpu.vector_store %arg5[%409, %c0_92, %c0_93], %412 {strides = array<i32>} : memref<16x8x128xf32, #tpu.memory_space<vmem>>, vector<1x8x128xf32>,
    %c11_i32 = arith.constant 11 : i32
    %413 = arith.index_cast %c11_i32 : i32 to index
    %c0_94 = arith.constant 0 : index
    %c0_95 = arith.constant 0 : index
    %414 = vector.load %arg1[%413, %c0_94, %c0_95] : memref<16x8x384xf32, #tpu.memory_space<vmem>>, vector<1x8x384xf32>
    %415 = vector.shape_cast %414 : vector<1x8x384xf32> to vector<8x384xf32>
    %416 = arith.truncf %408 : vector<8x128xf32> to vector<8x128xbf16>
    %cst_96 = arith.constant dense<0.000000e+00> : vector<8x384xf32>
    %417 = tpu.matmul %416, %3, %cst_96 {dimension_numbers = #tpu.dot_dimension_numbers<[1], [0], [0], [1], [0, 0, 1, 1], [], []>} : vector<8x128xbf16>, vector<128x384xbf16>, vector<8x384xf32> -> vector<8x384xf32>
    %418 = vector.extract_strided_slice %415 {offsets = [0, 0], sizes = [8, 128], strides = [1, 1]} : vector<8x384xf32> to vector<8x128xf32>
    %419 = vector.extract_strided_slice %417 {offsets = [0, 0], sizes = [8, 128], strides = [1, 1]} : vector<8x384xf32> to vector<8x128xf32>
    %420 = arith.addf %418, %419 : vector<8x128xf32>
    %421 = arith.negf %420 : vector<8x128xf32>
    %422 = math.exp %421 : vector<8x128xf32>
    %cst_97 = arith.constant 1.000000e+00 : f32
    %423 = vector.broadcast %cst_97 : f32 to vector<8x128xf32>
    %424 = arith.addf %423, %422 : vector<8x128xf32>
    %425 = arith.divf %423, %424 : vector<8x128xf32>
    %426 = vector.extract_strided_slice %415 {offsets = [0, 128], sizes = [8, 128], strides = [1, 1]} : vector<8x384xf32> to vector<8x128xf32>
    %427 = vector.extract_strided_slice %417 {offsets = [0, 128], sizes = [8, 128], strides = [1, 1]} : vector<8x384xf32> to vector<8x128xf32>
    %428 = arith.addf %426, %427 : vector<8x128xf32>
    %429 = arith.negf %428 : vector<8x128xf32>
    %430 = math.exp %429 : vector<8x128xf32>
    %cst_98 = arith.constant 1.000000e+00 : f32
    %431 = vector.broadcast %cst_98 : f32 to vector<8x128xf32>
    %432 = arith.addf %431, %430 : vector<8x128xf32>
    %433 = arith.divf %431, %432 : vector<8x128xf32>
    %434 = vector.extract_strided_slice %415 {offsets = [0, 256], sizes = [8, 128], strides = [1, 1]} : vector<8x384xf32> to vector<8x128xf32>
    %435 = vector.extract_strided_slice %417 {offsets = [0, 256], sizes = [8, 128], strides = [1, 1]} : vector<8x384xf32> to vector<8x128xf32>
    %436 = vector.broadcast %4 : vector<1x128xf32> to vector<8x128xf32>
    %437 = arith.addf %435, %436 : vector<8x128xf32>
    %438 = arith.mulf %425, %437 : vector<8x128xf32>
    %439 = arith.addf %434, %438 : vector<8x128xf32>
    %440 = math.tanh %439 : vector<8x128xf32>
    %cst_99 = arith.constant 1.000000e+00 : f32
    %441 = vector.broadcast %cst_99 : f32 to vector<8x128xf32>
    %442 = arith.subf %441, %433 : vector<8x128xf32>
    %443 = arith.mulf %442, %440 : vector<8x128xf32>
    %444 = arith.mulf %433, %408 : vector<8x128xf32>
    %445 = arith.addf %443, %444 : vector<8x128xf32>
    %446 = arith.index_cast %c11_i32 : i32 to index
    %c0_100 = arith.constant 0 : index
    %c0_101 = arith.constant 0 : index
    %447 = vector.load %arg5[%446, %c0_100, %c0_101] : memref<16x8x128xf32, #tpu.memory_space<vmem>>, vector<1x8x128xf32>
    %448 = vector.shape_cast %447 : vector<1x8x128xf32> to vector<8x128xf32>
    %449 = vector.shape_cast %445 : vector<8x128xf32> to vector<1x8x128xf32>
    tpu.vector_store %arg5[%446, %c0_100, %c0_101], %449 {strides = array<i32>} : memref<16x8x128xf32, #tpu.memory_space<vmem>>, vector<1x8x128xf32>,
    %c12_i32 = arith.constant 12 : i32
    %450 = arith.index_cast %c12_i32 : i32 to index
    %c0_102 = arith.constant 0 : index
    %c0_103 = arith.constant 0 : index
    %451 = vector.load %arg1[%450, %c0_102, %c0_103] : memref<16x8x384xf32, #tpu.memory_space<vmem>>, vector<1x8x384xf32>
    %452 = vector.shape_cast %451 : vector<1x8x384xf32> to vector<8x384xf32>
    %453 = arith.truncf %445 : vector<8x128xf32> to vector<8x128xbf16>
    %cst_104 = arith.constant dense<0.000000e+00> : vector<8x384xf32>
    %454 = tpu.matmul %453, %3, %cst_104 {dimension_numbers = #tpu.dot_dimension_numbers<[1], [0], [0], [1], [0, 0, 1, 1], [], []>} : vector<8x128xbf16>, vector<128x384xbf16>, vector<8x384xf32> -> vector<8x384xf32>
    %455 = vector.extract_strided_slice %452 {offsets = [0, 0], sizes = [8, 128], strides = [1, 1]} : vector<8x384xf32> to vector<8x128xf32>
    %456 = vector.extract_strided_slice %454 {offsets = [0, 0], sizes = [8, 128], strides = [1, 1]} : vector<8x384xf32> to vector<8x128xf32>
    %457 = arith.addf %455, %456 : vector<8x128xf32>
    %458 = arith.negf %457 : vector<8x128xf32>
    %459 = math.exp %458 : vector<8x128xf32>
    %cst_105 = arith.constant 1.000000e+00 : f32
    %460 = vector.broadcast %cst_105 : f32 to vector<8x128xf32>
    %461 = arith.addf %460, %459 : vector<8x128xf32>
    %462 = arith.divf %460, %461 : vector<8x128xf32>
    %463 = vector.extract_strided_slice %452 {offsets = [0, 128], sizes = [8, 128], strides = [1, 1]} : vector<8x384xf32> to vector<8x128xf32>
    %464 = vector.extract_strided_slice %454 {offsets = [0, 128], sizes = [8, 128], strides = [1, 1]} : vector<8x384xf32> to vector<8x128xf32>
    %465 = arith.addf %463, %464 : vector<8x128xf32>
    %466 = arith.negf %465 : vector<8x128xf32>
    %467 = math.exp %466 : vector<8x128xf32>
    %cst_106 = arith.constant 1.000000e+00 : f32
    %468 = vector.broadcast %cst_106 : f32 to vector<8x128xf32>
    %469 = arith.addf %468, %467 : vector<8x128xf32>
    %470 = arith.divf %468, %469 : vector<8x128xf32>
    %471 = vector.extract_strided_slice %452 {offsets = [0, 256], sizes = [8, 128], strides = [1, 1]} : vector<8x384xf32> to vector<8x128xf32>
    %472 = vector.extract_strided_slice %454 {offsets = [0, 256], sizes = [8, 128], strides = [1, 1]} : vector<8x384xf32> to vector<8x128xf32>
    %473 = vector.broadcast %4 : vector<1x128xf32> to vector<8x128xf32>
    %474 = arith.addf %472, %473 : vector<8x128xf32>
    %475 = arith.mulf %462, %474 : vector<8x128xf32>
    %476 = arith.addf %471, %475 : vector<8x128xf32>
    %477 = math.tanh %476 : vector<8x128xf32>
    %cst_107 = arith.constant 1.000000e+00 : f32
    %478 = vector.broadcast %cst_107 : f32 to vector<8x128xf32>
    %479 = arith.subf %478, %470 : vector<8x128xf32>
    %480 = arith.mulf %479, %477 : vector<8x128xf32>
    %481 = arith.mulf %470, %445 : vector<8x128xf32>
    %482 = arith.addf %480, %481 : vector<8x128xf32>
    %483 = arith.index_cast %c12_i32 : i32 to index
    %c0_108 = arith.constant 0 : index
    %c0_109 = arith.constant 0 : index
    %484 = vector.load %arg5[%483, %c0_108, %c0_109] : memref<16x8x128xf32, #tpu.memory_space<vmem>>, vector<1x8x128xf32>
    %485 = vector.shape_cast %484 : vector<1x8x128xf32> to vector<8x128xf32>
    %486 = vector.shape_cast %482 : vector<8x128xf32> to vector<1x8x128xf32>
    tpu.vector_store %arg5[%483, %c0_108, %c0_109], %486 {strides = array<i32>} : memref<16x8x128xf32, #tpu.memory_space<vmem>>, vector<1x8x128xf32>,
    %c13_i32 = arith.constant 13 : i32
    %487 = arith.index_cast %c13_i32 : i32 to index
    %c0_110 = arith.constant 0 : index
    %c0_111 = arith.constant 0 : index
    %488 = vector.load %arg1[%487, %c0_110, %c0_111] : memref<16x8x384xf32, #tpu.memory_space<vmem>>, vector<1x8x384xf32>
    %489 = vector.shape_cast %488 : vector<1x8x384xf32> to vector<8x384xf32>
    %490 = arith.truncf %482 : vector<8x128xf32> to vector<8x128xbf16>
    %cst_112 = arith.constant dense<0.000000e+00> : vector<8x384xf32>
    %491 = tpu.matmul %490, %3, %cst_112 {dimension_numbers = #tpu.dot_dimension_numbers<[1], [0], [0], [1], [0, 0, 1, 1], [], []>} : vector<8x128xbf16>, vector<128x384xbf16>, vector<8x384xf32> -> vector<8x384xf32>
    %492 = vector.extract_strided_slice %489 {offsets = [0, 0], sizes = [8, 128], strides = [1, 1]} : vector<8x384xf32> to vector<8x128xf32>
    %493 = vector.extract_strided_slice %491 {offsets = [0, 0], sizes = [8, 128], strides = [1, 1]} : vector<8x384xf32> to vector<8x128xf32>
    %494 = arith.addf %492, %493 : vector<8x128xf32>
    %495 = arith.negf %494 : vector<8x128xf32>
    %496 = math.exp %495 : vector<8x128xf32>
    %cst_113 = arith.constant 1.000000e+00 : f32
    %497 = vector.broadcast %cst_113 : f32 to vector<8x128xf32>
    %498 = arith.addf %497, %496 : vector<8x128xf32>
    %499 = arith.divf %497, %498 : vector<8x128xf32>
    %500 = vector.extract_strided_slice %489 {offsets = [0, 128], sizes = [8, 128], strides = [1, 1]} : vector<8x384xf32> to vector<8x128xf32>
    %501 = vector.extract_strided_slice %491 {offsets = [0, 128], sizes = [8, 128], strides = [1, 1]} : vector<8x384xf32> to vector<8x128xf32>
    %502 = arith.addf %500, %501 : vector<8x128xf32>
    %503 = arith.negf %502 : vector<8x128xf32>
    %504 = math.exp %503 : vector<8x128xf32>
    %cst_114 = arith.constant 1.000000e+00 : f32
    %505 = vector.broadcast %cst_114 : f32 to vector<8x128xf32>
    %506 = arith.addf %505, %504 : vector<8x128xf32>
    %507 = arith.divf %505, %506 : vector<8x128xf32>
    %508 = vector.extract_strided_slice %489 {offsets = [0, 256], sizes = [8, 128], strides = [1, 1]} : vector<8x384xf32> to vector<8x128xf32>
    %509 = vector.extract_strided_slice %491 {offsets = [0, 256], sizes = [8, 128], strides = [1, 1]} : vector<8x384xf32> to vector<8x128xf32>
    %510 = vector.broadcast %4 : vector<1x128xf32> to vector<8x128xf32>
    %511 = arith.addf %509, %510 : vector<8x128xf32>
    %512 = arith.mulf %499, %511 : vector<8x128xf32>
    %513 = arith.addf %508, %512 : vector<8x128xf32>
    %514 = math.tanh %513 : vector<8x128xf32>
    %cst_115 = arith.constant 1.000000e+00 : f32
    %515 = vector.broadcast %cst_115 : f32 to vector<8x128xf32>
    %516 = arith.subf %515, %507 : vector<8x128xf32>
    %517 = arith.mulf %516, %514 : vector<8x128xf32>
    %518 = arith.mulf %507, %482 : vector<8x128xf32>
    %519 = arith.addf %517, %518 : vector<8x128xf32>
    %520 = arith.index_cast %c13_i32 : i32 to index
    %c0_116 = arith.constant 0 : index
    %c0_117 = arith.constant 0 : index
    %521 = vector.load %arg5[%520, %c0_116, %c0_117] : memref<16x8x128xf32, #tpu.memory_space<vmem>>, vector<1x8x128xf32>
    %522 = vector.shape_cast %521 : vector<1x8x128xf32> to vector<8x128xf32>
    %523 = vector.shape_cast %519 : vector<8x128xf32> to vector<1x8x128xf32>
    tpu.vector_store %arg5[%520, %c0_116, %c0_117], %523 {strides = array<i32>} : memref<16x8x128xf32, #tpu.memory_space<vmem>>, vector<1x8x128xf32>,
    %c14_i32 = arith.constant 14 : i32
    %524 = arith.index_cast %c14_i32 : i32 to index
    %c0_118 = arith.constant 0 : index
    %c0_119 = arith.constant 0 : index
    %525 = vector.load %arg1[%524, %c0_118, %c0_119] : memref<16x8x384xf32, #tpu.memory_space<vmem>>, vector<1x8x384xf32>
    %526 = vector.shape_cast %525 : vector<1x8x384xf32> to vector<8x384xf32>
    %527 = arith.truncf %519 : vector<8x128xf32> to vector<8x128xbf16>
    %cst_120 = arith.constant dense<0.000000e+00> : vector<8x384xf32>
    %528 = tpu.matmul %527, %3, %cst_120 {dimension_numbers = #tpu.dot_dimension_numbers<[1], [0], [0], [1], [0, 0, 1, 1], [], []>} : vector<8x128xbf16>, vector<128x384xbf16>, vector<8x384xf32> -> vector<8x384xf32>
    %529 = vector.extract_strided_slice %526 {offsets = [0, 0], sizes = [8, 128], strides = [1, 1]} : vector<8x384xf32> to vector<8x128xf32>
    %530 = vector.extract_strided_slice %528 {offsets = [0, 0], sizes = [8, 128], strides = [1, 1]} : vector<8x384xf32> to vector<8x128xf32>
    %531 = arith.addf %529, %530 : vector<8x128xf32>
    %532 = arith.negf %531 : vector<8x128xf32>
    %533 = math.exp %532 : vector<8x128xf32>
    %cst_121 = arith.constant 1.000000e+00 : f32
    %534 = vector.broadcast %cst_121 : f32 to vector<8x128xf32>
    %535 = arith.addf %534, %533 : vector<8x128xf32>
    %536 = arith.divf %534, %535 : vector<8x128xf32>
    %537 = vector.extract_strided_slice %526 {offsets = [0, 128], sizes = [8, 128], strides = [1, 1]} : vector<8x384xf32> to vector<8x128xf32>
    %538 = vector.extract_strided_slice %528 {offsets = [0, 128], sizes = [8, 128], strides = [1, 1]} : vector<8x384xf32> to vector<8x128xf32>
    %539 = arith.addf %537, %538 : vector<8x128xf32>
    %540 = arith.negf %539 : vector<8x128xf32>
    %541 = math.exp %540 : vector<8x128xf32>
    %cst_122 = arith.constant 1.000000e+00 : f32
    %542 = vector.broadcast %cst_122 : f32 to vector<8x128xf32>
    %543 = arith.addf %542, %541 : vector<8x128xf32>
    %544 = arith.divf %542, %543 : vector<8x128xf32>
    %545 = vector.extract_strided_slice %526 {offsets = [0, 256], sizes = [8, 128], strides = [1, 1]} : vector<8x384xf32> to vector<8x128xf32>
    %546 = vector.extract_strided_slice %528 {offsets = [0, 256], sizes = [8, 128], strides = [1, 1]} : vector<8x384xf32> to vector<8x128xf32>
    %547 = vector.broadcast %4 : vector<1x128xf32> to vector<8x128xf32>
    %548 = arith.addf %546, %547 : vector<8x128xf32>
    %549 = arith.mulf %536, %548 : vector<8x128xf32>
    %550 = arith.addf %545, %549 : vector<8x128xf32>
    %551 = math.tanh %550 : vector<8x128xf32>
    %cst_123 = arith.constant 1.000000e+00 : f32
    %552 = vector.broadcast %cst_123 : f32 to vector<8x128xf32>
    %553 = arith.subf %552, %544 : vector<8x128xf32>
    %554 = arith.mulf %553, %551 : vector<8x128xf32>
    %555 = arith.mulf %544, %519 : vector<8x128xf32>
    %556 = arith.addf %554, %555 : vector<8x128xf32>
    %557 = arith.index_cast %c14_i32 : i32 to index
    %c0_124 = arith.constant 0 : index
    %c0_125 = arith.constant 0 : index
    %558 = vector.load %arg5[%557, %c0_124, %c0_125] : memref<16x8x128xf32, #tpu.memory_space<vmem>>, vector<1x8x128xf32>
    %559 = vector.shape_cast %558 : vector<1x8x128xf32> to vector<8x128xf32>
    %560 = vector.shape_cast %556 : vector<8x128xf32> to vector<1x8x128xf32>
    tpu.vector_store %arg5[%557, %c0_124, %c0_125], %560 {strides = array<i32>} : memref<16x8x128xf32, #tpu.memory_space<vmem>>, vector<1x8x128xf32>,
    %c15_i32 = arith.constant 15 : i32
    %561 = arith.index_cast %c15_i32 : i32 to index
    %c0_126 = arith.constant 0 : index
    %c0_127 = arith.constant 0 : index
    %562 = vector.load %arg1[%561, %c0_126, %c0_127] : memref<16x8x384xf32, #tpu.memory_space<vmem>>, vector<1x8x384xf32>
    %563 = vector.shape_cast %562 : vector<1x8x384xf32> to vector<8x384xf32>
    %564 = arith.truncf %556 : vector<8x128xf32> to vector<8x128xbf16>
    %cst_128 = arith.constant dense<0.000000e+00> : vector<8x384xf32>
    %565 = tpu.matmul %564, %3, %cst_128 {dimension_numbers = #tpu.dot_dimension_numbers<[1], [0], [0], [1], [0, 0, 1, 1], [], []>} : vector<8x128xbf16>, vector<128x384xbf16>, vector<8x384xf32> -> vector<8x384xf32>
    %566 = vector.extract_strided_slice %563 {offsets = [0, 0], sizes = [8, 128], strides = [1, 1]} : vector<8x384xf32> to vector<8x128xf32>
    %567 = vector.extract_strided_slice %565 {offsets = [0, 0], sizes = [8, 128], strides = [1, 1]} : vector<8x384xf32> to vector<8x128xf32>
    %568 = arith.addf %566, %567 : vector<8x128xf32>
    %569 = arith.negf %568 : vector<8x128xf32>
    %570 = math.exp %569 : vector<8x128xf32>
    %cst_129 = arith.constant 1.000000e+00 : f32
    %571 = vector.broadcast %cst_129 : f32 to vector<8x128xf32>
    %572 = arith.addf %571, %570 : vector<8x128xf32>
    %573 = arith.divf %571, %572 : vector<8x128xf32>
    %574 = vector.extract_strided_slice %563 {offsets = [0, 128], sizes = [8, 128], strides = [1, 1]} : vector<8x384xf32> to vector<8x128xf32>
    %575 = vector.extract_strided_slice %565 {offsets = [0, 128], sizes = [8, 128], strides = [1, 1]} : vector<8x384xf32> to vector<8x128xf32>
    %576 = arith.addf %574, %575 : vector<8x128xf32>
    %577 = arith.negf %576 : vector<8x128xf32>
    %578 = math.exp %577 : vector<8x128xf32>
    %cst_130 = arith.constant 1.000000e+00 : f32
    %579 = vector.broadcast %cst_130 : f32 to vector<8x128xf32>
    %580 = arith.addf %579, %578 : vector<8x128xf32>
    %581 = arith.divf %579, %580 : vector<8x128xf32>
    %582 = vector.extract_strided_slice %563 {offsets = [0, 256], sizes = [8, 128], strides = [1, 1]} : vector<8x384xf32> to vector<8x128xf32>
    %583 = vector.extract_strided_slice %565 {offsets = [0, 256], sizes = [8, 128], strides = [1, 1]} : vector<8x384xf32> to vector<8x128xf32>
    %584 = vector.broadcast %4 : vector<1x128xf32> to vector<8x128xf32>
    %585 = arith.addf %583, %584 : vector<8x128xf32>
    %586 = arith.mulf %573, %585 : vector<8x128xf32>
    %587 = arith.addf %582, %586 : vector<8x128xf32>
    %588 = math.tanh %587 : vector<8x128xf32>
    %cst_131 = arith.constant 1.000000e+00 : f32
    %589 = vector.broadcast %cst_131 : f32 to vector<8x128xf32>
    %590 = arith.subf %589, %581 : vector<8x128xf32>
    %591 = arith.mulf %590, %588 : vector<8x128xf32>
    %592 = arith.mulf %581, %556 : vector<8x128xf32>
    %593 = arith.addf %591, %592 : vector<8x128xf32>
    %594 = arith.index_cast %c15_i32 : i32 to index
    %c0_132 = arith.constant 0 : index
    %c0_133 = arith.constant 0 : index
    %595 = vector.load %arg5[%594, %c0_132, %c0_133] : memref<16x8x128xf32, #tpu.memory_space<vmem>>, vector<1x8x128xf32>
    %596 = vector.shape_cast %595 : vector<1x8x128xf32> to vector<8x128xf32>
    %597 = vector.shape_cast %593 : vector<8x128xf32> to vector<1x8x128xf32>
    tpu.vector_store %arg5[%594, %c0_132, %c0_133], %597 {strides = array<i32>} : memref<16x8x128xf32, #tpu.memory_space<vmem>>, vector<1x8x128xf32>,
    %c16_i32 = arith.constant 16 : i32
    %c0_134 = arith.constant 0 : index
    %c0_135 = arith.constant 0 : index
    %598 = vector.load %arg7[%c0_134, %c0_135] : memref<8x128xf32, #tpu.memory_space<vmem>>, vector<8x128xf32>
    tpu.vector_store %arg7[%c0_134, %c0_135], %593 {strides = array<i32>} : memref<8x128xf32, #tpu.memory_space<vmem>>, vector<8x128xf32>,
    %c0_136 = arith.constant 0 : index
    %c0_137 = arith.constant 0 : index
    %599 = vector.load %arg6[%c0_136, %c0_137] : memref<8x128xf32, #tpu.memory_space<vmem>>, vector<8x128xf32>
    tpu.vector_store %arg6[%c0_136, %c0_137], %593 {strides = array<i32>} : memref<8x128xf32, #tpu.memory_space<vmem>>, vector<8x128xf32>,
    return
  }
  func.func @transform_0(%arg0: i32) -> (i32, i32, i32) {
    %c0_i32 = arith.constant 0 : i32
    %c0_i32_0 = arith.constant 0 : i32
    %c0_i32_1 = arith.constant 0 : i32
    return %arg0, %c0_i32, %c0_i32_0 : i32, i32, i32
  }
  func.func @transform_1(%arg0: i32) -> (i32, i32) {
    %c0_i32 = arith.constant 0 : i32
    %c0_i32_0 = arith.constant 0 : i32
    %c0_i32_1 = arith.constant 0 : i32
    return %c0_i32, %c0_i32_0 : i32, i32
  }
  func.func @transform_2(%arg0: i32) -> (i32, i32) {
    %c0_i32 = arith.constant 0 : i32
    %c0_i32_0 = arith.constant 0 : i32
    %c0_i32_1 = arith.constant 0 : i32
    return %c0_i32, %c0_i32_0 : i32, i32
  }
  func.func @transform_3(%arg0: i32) -> (i32, i32) {
    %c0_i32 = arith.constant 0 : i32
    %c0_i32_0 = arith.constant 0 : i32
    %c0_i32_1 = arith.constant 0 : i32
    return %c0_i32, %c0_i32_0 : i32, i32
  }
  func.func @transform_4(%arg0: i32) -> (i32, i32, i32) {
    %c0_i32 = arith.constant 0 : i32
    %c0_i32_0 = arith.constant 0 : i32
    %c0_i32_1 = arith.constant 0 : i32
    return %arg0, %c0_i32, %c0_i32_0 : i32, i32, i32
  }
  func.func @transform_5(%arg0: i32) -> (i32, i32) {
    %c0_i32 = arith.constant 0 : i32
    %c0_i32_0 = arith.constant 0 : i32
    %c0_i32_1 = arith.constant 0 : i32
    return %c0_i32, %c0_i32_0 : i32, i32
  }
}

</mosaic_0001>

<llo_original>
// kernel: gru_encoder_forward.4
$region0: #{gru_encoder_forward.4}
  #allocation0 [shape = 'u32[]', space=smem, size = 0x4, offset = 0x4, fixed_abs, tag = 'smem constant byte address 0x4 - core index']
  #allocation1 [shape = 'u32[72,128]{1,0:T(1,128)}', space=vmem, size = 0x9000, scoped, tag = 'internal scratch']
  #allocation2 [shape = 'f32[128,128]{1,0:T(8,128)}', space=vmem, size = 0x10000, scoped, tag = 'scratch operand']
  %s0 = inlined_call_operand.vmem [shape: bf16[128,128], index: 0, kind: input, shape index: {}]
  %s1 = inlined_call_operand.vmem [shape: bf16[128,384], index: 1, kind: input, shape index: {}]
  %s2 = inlined_call_operand.vmem [shape: f32[1,384], index: 2, kind: input, shape index: {}]
  %s3 = inlined_call_operand.vmem [shape: f32[128,384], index: 3, kind: output, shape index: {}]
  %s4 = sld [smem:[#allocation0]]
  $region128: #{gru_encoder_forward.4} parent=0
    _
  %s6 = ssub.s32 1, %s4
  %s7 = scalar_select 0, %s6, %s4
  $region1: #{gru_encoder_forward.4} parent=0
    #allocation3 [shape = 'u8[65536]{0}', space=vmem, size = 0x10000, scoped, tag = 'input window, operand 1']
    #allocation4 [shape = 'u8[131072]{0}', space=vmem, size = 0x20000, scoped, tag = 'output window, operand 0']
    loop: start=0, step=1, limit=5
    $region2: #{gru_encoder_forward.4} parent=1 // loop_pre_header
      _
    $region3: #{gru_encoder_forward.4} parent=1 // loop_header
      %s9 = sphi 0, %s13
      %p10 = scmp.ge.s32.totalorder %s9, 5
      %s16 = sphi 0, %s35
      %s17 = sphi 0, %s31
      %s18 = sphi 0, %s27
      %s19 = sphi 0, %s16
      %s20 = sphi 0, %s17
      %s21 = sphi 0, %s18
      %s22 = sphi 0, %s19
      %s23 = sphi 0, %s20
      %s24 = sphi 0, %s21
      %s40 = sphi 0, %s42
      %s43 = sphi 0, %s40
      %s44 = sphi 0, %s43
      %s60 = sphi 0, %s44
      %s68 = sphi 0, %s70
      %s71 = sphi 0, %s68
      %s72 = sphi 0, %s71
      %s88 = sphi 0, %s72
      %s94 = sphi 0, %s96
      %s97 = sphi 0, %s94
      %s98 = sphi 0, %s97
      %s114 = sphi 0, %s98
      %s122 = sphi 0, %s124
      %s125 = sphi 0, %s122
      %s126 = sphi 0, %s125
      %s142 = sphi 0, %s126
    $region4: #{gru_encoder_forward.4} parent=1 // loop_header_branch
      %12 = sbr.rel (%p10) target = $region8
    $region5: #{gru_encoder_forward.4} parent=1 // loop_body
      %s14 = ssub.s32 %s9, 1
      %s15 = ssub.s32 %s9, 2
      %s25 = sadd.s32 1, %s18
      %p26 = scmp.ge.s32.totalorder %s25, 1
      %s27 = scalar_select %p26, 0, %s25
      %s28 = sadd.s32 1, %s17
      %s29 = scalar_select %p26, %s28, %s17
      %p30 = scmp.ge.s32.totalorder %s29, 3
      %s31 = scalar_select %p30, 0, %s29
      %s32 = sadd.s32 1, %s16
      %s33 = scalar_select %p30, %s32, %s16
      %p34 = scmp.ge.s32.totalorder %s33, 1
      %s35 = scalar_select %p34, 0, %s33
      %s36 = ssub.s32 %s16, %s35
      %s37 = ssub.s32 %s18, %s27
      %s38 = sor.u32 %s36, %s37
      %p39 = scmp.eq.s32.totalorder %s38, 0
      %s41 = sadd.s32 %s40, 1
      %s42 = scalar_select %p39, %s40, %s41
      %p45 = pneg %p39
      %p46 = scmp.eq.s32.totalorder %s9, 2
      %p47 = por %p45, %p46
      %p48 = scmp.ne.s32.totalorder %s40, %s43
      %p49 = scmp.eq.s32.totalorder %s9, 0
      %p50 = por %p48, %p49
      %p51 = scmp.ne.s32.totalorder %s40, %s43
      %p52 = scmp.eq.s32.totalorder %s14, 2
      %p53 = por %p51, %p52
      %p54 = scmp.ne.s32.totalorder %s43, %s44
      %p55 = scmp.eq.s32.totalorder %s14, 0
      %p56 = por %p54, %p55
      %p57 = scmp.ne.s32.totalorder %s43, %s44
      %p58 = scmp.eq.s32.totalorder %s15, 2
      %p59 = por %p57, %p58
      %p61 = scmp.ne.s32.totalorder %s44, %s60
      %p62 = scmp.eq.s32.totalorder %s15, 0
      %p63 = por %p61, %p62
      %s64 = ssub.s32 %s18, %s27
      %s65 = ssub.s32 %s17, %s31
      %s66 = sor.u32 %s64, %s65
      %p67 = scmp.eq.s32.totalorder %s66, 0
      %s69 = sadd.s32 %s68, 1
      %s70 = scalar_select %p67, %s68, %s69
      %p73 = pneg %p67
      %p74 = scmp.eq.s32.totalorder %s9, 2
      %p75 = por %p73, %p74
      %p76 = scmp.ne.s32.totalorder %s68, %s71
      %p77 = scmp.eq.s32.totalorder %s9, 0
      %p78 = por %p76, %p77
      %p79 = scmp.ne.s32.totalorder %s68, %s71
      %p80 = scmp.eq.s32.totalorder %s14, 2
      %p81 = por %p79, %p80
      %p82 = scmp.ne.s32.totalorder %s71, %s72
      %p83 = scmp.eq.s32.totalorder %s14, 0
      %p84 = por %p82, %p83
      %p85 = scmp.ne.s32.totalorder %s71, %s72
      %p86 = scmp.eq.s32.totalorder %s15, 2
      %p87 = por %p85, %p86
      %p89 = scmp.ne.s32.totalorder %s72, %s88
      %p90 = scmp.eq.s32.totalorder %s15, 0
      %p91 = por %p89, %p90
      %s92 = ssub.s32 %s17, %s31
      %p93 = scmp.eq.s32.totalorder %s92, 0
      %s95 = sadd.s32 %s94, 1
      %s96 = scalar_select %p93, %s94, %s95
      %p99 = pneg %p93
      %p100 = scmp.eq.s32.totalorder %s9, 2
      %p101 = por %p99, %p100
      %p102 = scmp.ne.s32.totalorder %s94, %s97
      %p103 = scmp.eq.s32.totalorder %s9, 0
      %p104 = por %p102, %p103
      %p105 = scmp.ne.s32.totalorder %s94, %s97
      %p106 = scmp.eq.s32.totalorder %s14, 2
      %p107 = por %p105, %p106
      %p108 = scmp.ne.s32.totalorder %s97, %s98
      %p109 = scmp.eq.s32.totalorder %s14, 0
      %p110 = por %p108, %p109
      %p111 = scmp.ne.s32.totalorder %s97, %s98
      %p112 = scmp.eq.s32.totalorder %s15, 2
      %p113 = por %p111, %p112
      %p115 = scmp.ne.s32.totalorder %s98, %s114
      %p116 = scmp.eq.s32.totalorder %s15, 0
      %p117 = por %p115, %p116
      %s118 = ssub.s32 %s16, %s35
      %s119 = ssub.s32 %s17, %s31
      %s120 = sor.u32 %s118, %s119
      %p121 = scmp.eq.s32.totalorder %s120, 0
      %s123 = sadd.s32 %s122, 1
      %s124 = scalar_select %p121, %s122, %s123
      %p127 = pneg %p121
      %p128 = scmp.eq.s32.totalorder %s9, 2
      %p129 = por %p127, %p128
      %p130 = scmp.ne.s32.totalorder %s122, %s125
      %p131 = scmp.eq.s32.totalorder %s9, 0
      %p132 = por %p130, %p131
      %p133 = scmp.ne.s32.totalorder %s122, %s125
      %p134 = scmp.eq.s32.totalorder %s14, 2
      %p135 = por %p133, %p134
      %p136 = scmp.ne.s32.totalorder %s125, %s126
      %p137 = scmp.eq.s32.totalorder %s14, 0
      %p138 = por %p136, %p137
      %p139 = scmp.ne.s32.totalorder %s125, %s126
      %p140 = scmp.eq.s32.totalorder %s15, 2
      %p141 = por %p139, %p140
      %p143 = scmp.ne.s32.totalorder %s126, %s142
      %p144 = scmp.eq.s32.totalorder %s15, 0
      %p145 = por %p143, %p144
      %p146 = scmp.le.s32.totalorder 1, %s9
      %p147 = scmp.lt.s32.totalorder %s9, 4
      %p148 = pnand %p146, %p147
      %p149 = pneg %p148
      // Predicated region
      $region9: #{gru_encoder_forward.4} parent=5 // pred_check
        _
      $region10: #{gru_encoder_forward.4} parent=5 // pred_check_branch
        %151 = sbr.rel (%p148) target = $region12
      $region11: #{gru_encoder_forward.4} parent=5 // pred_region
        %s152 = ssub.s32 %s9, 1
        // Predicated region
        $region13: #{gru_encoder_forward.4} parent=11 // pred_check
          %p153 = pneg %p56
        $region14: #{gru_encoder_forward.4} parent=11 // pred_check_branch
          %155 = sbr.rel (%p153) target = $region16
        $region15: #{gru_encoder_forward.4} parent=11 // pred_region
          %s156 = smul.u32 16, %s19
          %p157 = scmp.lt.s32.totalorder %s156, 15
          %s158 = scalar_select %p157, %s156, 15
          %p159 = scmp.lt.s32.totalorder %s21, 0
          %s160 = scalar_select %p159, %s21, 0
          %s161 = sadd.s32 %s160, %s158
          %s162 = smul.addr %s161, 4
          %s163 = scalar_lea.vmem %s0, %s162
          %s164 = smul.u32 16, %s19
        $region16: #{gru_encoder_forward.4} parent=11 // pred_fallthru
          _
      $region12: #{gru_encoder_forward.4} parent=5 // pred_fallthru
        _
      %p165 = scmp.lt.s32.totalorder %s9, 3
      // Predicated region
      $region17: #{gru_encoder_forward.4} parent=5 // pred_check
        %p166 = pneg %p165
      $region18: #{gru_encoder_forward.4} parent=5 // pred_check_branch
        %168 = sbr.rel (%p166) target = $region20
      $region19: #{gru_encoder_forward.4} parent=5 // pred_region
        // Predicated region
        $region21: #{gru_encoder_forward.4} parent=19 // pred_check
          %p169 = pneg %p78
        $region22: #{gru_encoder_forward.4} parent=19 // pred_check_branch
          %171 = sbr.rel (%p169) target = $region24
        $region23: #{gru_encoder_forward.4} parent=19 // pred_region
          %s172 = sand.u32 %s68, 1
          %s173 = sand.u32 %s68, 1
          %s174 = smul.addr %s173, 64
          %s175 = scalar_lea.vmem [#allocation3], %s174
          %s176 = smul.u32 16, %s18
          %s177 = smul.addr %s176, 3
          %s178 = sadd.s32 %s17, %s177
          %s179 = smul.addr %s178, 4
          %s180 = scalar_lea.vmem %s1, %s179
          // Predicated region
          $region25: #{gru_encoder_forward.4} parent=23 // pred_check
            _
          $region26: #{gru_encoder_forward.4} parent=23 // pred_check_branch
            %182 = sbr.rel (0) target = $region28
          $region27: #{gru_encoder_forward.4} parent=23 // pred_region
            // Predicated region
            $region29: #{gru_encoder_forward.4} parent=27 // pred_check
              _
            $region30: #{gru_encoder_forward.4} parent=27 // pred_check_branch
              %184 = sbr.rel target = $region32
            $region31: #{gru_encoder_forward.4} parent=27 // pred_region
              // Predicated region
              $region44: #{gru_encoder_forward.4} parent=31 // pred_check
                _
              $region45: #{gru_encoder_forward.4} parent=31 // pred_check_branch
                %230 = sbr.rel (0) target = $region47
              $region46: #{gru_encoder_forward.4} parent=31 // pred_region
                loop: start=0, step=1, limit=1
                $region48: #{gru_encoder_forward.4} parent=46 // loop_pre_header
                  _
                $region49: #{gru_encoder_forward.4} parent=46 // loop_header
                  %s232 = sphi 0, %s236
                  %p233 = scmp.ge.s32.totalorder %s232, 1
                  %s237 = sphi %s180, %s180
                  %s238 = sphi %s175, %s175
                $region50: #{gru_encoder_forward.4} parent=46 // loop_header_branch
                  %235 = sbr.rel (%p233) target = $region54
                $region51: #{gru_encoder_forward.4} parent=46 // loop_body
                  _
                $region52: #{gru_encoder_forward.4} parent=46 // loop_footer
                  %s236 = sadd.s32 1, %s232
                $region53: #{gru_encoder_forward.4} parent=46 // loop_footer_branch
                  %231 = sbr.rel target = $region49
                $region54: #{gru_encoder_forward.4} parent=46 // loop_exit
                  _
                %s240 = ssub.s32 16, 1
                loop: start=0, step=1, limit=1
                $region55: #{gru_encoder_forward.4} parent=46 // loop_pre_header
                  _
                $region56: #{gru_encoder_forward.4} parent=46 // loop_header
                  %s242 = sphi 0, %s246
                  %p243 = scmp.ge.s32.totalorder %s242, 1
                  %s247 = sphi %s180, %s180
                  %s248 = sphi %s175, %s175
                $region57: #{gru_encoder_forward.4} parent=46 // loop_header_branch
                  %245 = sbr.rel (%p243) target = $region61
                $region58: #{gru_encoder_forward.4} parent=46 // loop_body
                  %v249 = vld [vmem:[%s247] sm:%s240]
                  %250 = vst [vmem:[%s248] sm:%s240] %v249
                  %v251 = vld [vmem:[%s247 + $0xc] sm:%s240]
                  %252 = vst [vmem:[%s248 + $0x4] sm:%s240] %v251
                  %v253 = vld [vmem:[%s247 + $0x18] sm:%s240]
                  %254 = vst [vmem:[%s248 + $0x8] sm:%s240] %v253
                  %v255 = vld [vmem:[%s247 + $0x24] sm:%s240]
                  %256 = vst [vmem:[%s248 + $0xc] sm:%s240] %v255
                  %v257 = vld [vmem:[%s247 + $0x30] sm:%s240]
                  %258 = vst [vmem:[%s248 + $0x10] sm:%s240] %v257
                  %v259 = vld [vmem:[%s247 + $0x3c] sm:%s240]
                  %260 = vst [vmem:[%s248 + $0x14] sm:%s240] %v259
                  %v261 = vld [vmem:[%s247 + $0x48] sm:%s240]
                  %262 = vst [vmem:[%s248 + $0x18] sm:%s240] %v261
                  %v263 = vld [vmem:[%s247 + $0x54] sm:%s240]
                  %264 = vst [vmem:[%s248 + $0x1c] sm:%s240] %v263
                  %v265 = vld [vmem:[%s247 + $0x60] sm:%s240]
                  %266 = vst [vmem:[%s248 + $0x20] sm:%s240] %v265
                  %v267 = vld [vmem:[%s247 + $0x6c] sm:%s240]
                  %268 = vst [vmem:[%s248 + $0x24] sm:%s240] %v267
                  %v269 = vld [vmem:[%s247 + $0x78] sm:%s240]
                  %270 = vst [vmem:[%s248 + $0x28] sm:%s240] %v269
                  %v271 = vld [vmem:[%s247 + $0x84] sm:%s240]
                  %272 = vst [vmem:[%s248 + $0x2c] sm:%s240] %v271
                  %v273 = vld [vmem:[%s247 + $0x90] sm:%s240]
                  %274 = vst [vmem:[%s248 + $0x30] sm:%s240] %v273
                  %v275 = vld [vmem:[%s247 + $0x9c] sm:%s240]
                  %276 = vst [vmem:[%s248 + $0x34] sm:%s240] %v275
                  %v277 = vld [vmem:[%s247 + $0xa8] sm:%s240]
                  %278 = vst [vmem:[%s248 + $0x38] sm:%s240] %v277
                  %v279 = vld [vmem:[%s247 + $0xb4] sm:%s240]
                  %280 = vst [vmem:[%s248 + $0x3c] sm:%s240] %v279
                $region59: #{gru_encoder_forward.4} parent=46 // loop_footer
                  %s246 = sadd.s32 1, %s242
                $region60: #{gru_encoder_forward.4} parent=46 // loop_footer_branch
                  %241 = sbr.rel target = $region56
                $region61: #{gru_encoder_forward.4} parent=46 // loop_exit
                  _
              $region47: #{gru_encoder_forward.4} parent=31 // pred_fallthru
                _
            $region32: #{gru_encoder_forward.4} parent=27 // pred_fallthru
              _
            // Predicated region
            $region33: #{gru_encoder_forward.4} parent=27 // pred_check
              _
            $region34: #{gru_encoder_forward.4} parent=27 // pred_check_branch
              %186 = sbr.rel (0) target = $region36
            $region35: #{gru_encoder_forward.4} parent=27 // pred_region
              %s188 = ssub.s32 16, 1
              loop: start=0, step=1, limit=1
              $region37: #{gru_encoder_forward.4} parent=35 // loop_pre_header
                _
              $region38: #{gru_encoder_forward.4} parent=35 // loop_header
                %s190 = sphi 0, %s194
                %p191 = scmp.ge.s32.totalorder %s190, 1
                %s195 = sphi %s180, %s180
                %s196 = sphi %s175, %s175
              $region39: #{gru_encoder_forward.4} parent=35 // loop_header_branch
                %193 = sbr.rel (%p191) target = $region43
              $region40: #{gru_encoder_forward.4} parent=35 // loop_body
                %v197 = vld [vmem:[%s195] sm:%s188]
                %198 = vst [vmem:[%s196] sm:%s188] %v197
                %v199 = vld [vmem:[%s195 + $0xc] sm:%s188]
                %200 = vst [vmem:[%s196 + $0x4] sm:%s188] %v199
                %v201 = vld [vmem:[%s195 + $0x18] sm:%s188]
                %202 = vst [vmem:[%s196 + $0x8] sm:%s188] %v201
                %v203 = vld [vmem:[%s195 + $0x24] sm:%s188]
                %204 = vst [vmem:[%s196 + $0xc] sm:%s188] %v203
                %v205 = vld [vmem:[%s195 + $0x30] sm:%s188]
                %206 = vst [vmem:[%s196 + $0x10] sm:%s188] %v205
                %v207 = vld [vmem:[%s195 + $0x3c] sm:%s188]
                %208 = vst [vmem:[%s196 + $0x14] sm:%s188] %v207
                %v209 = vld [vmem:[%s195 + $0x48] sm:%s188]
                %210 = vst [vmem:[%s196 + $0x18] sm:%s188] %v209
                %v211 = vld [vmem:[%s195 + $0x54] sm:%s188]
                %212 = vst [vmem:[%s196 + $0x1c] sm:%s188] %v211
                %v213 = vld [vmem:[%s195 + $0x60] sm:%s188]
                %214 = vst [vmem:[%s196 + $0x20] sm:%s188] %v213
                %v215 = vld [vmem:[%s195 + $0x6c] sm:%s188]
                %216 = vst [vmem:[%s196 + $0x24] sm:%s188] %v215
                %v217 = vld [vmem:[%s195 + $0x78] sm:%s188]
                %218 = vst [vmem:[%s196 + $0x28] sm:%s188] %v217
                %v219 = vld [vmem:[%s195 + $0x84] sm:%s188]
                %220 = vst [vmem:[%s196 + $0x2c] sm:%s188] %v219
                %v221 = vld [vmem:[%s195 + $0x90] sm:%s188]
                %222 = vst [vmem:[%s196 + $0x30] sm:%s188] %v221
                %v223 = vld [vmem:[%s195 + $0x9c] sm:%s188]
                %224 = vst [vmem:[%s196 + $0x34] sm:%s188] %v223
                %v225 = vld [vmem:[%s195 + $0xa8] sm:%s188]
                %226 = vst [vmem:[%s196 + $0x38] sm:%s188] %v225
                %v227 = vld [vmem:[%s195 + $0xb4] sm:%s188]
                %228 = vst [vmem:[%s196 + $0x3c] sm:%s188] %v227
              $region41: #{gru_encoder_forward.4} parent=35 // loop_footer
                %s194 = sadd.s32 1, %s190
              $region42: #{gru_encoder_forward.4} parent=35 // loop_footer_branch
                %189 = sbr.rel target = $region38
              $region43: #{gru_encoder_forward.4} parent=35 // loop_exit
                _
            $region36: #{gru_encoder_forward.4} parent=27 // pred_fallthru
              _
          $region28: #{gru_encoder_forward.4} parent=23 // pred_fallthru
            _
          %281 = vnop
        $region24: #{gru_encoder_forward.4} parent=19 // pred_fallthru
          _
        // Predicated region
        $region62: #{gru_encoder_forward.4} parent=19 // pred_check
          %p282 = pneg %p104
        $region63: #{gru_encoder_forward.4} parent=19 // pred_check_branch
          %284 = sbr.rel (%p282) target = $region65
        $region64: #{gru_encoder_forward.4} parent=19 // pred_region
          %p285 = scmp.lt.s32.totalorder %s17, 2
          %s286 = scalar_select %p285, %s17, 2
          %s287 = scalar_lea.vmem %s2, %s286
        $region65: #{gru_encoder_forward.4} parent=19 // pred_fallthru
          _
      $region20: #{gru_encoder_forward.4} parent=5 // pred_fallthru
        _
      %p288 = scmp.le.s32.totalorder 1, %s9
      %p289 = scmp.lt.s32.totalorder %s9, 4
      %p290 = pnand %p288, %p289
      %p291 = pneg %p290
      // Predicated region
      $region66: #{gru_encoder_forward.4} parent=5 // pred_check
        _
      $region67: #{gru_encoder_forward.4} parent=5 // pred_check_branch
        %293 = sbr.rel (%p290) target = $region69
      $region68: #{gru_encoder_forward.4} parent=5 // pred_region
        %s294 = ssub.s32 %s9, 1
        %s295 = sand.u32 %s71, 1
        %s296 = sand.u32 %s71, 1
        %s297 = smul.addr %s296, 64
        %s298 = scalar_lea.vmem [#allocation3], %s297
        // Predicated region
        $region70: #{gru_encoder_forward.4} parent=68 // pred_check
          %p299 = pneg %p84
        $region71: #{gru_encoder_forward.4} parent=68 // pred_check_branch
          %301 = sbr.rel (%p299) target = $region73
        $region72: #{gru_encoder_forward.4} parent=68 // pred_region
          _
        $region73: #{gru_encoder_forward.4} parent=68 // pred_fallthru
          _
        %s302 = smul.u32 16, %s19
        %p303 = scmp.lt.s32.totalorder %s302, 15
        %s304 = scalar_select %p303, %s302, 15
        %p305 = scmp.lt.s32.totalorder %s21, 0
        %s306 = scalar_select %p305, %s21, 0
        %s307 = sadd.s32 %s306, %s304
        %s308 = smul.addr %s307, 4
        %s309 = scalar_lea.vmem %s0, %s308
        %p310 = pneg %p56
        %p311 = pneg %p53
        %s312 = sand.u32 %s71, 1
        %s313 = sand.u32 %s71, 1
        %s314 = smul.addr %s313, 64
        %s315 = scalar_lea.vmem [#allocation3], %s314
        %p316 = pneg %p84
        %p317 = pneg %p81
        %p318 = scmp.lt.s32.totalorder %s20, 2
        %s319 = scalar_select %p318, %s20, 2
        %s320 = scalar_lea.vmem %s2, %s319
        %p321 = pneg %p110
        %p322 = pneg %p107
        %p323 = pneg %p138
        %p324 = pneg %p135
        %s325 = sand.u32 %s125, 1
        %s326 = sand.u32 %s125, 1
        %s327 = smul.addr %s326, 128
        %s328 = scalar_lea.vmem [#allocation4], %s327
        %s329 = smul.u32 16, %s19
        %p330 = scmp.lt.s32.totalorder %s329, 15
        %s331 = scalar_select %p330, %s329, 15
        %p332 = scmp.lt.s32.totalorder %s21, 0
        %s333 = scalar_select %p332, %s21, 0
        %s334 = sadd.s32 %s333, %s331
        %s335 = smul.addr %s334, 4
        %s336 = scalar_lea.vmem %s0, %s335
        %s337 = smul.u32 16, %s19
        %s338 = smul.u32 16, %s21
        %p339 = scmp.lt.s32.totalorder %s20, 2
        %s340 = scalar_select %p339, %s20, 2
        %s341 = scalar_lea.vmem %s2, %s340
        %s342 = smul.u32 16, %s19
        %p343 = scmp.eq.s32.totalorder %s21, 0
        // Predicated region
        $region74: #{gru_encoder_forward.4} parent=68 // pred_check
          %p344 = pneg %p343
        $region75: #{gru_encoder_forward.4} parent=68 // pred_check_branch
          %346 = sbr.rel (%p344) target = $region77
        $region76: #{gru_encoder_forward.4} parent=68 // pred_region
          %347 = vst [vmem:[#allocation2] sm:$0xff] 0.0
          %348 = vst [vmem:[#allocation2 + $0x8] sm:$0xff] 0.0
          %349 = vst [vmem:[#allocation2 + $0x10] sm:$0xff] 0.0
          %350 = vst [vmem:[#allocation2 + $0x18] sm:$0xff] 0.0
          %351 = vst [vmem:[#allocation2 + $0x20] sm:$0xff] 0.0
          %352 = vst [vmem:[#allocation2 + $0x28] sm:$0xff] 0.0
          %353 = vst [vmem:[#allocation2 + $0x30] sm:$0xff] 0.0
          %354 = vst [vmem:[#allocation2 + $0x38] sm:$0xff] 0.0
          %355 = vst [vmem:[#allocation2 + $0x40] sm:$0xff] 0.0
          %356 = vst [vmem:[#allocation2 + $0x48] sm:$0xff] 0.0
          %357 = vst [vmem:[#allocation2 + $0x50] sm:$0xff] 0.0
          %358 = vst [vmem:[#allocation2 + $0x58] sm:$0xff] 0.0
          %359 = vst [vmem:[#allocation2 + $0x60] sm:$0xff] 0.0
          %360 = vst [vmem:[#allocation2 + $0x68] sm:$0xff] 0.0
          %361 = vst [vmem:[#allocation2 + $0x70] sm:$0xff] 0.0
          %362 = vst [vmem:[#allocation2 + $0x78] sm:$0xff] 0.0
        $region77: #{gru_encoder_forward.4} parent=68 // pred_fallthru
          _
        %v363 = vld [vmem:[#allocation2] sm:$0xff]
        %v364 = vld [vmem:[#allocation2 + $0x8] sm:$0xff]
        %v365 = vld [vmem:[#allocation2 + $0x10] sm:$0xff]
        %v366 = vld [vmem:[#allocation2 + $0x18] sm:$0xff]
        %v367 = vld [vmem:[#allocation2 + $0x20] sm:$0xff]
        %v368 = vld [vmem:[#allocation2 + $0x28] sm:$0xff]
        %v369 = vld [vmem:[#allocation2 + $0x30] sm:$0xff]
        %v370 = vld [vmem:[#allocation2 + $0x38] sm:$0xff]
        %v371 = vld [vmem:[#allocation2 + $0x40] sm:$0xff]
        %v372 = vld [vmem:[#allocation2 + $0x48] sm:$0xff]
        %v373 = vld [vmem:[#allocation2 + $0x50] sm:$0xff]
        %v374 = vld [vmem:[#allocation2 + $0x58] sm:$0xff]
        %v375 = vld [vmem:[#allocation2 + $0x60] sm:$0xff]
        %v376 = vld [vmem:[#allocation2 + $0x68] sm:$0xff]
        %v377 = vld [vmem:[#allocation2 + $0x70] sm:$0xff]
        %v378 = vld [vmem:[#allocation2 + $0x78] sm:$0xff]
        %v379 = vld [vmem:[%s336] sm:$0xf]
        %v380 = vld [vmem:[%s336 + $0x4] sm:$0xf]
        %v381 = vld [vmem:[%s336 + $0x8] sm:$0xf]
        %v382 = vld [vmem:[%s336 + $0xc] sm:$0xf]
        %v383 = vld [vmem:[%s336 + $0x10] sm:$0xf]
        %v384 = vld [vmem:[%s336 + $0x14] sm:$0xf]
        %v385 = vld [vmem:[%s336 + $0x18] sm:$0xf]
        %v386 = vld [vmem:[%s336 + $0x1c] sm:$0xf]
        %v387 = vld [vmem:[%s336 + $0x20] sm:$0xf]
        %v388 = vld [vmem:[%s336 + $0x24] sm:$0xf]
        %v389 = vld [vmem:[%s336 + $0x28] sm:$0xf]
        %v390 = vld [vmem:[%s336 + $0x2c] sm:$0xf]
        %v391 = vld [vmem:[%s336 + $0x30] sm:$0xf]
        %v392 = vld [vmem:[%s336 + $0x34] sm:$0xf]
        %v393 = vld [vmem:[%s336 + $0x38] sm:$0xf]
        %v394 = vld [vmem:[%s336 + $0x3c] sm:$0xf]
        %v395 = vld [vmem:[%s298] sm:$0xf]
        %v396 = vld [vmem:[%s298 + $0x4] sm:$0xf]
        %v397 = vld [vmem:[%s298 + $0x8] sm:$0xf]
        %v398 = vld [vmem:[%s298 + $0xc] sm:$0xf]
        %v399 = vld [vmem:[%s298 + $0x10] sm:$0xf]
        %v400 = vld [vmem:[%s298 + $0x14] sm:$0xf]
        %v401 = vld [vmem:[%s298 + $0x18] sm:$0xf]
        %v402 = vld [vmem:[%s298 + $0x1c] sm:$0xf]
        %v403 = vld [vmem:[%s298 + $0x20] sm:$0xf]
        %v404 = vld [vmem:[%s298 + $0x24] sm:$0xf]
        %v405 = vld [vmem:[%s298 + $0x28] sm:$0xf]
        %v406 = vld [vmem:[%s298 + $0x2c] sm:$0xf]
        %v407 = vld [vmem:[%s298 + $0x30] sm:$0xf]
        %v408 = vld [vmem:[%s298 + $0x34] sm:$0xf]
        %v409 = vld [vmem:[%s298 + $0x38] sm:$0xf]
        %v410 = vld [vmem:[%s298 + $0x3c] sm:$0xf]
        %v427 = vunpack.c.l.b16 %v379
        %v428 = vunpack.c.l.b16 %v380
        %v429 = vunpack.c.l.b16 %v381
        %v430 = vunpack.c.l.b16 %v382
        %v431 = vunpack.c.l.b16 %v383
        %v432 = vunpack.c.l.b16 %v384
        %v433 = vunpack.c.l.b16 %v385
        %v434 = vunpack.c.l.b16 %v386
        %v435 = vunpack.c.l.b16 %v387
        %v436 = vunpack.c.l.b16 %v388
        %v437 = vunpack.c.l.b16 %v389
        %v438 = vunpack.c.l.b16 %v390
        %v439 = vunpack.c.l.b16 %v391
        %v440 = vunpack.c.l.b16 %v392
        %v441 = vunpack.c.l.b16 %v393
        %v442 = vunpack.c.l.b16 %v394
        %v443 = vpack.c.b16 %v428, %v427
        %v444 = vpack.c.b16 %v430, %v429
        %v445 = vpack.c.b16 %v432, %v431
        %v446 = vpack.c.b16 %v434, %v433
        %v447 = vpack.c.b16 %v436, %v435
        %v448 = vpack.c.b16 %v438, %v437
        %v449 = vpack.c.b16 %v440, %v439
        %v450 = vpack.c.b16 %v442, %v441
        %v475 = vunpack.c.l.b16 %v395
        %v476 = vunpack.c.l.b16 %v396
        %v477 = vunpack.c.l.b16 %v397
        %v478 = vunpack.c.l.b16 %v398
        %v479 = vunpack.c.l.b16 %v399
        %v480 = vunpack.c.l.b16 %v400
        %v481 = vunpack.c.l.b16 %v401
        %v482 = vunpack.c.l.b16 %v402
        %v483 = vunpack.c.l.b16 %v403
        %v484 = vunpack.c.l.b16 %v404
        %v485 = vunpack.c.l.b16 %v405
        %v486 = vunpack.c.l.b16 %v406
        %v487 = vunpack.c.l.b16 %v407
        %v488 = vunpack.c.l.b16 %v408
        %v489 = vunpack.c.l.b16 %v409
        %v490 = vunpack.c.l.b16 %v410
        %v491 = vpack.c.b16 %v476, %v475
        %v492 = vpack.c.b16 %v478, %v477
        %v493 = vpack.c.b16 %v480, %v479
        %v494 = vpack.c.b16 %v482, %v481
        %v495 = vpack.c.b16 %v484, %v483
        %v496 = vpack.c.b16 %v486, %v485
        %v497 = vpack.c.b16 %v488, %v487
        %v498 = vpack.c.b16 %v490, %v489
        %507 = vmatpush.bf16.msra.mxu0 %v498
        %508 = vmatpush.bf16.msra.mxu0 %v497
        %509 = vmatpush.bf16.msra.mxu0 %v496
        %510 = vmatpush.bf16.msra.mxu0 %v495
        %511 = vmatpush.bf16.msra.mxu0 %v494
        %512 = vmatpush.bf16.msra.mxu0 %v493
        %513 = vmatpush.bf16.msra.mxu0 %v492
        %514 = vmatpush.bf16.msra.mxu0 %v491
        %515 = vmatmul.bf16.gmra.mxu0 %v443
        %v516 = vpop.f32.mrf.mxu0
        %v517 = vadd.f32 0.0, %v516
        %v518 = vpop.f32.mrf.mxu0
        %v519 = vadd.f32 0.0, %v518
        %520 = vmatmul.bf16.gmra.mxu0 %v444
        %v521 = vpop.f32.mrf.mxu0
        %v522 = vadd.f32 0.0, %v521
        %v523 = vpop.f32.mrf.mxu0
        %v524 = vadd.f32 0.0, %v523
        %525 = vmatmul.bf16.gmra.mxu0 %v445
        %v526 = vpop.f32.mrf.mxu0
        %v527 = vadd.f32 0.0, %v526
        %v528 = vpop.f32.mrf.mxu0
        %v529 = vadd.f32 0.0, %v528
        %530 = vmatmul.bf16.gmra.mxu0 %v446
        %v531 = vpop.f32.mrf.mxu0
        %v532 = vadd.f32 0.0, %v531
        %v533 = vpop.f32.mrf.mxu0
        %v534 = vadd.f32 0.0, %v533
        %535 = vmatmul.bf16.gmra.mxu0 %v447
        %v536 = vpop.f32.mrf.mxu0
        %v537 = vadd.f32 0.0, %v536
        %v538 = vpop.f32.mrf.mxu0
        %v539 = vadd.f32 0.0, %v538
        %540 = vmatmul.bf16.gmra.mxu0 %v448
        %v541 = vpop.f32.mrf.mxu0
        %v542 = vadd.f32 0.0, %v541
        %v543 = vpop.f32.mrf.mxu0
        %v544 = vadd.f32 0.0, %v543
        %545 = vmatmul.bf16.gmra.mxu0 %v449
        %v546 = vpop.f32.mrf.mxu0
        %v547 = vadd.f32 0.0, %v546
        %v548 = vpop.f32.mrf.mxu0
        %v549 = vadd.f32 0.0, %v548
        %550 = vmatmul.bf16.gmra.mxu0 %v450
        %v551 = vpop.f32.mrf.mxu0
        %v552 = vadd.f32 0.0, %v551
        %v553 = vpop.f32.mrf.mxu0
        %v554 = vadd.f32 0.0, %v553
        %555 = vdwg.mxu0
        %v556 = vadd.f32 %v363, %v517
        %v557 = vadd.f32 %v364, %v519
        %v558 = vadd.f32 %v365, %v522
        %v559 = vadd.f32 %v366, %v524
        %v560 = vadd.f32 %v367, %v527
        %v561 = vadd.f32 %v368, %v529
        %v562 = vadd.f32 %v369, %v532
        %v563 = vadd.f32 %v370, %v534
        %v564 = vadd.f32 %v371, %v537
        %v565 = vadd.f32 %v372, %v539
        %v566 = vadd.f32 %v373, %v542
        %v567 = vadd.f32 %v374, %v544
        %v568 = vadd.f32 %v375, %v547
        %v569 = vadd.f32 %v376, %v549
        %v570 = vadd.f32 %v377, %v552
        %v571 = vadd.f32 %v378, %v554
        %572 = vst [vmem:[#allocation2] sm:$0xff] %v556
        %573 = vst [vmem:[#allocation2 + $0x8] sm:$0xff] %v557
        %574 = vst [vmem:[#allocation2 + $0x10] sm:$0xff] %v558
        %575 = vst [vmem:[#allocation2 + $0x18] sm:$0xff] %v559
        %576 = vst [vmem:[#allocation2 + $0x20] sm:$0xff] %v560
        %577 = vst [vmem:[#allocation2 + $0x28] sm:$0xff] %v561
        %578 = vst [vmem:[#allocation2 + $0x30] sm:$0xff] %v562
        %579 = vst [vmem:[#allocation2 + $0x38] sm:$0xff] %v563
        %580 = vst [vmem:[#allocation2 + $0x40] sm:$0xff] %v564
        %581 = vst [vmem:[#allocation2 + $0x48] sm:$0xff] %v565
        %582 = vst [vmem:[#allocation2 + $0x50] sm:$0xff] %v566
        %583 = vst [vmem:[#allocation2 + $0x58] sm:$0xff] %v567
        %584 = vst [vmem:[#allocation2 + $0x60] sm:$0xff] %v568
        %585 = vst [vmem:[#allocation2 + $0x68] sm:$0xff] %v569
        %586 = vst [vmem:[#allocation2 + $0x70] sm:$0xff] %v570
        %587 = vst [vmem:[#allocation2 + $0x78] sm:$0xff] %v571
        // Predicated region
        $region78: #{gru_encoder_forward.4} parent=68 // pred_check
          %p588 = pneg %p343
        $region79: #{gru_encoder_forward.4} parent=68 // pred_check_branch
          %590 = sbr.rel (%p588) target = $region81
        $region80: #{gru_encoder_forward.4} parent=68 // pred_region
          %v591 = vld [vmem:[#allocation2] sm:$0xff]
          %v592 = vld [vmem:[#allocation2 + $0x8] sm:$0xff]
          %v593 = vld [vmem:[#allocation2 + $0x10] sm:$0xff]
          %v594 = vld [vmem:[#allocation2 + $0x18] sm:$0xff]
          %v595 = vld [vmem:[#allocation2 + $0x20] sm:$0xff]
          %v596 = vld [vmem:[#allocation2 + $0x28] sm:$0xff]
          %v597 = vld [vmem:[#allocation2 + $0x30] sm:$0xff]
          %v598 = vld [vmem:[#allocation2 + $0x38] sm:$0xff]
          %v599 = vld [vmem:[#allocation2 + $0x40] sm:$0xff]
          %v600 = vld [vmem:[#allocation2 + $0x48] sm:$0xff]
          %v601 = vld [vmem:[#allocation2 + $0x50] sm:$0xff]
          %v602 = vld [vmem:[#allocation2 + $0x58] sm:$0xff]
          %v603 = vld [vmem:[#allocation2 + $0x60] sm:$0xff]
          %v604 = vld [vmem:[#allocation2 + $0x68] sm:$0xff]
          %v605 = vld [vmem:[#allocation2 + $0x70] sm:$0xff]
          %v606 = vld [vmem:[#allocation2 + $0x78] sm:$0xff]
          %v607 = vld [vmem:[%s341] sm:$0x1]
          %v609 = vperm.slane %v607, 0
          %v611 = vadd.f32 %v591, %v609
          %v612 = vadd.f32 %v592, %v609
          %v613 = vadd.f32 %v593, %v609
          %v614 = vadd.f32 %v594, %v609
          %v615 = vadd.f32 %v595, %v609
          %v616 = vadd.f32 %v596, %v609
          %v617 = vadd.f32 %v597, %v609
          %v618 = vadd.f32 %v598, %v609
          %v619 = vadd.f32 %v599, %v609
          %v620 = vadd.f32 %v600, %v609
          %v621 = vadd.f32 %v601, %v609
          %v622 = vadd.f32 %v602, %v609
          %v623 = vadd.f32 %v603, %v609
          %v624 = vadd.f32 %v604, %v609
          %v625 = vadd.f32 %v605, %v609
          %v626 = vadd.f32 %v606, %v609
          %627 = vst [vmem:[%s328] sm:$0xff] %v611
          %628 = vst [vmem:[%s328 + $0x8] sm:$0xff] %v612
          %629 = vst [vmem:[%s328 + $0x10] sm:$0xff] %v613
          %630 = vst [vmem:[%s328 + $0x18] sm:$0xff] %v614
          %631 = vst [vmem:[%s328 + $0x20] sm:$0xff] %v615
          %632 = vst [vmem:[%s328 + $0x28] sm:$0xff] %v616
          %633 = vst [vmem:[%s328 + $0x30] sm:$0xff] %v617
          %634 = vst [vmem:[%s328 + $0x38] sm:$0xff] %v618
          %635 = vst [vmem:[%s328 + $0x40] sm:$0xff] %v619
          %636 = vst [vmem:[%s328 + $0x48] sm:$0xff] %v620
          %637 = vst [vmem:[%s328 + $0x50] sm:$0xff] %v621
          %638 = vst [vmem:[%s328 + $0x58] sm:$0xff] %v622
          %639 = vst [vmem:[%s328 + $0x60] sm:$0xff] %v623
          %640 = vst [vmem:[%s328 + $0x68] sm:$0xff] %v624
          %641 = vst [vmem:[%s328 + $0x70] sm:$0xff] %v625
          %642 = vst [vmem:[%s328 + $0x78] sm:$0xff] %v626
        $region81: #{gru_encoder_forward.4} parent=68 // pred_fallthru
          _
        %s643 = sand.u32 %s125, 1
        %s644 = sand.u32 %s125, 1
        %s645 = smul.addr %s644, 128
        %s646 = scalar_lea.vmem [#allocation4], %s645
        // Predicated region
        $region82: #{gru_encoder_forward.4} parent=68 // pred_check
          %p647 = pneg %p135
        $region83: #{gru_encoder_forward.4} parent=68 // pred_check_branch
          %649 = sbr.rel (%p647) target = $region85
        $region84: #{gru_encoder_forward.4} parent=68 // pred_region
          %s650 = smul.u32 16, %s19
          %s651 = smul.addr %s650, 3
          %s652 = sadd.s32 %s20, %s651
          %s653 = smul.addr %s652, 8
          %s654 = scalar_lea.vmem %s3, %s653
          // Predicated region
          $region86: #{gru_encoder_forward.4} parent=84 // pred_check
            _
          $region87: #{gru_encoder_forward.4} parent=84 // pred_check_branch
            %656 = sbr.rel (0) target = $region89
          $region88: #{gru_encoder_forward.4} parent=84 // pred_region
            // Predicated region
            $region90: #{gru_encoder_forward.4} parent=88 // pred_check
              _
            $region91: #{gru_encoder_forward.4} parent=88 // pred_check_branch
              %658 = sbr.rel (0) target = $region93
            $region92: #{gru_encoder_forward.4} parent=88 // pred_region
              // Predicated region
              $region105: #{gru_encoder_forward.4} parent=92 // pred_check
                _
              $region106: #{gru_encoder_forward.4} parent=92 // pred_check_branch
                %704 = sbr.rel (0) target = $region108
              $region107: #{gru_encoder_forward.4} parent=92 // pred_region
                loop: start=0, step=1, limit=1
                $region109: #{gru_encoder_forward.4} parent=107 // loop_pre_header
                  _
                $region110: #{gru_encoder_forward.4} parent=107 // loop_header
                  %s706 = sphi 0, %s710
                  %p707 = scmp.ge.s32.totalorder %s706, 1
                  %s711 = sphi %s646, %s646
                  %s712 = sphi %s654, %s654
                $region111: #{gru_encoder_forward.4} parent=107 // loop_header_branch
                  %709 = sbr.rel (%p707) target = $region115
                $region112: #{gru_encoder_forward.4} parent=107 // loop_body
                  %v713 = vld [vmem:[%s711] sm:$0xff]
                  %714 = vst [vmem:[%s712] sm:$0xff] %v713
                  %v715 = vld [vmem:[%s711 + $0x8] sm:$0xff]
                  %716 = vst [vmem:[%s712 + $0x18] sm:$0xff] %v715
                  %v717 = vld [vmem:[%s711 + $0x10] sm:$0xff]
                  %718 = vst [vmem:[%s712 + $0x30] sm:$0xff] %v717
                  %v719 = vld [vmem:[%s711 + $0x18] sm:$0xff]
                  %720 = vst [vmem:[%s712 + $0x48] sm:$0xff] %v719
                  %v721 = vld [vmem:[%s711 + $0x20] sm:$0xff]
                  %722 = vst [vmem:[%s712 + $0x60] sm:$0xff] %v721
                  %v723 = vld [vmem:[%s711 + $0x28] sm:$0xff]
                  %724 = vst [vmem:[%s712 + $0x78] sm:$0xff] %v723
                  %v725 = vld [vmem:[%s711 + $0x30] sm:$0xff]
                  %726 = vst [vmem:[%s712 + $0x90] sm:$0xff] %v725
                  %v727 = vld [vmem:[%s711 + $0x38] sm:$0xff]
                  %728 = vst [vmem:[%s712 + $0xa8] sm:$0xff] %v727
                  %v729 = vld [vmem:[%s711 + $0x40] sm:$0xff]
                  %730 = vst [vmem:[%s712 + $0xc0] sm:$0xff] %v729
                  %v731 = vld [vmem:[%s711 + $0x48] sm:$0xff]
                  %732 = vst [vmem:[%s712 + $0xd8] sm:$0xff] %v731
                  %v733 = vld [vmem:[%s711 + $0x50] sm:$0xff]
                  %734 = vst [vmem:[%s712 + $0xf0] sm:$0xff] %v733
                  %v735 = vld [vmem:[%s711 + $0x58] sm:$0xff]
                  %736 = vst [vmem:[%s712 + $0x108] sm:$0xff] %v735
                  %v737 = vld [vmem:[%s711 + $0x60] sm:$0xff]
                  %738 = vst [vmem:[%s712 + $0x120] sm:$0xff] %v737
                  %v739 = vld [vmem:[%s711 + $0x68] sm:$0xff]
                  %740 = vst [vmem:[%s712 + $0x138] sm:$0xff] %v739
                  %v741 = vld [vmem:[%s711 + $0x70] sm:$0xff]
                  %742 = vst [vmem:[%s712 + $0x150] sm:$0xff] %v741
                  %v743 = vld [vmem:[%s711 + $0x78] sm:$0xff]
                  %744 = vst [vmem:[%s712 + $0x168] sm:$0xff] %v743
                $region113: #{gru_encoder_forward.4} parent=107 // loop_footer
                  %s710 = sadd.s32 1, %s706
                $region114: #{gru_encoder_forward.4} parent=107 // loop_footer_branch
                  %705 = sbr.rel target = $region110
                $region115: #{gru_encoder_forward.4} parent=107 // loop_exit
                  _
              $region108: #{gru_encoder_forward.4} parent=92 // pred_fallthru
                _
              // Predicated region
              $region116: #{gru_encoder_forward.4} parent=92 // pred_check
                _
              $region117: #{gru_encoder_forward.4} parent=92 // pred_check_branch
                %746 = sbr.rel target = $region119
              $region118: #{gru_encoder_forward.4} parent=92 // pred_region
                _
              $region119: #{gru_encoder_forward.4} parent=92 // pred_fallthru
                _
            $region93: #{gru_encoder_forward.4} parent=88 // pred_fallthru
              _
            // Predicated region
            $region94: #{gru_encoder_forward.4} parent=88 // pred_check
              _
            $region95: #{gru_encoder_forward.4} parent=88 // pred_check_branch
              %660 = sbr.rel target = $region97
            $region96: #{gru_encoder_forward.4} parent=88 // pred_region
              %s662 = ssub.s32 256, 1
              loop: start=0, step=1, limit=1
              $region98: #{gru_encoder_forward.4} parent=96 // loop_pre_header
                _
              $region99: #{gru_encoder_forward.4} parent=96 // loop_header
                %s664 = sphi 0, %s668
                %p665 = scmp.ge.s32.totalorder %s664, 1
                %s669 = sphi %s646, %s646
                %s670 = sphi %s654, %s654
              $region100: #{gru_encoder_forward.4} parent=96 // loop_header_branch
                %667 = sbr.rel (%p665) target = $region104
              $region101: #{gru_encoder_forward.4} parent=96 // loop_body
                %v671 = vld [vmem:[%s669] sm:%s662]
                %672 = vst [vmem:[%s670] sm:%s662] %v671
                %v673 = vld [vmem:[%s669 + $0x8] sm:%s662]
                %674 = vst [vmem:[%s670 + $0x18] sm:%s662] %v673
                %v675 = vld [vmem:[%s669 + $0x10] sm:%s662]
                %676 = vst [vmem:[%s670 + $0x30] sm:%s662] %v675
                %v677 = vld [vmem:[%s669 + $0x18] sm:%s662]
                %678 = vst [vmem:[%s670 + $0x48] sm:%s662] %v677
                %v679 = vld [vmem:[%s669 + $0x20] sm:%s662]
                %680 = vst [vmem:[%s670 + $0x60] sm:%s662] %v679
                %v681 = vld [vmem:[%s669 + $0x28] sm:%s662]
                %682 = vst [vmem:[%s670 + $0x78] sm:%s662] %v681
                %v683 = vld [vmem:[%s669 + $0x30] sm:%s662]
                %684 = vst [vmem:[%s670 + $0x90] sm:%s662] %v683
                %v685 = vld [vmem:[%s669 + $0x38] sm:%s662]
                %686 = vst [vmem:[%s670 + $0xa8] sm:%s662] %v685
                %v687 = vld [vmem:[%s669 + $0x40] sm:%s662]
                %688 = vst [vmem:[%s670 + $0xc0] sm:%s662] %v687
                %v689 = vld [vmem:[%s669 + $0x48] sm:%s662]
                %690 = vst [vmem:[%s670 + $0xd8] sm:%s662] %v689
                %v691 = vld [vmem:[%s669 + $0x50] sm:%s662]
                %692 = vst [vmem:[%s670 + $0xf0] sm:%s662] %v691
                %v693 = vld [vmem:[%s669 + $0x58] sm:%s662]
                %694 = vst [vmem:[%s670 + $0x108] sm:%s662] %v693
                %v695 = vld [vmem:[%s669 + $0x60] sm:%s662]
                %696 = vst [vmem:[%s670 + $0x120] sm:%s662] %v695
                %v697 = vld [vmem:[%s669 + $0x68] sm:%s662]
                %698 = vst [vmem:[%s670 + $0x138] sm:%s662] %v697
                %v699 = vld [vmem:[%s669 + $0x70] sm:%s662]
                %700 = vst [vmem:[%s670 + $0x150] sm:%s662] %v699
                %v701 = vld [vmem:[%s669 + $0x78] sm:%s662]
                %702 = vst [vmem:[%s670 + $0x168] sm:%s662] %v701
              $region102: #{gru_encoder_forward.4} parent=96 // loop_footer
                %s668 = sadd.s32 1, %s664
              $region103: #{gru_encoder_forward.4} parent=96 // loop_footer_branch
                %663 = sbr.rel target = $region99
              $region104: #{gru_encoder_forward.4} parent=96 // loop_exit
                _
            $region97: #{gru_encoder_forward.4} parent=88 // pred_fallthru
              _
          $region89: #{gru_encoder_forward.4} parent=84 // pred_fallthru
            _
          %747 = vnop
        $region85: #{gru_encoder_forward.4} parent=68 // pred_fallthru
          _
      $region69: #{gru_encoder_forward.4} parent=5 // pred_fallthru
        _
      %p748 = scmp.le.s32.totalorder 2, %s9
      // Predicated region
      $region120: #{gru_encoder_forward.4} parent=5 // pred_check
        %p749 = pneg %p748
      $region121: #{gru_encoder_forward.4} parent=5 // pred_check_branch
        %751 = sbr.rel (%p749) target = $region123
      $region122: #{gru_encoder_forward.4} parent=5 // pred_region
        %s752 = ssub.s32 %s9, 2
        // Predicated region
        $region124: #{gru_encoder_forward.4} parent=122 // pred_check
          %p753 = pneg %p141
        $region125: #{gru_encoder_forward.4} parent=122 // pred_check_branch
          %755 = sbr.rel (%p753) target = $region127
        $region126: #{gru_encoder_forward.4} parent=122 // pred_region
          %s756 = sand.u32 %s126, 1
          %s757 = sand.u32 %s126, 1
          %s758 = smul.addr %s757, 128
          %s759 = scalar_lea.vmem [#allocation4], %s758
        $region127: #{gru_encoder_forward.4} parent=122 // pred_fallthru
          _
      $region123: #{gru_encoder_forward.4} parent=5 // pred_fallthru
        _
    $region6: #{gru_encoder_forward.4} parent=1 // loop_footer
      %s13 = sadd.s32 1, %s9
    $region7: #{gru_encoder_forward.4} parent=1 // loop_footer_branch
      %8 = sbr.rel target = $region3
    $region8: #{gru_encoder_forward.4} parent=1 // loop_exit
      _

// kernel: gru_encoder_forward.5
$region0: #{gru_encoder_forward.5}
  #allocation0 [shape = 'u32[]', space=smem, size = 0x4, offset = 0x4, fixed_abs, tag = 'smem constant byte address 0x4 - core index']
  #allocation1 [shape = 'u32[72,128]{1,0:T(1,128)}', space=vmem, size = 0x9000, scoped, tag = 'internal scratch']
  #allocation2 [shape = 'f32[8,128]{1,0:T(8,128)}', space=vmem, size = 0x1000, scoped, tag = 'scratch operand']
  %s0 = inlined_call_operand.vmem [shape: f32[16,8,384], index: 0, kind: input, shape index: {}]
  %s1 = inlined_call_operand.vmem [shape: f32[8,128], index: 1, kind: input, shape index: {}]
  %s2 = inlined_call_operand.vmem [shape: bf16[128,384], index: 2, kind: input, shape index: {}]
  %s3 = inlined_call_operand.vmem [shape: f32[1,128], index: 3, kind: input, shape index: {}]
  %s4 = inlined_call_operand.vmem [shape: f32[16,8,128], index: 4, kind: output, shape index: {0}]
  %s5 = inlined_call_operand.vmem [shape: f32[8,128], index: 5, kind: output, shape index: {1}]
  %6 = xla_tuple %s4, %s5
  %s7 = sld [smem:[#allocation0]]
  $region38: #{gru_encoder_forward.5} parent=0
    _
  %s9 = ssub.s32 1, %s7
  %s10 = scalar_select 0, %s9, %s7
  // Predicated region
  $region2: #{gru_encoder_forward.5} parent=0 // pred_check
    _
  $region3: #{gru_encoder_forward.5} parent=0 // pred_check_branch
    %12 = sbr.rel (0) target = $region5
  $region4: #{gru_encoder_forward.5} parent=0 // pred_region
    _
  $region5: #{gru_encoder_forward.5} parent=0 // pred_fallthru
    _
  // Predicated region
  $region6: #{gru_encoder_forward.5} parent=0 // pred_check
    _
  $region7: #{gru_encoder_forward.5} parent=0 // pred_check_branch
    %14 = sbr.rel (0) target = $region9
  $region8: #{gru_encoder_forward.5} parent=0 // pred_region
    _
  $region9: #{gru_encoder_forward.5} parent=0 // pred_fallthru
    _
  // Predicated region
  $region10: #{gru_encoder_forward.5} parent=0 // pred_check
    _
  $region11: #{gru_encoder_forward.5} parent=0 // pred_check_branch
    %16 = sbr.rel (0) target = $region13
  $region12: #{gru_encoder_forward.5} parent=0 // pred_region
    _
  $region13: #{gru_encoder_forward.5} parent=0 // pred_fallthru
    _
  // Predicated region
  $region14: #{gru_encoder_forward.5} parent=0 // pred_check
    _
  $region15: #{gru_encoder_forward.5} parent=0 // pred_check_branch
    %18 = sbr.rel (0) target = $region17
  $region16: #{gru_encoder_forward.5} parent=0 // pred_region
    _
  $region17: #{gru_encoder_forward.5} parent=0 // pred_fallthru
    _
  %p19 = scmp.eq.s32.totalorder 0, 0
  // Predicated region
  $region18: #{gru_encoder_forward.5} parent=0 // pred_check
    %p20 = pneg %p19
  $region19: #{gru_encoder_forward.5} parent=0 // pred_check_branch
    %22 = sbr.rel (%p20) target = $region21
  $region20: #{gru_encoder_forward.5} parent=0 // pred_region
    %v23 = vld [vmem:[%s1] sm:$0xff]
    %24 = vst [vmem:[#allocation2] sm:$0xff] %v23
  $region21: #{gru_encoder_forward.5} parent=0 // pred_fallthru
    _
  %v25 = vld [vmem:[%s2] sm:$0xff]
  %v26 = vld [vmem:[%s2 + $0x8] sm:$0xf]
  %v27 = vld [vmem:[%s2 + $0xc] sm:$0xff]
  %v28 = vld [vmem:[%s2 + $0x14] sm:$0xf]
  %v29 = vld [vmem:[%s2 + $0x18] sm:$0xff]
  %v30 = vld [vmem:[%s2 + $0x20] sm:$0xf]
  %v31 = vld [vmem:[%s2 + $0x24] sm:$0xff]
  %v32 = vld [vmem:[%s2 + $0x2c] sm:$0xf]
  %v33 = vld [vmem:[%s2 + $0x30] sm:$0xff]
  %v34 = vld [vmem:[%s2 + $0x38] sm:$0xf]
  %v35 = vld [vmem:[%s2 + $0x3c] sm:$0xff]
  %v36 = vld [vmem:[%s2 + $0x44] sm:$0xf]
  %v37 = vld [vmem:[%s2 + $0x48] sm:$0xff]
  %v38 = vld [vmem:[%s2 + $0x50] sm:$0xf]
  %v39 = vld [vmem:[%s2 + $0x54] sm:$0xff]
  %v40 = vld [vmem:[%s2 + $0x5c] sm:$0xf]
  %v41 = vld [vmem:[%s2 + $0x60] sm:$0xff]
  %v42 = vld [vmem:[%s2 + $0x68] sm:$0xf]
  %v43 = vld [vmem:[%s2 + $0x6c] sm:$0xff]
  %v44 = vld [vmem:[%s2 + $0x74] sm:$0xf]
  %v45 = vld [vmem:[%s2 + $0x78] sm:$0xff]
  %v46 = vld [vmem:[%s2 + $0x80] sm:$0xf]
  %v47 = vld [vmem:[%s2 + $0x84] sm:$0xff]
  %v48 = vld [vmem:[%s2 + $0x8c] sm:$0xf]
  %v49 = vld [vmem:[%s2 + $0x90] sm:$0xff]
  %v50 = vld [vmem:[%s2 + $0x98] sm:$0xf]
  %v51 = vld [vmem:[%s2 + $0x9c] sm:$0xff]
  %v52 = vld [vmem:[%s2 + $0xa4] sm:$0xf]
  %v53 = vld [vmem:[%s2 + $0xa8] sm:$0xff]
  %v54 = vld [vmem:[%s2 + $0xb0] sm:$0xf]
  %v55 = vld [vmem:[%s2 + $0xb4] sm:$0xff]
  %v56 = vld [vmem:[%s2 + $0xbc] sm:$0xf]
  %v57 = vld [vmem:[%s3] sm:$0x1]
  %v58 = vld [vmem:[#allocation2] sm:$0xff]
  %v59 = vld [vmem:[%s0] sm:$0xff]
  %v60 = vld [vmem:[%s0 + $0x8] sm:$0xff]
  %v61 = vld [vmem:[%s0 + $0x10] sm:$0xff]
  %v62 = vpack.c.bf16 %v58, %v58
  %v95 = vunpack.c.l.b16 %v25
  %v96 = vunpack.c.h.b16 %v25
  %v97 = vunpack.c.l.b16 %v26
  %v98 = vunpack.c.l.b16 %v27
  %v99 = vunpack.c.h.b16 %v27
  %v100 = vunpack.c.l.b16 %v28
  %v101 = vunpack.c.l.b16 %v29
  %v102 = vunpack.c.h.b16 %v29
  %v103 = vunpack.c.l.b16 %v30
  %v104 = vunpack.c.l.b16 %v31
  %v105 = vunpack.c.h.b16 %v31
  %v106 = vunpack.c.l.b16 %v32
  %v107 = vunpack.c.l.b16 %v33
  %v108 = vunpack.c.h.b16 %v33
  %v109 = vunpack.c.l.b16 %v34
  %v110 = vunpack.c.l.b16 %v35
  %v111 = vunpack.c.h.b16 %v35
  %v112 = vunpack.c.l.b16 %v36
  %v113 = vunpack.c.l.b16 %v37
  %v114 = vunpack.c.h.b16 %v37
  %v115 = vunpack.c.l.b16 %v38
  %v116 = vunpack.c.l.b16 %v39
  %v117 = vunpack.c.h.b16 %v39
  %v118 = vunpack.c.l.b16 %v40
  %v119 = vunpack.c.l.b16 %v41
  %v120 = vunpack.c.h.b16 %v41
  %v121 = vunpack.c.l.b16 %v42
  %v122 = vunpack.c.l.b16 %v43
  %v123 = vunpack.c.h.b16 %v43
  %v124 = vunpack.c.l.b16 %v44
  %v125 = vunpack.c.l.b16 %v45
  %v126 = vunpack.c.h.b16 %v45
  %v127 = vunpack.c.l.b16 %v46
  %v128 = vunpack.c.l.b16 %v47
  %v129 = vunpack.c.h.b16 %v47
  %v130 = vunpack.c.l.b16 %v48
  %v131 = vunpack.c.l.b16 %v49
  %v132 = vunpack.c.h.b16 %v49
  %v133 = vunpack.c.l.b16 %v50
  %v134 = vunpack.c.l.b16 %v51
  %v135 = vunpack.c.h.b16 %v51
  %v136 = vunpack.c.l.b16 %v52
  %v137 = vunpack.c.l.b16 %v53
  %v138 = vunpack.c.h.b16 %v53
  %v139 = vunpack.c.l.b16 %v54
  %v140 = vunpack.c.l.b16 %v55
  %v141 = vunpack.c.h.b16 %v55
  %v142 = vunpack.c.l.b16 %v56
  %v143 = vpack.c.b16 %v98, %v95
  %v144 = vpack.c.b16 %v99, %v96
  %v145 = vpack.c.b16 %v100, %v97
  %v146 = vpack.c.b16 %v104, %v101
  %v147 = vpack.c.b16 %v105, %v102
  %v148 = vpack.c.b16 %v106, %v103
  %v149 = vpack.c.b16 %v110, %v107
  %v150 = vpack.c.b16 %v111, %v108
  %v151 = vpack.c.b16 %v112, %v109
  %v152 = vpack.c.b16 %v116, %v113
  %v153 = vpack.c.b16 %v117, %v114
  %v154 = vpack.c.b16 %v118, %v115
  %v155 = vpack.c.b16 %v122, %v119
  %v156 = vpack.c.b16 %v123, %v120
  %v157 = vpack.c.b16 %v124, %v121
  %v158 = vpack.c.b16 %v128, %v125
  %v159 = vpack.c.b16 %v129, %v126
  %v160 = vpack.c.b16 %v130, %v127
  %v161 = vpack.c.b16 %v134, %v131
  %v162 = vpack.c.b16 %v135, %v132
  %v163 = vpack.c.b16 %v136, %v133
  %v164 = vpack.c.b16 %v140, %v137
  %v165 = vpack.c.b16 %v141, %v138
  %v166 = vpack.c.b16 %v142, %v139
  %191 = vmatpush.bf16.msra.mxu0 %v164
  %192 = vmatpush.bf16.msra.mxu0 %v161
  %193 = vmatpush.bf16.msra.mxu0 %v158
  %194 = vmatpush.bf16.msra.mxu0 %v155
  %195 = vmatpush.bf16.msra.mxu0 %v152
  %196 = vmatpush.bf16.msra.mxu0 %v149
  %197 = vmatpush.bf16.msra.mxu0 %v146
  %198 = vmatpush.bf16.msra.mxu0 %v143
  %199 = vmatmul.bf16.gmra.mxu0 %v62
  %v200 = vpop.f32.mrf.mxu0
  %v201 = vadd.f32 0.0, %v200
  %v202 = vpop.f32.mrf.mxu0
  %203 = vdwg.mxu0
  %204 = vmatpush.bf16.msra.mxu0 %v165
  %205 = vmatpush.bf16.msra.mxu0 %v162
  %206 = vmatpush.bf16.msra.mxu0 %v159
  %207 = vmatpush.bf16.msra.mxu0 %v156
  %208 = vmatpush.bf16.msra.mxu0 %v153
  %209 = vmatpush.bf16.msra.mxu0 %v150
  %210 = vmatpush.bf16.msra.mxu0 %v147
  %211 = vmatpush.bf16.msra.mxu0 %v144
  %212 = vmatmul.bf16.gmra.mxu0 %v62
  %v213 = vpop.f32.mrf.mxu0
  %v214 = vadd.f32 0.0, %v213
  %v215 = vpop.f32.mrf.mxu0
  %216 = vdwg.mxu0
  %217 = vmatpush.bf16.msra.mxu0 %v166
  %218 = vmatpush.bf16.msra.mxu0 %v163
  %219 = vmatpush.bf16.msra.mxu0 %v160
  %220 = vmatpush.bf16.msra.mxu0 %v157
  %221 = vmatpush.bf16.msra.mxu0 %v154
  %222 = vmatpush.bf16.msra.mxu0 %v151
  %223 = vmatpush.bf16.msra.mxu0 %v148
  %224 = vmatpush.bf16.msra.mxu0 %v145
  %225 = vmatmul.bf16.gmra.mxu0 %v62
  %v226 = vpop.f32.mrf.mxu0
  %v227 = vadd.f32 0.0, %v226
  %v228 = vpop.f32.mrf.mxu0
  %229 = vdwg.mxu0
  %v230 = vadd.f32 %v59, %v201
  %v231 = vxor.u32 %v230, 2147483648
  %v232 = vmul.f32 %v231, 1.442695
  %v233 = vpow.pop %v232
  %v234 = vadd.f32 %v233, 1.0
  %v235 = vrcp.pop %v234
  %v236 = vmul.f32 %v234, %v235
  %v237 = vsub.f32 1.0, %v236
  %v238 = vmul.f32 %v235, %v237
  %v239 = vadd.f32 %v235, %v238
  %vm240 = vweird.f32 %v234
  %vm241 = vweird.f32 %v235
  %vm242 = vmor %vm240, %vm241
  %v243 = vsel %vm242, %v235, %v239
  %v244 = vand.u32 2147483647, %v234
  %vm245 = vcmp.eq.f32.partialorder %v244, 8.507059e+37
  %v246 = vand.u32 %v234, 2147483648
  %v247 = vor.u32 1.1754944e-38, %v246
  %v248 = vsel %vm245, %v247, %v243
  %v249 = vmul.f32 1.0, %v248
  %v250 = vadd.f32 %v60, %v214
  %v251 = vxor.u32 %v250, 2147483648
  %v252 = vmul.f32 %v251, 1.442695
  %v253 = vpow.pop %v252
  %v254 = vadd.f32 %v253, 1.0
  %v255 = vrcp.pop %v254
  %v256 = vmul.f32 %v254, %v255
  %v257 = vsub.f32 1.0, %v256
  %v258 = vmul.f32 %v255, %v257
  %v259 = vadd.f32 %v255, %v258
  %vm260 = vweird.f32 %v254
  %vm261 = vweird.f32 %v255
  %vm262 = vmor %vm260, %vm261
  %v263 = vsel %vm262, %v255, %v259
  %v264 = vand.u32 2147483647, %v254
  %vm265 = vcmp.eq.f32.partialorder %v264, 8.507059e+37
  %v266 = vand.u32 %v254, 2147483648
  %v267 = vor.u32 1.1754944e-38, %v266
  %v268 = vsel %vm265, %v267, %v263
  %v269 = vmul.f32 1.0, %v268
  %v271 = vperm.slane %v57, 0
  %v273 = vadd.f32 %v227, %v271
  %v274 = vmul.f32 %v249, %v273
  %v275 = vadd.f32 %v61, %v274
  %v276 = vtanh.pop %v275
  %v277 = vsub.f32 1.0, %v269
  %v278 = vmul.f32 %v277, %v276
  %v279 = vmul.f32 %v269, %v58
  %v280 = vadd.f32 %v278, %v279
  %281 = vst [vmem:[%s4] sm:$0xff] %v280
  %s282 = scalar_lea.vmem %s0, 24
  %v283 = vld [vmem:[%s282] sm:$0xff]
  %v284 = vld [vmem:[%s282 + $0x8] sm:$0xff]
  %v285 = vld [vmem:[%s282 + $0x10] sm:$0xff]
  %v286 = vpack.c.bf16 %v280, %v280
  %287 = vmatpush.bf16.msra.mxu0 %v164
  %288 = vmatpush.bf16.msra.mxu0 %v161
  %289 = vmatpush.bf16.msra.mxu0 %v158
  %290 = vmatpush.bf16.msra.mxu0 %v155
  %291 = vmatpush.bf16.msra.mxu0 %v152
  %292 = vmatpush.bf16.msra.mxu0 %v149
  %293 = vmatpush.bf16.msra.mxu0 %v146
  %294 = vmatpush.bf16.msra.mxu0 %v143
  %295 = vmatmul.bf16.gmra.mxu0 %v286
  %v296 = vpop.f32.mrf.mxu0
  %v297 = vadd.f32 0.0, %v296
  %v298 = vpop.f32.mrf.mxu0
  %299 = vdwg.mxu0
  %300 = vmatpush.bf16.msra.mxu0 %v165
  %301 = vmatpush.bf16.msra.mxu0 %v162
  %302 = vmatpush.bf16.msra.mxu0 %v159
  %303 = vmatpush.bf16.msra.mxu0 %v156
  %304 = vmatpush.bf16.msra.mxu0 %v153
  %305 = vmatpush.bf16.msra.mxu0 %v150
  %306 = vmatpush.bf16.msra.mxu0 %v147
  %307 = vmatpush.bf16.msra.mxu0 %v144
  %308 = vmatmul.bf16.gmra.mxu0 %v286
  %v309 = vpop.f32.mrf.mxu0
  %v310 = vadd.f32 0.0, %v309
  %v311 = vpop.f32.mrf.mxu0
  %312 = vdwg.mxu0
  %313 = vmatpush.bf16.msra.mxu0 %v166
  %314 = vmatpush.bf16.msra.mxu0 %v163
  %315 = vmatpush.bf16.msra.mxu0 %v160
  %316 = vmatpush.bf16.msra.mxu0 %v157
  %317 = vmatpush.bf16.msra.mxu0 %v154
  %318 = vmatpush.bf16.msra.mxu0 %v151
  %319 = vmatpush.bf16.msra.mxu0 %v148
  %320 = vmatpush.bf16.msra.mxu0 %v145
  %321 = vmatmul.bf16.gmra.mxu0 %v286
  %v322 = vpop.f32.mrf.mxu0
  %v323 = vadd.f32 0.0, %v322
  %v324 = vpop.f32.mrf.mxu0
  %325 = vdwg.mxu0
  %v326 = vadd.f32 %v283, %v297
  %v327 = vxor.u32 %v326, 2147483648
  %v328 = vmul.f32 %v327, 1.442695
  %v329 = vpow.pop %v328
  %v330 = vadd.f32 %v329, 1.0
  %v331 = vrcp.pop %v330
  %v332 = vmul.f32 %v330, %v331
  %v333 = vsub.f32 1.0, %v332
  %v334 = vmul.f32 %v331, %v333
  %v335 = vadd.f32 %v331, %v334
  %vm336 = vweird.f32 %v330
  %vm337 = vweird.f32 %v331
  %vm338 = vmor %vm336, %vm337
  %v339 = vsel %vm338, %v331, %v335
  %v340 = vand.u32 2147483647, %v330
  %vm341 = vcmp.eq.f32.partialorder %v340, 8.507059e+37
  %v342 = vand.u32 %v330, 2147483648
  %v343 = vor.u32 1.1754944e-38, %v342
  %v344 = vsel %vm341, %v343, %v339
  %v345 = vmul.f32 1.0, %v344
  %v346 = vadd.f32 %v284, %v310
  %v347 = vxor.u32 %v346, 2147483648
  %v348 = vmul.f32 %v347, 1.442695
  %v349 = vpow.pop %v348
  %v350 = vadd.f32 %v349, 1.0
  %v351 = vrcp.pop %v350
  %v352 = vmul.f32 %v350, %v351
  %v353 = vsub.f32 1.0, %v352
  %v354 = vmul.f32 %v351, %v353
  %v355 = vadd.f32 %v351, %v354
  %vm356 = vweird.f32 %v350
  %vm357 = vweird.f32 %v351
  %vm358 = vmor %vm356, %vm357
  %v359 = vsel %vm358, %v351, %v355
  %v360 = vand.u32 2147483647, %v350
  %vm361 = vcmp.eq.f32.partialorder %v360, 8.507059e+37
  %v362 = vand.u32 %v350, 2147483648
  %v363 = vor.u32 1.1754944e-38, %v362
  %v364 = vsel %vm361, %v363, %v359
  %v365 = vmul.f32 1.0, %v364
  %v366 = vadd.f32 %v323, %v271
  %v367 = vmul.f32 %v345, %v366
  %v368 = vadd.f32 %v285, %v367
  %v369 = vtanh.pop %v368
  %v370 = vsub.f32 1.0, %v365
  %v371 = vmul.f32 %v370, %v369
  %v372 = vmul.f32 %v365, %v280
  %v373 = vadd.f32 %v371, %v372
  %s374 = scalar_lea.vmem %s4, 8
  %375 = vst [vmem:[%s374] sm:$0xff] %v373
  %s376 = scalar_lea.vmem %s0, 48
  %v377 = vld [vmem:[%s376] sm:$0xff]
  %v378 = vld [vmem:[%s376 + $0x8] sm:$0xff]
  %v379 = vld [vmem:[%s376 + $0x10] sm:$0xff]
  %v380 = vpack.c.bf16 %v373, %v373
  %381 = vmatpush.bf16.msra.mxu0 %v164
  %382 = vmatpush.bf16.msra.mxu0 %v161
  %383 = vmatpush.bf16.msra.mxu0 %v158
  %384 = vmatpush.bf16.msra.mxu0 %v155
  %385 = vmatpush.bf16.msra.mxu0 %v152
  %386 = vmatpush.bf16.msra.mxu0 %v149
  %387 = vmatpush.bf16.msra.mxu0 %v146
  %388 = vmatpush.bf16.msra.mxu0 %v143
  %389 = vmatmul.bf16.gmra.mxu0 %v380
  %v390 = vpop.f32.mrf.mxu0
  %v391 = vadd.f32 0.0, %v390
  %v392 = vpop.f32.mrf.mxu0
  %393 = vdwg.mxu0
  %394 = vmatpush.bf16.msra.mxu0 %v165
  %395 = vmatpush.bf16.msra.mxu0 %v162
  %396 = vmatpush.bf16.msra.mxu0 %v159
  %397 = vmatpush.bf16.msra.mxu0 %v156
  %398 = vmatpush.bf16.msra.mxu0 %v153
  %399 = vmatpush.bf16.msra.mxu0 %v150
  %400 = vmatpush.bf16.msra.mxu0 %v147
  %401 = vmatpush.bf16.msra.mxu0 %v144
  %402 = vmatmul.bf16.gmra.mxu0 %v380
  %v403 = vpop.f32.mrf.mxu0
  %v404 = vadd.f32 0.0, %v403
  %v405 = vpop.f32.mrf.mxu0
  %406 = vdwg.mxu0
  %407 = vmatpush.bf16.msra.mxu0 %v166
  %408 = vmatpush.bf16.msra.mxu0 %v163
  %409 = vmatpush.bf16.msra.mxu0 %v160
  %410 = vmatpush.bf16.msra.mxu0 %v157
  %411 = vmatpush.bf16.msra.mxu0 %v154
  %412 = vmatpush.bf16.msra.mxu0 %v151
  %413 = vmatpush.bf16.msra.mxu0 %v148
  %414 = vmatpush.bf16.msra.mxu0 %v145
  %415 = vmatmul.bf16.gmra.mxu0 %v380
  %v416 = vpop.f32.mrf.mxu0
  %v417 = vadd.f32 0.0, %v416
  %v418 = vpop.f32.mrf.mxu0
  %419 = vdwg.mxu0
  %v420 = vadd.f32 %v377, %v391
  %v421 = vxor.u32 %v420, 2147483648
  %v422 = vmul.f32 %v421, 1.442695
  %v423 = vpow.pop %v422
  %v424 = vadd.f32 %v423, 1.0
  %v425 = vrcp.pop %v424
  %v426 = vmul.f32 %v424, %v425
  %v427 = vsub.f32 1.0, %v426
  %v428 = vmul.f32 %v425, %v427
  %v429 = vadd.f32 %v425, %v428
  %vm430 = vweird.f32 %v424
  %vm431 = vweird.f32 %v425
  %vm432 = vmor %vm430, %vm431
  %v433 = vsel %vm432, %v425, %v429
  %v434 = vand.u32 2147483647, %v424
  %vm435 = vcmp.eq.f32.partialorder %v434, 8.507059e+37
  %v436 = vand.u32 %v424, 2147483648
  %v437 = vor.u32 1.1754944e-38, %v436
  %v438 = vsel %vm435, %v437, %v433
  %v439 = vmul.f32 1.0, %v438
  %v440 = vadd.f32 %v378, %v404
  %v441 = vxor.u32 %v440, 2147483648
  %v442 = vmul.f32 %v441, 1.442695
  %v443 = vpow.pop %v442
  %v444 = vadd.f32 %v443, 1.0
  %v445 = vrcp.pop %v444
  %v446 = vmul.f32 %v444, %v445
  %v447 = vsub.f32 1.0, %v446
  %v448 = vmul.f32 %v445, %v447
  %v449 = vadd.f32 %v445, %v448
  %vm450 = vweird.f32 %v444
  %vm451 = vweird.f32 %v445
  %vm452 = vmor %vm450, %vm451
  %v453 = vsel %vm452, %v445, %v449
  %v454 = vand.u32 2147483647, %v444
  %vm455 = vcmp.eq.f32.partialorder %v454, 8.507059e+37
  %v456 = vand.u32 %v444, 2147483648
  %v457 = vor.u32 1.1754944e-38, %v456
  %v458 = vsel %vm455, %v457, %v453
  %v459 = vmul.f32 1.0, %v458
  %v460 = vadd.f32 %v417, %v271
  %v461 = vmul.f32 %v439, %v460
  %v462 = vadd.f32 %v379, %v461
  %v463 = vtanh.pop %v462
  %v464 = vsub.f32 1.0, %v459
  %v465 = vmul.f32 %v464, %v463
  %v466 = vmul.f32 %v459, %v373
  %v467 = vadd.f32 %v465, %v466
  %s468 = scalar_lea.vmem %s4, 16
  %469 = vst [vmem:[%s468] sm:$0xff] %v467
  %s470 = scalar_lea.vmem %s0, 72
  %v471 = vld [vmem:[%s470] sm:$0xff]
  %v472 = vld [vmem:[%s470 + $0x8] sm:$0xff]
  %v473 = vld [vmem:[%s470 + $0x10] sm:$0xff]
  %v474 = vpack.c.bf16 %v467, %v467
  %475 = vmatpush.bf16.msra.mxu0 %v164
  %476 = vmatpush.bf16.msra.mxu0 %v161
  %477 = vmatpush.bf16.msra.mxu0 %v158
  %478 = vmatpush.bf16.msra.mxu0 %v155
  %479 = vmatpush.bf16.msra.mxu0 %v152
  %480 = vmatpush.bf16.msra.mxu0 %v149
  %481 = vmatpush.bf16.msra.mxu0 %v146
  %482 = vmatpush.bf16.msra.mxu0 %v143
  %483 = vmatmul.bf16.gmra.mxu0 %v474
  %v484 = vpop.f32.mrf.mxu0
  %v485 = vadd.f32 0.0, %v484
  %v486 = vpop.f32.mrf.mxu0
  %487 = vdwg.mxu0
  %488 = vmatpush.bf16.msra.mxu0 %v165
  %489 = vmatpush.bf16.msra.mxu0 %v162
  %490 = vmatpush.bf16.msra.mxu0 %v159
  %491 = vmatpush.bf16.msra.mxu0 %v156
  %492 = vmatpush.bf16.msra.mxu0 %v153
  %493 = vmatpush.bf16.msra.mxu0 %v150
  %494 = vmatpush.bf16.msra.mxu0 %v147
  %495 = vmatpush.bf16.msra.mxu0 %v144
  %496 = vmatmul.bf16.gmra.mxu0 %v474
  %v497 = vpop.f32.mrf.mxu0
  %v498 = vadd.f32 0.0, %v497
  %v499 = vpop.f32.mrf.mxu0
  %500 = vdwg.mxu0
  %501 = vmatpush.bf16.msra.mxu0 %v166
  %502 = vmatpush.bf16.msra.mxu0 %v163
  %503 = vmatpush.bf16.msra.mxu0 %v160
  %504 = vmatpush.bf16.msra.mxu0 %v157
  %505 = vmatpush.bf16.msra.mxu0 %v154
  %506 = vmatpush.bf16.msra.mxu0 %v151
  %507 = vmatpush.bf16.msra.mxu0 %v148
  %508 = vmatpush.bf16.msra.mxu0 %v145
  %509 = vmatmul.bf16.gmra.mxu0 %v474
  %v510 = vpop.f32.mrf.mxu0
  %v511 = vadd.f32 0.0, %v510
  %v512 = vpop.f32.mrf.mxu0
  %513 = vdwg.mxu0
  %v514 = vadd.f32 %v471, %v485
  %v515 = vxor.u32 %v514, 2147483648
  %v516 = vmul.f32 %v515, 1.442695
  %v517 = vpow.pop %v516
  %v518 = vadd.f32 %v517, 1.0
  %v519 = vrcp.pop %v518
  %v520 = vmul.f32 %v518, %v519
  %v521 = vsub.f32 1.0, %v520
  %v522 = vmul.f32 %v519, %v521
  %v523 = vadd.f32 %v519, %v522
  %vm524 = vweird.f32 %v518
  %vm525 = vweird.f32 %v519
  %vm526 = vmor %vm524, %vm525
  %v527 = vsel %vm526, %v519, %v523
  %v528 = vand.u32 2147483647, %v518
  %vm529 = vcmp.eq.f32.partialorder %v528, 8.507059e+37
  %v530 = vand.u32 %v518, 2147483648
  %v531 = vor.u32 1.1754944e-38, %v530
  %v532 = vsel %vm529, %v531, %v527
  %v533 = vmul.f32 1.0, %v532
  %v534 = vadd.f32 %v472, %v498
  %v535 = vxor.u32 %v534, 2147483648
  %v536 = vmul.f32 %v535, 1.442695
  %v537 = vpow.pop %v536
  %v538 = vadd.f32 %v537, 1.0
  %v539 = vrcp.pop %v538
  %v540 = vmul.f32 %v538, %v539
  %v541 = vsub.f32 1.0, %v540
  %v542 = vmul.f32 %v539, %v541
  %v543 = vadd.f32 %v539, %v542
  %vm544 = vweird.f32 %v538
  %vm545 = vweird.f32 %v539
  %vm546 = vmor %vm544, %vm545
  %v547 = vsel %vm546, %v539, %v543
  %v548 = vand.u32 2147483647, %v538
  %vm549 = vcmp.eq.f32.partialorder %v548, 8.507059e+37
  %v550 = vand.u32 %v538, 2147483648
  %v551 = vor.u32 1.1754944e-38, %v550
  %v552 = vsel %vm549, %v551, %v547
  %v553 = vmul.f32 1.0, %v552
  %v554 = vadd.f32 %v511, %v271
  %v555 = vmul.f32 %v533, %v554
  %v556 = vadd.f32 %v473, %v555
  %v557 = vtanh.pop %v556
  %v558 = vsub.f32 1.0, %v553
  %v559 = vmul.f32 %v558, %v557
  %v560 = vmul.f32 %v553, %v467
  %v561 = vadd.f32 %v559, %v560
  %s562 = scalar_lea.vmem %s4, 24
  %563 = vst [vmem:[%s562] sm:$0xff] %v561
  %s564 = scalar_lea.vmem %s0, 96
  %v565 = vld [vmem:[%s564] sm:$0xff]
  %v566 = vld [vmem:[%s564 + $0x8] sm:$0xff]
  %v567 = vld [vmem:[%s564 + $0x10] sm:$0xff]
  %v568 = vpack.c.bf16 %v561, %v561
  %569 = vmatpush.bf16.msra.mxu0 %v164
  %570 = vmatpush.bf16.msra.mxu0 %v161
  %571 = vmatpush.bf16.msra.mxu0 %v158
  %572 = vmatpush.bf16.msra.mxu0 %v155
  %573 = vmatpush.bf16.msra.mxu0 %v152
  %574 = vmatpush.bf16.msra.mxu0 %v149
  %575 = vmatpush.bf16.msra.mxu0 %v146
  %576 = vmatpush.bf16.msra.mxu0 %v143
  %577 = vmatmul.bf16.gmra.mxu0 %v568
  %v578 = vpop.f32.mrf.mxu0
  %v579 = vadd.f32 0.0, %v578
  %v580 = vpop.f32.mrf.mxu0
  %581 = vdwg.mxu0
  %582 = vmatpush.bf16.msra.mxu0 %v165
  %583 = vmatpush.bf16.msra.mxu0 %v162
  %584 = vmatpush.bf16.msra.mxu0 %v159
  %585 = vmatpush.bf16.msra.mxu0 %v156
  %586 = vmatpush.bf16.msra.mxu0 %v153
  %587 = vmatpush.bf16.msra.mxu0 %v150
  %588 = vmatpush.bf16.msra.mxu0 %v147
  %589 = vmatpush.bf16.msra.mxu0 %v144
  %590 = vmatmul.bf16.gmra.mxu0 %v568
  %v591 = vpop.f32.mrf.mxu0
  %v592 = vadd.f32 0.0, %v591
  %v593 = vpop.f32.mrf.mxu0
  %594 = vdwg.mxu0
  %595 = vmatpush.bf16.msra.mxu0 %v166
  %596 = vmatpush.bf16.msra.mxu0 %v163
  %597 = vmatpush.bf16.msra.mxu0 %v160
  %598 = vmatpush.bf16.msra.mxu0 %v157
  %599 = vmatpush.bf16.msra.mxu0 %v154
  %600 = vmatpush.bf16.msra.mxu0 %v151
  %601 = vmatpush.bf16.msra.mxu0 %v148
  %602 = vmatpush.bf16.msra.mxu0 %v145
  %603 = vmatmul.bf16.gmra.mxu0 %v568
  %v604 = vpop.f32.mrf.mxu0
  %v605 = vadd.f32 0.0, %v604
  %v606 = vpop.f32.mrf.mxu0
  %607 = vdwg.mxu0
  %v608 = vadd.f32 %v565, %v579
  %v609 = vxor.u32 %v608, 2147483648
  %v610 = vmul.f32 %v609, 1.442695
  %v611 = vpow.pop %v610
  %v612 = vadd.f32 %v611, 1.0
  %v613 = vrcp.pop %v612
  %v614 = vmul.f32 %v612, %v613
  %v615 = vsub.f32 1.0, %v614
  %v616 = vmul.f32 %v613, %v615
  %v617 = vadd.f32 %v613, %v616
  %vm618 = vweird.f32 %v612
  %vm619 = vweird.f32 %v613
  %vm620 = vmor %vm618, %vm619
  %v621 = vsel %vm620, %v613, %v617
  %v622 = vand.u32 2147483647, %v612
  %vm623 = vcmp.eq.f32.partialorder %v622, 8.507059e+37
  %v624 = vand.u32 %v612, 2147483648
  %v625 = vor.u32 1.1754944e-38, %v624
  %v626 = vsel %vm623, %v625, %v621
  %v627 = vmul.f32 1.0, %v626
  %v628 = vadd.f32 %v566, %v592
  %v629 = vxor.u32 %v628, 2147483648
  %v630 = vmul.f32 %v629, 1.442695
  %v631 = vpow.pop %v630
  %v632 = vadd.f32 %v631, 1.0
  %v633 = vrcp.pop %v632
  %v634 = vmul.f32 %v632, %v633
  %v635 = vsub.f32 1.0, %v634
  %v636 = vmul.f32 %v633, %v635
  %v637 = vadd.f32 %v633, %v636
  %vm638 = vweird.f32 %v632
  %vm639 = vweird.f32 %v633
  %vm640 = vmor %vm638, %vm639
  %v641 = vsel %vm640, %v633, %v637
  %v642 = vand.u32 2147483647, %v632
  %vm643 = vcmp.eq.f32.partialorder %v642, 8.507059e+37
  %v644 = vand.u32 %v632, 2147483648
  %v645 = vor.u32 1.1754944e-38, %v644
  %v646 = vsel %vm643, %v645, %v641
  %v647 = vmul.f32 1.0, %v646
  %v648 = vadd.f32 %v605, %v271
  %v649 = vmul.f32 %v627, %v648
  %v650 = vadd.f32 %v567, %v649
  %v651 = vtanh.pop %v650
  %v652 = vsub.f32 1.0, %v647
  %v653 = vmul.f32 %v652, %v651
  %v654 = vmul.f32 %v647, %v561
  %v655 = vadd.f32 %v653, %v654
  %s656 = scalar_lea.vmem %s4, 32
  %657 = vst [vmem:[%s656] sm:$0xff] %v655
  %s658 = scalar_lea.vmem %s0, 120
  %v659 = vld [vmem:[%s658] sm:$0xff]
  %v660 = vld [vmem:[%s658 + $0x8] sm:$0xff]
  %v661 = vld [vmem:[%s658 + $0x10] sm:$0xff]
  %v662 = vpack.c.bf16 %v655, %v655
  %663 = vmatpush.bf16.msra.mxu0 %v164
  %664 = vmatpush.bf16.msra.mxu0 %v161
  %665 = vmatpush.bf16.msra.mxu0 %v158
  %666 = vmatpush.bf16.msra.mxu0 %v155
  %667 = vmatpush.bf16.msra.mxu0 %v152
  %668 = vmatpush.bf16.msra.mxu0 %v149
  %669 = vmatpush.bf16.msra.mxu0 %v146
  %670 = vmatpush.bf16.msra.mxu0 %v143
  %671 = vmatmul.bf16.gmra.mxu0 %v662
  %v672 = vpop.f32.mrf.mxu0
  %v673 = vadd.f32 0.0, %v672
  %v674 = vpop.f32.mrf.mxu0
  %675 = vdwg.mxu0
  %676 = vmatpush.bf16.msra.mxu0 %v165
  %677 = vmatpush.bf16.msra.mxu0 %v162
  %678 = vmatpush.bf16.msra.mxu0 %v159
  %679 = vmatpush.bf16.msra.mxu0 %v156
  %680 = vmatpush.bf16.msra.mxu0 %v153
  %681 = vmatpush.bf16.msra.mxu0 %v150
  %682 = vmatpush.bf16.msra.mxu0 %v147
  %683 = vmatpush.bf16.msra.mxu0 %v144
  %684 = vmatmul.bf16.gmra.mxu0 %v662
  %v685 = vpop.f32.mrf.mxu0
  %v686 = vadd.f32 0.0, %v685
  %v687 = vpop.f32.mrf.mxu0
  %688 = vdwg.mxu0
  %689 = vmatpush.bf16.msra.mxu0 %v166
  %690 = vmatpush.bf16.msra.mxu0 %v163
  %691 = vmatpush.bf16.msra.mxu0 %v160
  %692 = vmatpush.bf16.msra.mxu0 %v157
  %693 = vmatpush.bf16.msra.mxu0 %v154
  %694 = vmatpush.bf16.msra.mxu0 %v151
  %695 = vmatpush.bf16.msra.mxu0 %v148
  %696 = vmatpush.bf16.msra.mxu0 %v145
  %697 = vmatmul.bf16.gmra.mxu0 %v662
  %v698 = vpop.f32.mrf.mxu0
  %v699 = vadd.f32 0.0, %v698
  %v700 = vpop.f32.mrf.mxu0
  %701 = vdwg.mxu0
  %v702 = vadd.f32 %v659, %v673
  %v703 = vxor.u32 %v702, 2147483648
  %v704 = vmul.f32 %v703, 1.442695
  %v705 = vpow.pop %v704
  %v706 = vadd.f32 %v705, 1.0
  %v707 = vrcp.pop %v706
  %v708 = vmul.f32 %v706, %v707
  %v709 = vsub.f32 1.0, %v708
  %v710 = vmul.f32 %v707, %v709
  %v711 = vadd.f32 %v707, %v710
  %vm712 = vweird.f32 %v706
  %vm713 = vweird.f32 %v707
  %vm714 = vmor %vm712, %vm713
  %v715 = vsel %vm714, %v707, %v711
  %v716 = vand.u32 2147483647, %v706
  %vm717 = vcmp.eq.f32.partialorder %v716, 8.507059e+37
  %v718 = vand.u32 %v706, 2147483648
  %v719 = vor.u32 1.1754944e-38, %v718
  %v720 = vsel %vm717, %v719, %v715
  %v721 = vmul.f32 1.0, %v720
  %v722 = vadd.f32 %v660, %v686
  %v723 = vxor.u32 %v722, 2147483648
  %v724 = vmul.f32 %v723, 1.442695
  %v725 = vpow.pop %v724
  %v726 = vadd.f32 %v725, 1.0
  %v727 = vrcp.pop %v726
  %v728 = vmul.f32 %v726, %v727
  %v729 = vsub.f32 1.0, %v728
  %v730 = vmul.f32 %v727, %v729
  %v731 = vadd.f32 %v727, %v730
  %vm732 = vweird.f32 %v726
  %vm733 = vweird.f32 %v727
  %vm734 = vmor %vm732, %vm733
  %v735 = vsel %vm734, %v727, %v731
  %v736 = vand.u32 2147483647, %v726
  %vm737 = vcmp.eq.f32.partialorder %v736, 8.507059e+37
  %v738 = vand.u32 %v726, 2147483648
  %v739 = vor.u32 1.1754944e-38, %v738
  %v740 = vsel %vm737, %v739, %v735
  %v741 = vmul.f32 1.0, %v740
  %v742 = vadd.f32 %v699, %v271
  %v743 = vmul.f32 %v721, %v742
  %v744 = vadd.f32 %v661, %v743
  %v745 = vtanh.pop %v744
  %v746 = vsub.f32 1.0, %v741
  %v747 = vmul.f32 %v746, %v745
  %v748 = vmul.f32 %v741, %v655
  %v749 = vadd.f32 %v747, %v748
  %s750 = scalar_lea.vmem %s4, 40
  %751 = vst [vmem:[%s750] sm:$0xff] %v749
  %s752 = scalar_lea.vmem %s0, 144
  %v753 = vld [vmem:[%s752] sm:$0xff]
  %v754 = vld [vmem:[%s752 + $0x8] sm:$0xff]
  %v755 = vld [vmem:[%s752 + $0x10] sm:$0xff]
  %v756 = vpack.c.bf16 %v749, %v749
  %757 = vmatpush.bf16.msra.mxu0 %v164
  %758 = vmatpush.bf16.msra.mxu0 %v161
  %759 = vmatpush.bf16.msra.mxu0 %v158
  %760 = vmatpush.bf16.msra.mxu0 %v155
  %761 = vmatpush.bf16.msra.mxu0 %v152
  %762 = vmatpush.bf16.msra.mxu0 %v149
  %763 = vmatpush.bf16.msra.mxu0 %v146
  %764 = vmatpush.bf16.msra.mxu0 %v143
  %765 = vmatmul.bf16.gmra.mxu0 %v756
  %v766 = vpop.f32.mrf.mxu0
  %v767 = vadd.f32 0.0, %v766
  %v768 = vpop.f32.mrf.mxu0
  %769 = vdwg.mxu0
  %770 = vmatpush.bf16.msra.mxu0 %v165
  %771 = vmatpush.bf16.msra.mxu0 %v162
  %772 = vmatpush.bf16.msra.mxu0 %v159
  %773 = vmatpush.bf16.msra.mxu0 %v156
  %774 = vmatpush.bf16.msra.mxu0 %v153
  %775 = vmatpush.bf16.msra.mxu0 %v150
  %776 = vmatpush.bf16.msra.mxu0 %v147
  %777 = vmatpush.bf16.msra.mxu0 %v144
  %778 = vmatmul.bf16.gmra.mxu0 %v756
  %v779 = vpop.f32.mrf.mxu0
  %v780 = vadd.f32 0.0, %v779
  %v781 = vpop.f32.mrf.mxu0
  %782 = vdwg.mxu0
  %783 = vmatpush.bf16.msra.mxu0 %v166
  %784 = vmatpush.bf16.msra.mxu0 %v163
  %785 = vmatpush.bf16.msra.mxu0 %v160
  %786 = vmatpush.bf16.msra.mxu0 %v157
  %787 = vmatpush.bf16.msra.mxu0 %v154
  %788 = vmatpush.bf16.msra.mxu0 %v151
  %789 = vmatpush.bf16.msra.mxu0 %v148
  %790 = vmatpush.bf16.msra.mxu0 %v145
  %791 = vmatmul.bf16.gmra.mxu0 %v756
  %v792 = vpop.f32.mrf.mxu0
  %v793 = vadd.f32 0.0, %v792
  %v794 = vpop.f32.mrf.mxu0
  %795 = vdwg.mxu0
  %v796 = vadd.f32 %v753, %v767
  %v797 = vxor.u32 %v796, 2147483648
  %v798 = vmul.f32 %v797, 1.442695
  %v799 = vpow.pop %v798
  %v800 = vadd.f32 %v799, 1.0
  %v801 = vrcp.pop %v800
  %v802 = vmul.f32 %v800, %v801
  %v803 = vsub.f32 1.0, %v802
  %v804 = vmul.f32 %v801, %v803
  %v805 = vadd.f32 %v801, %v804
  %vm806 = vweird.f32 %v800
  %vm807 = vweird.f32 %v801
  %vm808 = vmor %vm806, %vm807
  %v809 = vsel %vm808, %v801, %v805
  %v810 = vand.u32 2147483647, %v800
  %vm811 = vcmp.eq.f32.partialorder %v810, 8.507059e+37
  %v812 = vand.u32 %v800, 2147483648
  %v813 = vor.u32 1.1754944e-38, %v812
  %v814 = vsel %vm811, %v813, %v809
  %v815 = vmul.f32 1.0, %v814
  %v816 = vadd.f32 %v754, %v780
  %v817 = vxor.u32 %v816, 2147483648
  %v818 = vmul.f32 %v817, 1.442695
  %v819 = vpow.pop %v818
  %v820 = vadd.f32 %v819, 1.0
  %v821 = vrcp.pop %v820
  %v822 = vmul.f32 %v820, %v821
  %v823 = vsub.f32 1.0, %v822
  %v824 = vmul.f32 %v821, %v823
  %v825 = vadd.f32 %v821, %v824
  %vm826 = vweird.f32 %v820
  %vm827 = vweird.f32 %v821
  %vm828 = vmor %vm826, %vm827
  %v829 = vsel %vm828, %v821, %v825
  %v830 = vand.u32 2147483647, %v820
  %vm831 = vcmp.eq.f32.partialorder %v830, 8.507059e+37
  %v832 = vand.u32 %v820, 2147483648
  %v833 = vor.u32 1.1754944e-38, %v832
  %v834 = vsel %vm831, %v833, %v829
  %v835 = vmul.f32 1.0, %v834
  %v836 = vadd.f32 %v793, %v271
  %v837 = vmul.f32 %v815, %v836
  %v838 = vadd.f32 %v755, %v837
  %v839 = vtanh.pop %v838
  %v840 = vsub.f32 1.0, %v835
  %v841 = vmul.f32 %v840, %v839
  %v842 = vmul.f32 %v835, %v749
  %v843 = vadd.f32 %v841, %v842
  %s844 = scalar_lea.vmem %s4, 48
  %845 = vst [vmem:[%s844] sm:$0xff] %v843
  %s846 = scalar_lea.vmem %s0, 168
  %v847 = vld [vmem:[%s846] sm:$0xff]
  %v848 = vld [vmem:[%s846 + $0x8] sm:$0xff]
  %v849 = vld [vmem:[%s846 + $0x10] sm:$0xff]
  %v850 = vpack.c.bf16 %v843, %v843
  %851 = vmatpush.bf16.msra.mxu0 %v164
  %852 = vmatpush.bf16.msra.mxu0 %v161
  %853 = vmatpush.bf16.msra.mxu0 %v158
  %854 = vmatpush.bf16.msra.mxu0 %v155
  %855 = vmatpush.bf16.msra.mxu0 %v152
  %856 = vmatpush.bf16.msra.mxu0 %v149
  %857 = vmatpush.bf16.msra.mxu0 %v146
  %858 = vmatpush.bf16.msra.mxu0 %v143
  %859 = vmatmul.bf16.gmra.mxu0 %v850
  %v860 = vpop.f32.mrf.mxu0
  %v861 = vadd.f32 0.0, %v860
  %v862 = vpop.f32.mrf.mxu0
  %863 = vdwg.mxu0
  %864 = vmatpush.bf16.msra.mxu0 %v165
  %865 = vmatpush.bf16.msra.mxu0 %v162
  %866 = vmatpush.bf16.msra.mxu0 %v159
  %867 = vmatpush.bf16.msra.mxu0 %v156
  %868 = vmatpush.bf16.msra.mxu0 %v153
  %869 = vmatpush.bf16.msra.mxu0 %v150
  %870 = vmatpush.bf16.msra.mxu0 %v147
  %871 = vmatpush.bf16.msra.mxu0 %v144
  %872 = vmatmul.bf16.gmra.mxu0 %v850
  %v873 = vpop.f32.mrf.mxu0
  %v874 = vadd.f32 0.0, %v873
  %v875 = vpop.f32.mrf.mxu0
  %876 = vdwg.mxu0
  %877 = vmatpush.bf16.msra.mxu0 %v166
  %878 = vmatpush.bf16.msra.mxu0 %v163
  %879 = vmatpush.bf16.msra.mxu0 %v160
  %880 = vmatpush.bf16.msra.mxu0 %v157
  %881 = vmatpush.bf16.msra.mxu0 %v154
  %882 = vmatpush.bf16.msra.mxu0 %v151
  %883 = vmatpush.bf16.msra.mxu0 %v148
  %884 = vmatpush.bf16.msra.mxu0 %v145
  %885 = vmatmul.bf16.gmra.mxu0 %v850
  %v886 = vpop.f32.mrf.mxu0
  %v887 = vadd.f32 0.0, %v886
  %v888 = vpop.f32.mrf.mxu0
  %889 = vdwg.mxu0
  %v890 = vadd.f32 %v847, %v861
  %v891 = vxor.u32 %v890, 2147483648
  %v892 = vmul.f32 %v891, 1.442695
  %v893 = vpow.pop %v892
  %v894 = vadd.f32 %v893, 1.0
  %v895 = vrcp.pop %v894
  %v896 = vmul.f32 %v894, %v895
  %v897 = vsub.f32 1.0, %v896
  %v898 = vmul.f32 %v895, %v897
  %v899 = vadd.f32 %v895, %v898
  %vm900 = vweird.f32 %v894
  %vm901 = vweird.f32 %v895
  %vm902 = vmor %vm900, %vm901
  %v903 = vsel %vm902, %v895, %v899
  %v904 = vand.u32 2147483647, %v894
  %vm905 = vcmp.eq.f32.partialorder %v904, 8.507059e+37
  %v906 = vand.u32 %v894, 2147483648
  %v907 = vor.u32 1.1754944e-38, %v906
  %v908 = vsel %vm905, %v907, %v903
  %v909 = vmul.f32 1.0, %v908
  %v910 = vadd.f32 %v848, %v874
  %v911 = vxor.u32 %v910, 2147483648
  %v912 = vmul.f32 %v911, 1.442695
  %v913 = vpow.pop %v912
  %v914 = vadd.f32 %v913, 1.0
  %v915 = vrcp.pop %v914
  %v916 = vmul.f32 %v914, %v915
  %v917 = vsub.f32 1.0, %v916
  %v918 = vmul.f32 %v915, %v917
  %v919 = vadd.f32 %v915, %v918
  %vm920 = vweird.f32 %v914
  %vm921 = vweird.f32 %v915
  %vm922 = vmor %vm920, %vm921
  %v923 = vsel %vm922, %v915, %v919
  %v924 = vand.u32 2147483647, %v914
  %vm925 = vcmp.eq.f32.partialorder %v924, 8.507059e+37
  %v926 = vand.u32 %v914, 2147483648
  %v927 = vor.u32 1.1754944e-38, %v926
  %v928 = vsel %vm925, %v927, %v923
  %v929 = vmul.f32 1.0, %v928
  %v930 = vadd.f32 %v887, %v271
  %v931 = vmul.f32 %v909, %v930
  %v932 = vadd.f32 %v849, %v931
  %v933 = vtanh.pop %v932
  %v934 = vsub.f32 1.0, %v929
  %v935 = vmul.f32 %v934, %v933
  %v936 = vmul.f32 %v929, %v843
  %v937 = vadd.f32 %v935, %v936
  %s938 = scalar_lea.vmem %s4, 56
  %939 = vst [vmem:[%s938] sm:$0xff] %v937
  %s940 = scalar_lea.vmem %s0, 192
  %v941 = vld [vmem:[%s940] sm:$0xff]
  %v942 = vld [vmem:[%s940 + $0x8] sm:$0xff]
  %v943 = vld [vmem:[%s940 + $0x10] sm:$0xff]
  %v944 = vpack.c.bf16 %v937, %v937
  %945 = vmatpush.bf16.msra.mxu0 %v164
  %946 = vmatpush.bf16.msra.mxu0 %v161
  %947 = vmatpush.bf16.msra.mxu0 %v158
  %948 = vmatpush.bf16.msra.mxu0 %v155
  %949 = vmatpush.bf16.msra.mxu0 %v152
  %950 = vmatpush.bf16.msra.mxu0 %v149
  %951 = vmatpush.bf16.msra.mxu0 %v146
  %952 = vmatpush.bf16.msra.mxu0 %v143
  %953 = vmatmul.bf16.gmra.mxu0 %v944
  %v954 = vpop.f32.mrf.mxu0
  %v955 = vadd.f32 0.0, %v954
  %v956 = vpop.f32.mrf.mxu0
  %957 = vdwg.mxu0
  %958 = vmatpush.bf16.msra.mxu0 %v165
  %959 = vmatpush.bf16.msra.mxu0 %v162
  %960 = vmatpush.bf16.msra.mxu0 %v159
  %961 = vmatpush.bf16.msra.mxu0 %v156
  %962 = vmatpush.bf16.msra.mxu0 %v153
  %963 = vmatpush.bf16.msra.mxu0 %v150
  %964 = vmatpush.bf16.msra.mxu0 %v147
  %965 = vmatpush.bf16.msra.mxu0 %v144
  %966 = vmatmul.bf16.gmra.mxu0 %v944
  %v967 = vpop.f32.mrf.mxu0
  %v968 = vadd.f32 0.0, %v967
  %v969 = vpop.f32.mrf.mxu0
  %970 = vdwg.mxu0
  %971 = vmatpush.bf16.msra.mxu0 %v166
  %972 = vmatpush.bf16.msra.mxu0 %v163
  %973 = vmatpush.bf16.msra.mxu0 %v160
  %974 = vmatpush.bf16.msra.mxu0 %v157
  %975 = vmatpush.bf16.msra.mxu0 %v154
  %976 = vmatpush.bf16.msra.mxu0 %v151
  %977 = vmatpush.bf16.msra.mxu0 %v148
  %978 = vmatpush.bf16.msra.mxu0 %v145
  %979 = vmatmul.bf16.gmra.mxu0 %v944
  %v980 = vpop.f32.mrf.mxu0
  %v981 = vadd.f32 0.0, %v980
  %v982 = vpop.f32.mrf.mxu0
  %983 = vdwg.mxu0
  %v984 = vadd.f32 %v941, %v955
  %v985 = vxor.u32 %v984, 2147483648
  %v986 = vmul.f32 %v985, 1.442695
  %v987 = vpow.pop %v986
  %v988 = vadd.f32 %v987, 1.0
  %v989 = vrcp.pop %v988
  %v990 = vmul.f32 %v988, %v989
  %v991 = vsub.f32 1.0, %v990
  %v992 = vmul.f32 %v989, %v991
  %v993 = vadd.f32 %v989, %v992
  %vm994 = vweird.f32 %v988
  %vm995 = vweird.f32 %v989
  %vm996 = vmor %vm994, %vm995
  %v997 = vsel %vm996, %v989, %v993
  %v998 = vand.u32 2147483647, %v988
  %vm999 = vcmp.eq.f32.partialorder %v998, 8.507059e+37
  %v1000 = vand.u32 %v988, 2147483648
  %v1001 = vor.u32 1.1754944e-38, %v1000
  %v1002 = vsel %vm999, %v1001, %v997
  %v1003 = vmul.f32 1.0, %v1002
  %v1004 = vadd.f32 %v942, %v968
  %v1005 = vxor.u32 %v1004, 2147483648
  %v1006 = vmul.f32 %v1005, 1.442695
  %v1007 = vpow.pop %v1006
  %v1008 = vadd.f32 %v1007, 1.0
  %v1009 = vrcp.pop %v1008
  %v1010 = vmul.f32 %v1008, %v1009
  %v1011 = vsub.f32 1.0, %v1010
  %v1012 = vmul.f32 %v1009, %v1011
  %v1013 = vadd.f32 %v1009, %v1012
  %vm1014 = vweird.f32 %v1008
  %vm1015 = vweird.f32 %v1009
  %vm1016 = vmor %vm1014, %vm1015
  %v1017 = vsel %vm1016, %v1009, %v1013
  %v1018 = vand.u32 2147483647, %v1008
  %vm1019 = vcmp.eq.f32.partialorder %v1018, 8.507059e+37
  %v1020 = vand.u32 %v1008, 2147483648
  %v1021 = vor.u32 1.1754944e-38, %v1020
  %v1022 = vsel %vm1019, %v1021, %v1017
  %v1023 = vmul.f32 1.0, %v1022
  %v1024 = vadd.f32 %v981, %v271
  %v1025 = vmul.f32 %v1003, %v1024
  %v1026 = vadd.f32 %v943, %v1025
  %v1027 = vtanh.pop %v1026
  %v1028 = vsub.f32 1.0, %v1023
  %v1029 = vmul.f32 %v1028, %v1027
  %v1030 = vmul.f32 %v1023, %v937
  %v1031 = vadd.f32 %v1029, %v1030
  %s1032 = scalar_lea.vmem %s4, 64
  %1033 = vst [vmem:[%s1032] sm:$0xff] %v1031
  %s1034 = scalar_lea.vmem %s0, 216
  %v1035 = vld [vmem:[%s1034] sm:$0xff]
  %v1036 = vld [vmem:[%s1034 + $0x8] sm:$0xff]
  %v1037 = vld [vmem:[%s1034 + $0x10] sm:$0xff]
  %v1038 = vpack.c.bf16 %v1031, %v1031
  %1039 = vmatpush.bf16.msra.mxu0 %v164
  %1040 = vmatpush.bf16.msra.mxu0 %v161
  %1041 = vmatpush.bf16.msra.mxu0 %v158
  %1042 = vmatpush.bf16.msra.mxu0 %v155
  %1043 = vmatpush.bf16.msra.mxu0 %v152
  %1044 = vmatpush.bf16.msra.mxu0 %v149
  %1045 = vmatpush.bf16.msra.mxu0 %v146
  %1046 = vmatpush.bf16.msra.mxu0 %v143
  %1047 = vmatmul.bf16.gmra.mxu0 %v1038
  %v1048 = vpop.f32.mrf.mxu0
  %v1049 = vadd.f32 0.0, %v1048
  %v1050 = vpop.f32.mrf.mxu0
  %1051 = vdwg.mxu0
  %1052 = vmatpush.bf16.msra.mxu0 %v165
  %1053 = vmatpush.bf16.msra.mxu0 %v162
  %1054 = vmatpush.bf16.msra.mxu0 %v159
  %1055 = vmatpush.bf16.msra.mxu0 %v156
  %1056 = vmatpush.bf16.msra.mxu0 %v153
  %1057 = vmatpush.bf16.msra.mxu0 %v150
  %1058 = vmatpush.bf16.msra.mxu0 %v147
  %1059 = vmatpush.bf16.msra.mxu0 %v144
  %1060 = vmatmul.bf16.gmra.mxu0 %v1038
  %v1061 = vpop.f32.mrf.mxu0
  %v1062 = vadd.f32 0.0, %v1061
  %v1063 = vpop.f32.mrf.mxu0
  %1064 = vdwg.mxu0
  %1065 = vmatpush.bf16.msra.mxu0 %v166
  %1066 = vmatpush.bf16.msra.mxu0 %v163
  %1067 = vmatpush.bf16.msra.mxu0 %v160
  %1068 = vmatpush.bf16.msra.mxu0 %v157
  %1069 = vmatpush.bf16.msra.mxu0 %v154
  %1070 = vmatpush.bf16.msra.mxu0 %v151
  %1071 = vmatpush.bf16.msra.mxu0 %v148
  %1072 = vmatpush.bf16.msra.mxu0 %v145
  %1073 = vmatmul.bf16.gmra.mxu0 %v1038
  %v1074 = vpop.f32.mrf.mxu0
  %v1075 = vadd.f32 0.0, %v1074
  %v1076 = vpop.f32.mrf.mxu0
  %1077 = vdwg.mxu0
  %v1078 = vadd.f32 %v1035, %v1049
  %v1079 = vxor.u32 %v1078, 2147483648
  %v1080 = vmul.f32 %v1079, 1.442695
  %v1081 = vpow.pop %v1080
  %v1082 = vadd.f32 %v1081, 1.0
  %v1083 = vrcp.pop %v1082
  %v1084 = vmul.f32 %v1082, %v1083
  %v1085 = vsub.f32 1.0, %v1084
  %v1086 = vmul.f32 %v1083, %v1085
  %v1087 = vadd.f32 %v1083, %v1086
  %vm1088 = vweird.f32 %v1082
  %vm1089 = vweird.f32 %v1083
  %vm1090 = vmor %vm1088, %vm1089
  %v1091 = vsel %vm1090, %v1083, %v1087
  %v1092 = vand.u32 2147483647, %v1082
  %vm1093 = vcmp.eq.f32.partialorder %v1092, 8.507059e+37
  %v1094 = vand.u32 %v1082, 2147483648
  %v1095 = vor.u32 1.1754944e-38, %v1094
  %v1096 = vsel %vm1093, %v1095, %v1091
  %v1097 = vmul.f32 1.0, %v1096
  %v1098 = vadd.f32 %v1036, %v1062
  %v1099 = vxor.u32 %v1098, 2147483648
  %v1100 = vmul.f32 %v1099, 1.442695
  %v1101 = vpow.pop %v1100
  %v1102 = vadd.f32 %v1101, 1.0
  %v1103 = vrcp.pop %v1102
  %v1104 = vmul.f32 %v1102, %v1103
  %v1105 = vsub.f32 1.0, %v1104
  %v1106 = vmul.f32 %v1103, %v1105
  %v1107 = vadd.f32 %v1103, %v1106
  %vm1108 = vweird.f32 %v1102
  %vm1109 = vweird.f32 %v1103
  %vm1110 = vmor %vm1108, %vm1109
  %v1111 = vsel %vm1110, %v1103, %v1107
  %v1112 = vand.u32 2147483647, %v1102
  %vm1113 = vcmp.eq.f32.partialorder %v1112, 8.507059e+37
  %v1114 = vand.u32 %v1102, 2147483648
  %v1115 = vor.u32 1.1754944e-38, %v1114
  %v1116 = vsel %vm1113, %v1115, %v1111
  %v1117 = vmul.f32 1.0, %v1116
  %v1118 = vadd.f32 %v1075, %v271
  %v1119 = vmul.f32 %v1097, %v1118
  %v1120 = vadd.f32 %v1037, %v1119
  %v1121 = vtanh.pop %v1120
  %v1122 = vsub.f32 1.0, %v1117
  %v1123 = vmul.f32 %v1122, %v1121
  %v1124 = vmul.f32 %v1117, %v1031
  %v1125 = vadd.f32 %v1123, %v1124
  %s1126 = scalar_lea.vmem %s4, 72
  %1127 = vst [vmem:[%s1126] sm:$0xff] %v1125
  %s1128 = scalar_lea.vmem %s0, 240
  %v1129 = vld [vmem:[%s1128] sm:$0xff]
  %v1130 = vld [vmem:[%s1128 + $0x8] sm:$0xff]
  %v1131 = vld [vmem:[%s1128 + $0x10] sm:$0xff]
  %v1132 = vpack.c.bf16 %v1125, %v1125
  %1133 = vmatpush.bf16.msra.mxu0 %v164
  %1134 = vmatpush.bf16.msra.mxu0 %v161
  %1135 = vmatpush.bf16.msra.mxu0 %v158
  %1136 = vmatpush.bf16.msra.mxu0 %v155
  %1137 = vmatpush.bf16.msra.mxu0 %v152
  %1138 = vmatpush.bf16.msra.mxu0 %v149
  %1139 = vmatpush.bf16.msra.mxu0 %v146
  %1140 = vmatpush.bf16.msra.mxu0 %v143
  %1141 = vmatmul.bf16.gmra.mxu0 %v1132
  %v1142 = vpop.f32.mrf.mxu0
  %v1143 = vadd.f32 0.0, %v1142
  %v1144 = vpop.f32.mrf.mxu0
  %1145 = vdwg.mxu0
  %1146 = vmatpush.bf16.msra.mxu0 %v165
  %1147 = vmatpush.bf16.msra.mxu0 %v162
  %1148 = vmatpush.bf16.msra.mxu0 %v159
  %1149 = vmatpush.bf16.msra.mxu0 %v156
  %1150 = vmatpush.bf16.msra.mxu0 %v153
  %1151 = vmatpush.bf16.msra.mxu0 %v150
  %1152 = vmatpush.bf16.msra.mxu0 %v147
  %1153 = vmatpush.bf16.msra.mxu0 %v144
  %1154 = vmatmul.bf16.gmra.mxu0 %v1132
  %v1155 = vpop.f32.mrf.mxu0
  %v1156 = vadd.f32 0.0, %v1155
  %v1157 = vpop.f32.mrf.mxu0
  %1158 = vdwg.mxu0
  %1159 = vmatpush.bf16.msra.mxu0 %v166
  %1160 = vmatpush.bf16.msra.mxu0 %v163
  %1161 = vmatpush.bf16.msra.mxu0 %v160
  %1162 = vmatpush.bf16.msra.mxu0 %v157
  %1163 = vmatpush.bf16.msra.mxu0 %v154
  %1164 = vmatpush.bf16.msra.mxu0 %v151
  %1165 = vmatpush.bf16.msra.mxu0 %v148
  %1166 = vmatpush.bf16.msra.mxu0 %v145
  %1167 = vmatmul.bf16.gmra.mxu0 %v1132
  %v1168 = vpop.f32.mrf.mxu0
  %v1169 = vadd.f32 0.0, %v1168
  %v1170 = vpop.f32.mrf.mxu0
  %1171 = vdwg.mxu0
  %v1172 = vadd.f32 %v1129, %v1143
  %v1173 = vxor.u32 %v1172, 2147483648
  %v1174 = vmul.f32 %v1173, 1.442695
  %v1175 = vpow.pop %v1174
  %v1176 = vadd.f32 %v1175, 1.0
  %v1177 = vrcp.pop %v1176
  %v1178 = vmul.f32 %v1176, %v1177
  %v1179 = vsub.f32 1.0, %v1178
  %v1180 = vmul.f32 %v1177, %v1179
  %v1181 = vadd.f32 %v1177, %v1180
  %vm1182 = vweird.f32 %v1176
  %vm1183 = vweird.f32 %v1177
  %vm1184 = vmor %vm1182, %vm1183
  %v1185 = vsel %vm1184, %v1177, %v1181
  %v1186 = vand.u32 2147483647, %v1176
  %vm1187 = vcmp.eq.f32.partialorder %v1186, 8.507059e+37
  %v1188 = vand.u32 %v1176, 2147483648
  %v1189 = vor.u32 1.1754944e-38, %v1188
  %v1190 = vsel %vm1187, %v1189, %v1185
  %v1191 = vmul.f32 1.0, %v1190
  %v1192 = vadd.f32 %v1130, %v1156
  %v1193 = vxor.u32 %v1192, 2147483648
  %v1194 = vmul.f32 %v1193, 1.442695
  %v1195 = vpow.pop %v1194
  %v1196 = vadd.f32 %v1195, 1.0
  %v1197 = vrcp.pop %v1196
  %v1198 = vmul.f32 %v1196, %v1197
  %v1199 = vsub.f32 1.0, %v1198
  %v1200 = vmul.f32 %v1197, %v1199
  %v1201 = vadd.f32 %v1197, %v1200
  %vm1202 = vweird.f32 %v1196
  %vm1203 = vweird.f32 %v1197
  %vm1204 = vmor %vm1202, %vm1203
  %v1205 = vsel %vm1204, %v1197, %v1201
  %v1206 = vand.u32 2147483647, %v1196
  %vm1207 = vcmp.eq.f32.partialorder %v1206, 8.507059e+37
  %v1208 = vand.u32 %v1196, 2147483648
  %v1209 = vor.u32 1.1754944e-38, %v1208
  %v1210 = vsel %vm1207, %v1209, %v1205
  %v1211 = vmul.f32 1.0, %v1210
  %v1212 = vadd.f32 %v1169, %v271
  %v1213 = vmul.f32 %v1191, %v1212
  %v1214 = vadd.f32 %v1131, %v1213
  %v1215 = vtanh.pop %v1214
  %v1216 = vsub.f32 1.0, %v1211
  %v1217 = vmul.f32 %v1216, %v1215
  %v1218 = vmul.f32 %v1211, %v1125
  %v1219 = vadd.f32 %v1217, %v1218
  %s1220 = scalar_lea.vmem %s4, 80
  %1221 = vst [vmem:[%s1220] sm:$0xff] %v1219
  %s1222 = scalar_lea.vmem %s0, 264
  %v1223 = vld [vmem:[%s1222] sm:$0xff]
  %v1224 = vld [vmem:[%s1222 + $0x8] sm:$0xff]
  %v1225 = vld [vmem:[%s1222 + $0x10] sm:$0xff]
  %v1226 = vpack.c.bf16 %v1219, %v1219
  %1227 = vmatpush.bf16.msra.mxu0 %v164
  %1228 = vmatpush.bf16.msra.mxu0 %v161
  %1229 = vmatpush.bf16.msra.mxu0 %v158
  %1230 = vmatpush.bf16.msra.mxu0 %v155
  %1231 = vmatpush.bf16.msra.mxu0 %v152
  %1232 = vmatpush.bf16.msra.mxu0 %v149
  %1233 = vmatpush.bf16.msra.mxu0 %v146
  %1234 = vmatpush.bf16.msra.mxu0 %v143
  %1235 = vmatmul.bf16.gmra.mxu0 %v1226
  %v1236 = vpop.f32.mrf.mxu0
  %v1237 = vadd.f32 0.0, %v1236
  %v1238 = vpop.f32.mrf.mxu0
  %1239 = vdwg.mxu0
  %1240 = vmatpush.bf16.msra.mxu0 %v165
  %1241 = vmatpush.bf16.msra.mxu0 %v162
  %1242 = vmatpush.bf16.msra.mxu0 %v159
  %1243 = vmatpush.bf16.msra.mxu0 %v156
  %1244 = vmatpush.bf16.msra.mxu0 %v153
  %1245 = vmatpush.bf16.msra.mxu0 %v150
  %1246 = vmatpush.bf16.msra.mxu0 %v147
  %1247 = vmatpush.bf16.msra.mxu0 %v144
  %1248 = vmatmul.bf16.gmra.mxu0 %v1226
  %v1249 = vpop.f32.mrf.mxu0
  %v1250 = vadd.f32 0.0, %v1249
  %v1251 = vpop.f32.mrf.mxu0
  %1252 = vdwg.mxu0
  %1253 = vmatpush.bf16.msra.mxu0 %v166
  %1254 = vmatpush.bf16.msra.mxu0 %v163
  %1255 = vmatpush.bf16.msra.mxu0 %v160
  %1256 = vmatpush.bf16.msra.mxu0 %v157
  %1257 = vmatpush.bf16.msra.mxu0 %v154
  %1258 = vmatpush.bf16.msra.mxu0 %v151
  %1259 = vmatpush.bf16.msra.mxu0 %v148
  %1260 = vmatpush.bf16.msra.mxu0 %v145
  %1261 = vmatmul.bf16.gmra.mxu0 %v1226
  %v1262 = vpop.f32.mrf.mxu0
  %v1263 = vadd.f32 0.0, %v1262
  %v1264 = vpop.f32.mrf.mxu0
  %1265 = vdwg.mxu0
  %v1266 = vadd.f32 %v1223, %v1237
  %v1267 = vxor.u32 %v1266, 2147483648
  %v1268 = vmul.f32 %v1267, 1.442695
  %v1269 = vpow.pop %v1268
  %v1270 = vadd.f32 %v1269, 1.0
  %v1271 = vrcp.pop %v1270
  %v1272 = vmul.f32 %v1270, %v1271
  %v1273 = vsub.f32 1.0, %v1272
  %v1274 = vmul.f32 %v1271, %v1273
  %v1275 = vadd.f32 %v1271, %v1274
  %vm1276 = vweird.f32 %v1270
  %vm1277 = vweird.f32 %v1271
  %vm1278 = vmor %vm1276, %vm1277
  %v1279 = vsel %vm1278, %v1271, %v1275
  %v1280 = vand.u32 2147483647, %v1270
  %vm1281 = vcmp.eq.f32.partialorder %v1280, 8.507059e+37
  %v1282 = vand.u32 %v1270, 2147483648
  %v1283 = vor.u32 1.1754944e-38, %v1282
  %v1284 = vsel %vm1281, %v1283, %v1279
  %v1285 = vmul.f32 1.0, %v1284
  %v1286 = vadd.f32 %v1224, %v1250
  %v1287 = vxor.u32 %v1286, 2147483648
  %v1288 = vmul.f32 %v1287, 1.442695
  %v1289 = vpow.pop %v1288
  %v1290 = vadd.f32 %v1289, 1.0
  %v1291 = vrcp.pop %v1290
  %v1292 = vmul.f32 %v1290, %v1291
  %v1293 = vsub.f32 1.0, %v1292
  %v1294 = vmul.f32 %v1291, %v1293
  %v1295 = vadd.f32 %v1291, %v1294
  %vm1296 = vweird.f32 %v1290
  %vm1297 = vweird.f32 %v1291
  %vm1298 = vmor %vm1296, %vm1297
  %v1299 = vsel %vm1298, %v1291, %v1295
  %v1300 = vand.u32 2147483647, %v1290
  %vm1301 = vcmp.eq.f32.partialorder %v1300, 8.507059e+37
  %v1302 = vand.u32 %v1290, 2147483648
  %v1303 = vor.u32 1.1754944e-38, %v1302
  %v1304 = vsel %vm1301, %v1303, %v1299
  %v1305 = vmul.f32 1.0, %v1304
  %v1306 = vadd.f32 %v1263, %v271
  %v1307 = vmul.f32 %v1285, %v1306
  %v1308 = vadd.f32 %v1225, %v1307
  %v1309 = vtanh.pop %v1308
  %v1310 = vsub.f32 1.0, %v1305
  %v1311 = vmul.f32 %v1310, %v1309
  %v1312 = vmul.f32 %v1305, %v1219
  %v1313 = vadd.f32 %v1311, %v1312
  %s1314 = scalar_lea.vmem %s4, 88
  %1315 = vst [vmem:[%s1314] sm:$0xff] %v1313
  %s1316 = scalar_lea.vmem %s0, 288
  %v1317 = vld [vmem:[%s1316] sm:$0xff]
  %v1318 = vld [vmem:[%s1316 + $0x8] sm:$0xff]
  %v1319 = vld [vmem:[%s1316 + $0x10] sm:$0xff]
  %v1320 = vpack.c.bf16 %v1313, %v1313
  %1321 = vmatpush.bf16.msra.mxu0 %v164
  %1322 = vmatpush.bf16.msra.mxu0 %v161
  %1323 = vmatpush.bf16.msra.mxu0 %v158
  %1324 = vmatpush.bf16.msra.mxu0 %v155
  %1325 = vmatpush.bf16.msra.mxu0 %v152
  %1326 = vmatpush.bf16.msra.mxu0 %v149
  %1327 = vmatpush.bf16.msra.mxu0 %v146
  %1328 = vmatpush.bf16.msra.mxu0 %v143
  %1329 = vmatmul.bf16.gmra.mxu0 %v1320
  %v1330 = vpop.f32.mrf.mxu0
  %v1331 = vadd.f32 0.0, %v1330
  %v1332 = vpop.f32.mrf.mxu0
  %1333 = vdwg.mxu0
  %1334 = vmatpush.bf16.msra.mxu0 %v165
  %1335 = vmatpush.bf16.msra.mxu0 %v162
  %1336 = vmatpush.bf16.msra.mxu0 %v159
  %1337 = vmatpush.bf16.msra.mxu0 %v156
  %1338 = vmatpush.bf16.msra.mxu0 %v153
  %1339 = vmatpush.bf16.msra.mxu0 %v150
  %1340 = vmatpush.bf16.msra.mxu0 %v147
  %1341 = vmatpush.bf16.msra.mxu0 %v144
  %1342 = vmatmul.bf16.gmra.mxu0 %v1320
  %v1343 = vpop.f32.mrf.mxu0
  %v1344 = vadd.f32 0.0, %v1343
  %v1345 = vpop.f32.mrf.mxu0
  %1346 = vdwg.mxu0
  %1347 = vmatpush.bf16.msra.mxu0 %v166
  %1348 = vmatpush.bf16.msra.mxu0 %v163
  %1349 = vmatpush.bf16.msra.mxu0 %v160
  %1350 = vmatpush.bf16.msra.mxu0 %v157
  %1351 = vmatpush.bf16.msra.mxu0 %v154
  %1352 = vmatpush.bf16.msra.mxu0 %v151
  %1353 = vmatpush.bf16.msra.mxu0 %v148
  %1354 = vmatpush.bf16.msra.mxu0 %v145
  %1355 = vmatmul.bf16.gmra.mxu0 %v1320
  %v1356 = vpop.f32.mrf.mxu0
  %v1357 = vadd.f32 0.0, %v1356
  %v1358 = vpop.f32.mrf.mxu0
  %1359 = vdwg.mxu0
  %v1360 = vadd.f32 %v1317, %v1331
  %v1361 = vxor.u32 %v1360, 2147483648
  %v1362 = vmul.f32 %v1361, 1.442695
  %v1363 = vpow.pop %v1362
  %v1364 = vadd.f32 %v1363, 1.0
  %v1365 = vrcp.pop %v1364
  %v1366 = vmul.f32 %v1364, %v1365
  %v1367 = vsub.f32 1.0, %v1366
  %v1368 = vmul.f32 %v1365, %v1367
  %v1369 = vadd.f32 %v1365, %v1368
  %vm1370 = vweird.f32 %v1364
  %vm1371 = vweird.f32 %v1365
  %vm1372 = vmor %vm1370, %vm1371
  %v1373 = vsel %vm1372, %v1365, %v1369
  %v1374 = vand.u32 2147483647, %v1364
  %vm1375 = vcmp.eq.f32.partialorder %v1374, 8.507059e+37
  %v1376 = vand.u32 %v1364, 2147483648
  %v1377 = vor.u32 1.1754944e-38, %v1376
  %v1378 = vsel %vm1375, %v1377, %v1373
  %v1379 = vmul.f32 1.0, %v1378
  %v1380 = vadd.f32 %v1318, %v1344
  %v1381 = vxor.u32 %v1380, 2147483648
  %v1382 = vmul.f32 %v1381, 1.442695
  %v1383 = vpow.pop %v1382
  %v1384 = vadd.f32 %v1383, 1.0
  %v1385 = vrcp.pop %v1384
  %v1386 = vmul.f32 %v1384, %v1385
  %v1387 = vsub.f32 1.0, %v1386
  %v1388 = vmul.f32 %v1385, %v1387
  %v1389 = vadd.f32 %v1385, %v1388
  %vm1390 = vweird.f32 %v1384
  %vm1391 = vweird.f32 %v1385
  %vm1392 = vmor %vm1390, %vm1391
  %v1393 = vsel %vm1392, %v1385, %v1389
  %v1394 = vand.u32 2147483647, %v1384
  %vm1395 = vcmp.eq.f32.partialorder %v1394, 8.507059e+37
  %v1396 = vand.u32 %v1384, 2147483648
  %v1397 = vor.u32 1.1754944e-38, %v1396
  %v1398 = vsel %vm1395, %v1397, %v1393
  %v1399 = vmul.f32 1.0, %v1398
  %v1400 = vadd.f32 %v1357, %v271
  %v1401 = vmul.f32 %v1379, %v1400
  %v1402 = vadd.f32 %v1319, %v1401
  %v1403 = vtanh.pop %v1402
  %v1404 = vsub.f32 1.0, %v1399
  %v1405 = vmul.f32 %v1404, %v1403
  %v1406 = vmul.f32 %v1399, %v1313
  %v1407 = vadd.f32 %v1405, %v1406
  %s1408 = scalar_lea.vmem %s4, 96
  %1409 = vst [vmem:[%s1408] sm:$0xff] %v1407
  %s1410 = scalar_lea.vmem %s0, 312
  %v1411 = vld [vmem:[%s1410] sm:$0xff]
  %v1412 = vld [vmem:[%s1410 + $0x8] sm:$0xff]
  %v1413 = vld [vmem:[%s1410 + $0x10] sm:$0xff]
  %v1414 = vpack.c.bf16 %v1407, %v1407
  %1415 = vmatpush.bf16.msra.mxu0 %v164
  %1416 = vmatpush.bf16.msra.mxu0 %v161
  %1417 = vmatpush.bf16.msra.mxu0 %v158
  %1418 = vmatpush.bf16.msra.mxu0 %v155
  %1419 = vmatpush.bf16.msra.mxu0 %v152
  %1420 = vmatpush.bf16.msra.mxu0 %v149
  %1421 = vmatpush.bf16.msra.mxu0 %v146
  %1422 = vmatpush.bf16.msra.mxu0 %v143
  %1423 = vmatmul.bf16.gmra.mxu0 %v1414
  %v1424 = vpop.f32.mrf.mxu0
  %v1425 = vadd.f32 0.0, %v1424
  %v1426 = vpop.f32.mrf.mxu0
  %1427 = vdwg.mxu0
  %1428 = vmatpush.bf16.msra.mxu0 %v165
  %1429 = vmatpush.bf16.msra.mxu0 %v162
  %1430 = vmatpush.bf16.msra.mxu0 %v159
  %1431 = vmatpush.bf16.msra.mxu0 %v156
  %1432 = vmatpush.bf16.msra.mxu0 %v153
  %1433 = vmatpush.bf16.msra.mxu0 %v150
  %1434 = vmatpush.bf16.msra.mxu0 %v147
  %1435 = vmatpush.bf16.msra.mxu0 %v144
  %1436 = vmatmul.bf16.gmra.mxu0 %v1414
  %v1437 = vpop.f32.mrf.mxu0
  %v1438 = vadd.f32 0.0, %v1437
  %v1439 = vpop.f32.mrf.mxu0
  %1440 = vdwg.mxu0
  %1441 = vmatpush.bf16.msra.mxu0 %v166
  %1442 = vmatpush.bf16.msra.mxu0 %v163
  %1443 = vmatpush.bf16.msra.mxu0 %v160
  %1444 = vmatpush.bf16.msra.mxu0 %v157
  %1445 = vmatpush.bf16.msra.mxu0 %v154
  %1446 = vmatpush.bf16.msra.mxu0 %v151
  %1447 = vmatpush.bf16.msra.mxu0 %v148
  %1448 = vmatpush.bf16.msra.mxu0 %v145
  %1449 = vmatmul.bf16.gmra.mxu0 %v1414
  %v1450 = vpop.f32.mrf.mxu0
  %v1451 = vadd.f32 0.0, %v1450
  %v1452 = vpop.f32.mrf.mxu0
  %1453 = vdwg.mxu0
  %v1454 = vadd.f32 %v1411, %v1425
  %v1455 = vxor.u32 %v1454, 2147483648
  %v1456 = vmul.f32 %v1455, 1.442695
  %v1457 = vpow.pop %v1456
  %v1458 = vadd.f32 %v1457, 1.0
  %v1459 = vrcp.pop %v1458
  %v1460 = vmul.f32 %v1458, %v1459
  %v1461 = vsub.f32 1.0, %v1460
  %v1462 = vmul.f32 %v1459, %v1461
  %v1463 = vadd.f32 %v1459, %v1462
  %vm1464 = vweird.f32 %v1458
  %vm1465 = vweird.f32 %v1459
  %vm1466 = vmor %vm1464, %vm1465
  %v1467 = vsel %vm1466, %v1459, %v1463
  %v1468 = vand.u32 2147483647, %v1458
  %vm1469 = vcmp.eq.f32.partialorder %v1468, 8.507059e+37
  %v1470 = vand.u32 %v1458, 2147483648
  %v1471 = vor.u32 1.1754944e-38, %v1470
  %v1472 = vsel %vm1469, %v1471, %v1467
  %v1473 = vmul.f32 1.0, %v1472
  %v1474 = vadd.f32 %v1412, %v1438
  %v1475 = vxor.u32 %v1474, 2147483648
  %v1476 = vmul.f32 %v1475, 1.442695
  %v1477 = vpow.pop %v1476
  %v1478 = vadd.f32 %v1477, 1.0
  %v1479 = vrcp.pop %v1478
  %v1480 = vmul.f32 %v1478, %v1479
  %v1481 = vsub.f32 1.0, %v1480
  %v1482 = vmul.f32 %v1479, %v1481
  %v1483 = vadd.f32 %v1479, %v1482
  %vm1484 = vweird.f32 %v1478
  %vm1485 = vweird.f32 %v1479
  %vm1486 = vmor %vm1484, %vm1485
  %v1487 = vsel %vm1486, %v1479, %v1483
  %v1488 = vand.u32 2147483647, %v1478
  %vm1489 = vcmp.eq.f32.partialorder %v1488, 8.507059e+37
  %v1490 = vand.u32 %v1478, 2147483648
  %v1491 = vor.u32 1.1754944e-38, %v1490
  %v1492 = vsel %vm1489, %v1491, %v1487
  %v1493 = vmul.f32 1.0, %v1492
  %v1494 = vadd.f32 %v1451, %v271
  %v1495 = vmul.f32 %v1473, %v1494
  %v1496 = vadd.f32 %v1413, %v1495
  %v1497 = vtanh.pop %v1496
  %v1498 = vsub.f32 1.0, %v1493
  %v1499 = vmul.f32 %v1498, %v1497
  %v1500 = vmul.f32 %v1493, %v1407
  %v1501 = vadd.f32 %v1499, %v1500
  %s1502 = scalar_lea.vmem %s4, 104
  %1503 = vst [vmem:[%s1502] sm:$0xff] %v1501
  %s1504 = scalar_lea.vmem %s0, 336
  %v1505 = vld [vmem:[%s1504] sm:$0xff]
  %v1506 = vld [vmem:[%s1504 + $0x8] sm:$0xff]
  %v1507 = vld [vmem:[%s1504 + $0x10] sm:$0xff]
  %v1508 = vpack.c.bf16 %v1501, %v1501
  %1509 = vmatpush.bf16.msra.mxu0 %v164
  %1510 = vmatpush.bf16.msra.mxu0 %v161
  %1511 = vmatpush.bf16.msra.mxu0 %v158
  %1512 = vmatpush.bf16.msra.mxu0 %v155
  %1513 = vmatpush.bf16.msra.mxu0 %v152
  %1514 = vmatpush.bf16.msra.mxu0 %v149
  %1515 = vmatpush.bf16.msra.mxu0 %v146
  %1516 = vmatpush.bf16.msra.mxu0 %v143
  %1517 = vmatmul.bf16.gmra.mxu0 %v1508
  %v1518 = vpop.f32.mrf.mxu0
  %v1519 = vadd.f32 0.0, %v1518
  %v1520 = vpop.f32.mrf.mxu0
  %1521 = vdwg.mxu0
  %1522 = vmatpush.bf16.msra.mxu0 %v165
  %1523 = vmatpush.bf16.msra.mxu0 %v162
  %1524 = vmatpush.bf16.msra.mxu0 %v159
  %1525 = vmatpush.bf16.msra.mxu0 %v156
  %1526 = vmatpush.bf16.msra.mxu0 %v153
  %1527 = vmatpush.bf16.msra.mxu0 %v150
  %1528 = vmatpush.bf16.msra.mxu0 %v147
  %1529 = vmatpush.bf16.msra.mxu0 %v144
  %1530 = vmatmul.bf16.gmra.mxu0 %v1508
  %v1531 = vpop.f32.mrf.mxu0
  %v1532 = vadd.f32 0.0, %v1531
  %v1533 = vpop.f32.mrf.mxu0
  %1534 = vdwg.mxu0
  %1535 = vmatpush.bf16.msra.mxu0 %v166
  %1536 = vmatpush.bf16.msra.mxu0 %v163
  %1537 = vmatpush.bf16.msra.mxu0 %v160
  %1538 = vmatpush.bf16.msra.mxu0 %v157
  %1539 = vmatpush.bf16.msra.mxu0 %v154
  %1540 = vmatpush.bf16.msra.mxu0 %v151
  %1541 = vmatpush.bf16.msra.mxu0 %v148
  %1542 = vmatpush.bf16.msra.mxu0 %v145
  %1543 = vmatmul.bf16.gmra.mxu0 %v1508
  %v1544 = vpop.f32.mrf.mxu0
  %v1545 = vadd.f32 0.0, %v1544
  %v1546 = vpop.f32.mrf.mxu0
  %1547 = vdwg.mxu0
  %v1548 = vadd.f32 %v1505, %v1519
  %v1549 = vxor.u32 %v1548, 2147483648
  %v1550 = vmul.f32 %v1549, 1.442695
  %v1551 = vpow.pop %v1550
  %v1552 = vadd.f32 %v1551, 1.0
  %v1553 = vrcp.pop %v1552
  %v1554 = vmul.f32 %v1552, %v1553
  %v1555 = vsub.f32 1.0, %v1554
  %v1556 = vmul.f32 %v1553, %v1555
  %v1557 = vadd.f32 %v1553, %v1556
  %vm1558 = vweird.f32 %v1552
  %vm1559 = vweird.f32 %v1553
  %vm1560 = vmor %vm1558, %vm1559
  %v1561 = vsel %vm1560, %v1553, %v1557
  %v1562 = vand.u32 2147483647, %v1552
  %vm1563 = vcmp.eq.f32.partialorder %v1562, 8.507059e+37
  %v1564 = vand.u32 %v1552, 2147483648
  %v1565 = vor.u32 1.1754944e-38, %v1564
  %v1566 = vsel %vm1563, %v1565, %v1561
  %v1567 = vmul.f32 1.0, %v1566
  %v1568 = vadd.f32 %v1506, %v1532
  %v1569 = vxor.u32 %v1568, 2147483648
  %v1570 = vmul.f32 %v1569, 1.442695
  %v1571 = vpow.pop %v1570
  %v1572 = vadd.f32 %v1571, 1.0
  %v1573 = vrcp.pop %v1572
  %v1574 = vmul.f32 %v1572, %v1573
  %v1575 = vsub.f32 1.0, %v1574
  %v1576 = vmul.f32 %v1573, %v1575
  %v1577 = vadd.f32 %v1573, %v1576
  %vm1578 = vweird.f32 %v1572
  %vm1579 = vweird.f32 %v1573
  %vm1580 = vmor %vm1578, %vm1579
  %v1581 = vsel %vm1580, %v1573, %v1577
  %v1582 = vand.u32 2147483647, %v1572
  %vm1583 = vcmp.eq.f32.partialorder %v1582, 8.507059e+37
  %v1584 = vand.u32 %v1572, 2147483648
  %v1585 = vor.u32 1.1754944e-38, %v1584
  %v1586 = vsel %vm1583, %v1585, %v1581
  %v1587 = vmul.f32 1.0, %v1586
  %v1588 = vadd.f32 %v1545, %v271
  %v1589 = vmul.f32 %v1567, %v1588
  %v1590 = vadd.f32 %v1507, %v1589
  %v1591 = vtanh.pop %v1590
  %v1592 = vsub.f32 1.0, %v1587
  %v1593 = vmul.f32 %v1592, %v1591
  %v1594 = vmul.f32 %v1587, %v1501
  %v1595 = vadd.f32 %v1593, %v1594
  %s1596 = scalar_lea.vmem %s4, 112
  %1597 = vst [vmem:[%s1596] sm:$0xff] %v1595
  %s1598 = scalar_lea.vmem %s0, 360
  %v1599 = vld [vmem:[%s1598] sm:$0xff]
  %v1600 = vld [vmem:[%s1598 + $0x8] sm:$0xff]
  %v1601 = vld [vmem:[%s1598 + $0x10] sm:$0xff]
  %v1602 = vpack.c.bf16 %v1595, %v1595
  %1603 = vmatpush.bf16.msra.mxu0 %v164
  %1604 = vmatpush.bf16.msra.mxu0 %v161
  %1605 = vmatpush.bf16.msra.mxu0 %v158
  %1606 = vmatpush.bf16.msra.mxu0 %v155
  %1607 = vmatpush.bf16.msra.mxu0 %v152
  %1608 = vmatpush.bf16.msra.mxu0 %v149
  %1609 = vmatpush.bf16.msra.mxu0 %v146
  %1610 = vmatpush.bf16.msra.mxu0 %v143
  %1611 = vmatmul.bf16.gmra.mxu0 %v1602
  %v1612 = vpop.f32.mrf.mxu0
  %v1613 = vadd.f32 0.0, %v1612
  %v1614 = vpop.f32.mrf.mxu0
  %1615 = vdwg.mxu0
  %1616 = vmatpush.bf16.msra.mxu0 %v165
  %1617 = vmatpush.bf16.msra.mxu0 %v162
  %1618 = vmatpush.bf16.msra.mxu0 %v159
  %1619 = vmatpush.bf16.msra.mxu0 %v156
  %1620 = vmatpush.bf16.msra.mxu0 %v153
  %1621 = vmatpush.bf16.msra.mxu0 %v150
  %1622 = vmatpush.bf16.msra.mxu0 %v147
  %1623 = vmatpush.bf16.msra.mxu0 %v144
  %1624 = vmatmul.bf16.gmra.mxu0 %v1602
  %v1625 = vpop.f32.mrf.mxu0
  %v1626 = vadd.f32 0.0, %v1625
  %v1627 = vpop.f32.mrf.mxu0
  %1628 = vdwg.mxu0
  %1629 = vmatpush.bf16.msra.mxu0 %v166
  %1630 = vmatpush.bf16.msra.mxu0 %v163
  %1631 = vmatpush.bf16.msra.mxu0 %v160
  %1632 = vmatpush.bf16.msra.mxu0 %v157
  %1633 = vmatpush.bf16.msra.mxu0 %v154
  %1634 = vmatpush.bf16.msra.mxu0 %v151
  %1635 = vmatpush.bf16.msra.mxu0 %v148
  %1636 = vmatpush.bf16.msra.mxu0 %v145
  %1637 = vmatmul.bf16.gmra.mxu0 %v1602
  %v1638 = vpop.f32.mrf.mxu0
  %v1639 = vadd.f32 0.0, %v1638
  %v1640 = vpop.f32.mrf.mxu0
  %1641 = vdwg.mxu0
  %v1642 = vadd.f32 %v1599, %v1613
  %v1643 = vxor.u32 %v1642, 2147483648
  %v1644 = vmul.f32 %v1643, 1.442695
  %v1645 = vpow.pop %v1644
  %v1646 = vadd.f32 %v1645, 1.0
  %v1647 = vrcp.pop %v1646
  %v1648 = vmul.f32 %v1646, %v1647
  %v1649 = vsub.f32 1.0, %v1648
  %v1650 = vmul.f32 %v1647, %v1649
  %v1651 = vadd.f32 %v1647, %v1650
  %vm1652 = vweird.f32 %v1646
  %vm1653 = vweird.f32 %v1647
  %vm1654 = vmor %vm1652, %vm1653
  %v1655 = vsel %vm1654, %v1647, %v1651
  %v1656 = vand.u32 2147483647, %v1646
  %vm1657 = vcmp.eq.f32.partialorder %v1656, 8.507059e+37
  %v1658 = vand.u32 %v1646, 2147483648
  %v1659 = vor.u32 1.1754944e-38, %v1658
  %v1660 = vsel %vm1657, %v1659, %v1655
  %v1661 = vmul.f32 1.0, %v1660
  %v1662 = vadd.f32 %v1600, %v1626
  %v1663 = vxor.u32 %v1662, 2147483648
  %v1664 = vmul.f32 %v1663, 1.442695
  %v1665 = vpow.pop %v1664
  %v1666 = vadd.f32 %v1665, 1.0
  %v1667 = vrcp.pop %v1666
  %v1668 = vmul.f32 %v1666, %v1667
  %v1669 = vsub.f32 1.0, %v1668
  %v1670 = vmul.f32 %v1667, %v1669
  %v1671 = vadd.f32 %v1667, %v1670
  %vm1672 = vweird.f32 %v1666
  %vm1673 = vweird.f32 %v1667
  %vm1674 = vmor %vm1672, %vm1673
  %v1675 = vsel %vm1674, %v1667, %v1671
  %v1676 = vand.u32 2147483647, %v1666
  %vm1677 = vcmp.eq.f32.partialorder %v1676, 8.507059e+37
  %v1678 = vand.u32 %v1666, 2147483648
  %v1679 = vor.u32 1.1754944e-38, %v1678
  %v1680 = vsel %vm1677, %v1679, %v1675
  %v1681 = vmul.f32 1.0, %v1680
  %v1682 = vadd.f32 %v1639, %v271
  %v1683 = vmul.f32 %v1661, %v1682
  %v1684 = vadd.f32 %v1601, %v1683
  %v1685 = vtanh.pop %v1684
  %v1686 = vsub.f32 1.0, %v1681
  %v1687 = vmul.f32 %v1686, %v1685
  %v1688 = vmul.f32 %v1681, %v1595
  %v1689 = vadd.f32 %v1687, %v1688
  %s1690 = scalar_lea.vmem %s4, 120
  %1691 = vst [vmem:[%s1690] sm:$0xff] %v1689
  %1692 = vst [vmem:[#allocation2] sm:$0xff] %v1689
  %1693 = vst [vmem:[%s5] sm:$0xff] %v1689
  // Predicated region
  $region22: #{gru_encoder_forward.5} parent=0 // pred_check
    _
  $region23: #{gru_encoder_forward.5} parent=0 // pred_check_branch
    %1695 = sbr.rel (0) target = $region25
  $region24: #{gru_encoder_forward.5} parent=0 // pred_region
    _
  $region25: #{gru_encoder_forward.5} parent=0 // pred_fallthru
    _
  // Predicated region
  $region26: #{gru_encoder_forward.5} parent=0 // pred_check
    _
  $region27: #{gru_encoder_forward.5} parent=0 // pred_check_branch
    %1697 = sbr.rel (0) target = $region29
  $region28: #{gru_encoder_forward.5} parent=0 // pred_region
    _
  $region29: #{gru_encoder_forward.5} parent=0 // pred_fallthru
    _
  // Predicated region
  $region30: #{gru_encoder_forward.5} parent=0 // pred_check
    _
  $region31: #{gru_encoder_forward.5} parent=0 // pred_check_branch
    %1699 = sbr.rel (0) target = $region33
  $region32: #{gru_encoder_forward.5} parent=0 // pred_region
    _
  $region33: #{gru_encoder_forward.5} parent=0 // pred_fallthru
    _
  // Predicated region
  $region34: #{gru_encoder_forward.5} parent=0 // pred_check
    _
  $region35: #{gru_encoder_forward.5} parent=0 // pred_check_branch
    %1701 = sbr.rel (0) target = $region37
  $region36: #{gru_encoder_forward.5} parent=0 // pred_region
    _
  $region37: #{gru_encoder_forward.5} parent=0 // pred_fallthru
    _

// kernel: gru_encoder_forward.7
$region0: #{gru_encoder_forward.7}
  #allocation0 [shape = 'u32[]', space=smem, size = 0x4, offset = 0x4, fixed_abs, tag = 'smem constant byte address 0x4 - core index']
  #allocation1 [shape = 'u32[72,128]{1,0:T(1,128)}', space=vmem, size = 0x9000, scoped, tag = 'internal scratch']
  #allocation2 [shape = 'f32[8,128]{1,0:T(8,128)}', space=vmem, size = 0x1000, scoped, tag = 'scratch operand']
  %s0 = inlined_call_operand.vmem [shape: f32[16,8,384], index: 0, kind: input, shape index: {}]
  %s1 = inlined_call_operand.vmem [shape: f32[8,128], index: 1, kind: input, shape index: {}]
  %s2 = inlined_call_operand.vmem [shape: bf16[128,384], index: 2, kind: input, shape index: {}]
  %s3 = inlined_call_operand.vmem [shape: f32[1,128], index: 3, kind: input, shape index: {}]
  %s4 = inlined_call_operand.hbm [shape: f32[16,8,128], index: 4, kind: output, shape index: {0}]
  %s5 = inlined_call_operand.vmem [shape: f32[8,128], index: 5, kind: output, shape index: {1}]
  %6 = xla_tuple %s4, %s5
  %s7 = sld [smem:[#allocation0]]
  $region38: #{gru_encoder_forward.7} parent=0
    _
  %s9 = ssub.s32 1, %s7
  %s10 = scalar_select 0, %s9, %s7
  $region1: #{gru_encoder_forward.7} parent=0
    #allocation3 [shape = 'u8[65536]{0}', space=vmem, size = 0x10000, scoped, tag = 'output window, operand 0, single buffered']
    #allocation4 [shape = 's32[1]{0}', space=sflag, size = 0x4, scoped, tag = 'scoped memory for gru_encoder_forward.7']
    %11 = vsyncpa [#allocation4], 0
    // Predicated region
    $region2: #{gru_encoder_forward.7} parent=1 // pred_check
      _
    $region3: #{gru_encoder_forward.7} parent=1 // pred_check_branch
      %13 = sbr.rel (0) target = $region5
    $region4: #{gru_encoder_forward.7} parent=1 // pred_region
      _
    $region5: #{gru_encoder_forward.7} parent=1 // pred_fallthru
      _
    // Predicated region
    $region6: #{gru_encoder_forward.7} parent=1 // pred_check
      _
    $region7: #{gru_encoder_forward.7} parent=1 // pred_check_branch
      %15 = sbr.rel (0) target = $region9
    $region8: #{gru_encoder_forward.7} parent=1 // pred_region
      _
    $region9: #{gru_encoder_forward.7} parent=1 // pred_fallthru
      _
    // Predicated region
    $region10: #{gru_encoder_forward.7} parent=1 // pred_check
      _
    $region11: #{gru_encoder_forward.7} parent=1 // pred_check_branch
      %17 = sbr.rel (0) target = $region13
    $region12: #{gru_encoder_forward.7} parent=1 // pred_region
      _
    $region13: #{gru_encoder_forward.7} parent=1 // pred_fallthru
      _
    // Predicated region
    $region14: #{gru_encoder_forward.7} parent=1 // pred_check
      _
    $region15: #{gru_encoder_forward.7} parent=1 // pred_check_branch
      %19 = sbr.rel (0) target = $region17
    $region16: #{gru_encoder_forward.7} parent=1 // pred_region
      _
    $region17: #{gru_encoder_forward.7} parent=1 // pred_fallthru
      _
    %p20 = scmp.eq.s32.totalorder 0, 0
    // Predicated region
    $region18: #{gru_encoder_forward.7} parent=1 // pred_check
      %p21 = pneg %p20
    $region19: #{gru_encoder_forward.7} parent=1 // pred_check_branch
      %23 = sbr.rel (%p21) target = $region21
    $region20: #{gru_encoder_forward.7} parent=1 // pred_region
      %v24 = vld [vmem:[%s1] sm:$0xff]
      %25 = vst [vmem:[#allocation2] sm:$0xff] %v24
    $region21: #{gru_encoder_forward.7} parent=1 // pred_fallthru
      _
    %v26 = vld [vmem:[%s2] sm:$0xff]
    %v27 = vld [vmem:[%s2 + $0x8] sm:$0xf]
    %v28 = vld [vmem:[%s2 + $0xc] sm:$0xff]
    %v29 = vld [vmem:[%s2 + $0x14] sm:$0xf]
    %v30 = vld [vmem:[%s2 + $0x18] sm:$0xff]
    %v31 = vld [vmem:[%s2 + $0x20] sm:$0xf]
    %v32 = vld [vmem:[%s2 + $0x24] sm:$0xff]
    %v33 = vld [vmem:[%s2 + $0x2c] sm:$0xf]
    %v34 = vld [vmem:[%s2 + $0x30] sm:$0xff]
    %v35 = vld [vmem:[%s2 + $0x38] sm:$0xf]
    %v36 = vld [vmem:[%s2 + $0x3c] sm:$0xff]
    %v37 = vld [vmem:[%s2 + $0x44] sm:$0xf]
    %v38 = vld [vmem:[%s2 + $0x48] sm:$0xff]
    %v39 = vld [vmem:[%s2 + $0x50] sm:$0xf]
    %v40 = vld [vmem:[%s2 + $0x54] sm:$0xff]
    %v41 = vld [vmem:[%s2 + $0x5c] sm:$0xf]
    %v42 = vld [vmem:[%s2 + $0x60] sm:$0xff]
    %v43 = vld [vmem:[%s2 + $0x68] sm:$0xf]
    %v44 = vld [vmem:[%s2 + $0x6c] sm:$0xff]
    %v45 = vld [vmem:[%s2 + $0x74] sm:$0xf]
    %v46 = vld [vmem:[%s2 + $0x78] sm:$0xff]
    %v47 = vld [vmem:[%s2 + $0x80] sm:$0xf]
    %v48 = vld [vmem:[%s2 + $0x84] sm:$0xff]
    %v49 = vld [vmem:[%s2 + $0x8c] sm:$0xf]
    %v50 = vld [vmem:[%s2 + $0x90] sm:$0xff]
    %v51 = vld [vmem:[%s2 + $0x98] sm:$0xf]
    %v52 = vld [vmem:[%s2 + $0x9c] sm:$0xff]
    %v53 = vld [vmem:[%s2 + $0xa4] sm:$0xf]
    %v54 = vld [vmem:[%s2 + $0xa8] sm:$0xff]
    %v55 = vld [vmem:[%s2 + $0xb0] sm:$0xf]
    %v56 = vld [vmem:[%s2 + $0xb4] sm:$0xff]
    %v57 = vld [vmem:[%s2 + $0xbc] sm:$0xf]
    %v58 = vld [vmem:[%s3] sm:$0x1]
    %v59 = vld [vmem:[#allocation2] sm:$0xff]
    %v60 = vld [vmem:[%s0] sm:$0xff]
    %v61 = vld [vmem:[%s0 + $0x8] sm:$0xff]
    %v62 = vld [vmem:[%s0 + $0x10] sm:$0xff]
    %v63 = vpack.c.bf16 %v59, %v59
    %v96 = vunpack.c.l.b16 %v26
    %v97 = vunpack.c.h.b16 %v26
    %v98 = vunpack.c.l.b16 %v27
    %v99 = vunpack.c.l.b16 %v28
    %v100 = vunpack.c.h.b16 %v28
    %v101 = vunpack.c.l.b16 %v29
    %v102 = vunpack.c.l.b16 %v30
    %v103 = vunpack.c.h.b16 %v30
    %v104 = vunpack.c.l.b16 %v31
    %v105 = vunpack.c.l.b16 %v32
    %v106 = vunpack.c.h.b16 %v32
    %v107 = vunpack.c.l.b16 %v33
    %v108 = vunpack.c.l.b16 %v34
    %v109 = vunpack.c.h.b16 %v34
    %v110 = vunpack.c.l.b16 %v35
    %v111 = vunpack.c.l.b16 %v36
    %v112 = vunpack.c.h.b16 %v36
    %v113 = vunpack.c.l.b16 %v37
    %v114 = vunpack.c.l.b16 %v38
    %v115 = vunpack.c.h.b16 %v38
    %v116 = vunpack.c.l.b16 %v39
    %v117 = vunpack.c.l.b16 %v40
    %v118 = vunpack.c.h.b16 %v40
    %v119 = vunpack.c.l.b16 %v41
    %v120 = vunpack.c.l.b16 %v42
    %v121 = vunpack.c.h.b16 %v42
    %v122 = vunpack.c.l.b16 %v43
    %v123 = vunpack.c.l.b16 %v44
    %v124 = vunpack.c.h.b16 %v44
    %v125 = vunpack.c.l.b16 %v45
    %v126 = vunpack.c.l.b16 %v46
    %v127 = vunpack.c.h.b16 %v46
    %v128 = vunpack.c.l.b16 %v47
    %v129 = vunpack.c.l.b16 %v48
    %v130 = vunpack.c.h.b16 %v48
    %v131 = vunpack.c.l.b16 %v49
    %v132 = vunpack.c.l.b16 %v50
    %v133 = vunpack.c.h.b16 %v50
    %v134 = vunpack.c.l.b16 %v51
    %v135 = vunpack.c.l.b16 %v52
    %v136 = vunpack.c.h.b16 %v52
    %v137 = vunpack.c.l.b16 %v53
    %v138 = vunpack.c.l.b16 %v54
    %v139 = vunpack.c.h.b16 %v54
    %v140 = vunpack.c.l.b16 %v55
    %v141 = vunpack.c.l.b16 %v56
    %v142 = vunpack.c.h.b16 %v56
    %v143 = vunpack.c.l.b16 %v57
    %v144 = vpack.c.b16 %v99, %v96
    %v145 = vpack.c.b16 %v100, %v97
    %v146 = vpack.c.b16 %v101, %v98
    %v147 = vpack.c.b16 %v105, %v102
    %v148 = vpack.c.b16 %v106, %v103
    %v149 = vpack.c.b16 %v107, %v104
    %v150 = vpack.c.b16 %v111, %v108
    %v151 = vpack.c.b16 %v112, %v109
    %v152 = vpack.c.b16 %v113, %v110
    %v153 = vpack.c.b16 %v117, %v114
    %v154 = vpack.c.b16 %v118, %v115
    %v155 = vpack.c.b16 %v119, %v116
    %v156 = vpack.c.b16 %v123, %v120
    %v157 = vpack.c.b16 %v124, %v121
    %v158 = vpack.c.b16 %v125, %v122
    %v159 = vpack.c.b16 %v129, %v126
    %v160 = vpack.c.b16 %v130, %v127
    %v161 = vpack.c.b16 %v131, %v128
    %v162 = vpack.c.b16 %v135, %v132
    %v163 = vpack.c.b16 %v136, %v133
    %v164 = vpack.c.b16 %v137, %v134
    %v165 = vpack.c.b16 %v141, %v138
    %v166 = vpack.c.b16 %v142, %v139
    %v167 = vpack.c.b16 %v143, %v140
    %192 = vmatpush.bf16.msra.mxu0 %v165
    %193 = vmatpush.bf16.msra.mxu0 %v162
    %194 = vmatpush.bf16.msra.mxu0 %v159
    %195 = vmatpush.bf16.msra.mxu0 %v156
    %196 = vmatpush.bf16.msra.mxu0 %v153
    %197 = vmatpush.bf16.msra.mxu0 %v150
    %198 = vmatpush.bf16.msra.mxu0 %v147
    %199 = vmatpush.bf16.msra.mxu0 %v144
    %200 = vmatmul.bf16.gmra.mxu0 %v63
    %v201 = vpop.f32.mrf.mxu0
    %v202 = vadd.f32 0.0, %v201
    %v203 = vpop.f32.mrf.mxu0
    %204 = vdwg.mxu0
    %205 = vmatpush.bf16.msra.mxu0 %v166
    %206 = vmatpush.bf16.msra.mxu0 %v163
    %207 = vmatpush.bf16.msra.mxu0 %v160
    %208 = vmatpush.bf16.msra.mxu0 %v157
    %209 = vmatpush.bf16.msra.mxu0 %v154
    %210 = vmatpush.bf16.msra.mxu0 %v151
    %211 = vmatpush.bf16.msra.mxu0 %v148
    %212 = vmatpush.bf16.msra.mxu0 %v145
    %213 = vmatmul.bf16.gmra.mxu0 %v63
    %v214 = vpop.f32.mrf.mxu0
    %v215 = vadd.f32 0.0, %v214
    %v216 = vpop.f32.mrf.mxu0
    %217 = vdwg.mxu0
    %218 = vmatpush.bf16.msra.mxu0 %v167
    %219 = vmatpush.bf16.msra.mxu0 %v164
    %220 = vmatpush.bf16.msra.mxu0 %v161
    %221 = vmatpush.bf16.msra.mxu0 %v158
    %222 = vmatpush.bf16.msra.mxu0 %v155
    %223 = vmatpush.bf16.msra.mxu0 %v152
    %224 = vmatpush.bf16.msra.mxu0 %v149
    %225 = vmatpush.bf16.msra.mxu0 %v146
    %226 = vmatmul.bf16.gmra.mxu0 %v63
    %v227 = vpop.f32.mrf.mxu0
    %v228 = vadd.f32 0.0, %v227
    %v229 = vpop.f32.mrf.mxu0
    %230 = vdwg.mxu0
    %v231 = vadd.f32 %v60, %v202
    %v232 = vxor.u32 %v231, 2147483648
    %v233 = vmul.f32 %v232, 1.442695
    %v234 = vpow.pop %v233
    %v235 = vadd.f32 %v234, 1.0
    %v236 = vrcp.pop %v235
    %v237 = vmul.f32 %v235, %v236
    %v238 = vsub.f32 1.0, %v237
    %v239 = vmul.f32 %v236, %v238
    %v240 = vadd.f32 %v236, %v239
    %vm241 = vweird.f32 %v235
    %vm242 = vweird.f32 %v236
    %vm243 = vmor %vm241, %vm242
    %v244 = vsel %vm243, %v236, %v240
    %v245 = vand.u32 2147483647, %v235
    %vm246 = vcmp.eq.f32.partialorder %v245, 8.507059e+37
    %v247 = vand.u32 %v235, 2147483648
    %v248 = vor.u32 1.1754944e-38, %v247
    %v249 = vsel %vm246, %v248, %v244
    %v250 = vmul.f32 1.0, %v249
    %v251 = vadd.f32 %v61, %v215
    %v252 = vxor.u32 %v251, 2147483648
    %v253 = vmul.f32 %v252, 1.442695
    %v254 = vpow.pop %v253
    %v255 = vadd.f32 %v254, 1.0
    %v256 = vrcp.pop %v255
    %v257 = vmul.f32 %v255, %v256
    %v258 = vsub.f32 1.0, %v257
    %v259 = vmul.f32 %v256, %v258
    %v260 = vadd.f32 %v256, %v259
    %vm261 = vweird.f32 %v255
    %vm262 = vweird.f32 %v256
    %vm263 = vmor %vm261, %vm262
    %v264 = vsel %vm263, %v256, %v260
    %v265 = vand.u32 2147483647, %v255
    %vm266 = vcmp.eq.f32.partialorder %v265, 8.507059e+37
    %v267 = vand.u32 %v255, 2147483648
    %v268 = vor.u32 1.1754944e-38, %v267
    %v269 = vsel %vm266, %v268, %v264
    %v270 = vmul.f32 1.0, %v269
    %v272 = vperm.slane %v58, 0
    %v274 = vadd.f32 %v228, %v272
    %v275 = vmul.f32 %v250, %v274
    %v276 = vadd.f32 %v62, %v275
    %v277 = vtanh.pop %v276
    %v278 = vsub.f32 1.0, %v270
    %v279 = vmul.f32 %v278, %v277
    %v280 = vmul.f32 %v270, %v59
    %v281 = vadd.f32 %v279, %v280
    %282 = vst [vmem:[#allocation3] sm:$0xff] %v281
    %s283 = scalar_lea.vmem %s0, 24
    %v284 = vld [vmem:[%s283] sm:$0xff]
    %v285 = vld [vmem:[%s283 + $0x8] sm:$0xff]
    %v286 = vld [vmem:[%s283 + $0x10] sm:$0xff]
    %v287 = vpack.c.bf16 %v281, %v281
    %288 = vmatpush.bf16.msra.mxu0 %v165
    %289 = vmatpush.bf16.msra.mxu0 %v162
    %290 = vmatpush.bf16.msra.mxu0 %v159
    %291 = vmatpush.bf16.msra.mxu0 %v156
    %292 = vmatpush.bf16.msra.mxu0 %v153
    %293 = vmatpush.bf16.msra.mxu0 %v150
    %294 = vmatpush.bf16.msra.mxu0 %v147
    %295 = vmatpush.bf16.msra.mxu0 %v144
    %296 = vmatmul.bf16.gmra.mxu0 %v287
    %v297 = vpop.f32.mrf.mxu0
    %v298 = vadd.f32 0.0, %v297
    %v299 = vpop.f32.mrf.mxu0
    %300 = vdwg.mxu0
    %301 = vmatpush.bf16.msra.mxu0 %v166
    %302 = vmatpush.bf16.msra.mxu0 %v163
    %303 = vmatpush.bf16.msra.mxu0 %v160
    %304 = vmatpush.bf16.msra.mxu0 %v157
    %305 = vmatpush.bf16.msra.mxu0 %v154
    %306 = vmatpush.bf16.msra.mxu0 %v151
    %307 = vmatpush.bf16.msra.mxu0 %v148
    %308 = vmatpush.bf16.msra.mxu0 %v145
    %309 = vmatmul.bf16.gmra.mxu0 %v287
    %v310 = vpop.f32.mrf.mxu0
    %v311 = vadd.f32 0.0, %v310
    %v312 = vpop.f32.mrf.mxu0
    %313 = vdwg.mxu0
    %314 = vmatpush.bf16.msra.mxu0 %v167
    %315 = vmatpush.bf16.msra.mxu0 %v164
    %316 = vmatpush.bf16.msra.mxu0 %v161
    %317 = vmatpush.bf16.msra.mxu0 %v158
    %318 = vmatpush.bf16.msra.mxu0 %v155
    %319 = vmatpush.bf16.msra.mxu0 %v152
    %320 = vmatpush.bf16.msra.mxu0 %v149
    %321 = vmatpush.bf16.msra.mxu0 %v146
    %322 = vmatmul.bf16.gmra.mxu0 %v287
    %v323 = vpop.f32.mrf.mxu0
    %v324 = vadd.f32 0.0, %v323
    %v325 = vpop.f32.mrf.mxu0
    %326 = vdwg.mxu0
    %v327 = vadd.f32 %v284, %v298
    %v328 = vxor.u32 %v327, 2147483648
    %v329 = vmul.f32 %v328, 1.442695
    %v330 = vpow.pop %v329
    %v331 = vadd.f32 %v330, 1.0
    %v332 = vrcp.pop %v331
    %v333 = vmul.f32 %v331, %v332
    %v334 = vsub.f32 1.0, %v333
    %v335 = vmul.f32 %v332, %v334
    %v336 = vadd.f32 %v332, %v335
    %vm337 = vweird.f32 %v331
    %vm338 = vweird.f32 %v332
    %vm339 = vmor %vm337, %vm338
    %v340 = vsel %vm339, %v332, %v336
    %v341 = vand.u32 2147483647, %v331
    %vm342 = vcmp.eq.f32.partialorder %v341, 8.507059e+37
    %v343 = vand.u32 %v331, 2147483648
    %v344 = vor.u32 1.1754944e-38, %v343
    %v345 = vsel %vm342, %v344, %v340
    %v346 = vmul.f32 1.0, %v345
    %v347 = vadd.f32 %v285, %v311
    %v348 = vxor.u32 %v347, 2147483648
    %v349 = vmul.f32 %v348, 1.442695
    %v350 = vpow.pop %v349
    %v351 = vadd.f32 %v350, 1.0
    %v352 = vrcp.pop %v351
    %v353 = vmul.f32 %v351, %v352
    %v354 = vsub.f32 1.0, %v353
    %v355 = vmul.f32 %v352, %v354
    %v356 = vadd.f32 %v352, %v355
    %vm357 = vweird.f32 %v351
    %vm358 = vweird.f32 %v352
    %vm359 = vmor %vm357, %vm358
    %v360 = vsel %vm359, %v352, %v356
    %v361 = vand.u32 2147483647, %v351
    %vm362 = vcmp.eq.f32.partialorder %v361, 8.507059e+37
    %v363 = vand.u32 %v351, 2147483648
    %v364 = vor.u32 1.1754944e-38, %v363
    %v365 = vsel %vm362, %v364, %v360
    %v366 = vmul.f32 1.0, %v365
    %v367 = vadd.f32 %v324, %v272
    %v368 = vmul.f32 %v346, %v367
    %v369 = vadd.f32 %v286, %v368
    %v370 = vtanh.pop %v369
    %v371 = vsub.f32 1.0, %v366
    %v372 = vmul.f32 %v371, %v370
    %v373 = vmul.f32 %v366, %v281
    %v374 = vadd.f32 %v372, %v373
    %s375 = scalar_lea.vmem [#allocation3], 8
    %376 = vst [vmem:[%s375] sm:$0xff] %v374
    %s377 = scalar_lea.vmem %s0, 48
    %v378 = vld [vmem:[%s377] sm:$0xff]
    %v379 = vld [vmem:[%s377 + $0x8] sm:$0xff]
    %v380 = vld [vmem:[%s377 + $0x10] sm:$0xff]
    %v381 = vpack.c.bf16 %v374, %v374
    %382 = vmatpush.bf16.msra.mxu0 %v165
    %383 = vmatpush.bf16.msra.mxu0 %v162
    %384 = vmatpush.bf16.msra.mxu0 %v159
    %385 = vmatpush.bf16.msra.mxu0 %v156
    %386 = vmatpush.bf16.msra.mxu0 %v153
    %387 = vmatpush.bf16.msra.mxu0 %v150
    %388 = vmatpush.bf16.msra.mxu0 %v147
    %389 = vmatpush.bf16.msra.mxu0 %v144
    %390 = vmatmul.bf16.gmra.mxu0 %v381
    %v391 = vpop.f32.mrf.mxu0
    %v392 = vadd.f32 0.0, %v391
    %v393 = vpop.f32.mrf.mxu0
    %394 = vdwg.mxu0
    %395 = vmatpush.bf16.msra.mxu0 %v166
    %396 = vmatpush.bf16.msra.mxu0 %v163
    %397 = vmatpush.bf16.msra.mxu0 %v160
    %398 = vmatpush.bf16.msra.mxu0 %v157
    %399 = vmatpush.bf16.msra.mxu0 %v154
    %400 = vmatpush.bf16.msra.mxu0 %v151
    %401 = vmatpush.bf16.msra.mxu0 %v148
    %402 = vmatpush.bf16.msra.mxu0 %v145
    %403 = vmatmul.bf16.gmra.mxu0 %v381
    %v404 = vpop.f32.mrf.mxu0
    %v405 = vadd.f32 0.0, %v404
    %v406 = vpop.f32.mrf.mxu0
    %407 = vdwg.mxu0
    %408 = vmatpush.bf16.msra.mxu0 %v167
    %409 = vmatpush.bf16.msra.mxu0 %v164
    %410 = vmatpush.bf16.msra.mxu0 %v161
    %411 = vmatpush.bf16.msra.mxu0 %v158
    %412 = vmatpush.bf16.msra.mxu0 %v155
    %413 = vmatpush.bf16.msra.mxu0 %v152
    %414 = vmatpush.bf16.msra.mxu0 %v149
    %415 = vmatpush.bf16.msra.mxu0 %v146
    %416 = vmatmul.bf16.gmra.mxu0 %v381
    %v417 = vpop.f32.mrf.mxu0
    %v418 = vadd.f32 0.0, %v417
    %v419 = vpop.f32.mrf.mxu0
    %420 = vdwg.mxu0
    %v421 = vadd.f32 %v378, %v392
    %v422 = vxor.u32 %v421, 2147483648
    %v423 = vmul.f32 %v422, 1.442695
    %v424 = vpow.pop %v423
    %v425 = vadd.f32 %v424, 1.0
    %v426 = vrcp.pop %v425
    %v427 = vmul.f32 %v425, %v426
    %v428 = vsub.f32 1.0, %v427
    %v429 = vmul.f32 %v426, %v428
    %v430 = vadd.f32 %v426, %v429
    %vm431 = vweird.f32 %v425
    %vm432 = vweird.f32 %v426
    %vm433 = vmor %vm431, %vm432
    %v434 = vsel %vm433, %v426, %v430
    %v435 = vand.u32 2147483647, %v425
    %vm436 = vcmp.eq.f32.partialorder %v435, 8.507059e+37
    %v437 = vand.u32 %v425, 2147483648
    %v438 = vor.u32 1.1754944e-38, %v437
    %v439 = vsel %vm436, %v438, %v434
    %v440 = vmul.f32 1.0, %v439
    %v441 = vadd.f32 %v379, %v405
    %v442 = vxor.u32 %v441, 2147483648
    %v443 = vmul.f32 %v442, 1.442695
    %v444 = vpow.pop %v443
    %v445 = vadd.f32 %v444, 1.0
    %v446 = vrcp.pop %v445
    %v447 = vmul.f32 %v445, %v446
    %v448 = vsub.f32 1.0, %v447
    %v449 = vmul.f32 %v446, %v448
    %v450 = vadd.f32 %v446, %v449
    %vm451 = vweird.f32 %v445
    %vm452 = vweird.f32 %v446
    %vm453 = vmor %vm451, %vm452
    %v454 = vsel %vm453, %v446, %v450
    %v455 = vand.u32 2147483647, %v445
    %vm456 = vcmp.eq.f32.partialorder %v455, 8.507059e+37
    %v457 = vand.u32 %v445, 2147483648
    %v458 = vor.u32 1.1754944e-38, %v457
    %v459 = vsel %vm456, %v458, %v454
    %v460 = vmul.f32 1.0, %v459
    %v461 = vadd.f32 %v418, %v272
    %v462 = vmul.f32 %v440, %v461
    %v463 = vadd.f32 %v380, %v462
    %v464 = vtanh.pop %v463
    %v465 = vsub.f32 1.0, %v460
    %v466 = vmul.f32 %v465, %v464
    %v467 = vmul.f32 %v460, %v374
    %v468 = vadd.f32 %v466, %v467
    %s469 = scalar_lea.vmem [#allocation3], 16
    %470 = vst [vmem:[%s469] sm:$0xff] %v468
    %s471 = scalar_lea.vmem %s0, 72
    %v472 = vld [vmem:[%s471] sm:$0xff]
    %v473 = vld [vmem:[%s471 + $0x8] sm:$0xff]
    %v474 = vld [vmem:[%s471 + $0x10] sm:$0xff]
    %v475 = vpack.c.bf16 %v468, %v468
    %476 = vmatpush.bf16.msra.mxu0 %v165
    %477 = vmatpush.bf16.msra.mxu0 %v162
    %478 = vmatpush.bf16.msra.mxu0 %v159
    %479 = vmatpush.bf16.msra.mxu0 %v156
    %480 = vmatpush.bf16.msra.mxu0 %v153
    %481 = vmatpush.bf16.msra.mxu0 %v150
    %482 = vmatpush.bf16.msra.mxu0 %v147
    %483 = vmatpush.bf16.msra.mxu0 %v144
    %484 = vmatmul.bf16.gmra.mxu0 %v475
    %v485 = vpop.f32.mrf.mxu0
    %v486 = vadd.f32 0.0, %v485
    %v487 = vpop.f32.mrf.mxu0
    %488 = vdwg.mxu0
    %489 = vmatpush.bf16.msra.mxu0 %v166
    %490 = vmatpush.bf16.msra.mxu0 %v163
    %491 = vmatpush.bf16.msra.mxu0 %v160
    %492 = vmatpush.bf16.msra.mxu0 %v157
    %493 = vmatpush.bf16.msra.mxu0 %v154
    %494 = vmatpush.bf16.msra.mxu0 %v151
    %495 = vmatpush.bf16.msra.mxu0 %v148
    %496 = vmatpush.bf16.msra.mxu0 %v145
    %497 = vmatmul.bf16.gmra.mxu0 %v475
    %v498 = vpop.f32.mrf.mxu0
    %v499 = vadd.f32 0.0, %v498
    %v500 = vpop.f32.mrf.mxu0
    %501 = vdwg.mxu0
    %502 = vmatpush.bf16.msra.mxu0 %v167
    %503 = vmatpush.bf16.msra.mxu0 %v164
    %504 = vmatpush.bf16.msra.mxu0 %v161
    %505 = vmatpush.bf16.msra.mxu0 %v158
    %506 = vmatpush.bf16.msra.mxu0 %v155
    %507 = vmatpush.bf16.msra.mxu0 %v152
    %508 = vmatpush.bf16.msra.mxu0 %v149
    %509 = vmatpush.bf16.msra.mxu0 %v146
    %510 = vmatmul.bf16.gmra.mxu0 %v475
    %v511 = vpop.f32.mrf.mxu0
    %v512 = vadd.f32 0.0, %v511
    %v513 = vpop.f32.mrf.mxu0
    %514 = vdwg.mxu0
    %v515 = vadd.f32 %v472, %v486
    %v516 = vxor.u32 %v515, 2147483648
    %v517 = vmul.f32 %v516, 1.442695
    %v518 = vpow.pop %v517
    %v519 = vadd.f32 %v518, 1.0
    %v520 = vrcp.pop %v519
    %v521 = vmul.f32 %v519, %v520
    %v522 = vsub.f32 1.0, %v521
    %v523 = vmul.f32 %v520, %v522
    %v524 = vadd.f32 %v520, %v523
    %vm525 = vweird.f32 %v519
    %vm526 = vweird.f32 %v520
    %vm527 = vmor %vm525, %vm526
    %v528 = vsel %vm527, %v520, %v524
    %v529 = vand.u32 2147483647, %v519
    %vm530 = vcmp.eq.f32.partialorder %v529, 8.507059e+37
    %v531 = vand.u32 %v519, 2147483648
    %v532 = vor.u32 1.1754944e-38, %v531
    %v533 = vsel %vm530, %v532, %v528
    %v534 = vmul.f32 1.0, %v533
    %v535 = vadd.f32 %v473, %v499
    %v536 = vxor.u32 %v535, 2147483648
    %v537 = vmul.f32 %v536, 1.442695
    %v538 = vpow.pop %v537
    %v539 = vadd.f32 %v538, 1.0
    %v540 = vrcp.pop %v539
    %v541 = vmul.f32 %v539, %v540
    %v542 = vsub.f32 1.0, %v541
    %v543 = vmul.f32 %v540, %v542
    %v544 = vadd.f32 %v540, %v543
    %vm545 = vweird.f32 %v539
    %vm546 = vweird.f32 %v540
    %vm547 = vmor %vm545, %vm546
    %v548 = vsel %vm547, %v540, %v544
    %v549 = vand.u32 2147483647, %v539
    %vm550 = vcmp.eq.f32.partialorder %v549, 8.507059e+37
    %v551 = vand.u32 %v539, 2147483648
    %v552 = vor.u32 1.1754944e-38, %v551
    %v553 = vsel %vm550, %v552, %v548
    %v554 = vmul.f32 1.0, %v553
    %v555 = vadd.f32 %v512, %v272
    %v556 = vmul.f32 %v534, %v555
    %v557 = vadd.f32 %v474, %v556
    %v558 = vtanh.pop %v557
    %v559 = vsub.f32 1.0, %v554
    %v560 = vmul.f32 %v559, %v558
    %v561 = vmul.f32 %v554, %v468
    %v562 = vadd.f32 %v560, %v561
    %s563 = scalar_lea.vmem [#allocation3], 24
    %564 = vst [vmem:[%s563] sm:$0xff] %v562
    %s565 = scalar_lea.vmem %s0, 96
    %v566 = vld [vmem:[%s565] sm:$0xff]
    %v567 = vld [vmem:[%s565 + $0x8] sm:$0xff]
    %v568 = vld [vmem:[%s565 + $0x10] sm:$0xff]
    %v569 = vpack.c.bf16 %v562, %v562
    %570 = vmatpush.bf16.msra.mxu0 %v165
    %571 = vmatpush.bf16.msra.mxu0 %v162
    %572 = vmatpush.bf16.msra.mxu0 %v159
    %573 = vmatpush.bf16.msra.mxu0 %v156
    %574 = vmatpush.bf16.msra.mxu0 %v153
    %575 = vmatpush.bf16.msra.mxu0 %v150
    %576 = vmatpush.bf16.msra.mxu0 %v147
    %577 = vmatpush.bf16.msra.mxu0 %v144
    %578 = vmatmul.bf16.gmra.mxu0 %v569
    %v579 = vpop.f32.mrf.mxu0
    %v580 = vadd.f32 0.0, %v579
    %v581 = vpop.f32.mrf.mxu0
    %582 = vdwg.mxu0
    %583 = vmatpush.bf16.msra.mxu0 %v166
    %584 = vmatpush.bf16.msra.mxu0 %v163
    %585 = vmatpush.bf16.msra.mxu0 %v160
    %586 = vmatpush.bf16.msra.mxu0 %v157
    %587 = vmatpush.bf16.msra.mxu0 %v154
    %588 = vmatpush.bf16.msra.mxu0 %v151
    %589 = vmatpush.bf16.msra.mxu0 %v148
    %590 = vmatpush.bf16.msra.mxu0 %v145
    %591 = vmatmul.bf16.gmra.mxu0 %v569
    %v592 = vpop.f32.mrf.mxu0
    %v593 = vadd.f32 0.0, %v592
    %v594 = vpop.f32.mrf.mxu0
    %595 = vdwg.mxu0
    %596 = vmatpush.bf16.msra.mxu0 %v167
    %597 = vmatpush.bf16.msra.mxu0 %v164
    %598 = vmatpush.bf16.msra.mxu0 %v161
    %599 = vmatpush.bf16.msra.mxu0 %v158
    %600 = vmatpush.bf16.msra.mxu0 %v155
    %601 = vmatpush.bf16.msra.mxu0 %v152
    %602 = vmatpush.bf16.msra.mxu0 %v149
    %603 = vmatpush.bf16.msra.mxu0 %v146
    %604 = vmatmul.bf16.gmra.mxu0 %v569
    %v605 = vpop.f32.mrf.mxu0
    %v606 = vadd.f32 0.0, %v605
    %v607 = vpop.f32.mrf.mxu0
    %608 = vdwg.mxu0
    %v609 = vadd.f32 %v566, %v580
    %v610 = vxor.u32 %v609, 2147483648
    %v611 = vmul.f32 %v610, 1.442695
    %v612 = vpow.pop %v611
    %v613 = vadd.f32 %v612, 1.0
    %v614 = vrcp.pop %v613
    %v615 = vmul.f32 %v613, %v614
    %v616 = vsub.f32 1.0, %v615
    %v617 = vmul.f32 %v614, %v616
    %v618 = vadd.f32 %v614, %v617
    %vm619 = vweird.f32 %v613
    %vm620 = vweird.f32 %v614
    %vm621 = vmor %vm619, %vm620
    %v622 = vsel %vm621, %v614, %v618
    %v623 = vand.u32 2147483647, %v613
    %vm624 = vcmp.eq.f32.partialorder %v623, 8.507059e+37
    %v625 = vand.u32 %v613, 2147483648
    %v626 = vor.u32 1.1754944e-38, %v625
    %v627 = vsel %vm624, %v626, %v622
    %v628 = vmul.f32 1.0, %v627
    %v629 = vadd.f32 %v567, %v593
    %v630 = vxor.u32 %v629, 2147483648
    %v631 = vmul.f32 %v630, 1.442695
    %v632 = vpow.pop %v631
    %v633 = vadd.f32 %v632, 1.0
    %v634 = vrcp.pop %v633
    %v635 = vmul.f32 %v633, %v634
    %v636 = vsub.f32 1.0, %v635
    %v637 = vmul.f32 %v634, %v636
    %v638 = vadd.f32 %v634, %v637
    %vm639 = vweird.f32 %v633
    %vm640 = vweird.f32 %v634
    %vm641 = vmor %vm639, %vm640
    %v642 = vsel %vm641, %v634, %v638
    %v643 = vand.u32 2147483647, %v633
    %vm644 = vcmp.eq.f32.partialorder %v643, 8.507059e+37
    %v645 = vand.u32 %v633, 2147483648
    %v646 = vor.u32 1.1754944e-38, %v645
    %v647 = vsel %vm644, %v646, %v642
    %v648 = vmul.f32 1.0, %v647
    %v649 = vadd.f32 %v606, %v272
    %v650 = vmul.f32 %v628, %v649
    %v651 = vadd.f32 %v568, %v650
    %v652 = vtanh.pop %v651
    %v653 = vsub.f32 1.0, %v648
    %v654 = vmul.f32 %v653, %v652
    %v655 = vmul.f32 %v648, %v562
    %v656 = vadd.f32 %v654, %v655
    %s657 = scalar_lea.vmem [#allocation3], 32
    %658 = vst [vmem:[%s657] sm:$0xff] %v656
    %s659 = scalar_lea.vmem %s0, 120
    %v660 = vld [vmem:[%s659] sm:$0xff]
    %v661 = vld [vmem:[%s659 + $0x8] sm:$0xff]
    %v662 = vld [vmem:[%s659 + $0x10] sm:$0xff]
    %v663 = vpack.c.bf16 %v656, %v656
    %664 = vmatpush.bf16.msra.mxu0 %v165
    %665 = vmatpush.bf16.msra.mxu0 %v162
    %666 = vmatpush.bf16.msra.mxu0 %v159
    %667 = vmatpush.bf16.msra.mxu0 %v156
    %668 = vmatpush.bf16.msra.mxu0 %v153
    %669 = vmatpush.bf16.msra.mxu0 %v150
    %670 = vmatpush.bf16.msra.mxu0 %v147
    %671 = vmatpush.bf16.msra.mxu0 %v144
    %672 = vmatmul.bf16.gmra.mxu0 %v663
    %v673 = vpop.f32.mrf.mxu0
    %v674 = vadd.f32 0.0, %v673
    %v675 = vpop.f32.mrf.mxu0
    %676 = vdwg.mxu0
    %677 = vmatpush.bf16.msra.mxu0 %v166
    %678 = vmatpush.bf16.msra.mxu0 %v163
    %679 = vmatpush.bf16.msra.mxu0 %v160
    %680 = vmatpush.bf16.msra.mxu0 %v157
    %681 = vmatpush.bf16.msra.mxu0 %v154
    %682 = vmatpush.bf16.msra.mxu0 %v151
    %683 = vmatpush.bf16.msra.mxu0 %v148
    %684 = vmatpush.bf16.msra.mxu0 %v145
    %685 = vmatmul.bf16.gmra.mxu0 %v663
    %v686 = vpop.f32.mrf.mxu0
    %v687 = vadd.f32 0.0, %v686
    %v688 = vpop.f32.mrf.mxu0
    %689 = vdwg.mxu0
    %690 = vmatpush.bf16.msra.mxu0 %v167
    %691 = vmatpush.bf16.msra.mxu0 %v164
    %692 = vmatpush.bf16.msra.mxu0 %v161
    %693 = vmatpush.bf16.msra.mxu0 %v158
    %694 = vmatpush.bf16.msra.mxu0 %v155
    %695 = vmatpush.bf16.msra.mxu0 %v152
    %696 = vmatpush.bf16.msra.mxu0 %v149
    %697 = vmatpush.bf16.msra.mxu0 %v146
    %698 = vmatmul.bf16.gmra.mxu0 %v663
    %v699 = vpop.f32.mrf.mxu0
    %v700 = vadd.f32 0.0, %v699
    %v701 = vpop.f32.mrf.mxu0
    %702 = vdwg.mxu0
    %v703 = vadd.f32 %v660, %v674
    %v704 = vxor.u32 %v703, 2147483648
    %v705 = vmul.f32 %v704, 1.442695
    %v706 = vpow.pop %v705
    %v707 = vadd.f32 %v706, 1.0
    %v708 = vrcp.pop %v707
    %v709 = vmul.f32 %v707, %v708
    %v710 = vsub.f32 1.0, %v709
    %v711 = vmul.f32 %v708, %v710
    %v712 = vadd.f32 %v708, %v711
    %vm713 = vweird.f32 %v707
    %vm714 = vweird.f32 %v708
    %vm715 = vmor %vm713, %vm714
    %v716 = vsel %vm715, %v708, %v712
    %v717 = vand.u32 2147483647, %v707
    %vm718 = vcmp.eq.f32.partialorder %v717, 8.507059e+37
    %v719 = vand.u32 %v707, 2147483648
    %v720 = vor.u32 1.1754944e-38, %v719
    %v721 = vsel %vm718, %v720, %v716
    %v722 = vmul.f32 1.0, %v721
    %v723 = vadd.f32 %v661, %v687
    %v724 = vxor.u32 %v723, 2147483648
    %v725 = vmul.f32 %v724, 1.442695
    %v726 = vpow.pop %v725
    %v727 = vadd.f32 %v726, 1.0
    %v728 = vrcp.pop %v727
    %v729 = vmul.f32 %v727, %v728
    %v730 = vsub.f32 1.0, %v729
    %v731 = vmul.f32 %v728, %v730
    %v732 = vadd.f32 %v728, %v731
    %vm733 = vweird.f32 %v727
    %vm734 = vweird.f32 %v728
    %vm735 = vmor %vm733, %vm734
    %v736 = vsel %vm735, %v728, %v732
    %v737 = vand.u32 2147483647, %v727
    %vm738 = vcmp.eq.f32.partialorder %v737, 8.507059e+37
    %v739 = vand.u32 %v727, 2147483648
    %v740 = vor.u32 1.1754944e-38, %v739
    %v741 = vsel %vm738, %v740, %v736
    %v742 = vmul.f32 1.0, %v741
    %v743 = vadd.f32 %v700, %v272
    %v744 = vmul.f32 %v722, %v743
    %v745 = vadd.f32 %v662, %v744
    %v746 = vtanh.pop %v745
    %v747 = vsub.f32 1.0, %v742
    %v748 = vmul.f32 %v747, %v746
    %v749 = vmul.f32 %v742, %v656
    %v750 = vadd.f32 %v748, %v749
    %s751 = scalar_lea.vmem [#allocation3], 40
    %752 = vst [vmem:[%s751] sm:$0xff] %v750
    %s753 = scalar_lea.vmem %s0, 144
    %v754 = vld [vmem:[%s753] sm:$0xff]
    %v755 = vld [vmem:[%s753 + $0x8] sm:$0xff]
    %v756 = vld [vmem:[%s753 + $0x10] sm:$0xff]
    %v757 = vpack.c.bf16 %v750, %v750
    %758 = vmatpush.bf16.msra.mxu0 %v165
    %759 = vmatpush.bf16.msra.mxu0 %v162
    %760 = vmatpush.bf16.msra.mxu0 %v159
    %761 = vmatpush.bf16.msra.mxu0 %v156
    %762 = vmatpush.bf16.msra.mxu0 %v153
    %763 = vmatpush.bf16.msra.mxu0 %v150
    %764 = vmatpush.bf16.msra.mxu0 %v147
    %765 = vmatpush.bf16.msra.mxu0 %v144
    %766 = vmatmul.bf16.gmra.mxu0 %v757
    %v767 = vpop.f32.mrf.mxu0
    %v768 = vadd.f32 0.0, %v767
    %v769 = vpop.f32.mrf.mxu0
    %770 = vdwg.mxu0
    %771 = vmatpush.bf16.msra.mxu0 %v166
    %772 = vmatpush.bf16.msra.mxu0 %v163
    %773 = vmatpush.bf16.msra.mxu0 %v160
    %774 = vmatpush.bf16.msra.mxu0 %v157
    %775 = vmatpush.bf16.msra.mxu0 %v154
    %776 = vmatpush.bf16.msra.mxu0 %v151
    %777 = vmatpush.bf16.msra.mxu0 %v148
    %778 = vmatpush.bf16.msra.mxu0 %v145
    %779 = vmatmul.bf16.gmra.mxu0 %v757
    %v780 = vpop.f32.mrf.mxu0
    %v781 = vadd.f32 0.0, %v780
    %v782 = vpop.f32.mrf.mxu0
    %783 = vdwg.mxu0
    %784 = vmatpush.bf16.msra.mxu0 %v167
    %785 = vmatpush.bf16.msra.mxu0 %v164
    %786 = vmatpush.bf16.msra.mxu0 %v161
    %787 = vmatpush.bf16.msra.mxu0 %v158
    %788 = vmatpush.bf16.msra.mxu0 %v155
    %789 = vmatpush.bf16.msra.mxu0 %v152
    %790 = vmatpush.bf16.msra.mxu0 %v149
    %791 = vmatpush.bf16.msra.mxu0 %v146
    %792 = vmatmul.bf16.gmra.mxu0 %v757
    %v793 = vpop.f32.mrf.mxu0
    %v794 = vadd.f32 0.0, %v793
    %v795 = vpop.f32.mrf.mxu0
    %796 = vdwg.mxu0
    %v797 = vadd.f32 %v754, %v768
    %v798 = vxor.u32 %v797, 2147483648
    %v799 = vmul.f32 %v798, 1.442695
    %v800 = vpow.pop %v799
    %v801 = vadd.f32 %v800, 1.0
    %v802 = vrcp.pop %v801
    %v803 = vmul.f32 %v801, %v802
    %v804 = vsub.f32 1.0, %v803
    %v805 = vmul.f32 %v802, %v804
    %v806 = vadd.f32 %v802, %v805
    %vm807 = vweird.f32 %v801
    %vm808 = vweird.f32 %v802
    %vm809 = vmor %vm807, %vm808
    %v810 = vsel %vm809, %v802, %v806
    %v811 = vand.u32 2147483647, %v801
    %vm812 = vcmp.eq.f32.partialorder %v811, 8.507059e+37
    %v813 = vand.u32 %v801, 2147483648
    %v814 = vor.u32 1.1754944e-38, %v813
    %v815 = vsel %vm812, %v814, %v810
    %v816 = vmul.f32 1.0, %v815
    %v817 = vadd.f32 %v755, %v781
    %v818 = vxor.u32 %v817, 2147483648
    %v819 = vmul.f32 %v818, 1.442695
    %v820 = vpow.pop %v819
    %v821 = vadd.f32 %v820, 1.0
    %v822 = vrcp.pop %v821
    %v823 = vmul.f32 %v821, %v822
    %v824 = vsub.f32 1.0, %v823
    %v825 = vmul.f32 %v822, %v824
    %v826 = vadd.f32 %v822, %v825
    %vm827 = vweird.f32 %v821
    %vm828 = vweird.f32 %v822
    %vm829 = vmor %vm827, %vm828
    %v830 = vsel %vm829, %v822, %v826
    %v831 = vand.u32 2147483647, %v821
    %vm832 = vcmp.eq.f32.partialorder %v831, 8.507059e+37
    %v833 = vand.u32 %v821, 2147483648
    %v834 = vor.u32 1.1754944e-38, %v833
    %v835 = vsel %vm832, %v834, %v830
    %v836 = vmul.f32 1.0, %v835
    %v837 = vadd.f32 %v794, %v272
    %v838 = vmul.f32 %v816, %v837
    %v839 = vadd.f32 %v756, %v838
    %v840 = vtanh.pop %v839
    %v841 = vsub.f32 1.0, %v836
    %v842 = vmul.f32 %v841, %v840
    %v843 = vmul.f32 %v836, %v750
    %v844 = vadd.f32 %v842, %v843
    %s845 = scalar_lea.vmem [#allocation3], 48
    %846 = vst [vmem:[%s845] sm:$0xff] %v844
    %s847 = scalar_lea.vmem %s0, 168
    %v848 = vld [vmem:[%s847] sm:$0xff]
    %v849 = vld [vmem:[%s847 + $0x8] sm:$0xff]
    %v850 = vld [vmem:[%s847 + $0x10] sm:$0xff]
    %v851 = vpack.c.bf16 %v844, %v844
    %852 = vmatpush.bf16.msra.mxu0 %v165
    %853 = vmatpush.bf16.msra.mxu0 %v162
    %854 = vmatpush.bf16.msra.mxu0 %v159
    %855 = vmatpush.bf16.msra.mxu0 %v156
    %856 = vmatpush.bf16.msra.mxu0 %v153
    %857 = vmatpush.bf16.msra.mxu0 %v150
    %858 = vmatpush.bf16.msra.mxu0 %v147
    %859 = vmatpush.bf16.msra.mxu0 %v144
    %860 = vmatmul.bf16.gmra.mxu0 %v851
    %v861 = vpop.f32.mrf.mxu0
    %v862 = vadd.f32 0.0, %v861
    %v863 = vpop.f32.mrf.mxu0
    %864 = vdwg.mxu0
    %865 = vmatpush.bf16.msra.mxu0 %v166
    %866 = vmatpush.bf16.msra.mxu0 %v163
    %867 = vmatpush.bf16.msra.mxu0 %v160
    %868 = vmatpush.bf16.msra.mxu0 %v157
    %869 = vmatpush.bf16.msra.mxu0 %v154
    %870 = vmatpush.bf16.msra.mxu0 %v151
    %871 = vmatpush.bf16.msra.mxu0 %v148
    %872 = vmatpush.bf16.msra.mxu0 %v145
    %873 = vmatmul.bf16.gmra.mxu0 %v851
    %v874 = vpop.f32.mrf.mxu0
    %v875 = vadd.f32 0.0, %v874
    %v876 = vpop.f32.mrf.mxu0
    %877 = vdwg.mxu0
    %878 = vmatpush.bf16.msra.mxu0 %v167
    %879 = vmatpush.bf16.msra.mxu0 %v164
    %880 = vmatpush.bf16.msra.mxu0 %v161
    %881 = vmatpush.bf16.msra.mxu0 %v158
    %882 = vmatpush.bf16.msra.mxu0 %v155
    %883 = vmatpush.bf16.msra.mxu0 %v152
    %884 = vmatpush.bf16.msra.mxu0 %v149
    %885 = vmatpush.bf16.msra.mxu0 %v146
    %886 = vmatmul.bf16.gmra.mxu0 %v851
    %v887 = vpop.f32.mrf.mxu0
    %v888 = vadd.f32 0.0, %v887
    %v889 = vpop.f32.mrf.mxu0
    %890 = vdwg.mxu0
    %v891 = vadd.f32 %v848, %v862
    %v892 = vxor.u32 %v891, 2147483648
    %v893 = vmul.f32 %v892, 1.442695
    %v894 = vpow.pop %v893
    %v895 = vadd.f32 %v894, 1.0
    %v896 = vrcp.pop %v895
    %v897 = vmul.f32 %v895, %v896
    %v898 = vsub.f32 1.0, %v897
    %v899 = vmul.f32 %v896, %v898
    %v900 = vadd.f32 %v896, %v899
    %vm901 = vweird.f32 %v895
    %vm902 = vweird.f32 %v896
    %vm903 = vmor %vm901, %vm902
    %v904 = vsel %vm903, %v896, %v900
    %v905 = vand.u32 2147483647, %v895
    %vm906 = vcmp.eq.f32.partialorder %v905, 8.507059e+37
    %v907 = vand.u32 %v895, 2147483648
    %v908 = vor.u32 1.1754944e-38, %v907
    %v909 = vsel %vm906, %v908, %v904
    %v910 = vmul.f32 1.0, %v909
    %v911 = vadd.f32 %v849, %v875
    %v912 = vxor.u32 %v911, 2147483648
    %v913 = vmul.f32 %v912, 1.442695
    %v914 = vpow.pop %v913
    %v915 = vadd.f32 %v914, 1.0
    %v916 = vrcp.pop %v915
    %v917 = vmul.f32 %v915, %v916
    %v918 = vsub.f32 1.0, %v917
    %v919 = vmul.f32 %v916, %v918
    %v920 = vadd.f32 %v916, %v919
    %vm921 = vweird.f32 %v915
    %vm922 = vweird.f32 %v916
    %vm923 = vmor %vm921, %vm922
    %v924 = vsel %vm923, %v916, %v920
    %v925 = vand.u32 2147483647, %v915
    %vm926 = vcmp.eq.f32.partialorder %v925, 8.507059e+37
    %v927 = vand.u32 %v915, 2147483648
    %v928 = vor.u32 1.1754944e-38, %v927
    %v929 = vsel %vm926, %v928, %v924
    %v930 = vmul.f32 1.0, %v929
    %v931 = vadd.f32 %v888, %v272
    %v932 = vmul.f32 %v910, %v931
    %v933 = vadd.f32 %v850, %v932
    %v934 = vtanh.pop %v933
    %v935 = vsub.f32 1.0, %v930
    %v936 = vmul.f32 %v935, %v934
    %v937 = vmul.f32 %v930, %v844
    %v938 = vadd.f32 %v936, %v937
    %s939 = scalar_lea.vmem [#allocation3], 56
    %940 = vst [vmem:[%s939] sm:$0xff] %v938
    %s941 = scalar_lea.vmem %s0, 192
    %v942 = vld [vmem:[%s941] sm:$0xff]
    %v943 = vld [vmem:[%s941 + $0x8] sm:$0xff]
    %v944 = vld [vmem:[%s941 + $0x10] sm:$0xff]
    %v945 = vpack.c.bf16 %v938, %v938
    %946 = vmatpush.bf16.msra.mxu0 %v165
    %947 = vmatpush.bf16.msra.mxu0 %v162
    %948 = vmatpush.bf16.msra.mxu0 %v159
    %949 = vmatpush.bf16.msra.mxu0 %v156
    %950 = vmatpush.bf16.msra.mxu0 %v153
    %951 = vmatpush.bf16.msra.mxu0 %v150
    %952 = vmatpush.bf16.msra.mxu0 %v147
    %953 = vmatpush.bf16.msra.mxu0 %v144
    %954 = vmatmul.bf16.gmra.mxu0 %v945
    %v955 = vpop.f32.mrf.mxu0
    %v956 = vadd.f32 0.0, %v955
    %v957 = vpop.f32.mrf.mxu0
    %958 = vdwg.mxu0
    %959 = vmatpush.bf16.msra.mxu0 %v166
    %960 = vmatpush.bf16.msra.mxu0 %v163
    %961 = vmatpush.bf16.msra.mxu0 %v160
    %962 = vmatpush.bf16.msra.mxu0 %v157
    %963 = vmatpush.bf16.msra.mxu0 %v154
    %964 = vmatpush.bf16.msra.mxu0 %v151
    %965 = vmatpush.bf16.msra.mxu0 %v148
    %966 = vmatpush.bf16.msra.mxu0 %v145
    %967 = vmatmul.bf16.gmra.mxu0 %v945
    %v968 = vpop.f32.mrf.mxu0
    %v969 = vadd.f32 0.0, %v968
    %v970 = vpop.f32.mrf.mxu0
    %971 = vdwg.mxu0
    %972 = vmatpush.bf16.msra.mxu0 %v167
    %973 = vmatpush.bf16.msra.mxu0 %v164
    %974 = vmatpush.bf16.msra.mxu0 %v161
    %975 = vmatpush.bf16.msra.mxu0 %v158
    %976 = vmatpush.bf16.msra.mxu0 %v155
    %977 = vmatpush.bf16.msra.mxu0 %v152
    %978 = vmatpush.bf16.msra.mxu0 %v149
    %979 = vmatpush.bf16.msra.mxu0 %v146
    %980 = vmatmul.bf16.gmra.mxu0 %v945
    %v981 = vpop.f32.mrf.mxu0
    %v982 = vadd.f32 0.0, %v981
    %v983 = vpop.f32.mrf.mxu0
    %984 = vdwg.mxu0
    %v985 = vadd.f32 %v942, %v956
    %v986 = vxor.u32 %v985, 2147483648
    %v987 = vmul.f32 %v986, 1.442695
    %v988 = vpow.pop %v987
    %v989 = vadd.f32 %v988, 1.0
    %v990 = vrcp.pop %v989
    %v991 = vmul.f32 %v989, %v990
    %v992 = vsub.f32 1.0, %v991
    %v993 = vmul.f32 %v990, %v992
    %v994 = vadd.f32 %v990, %v993
    %vm995 = vweird.f32 %v989
    %vm996 = vweird.f32 %v990
    %vm997 = vmor %vm995, %vm996
    %v998 = vsel %vm997, %v990, %v994
    %v999 = vand.u32 2147483647, %v989
    %vm1000 = vcmp.eq.f32.partialorder %v999, 8.507059e+37
    %v1001 = vand.u32 %v989, 2147483648
    %v1002 = vor.u32 1.1754944e-38, %v1001
    %v1003 = vsel %vm1000, %v1002, %v998
    %v1004 = vmul.f32 1.0, %v1003
    %v1005 = vadd.f32 %v943, %v969
    %v1006 = vxor.u32 %v1005, 2147483648
    %v1007 = vmul.f32 %v1006, 1.442695
    %v1008 = vpow.pop %v1007
    %v1009 = vadd.f32 %v1008, 1.0
    %v1010 = vrcp.pop %v1009
    %v1011 = vmul.f32 %v1009, %v1010
    %v1012 = vsub.f32 1.0, %v1011
    %v1013 = vmul.f32 %v1010, %v1012
    %v1014 = vadd.f32 %v1010, %v1013
    %vm1015 = vweird.f32 %v1009
    %vm1016 = vweird.f32 %v1010
    %vm1017 = vmor %vm1015, %vm1016
    %v1018 = vsel %vm1017, %v1010, %v1014
    %v1019 = vand.u32 2147483647, %v1009
    %vm1020 = vcmp.eq.f32.partialorder %v1019, 8.507059e+37
    %v1021 = vand.u32 %v1009, 2147483648
    %v1022 = vor.u32 1.1754944e-38, %v1021
    %v1023 = vsel %vm1020, %v1022, %v1018
    %v1024 = vmul.f32 1.0, %v1023
    %v1025 = vadd.f32 %v982, %v272
    %v1026 = vmul.f32 %v1004, %v1025
    %v1027 = vadd.f32 %v944, %v1026
    %v1028 = vtanh.pop %v1027
    %v1029 = vsub.f32 1.0, %v1024
    %v1030 = vmul.f32 %v1029, %v1028
    %v1031 = vmul.f32 %v1024, %v938
    %v1032 = vadd.f32 %v1030, %v1031
    %s1033 = scalar_lea.vmem [#allocation3], 64
    %1034 = vst [vmem:[%s1033] sm:$0xff] %v1032
    %s1035 = scalar_lea.vmem %s0, 216
    %v1036 = vld [vmem:[%s1035] sm:$0xff]
    %v1037 = vld [vmem:[%s1035 + $0x8] sm:$0xff]
    %v1038 = vld [vmem:[%s1035 + $0x10] sm:$0xff]
    %v1039 = vpack.c.bf16 %v1032, %v1032
    %1040 = vmatpush.bf16.msra.mxu0 %v165
    %1041 = vmatpush.bf16.msra.mxu0 %v162
    %1042 = vmatpush.bf16.msra.mxu0 %v159
    %1043 = vmatpush.bf16.msra.mxu0 %v156
    %1044 = vmatpush.bf16.msra.mxu0 %v153
    %1045 = vmatpush.bf16.msra.mxu0 %v150
    %1046 = vmatpush.bf16.msra.mxu0 %v147
    %1047 = vmatpush.bf16.msra.mxu0 %v144
    %1048 = vmatmul.bf16.gmra.mxu0 %v1039
    %v1049 = vpop.f32.mrf.mxu0
    %v1050 = vadd.f32 0.0, %v1049
    %v1051 = vpop.f32.mrf.mxu0
    %1052 = vdwg.mxu0
    %1053 = vmatpush.bf16.msra.mxu0 %v166
    %1054 = vmatpush.bf16.msra.mxu0 %v163
    %1055 = vmatpush.bf16.msra.mxu0 %v160
    %1056 = vmatpush.bf16.msra.mxu0 %v157
    %1057 = vmatpush.bf16.msra.mxu0 %v154
    %1058 = vmatpush.bf16.msra.mxu0 %v151
    %1059 = vmatpush.bf16.msra.mxu0 %v148
    %1060 = vmatpush.bf16.msra.mxu0 %v145
    %1061 = vmatmul.bf16.gmra.mxu0 %v1039
    %v1062 = vpop.f32.mrf.mxu0
    %v1063 = vadd.f32 0.0, %v1062
    %v1064 = vpop.f32.mrf.mxu0
    %1065 = vdwg.mxu0
    %1066 = vmatpush.bf16.msra.mxu0 %v167
    %1067 = vmatpush.bf16.msra.mxu0 %v164
    %1068 = vmatpush.bf16.msra.mxu0 %v161
    %1069 = vmatpush.bf16.msra.mxu0 %v158
    %1070 = vmatpush.bf16.msra.mxu0 %v155
    %1071 = vmatpush.bf16.msra.mxu0 %v152
    %1072 = vmatpush.bf16.msra.mxu0 %v149
    %1073 = vmatpush.bf16.msra.mxu0 %v146
    %1074 = vmatmul.bf16.gmra.mxu0 %v1039
    %v1075 = vpop.f32.mrf.mxu0
    %v1076 = vadd.f32 0.0, %v1075
    %v1077 = vpop.f32.mrf.mxu0
    %1078 = vdwg.mxu0
    %v1079 = vadd.f32 %v1036, %v1050
    %v1080 = vxor.u32 %v1079, 2147483648
    %v1081 = vmul.f32 %v1080, 1.442695
    %v1082 = vpow.pop %v1081
    %v1083 = vadd.f32 %v1082, 1.0
    %v1084 = vrcp.pop %v1083
    %v1085 = vmul.f32 %v1083, %v1084
    %v1086 = vsub.f32 1.0, %v1085
    %v1087 = vmul.f32 %v1084, %v1086
    %v1088 = vadd.f32 %v1084, %v1087
    %vm1089 = vweird.f32 %v1083
    %vm1090 = vweird.f32 %v1084
    %vm1091 = vmor %vm1089, %vm1090
    %v1092 = vsel %vm1091, %v1084, %v1088
    %v1093 = vand.u32 2147483647, %v1083
    %vm1094 = vcmp.eq.f32.partialorder %v1093, 8.507059e+37
    %v1095 = vand.u32 %v1083, 2147483648
    %v1096 = vor.u32 1.1754944e-38, %v1095
    %v1097 = vsel %vm1094, %v1096, %v1092
    %v1098 = vmul.f32 1.0, %v1097
    %v1099 = vadd.f32 %v1037, %v1063
    %v1100 = vxor.u32 %v1099, 2147483648
    %v1101 = vmul.f32 %v1100, 1.442695
    %v1102 = vpow.pop %v1101
    %v1103 = vadd.f32 %v1102, 1.0
    %v1104 = vrcp.pop %v1103
    %v1105 = vmul.f32 %v1103, %v1104
    %v1106 = vsub.f32 1.0, %v1105
    %v1107 = vmul.f32 %v1104, %v1106
    %v1108 = vadd.f32 %v1104, %v1107
    %vm1109 = vweird.f32 %v1103
    %vm1110 = vweird.f32 %v1104
    %vm1111 = vmor %vm1109, %vm1110
    %v1112 = vsel %vm1111, %v1104, %v1108
    %v1113 = vand.u32 2147483647, %v1103
    %vm1114 = vcmp.eq.f32.partialorder %v1113, 8.507059e+37
    %v1115 = vand.u32 %v1103, 2147483648
    %v1116 = vor.u32 1.1754944e-38, %v1115
    %v1117 = vsel %vm1114, %v1116, %v1112
    %v1118 = vmul.f32 1.0, %v1117
    %v1119 = vadd.f32 %v1076, %v272
    %v1120 = vmul.f32 %v1098, %v1119
    %v1121 = vadd.f32 %v1038, %v1120
    %v1122 = vtanh.pop %v1121
    %v1123 = vsub.f32 1.0, %v1118
    %v1124 = vmul.f32 %v1123, %v1122
    %v1125 = vmul.f32 %v1118, %v1032
    %v1126 = vadd.f32 %v1124, %v1125
    %s1127 = scalar_lea.vmem [#allocation3], 72
    %1128 = vst [vmem:[%s1127] sm:$0xff] %v1126
    %s1129 = scalar_lea.vmem %s0, 240
    %v1130 = vld [vmem:[%s1129] sm:$0xff]
    %v1131 = vld [vmem:[%s1129 + $0x8] sm:$0xff]
    %v1132 = vld [vmem:[%s1129 + $0x10] sm:$0xff]
    %v1133 = vpack.c.bf16 %v1126, %v1126
    %1134 = vmatpush.bf16.msra.mxu0 %v165
    %1135 = vmatpush.bf16.msra.mxu0 %v162
    %1136 = vmatpush.bf16.msra.mxu0 %v159
    %1137 = vmatpush.bf16.msra.mxu0 %v156
    %1138 = vmatpush.bf16.msra.mxu0 %v153
    %1139 = vmatpush.bf16.msra.mxu0 %v150
    %1140 = vmatpush.bf16.msra.mxu0 %v147
    %1141 = vmatpush.bf16.msra.mxu0 %v144
    %1142 = vmatmul.bf16.gmra.mxu0 %v1133
    %v1143 = vpop.f32.mrf.mxu0
    %v1144 = vadd.f32 0.0, %v1143
    %v1145 = vpop.f32.mrf.mxu0
    %1146 = vdwg.mxu0
    %1147 = vmatpush.bf16.msra.mxu0 %v166
    %1148 = vmatpush.bf16.msra.mxu0 %v163
    %1149 = vmatpush.bf16.msra.mxu0 %v160
    %1150 = vmatpush.bf16.msra.mxu0 %v157
    %1151 = vmatpush.bf16.msra.mxu0 %v154
    %1152 = vmatpush.bf16.msra.mxu0 %v151
    %1153 = vmatpush.bf16.msra.mxu0 %v148
    %1154 = vmatpush.bf16.msra.mxu0 %v145
    %1155 = vmatmul.bf16.gmra.mxu0 %v1133
    %v1156 = vpop.f32.mrf.mxu0
    %v1157 = vadd.f32 0.0, %v1156
    %v1158 = vpop.f32.mrf.mxu0
    %1159 = vdwg.mxu0
    %1160 = vmatpush.bf16.msra.mxu0 %v167
    %1161 = vmatpush.bf16.msra.mxu0 %v164
    %1162 = vmatpush.bf16.msra.mxu0 %v161
    %1163 = vmatpush.bf16.msra.mxu0 %v158
    %1164 = vmatpush.bf16.msra.mxu0 %v155
    %1165 = vmatpush.bf16.msra.mxu0 %v152
    %1166 = vmatpush.bf16.msra.mxu0 %v149
    %1167 = vmatpush.bf16.msra.mxu0 %v146
    %1168 = vmatmul.bf16.gmra.mxu0 %v1133
    %v1169 = vpop.f32.mrf.mxu0
    %v1170 = vadd.f32 0.0, %v1169
    %v1171 = vpop.f32.mrf.mxu0
    %1172 = vdwg.mxu0
    %v1173 = vadd.f32 %v1130, %v1144
    %v1174 = vxor.u32 %v1173, 2147483648
    %v1175 = vmul.f32 %v1174, 1.442695
    %v1176 = vpow.pop %v1175
    %v1177 = vadd.f32 %v1176, 1.0
    %v1178 = vrcp.pop %v1177
    %v1179 = vmul.f32 %v1177, %v1178
    %v1180 = vsub.f32 1.0, %v1179
    %v1181 = vmul.f32 %v1178, %v1180
    %v1182 = vadd.f32 %v1178, %v1181
    %vm1183 = vweird.f32 %v1177
    %vm1184 = vweird.f32 %v1178
    %vm1185 = vmor %vm1183, %vm1184
    %v1186 = vsel %vm1185, %v1178, %v1182
    %v1187 = vand.u32 2147483647, %v1177
    %vm1188 = vcmp.eq.f32.partialorder %v1187, 8.507059e+37
    %v1189 = vand.u32 %v1177, 2147483648
    %v1190 = vor.u32 1.1754944e-38, %v1189
    %v1191 = vsel %vm1188, %v1190, %v1186
    %v1192 = vmul.f32 1.0, %v1191
    %v1193 = vadd.f32 %v1131, %v1157
    %v1194 = vxor.u32 %v1193, 2147483648
    %v1195 = vmul.f32 %v1194, 1.442695
    %v1196 = vpow.pop %v1195
    %v1197 = vadd.f32 %v1196, 1.0
    %v1198 = vrcp.pop %v1197
    %v1199 = vmul.f32 %v1197, %v1198
    %v1200 = vsub.f32 1.0, %v1199
    %v1201 = vmul.f32 %v1198, %v1200
    %v1202 = vadd.f32 %v1198, %v1201
    %vm1203 = vweird.f32 %v1197
    %vm1204 = vweird.f32 %v1198
    %vm1205 = vmor %vm1203, %vm1204
    %v1206 = vsel %vm1205, %v1198, %v1202
    %v1207 = vand.u32 2147483647, %v1197
    %vm1208 = vcmp.eq.f32.partialorder %v1207, 8.507059e+37
    %v1209 = vand.u32 %v1197, 2147483648
    %v1210 = vor.u32 1.1754944e-38, %v1209
    %v1211 = vsel %vm1208, %v1210, %v1206
    %v1212 = vmul.f32 1.0, %v1211
    %v1213 = vadd.f32 %v1170, %v272
    %v1214 = vmul.f32 %v1192, %v1213
    %v1215 = vadd.f32 %v1132, %v1214
    %v1216 = vtanh.pop %v1215
    %v1217 = vsub.f32 1.0, %v1212
    %v1218 = vmul.f32 %v1217, %v1216
    %v1219 = vmul.f32 %v1212, %v1126
    %v1220 = vadd.f32 %v1218, %v1219
    %s1221 = scalar_lea.vmem [#allocation3], 80
    %1222 = vst [vmem:[%s1221] sm:$0xff] %v1220
    %s1223 = scalar_lea.vmem %s0, 264
    %v1224 = vld [vmem:[%s1223] sm:$0xff]
    %v1225 = vld [vmem:[%s1223 + $0x8] sm:$0xff]
    %v1226 = vld [vmem:[%s1223 + $0x10] sm:$0xff]
    %v1227 = vpack.c.bf16 %v1220, %v1220
    %1228 = vmatpush.bf16.msra.mxu0 %v165
    %1229 = vmatpush.bf16.msra.mxu0 %v162
    %1230 = vmatpush.bf16.msra.mxu0 %v159
    %1231 = vmatpush.bf16.msra.mxu0 %v156
    %1232 = vmatpush.bf16.msra.mxu0 %v153
    %1233 = vmatpush.bf16.msra.mxu0 %v150
    %1234 = vmatpush.bf16.msra.mxu0 %v147
    %1235 = vmatpush.bf16.msra.mxu0 %v144
    %1236 = vmatmul.bf16.gmra.mxu0 %v1227
    %v1237 = vpop.f32.mrf.mxu0
    %v1238 = vadd.f32 0.0, %v1237
    %v1239 = vpop.f32.mrf.mxu0
    %1240 = vdwg.mxu0
    %1241 = vmatpush.bf16.msra.mxu0 %v166
    %1242 = vmatpush.bf16.msra.mxu0 %v163
    %1243 = vmatpush.bf16.msra.mxu0 %v160
    %1244 = vmatpush.bf16.msra.mxu0 %v157
    %1245 = vmatpush.bf16.msra.mxu0 %v154
    %1246 = vmatpush.bf16.msra.mxu0 %v151
    %1247 = vmatpush.bf16.msra.mxu0 %v148
    %1248 = vmatpush.bf16.msra.mxu0 %v145
    %1249 = vmatmul.bf16.gmra.mxu0 %v1227
    %v1250 = vpop.f32.mrf.mxu0
    %v1251 = vadd.f32 0.0, %v1250
    %v1252 = vpop.f32.mrf.mxu0
    %1253 = vdwg.mxu0
    %1254 = vmatpush.bf16.msra.mxu0 %v167
    %1255 = vmatpush.bf16.msra.mxu0 %v164
    %1256 = vmatpush.bf16.msra.mxu0 %v161
    %1257 = vmatpush.bf16.msra.mxu0 %v158
    %1258 = vmatpush.bf16.msra.mxu0 %v155
    %1259 = vmatpush.bf16.msra.mxu0 %v152
    %1260 = vmatpush.bf16.msra.mxu0 %v149
    %1261 = vmatpush.bf16.msra.mxu0 %v146
    %1262 = vmatmul.bf16.gmra.mxu0 %v1227
    %v1263 = vpop.f32.mrf.mxu0
    %v1264 = vadd.f32 0.0, %v1263
    %v1265 = vpop.f32.mrf.mxu0
    %1266 = vdwg.mxu0
    %v1267 = vadd.f32 %v1224, %v1238
    %v1268 = vxor.u32 %v1267, 2147483648
    %v1269 = vmul.f32 %v1268, 1.442695
    %v1270 = vpow.pop %v1269
    %v1271 = vadd.f32 %v1270, 1.0
    %v1272 = vrcp.pop %v1271
    %v1273 = vmul.f32 %v1271, %v1272
    %v1274 = vsub.f32 1.0, %v1273
    %v1275 = vmul.f32 %v1272, %v1274
    %v1276 = vadd.f32 %v1272, %v1275
    %vm1277 = vweird.f32 %v1271
    %vm1278 = vweird.f32 %v1272
    %vm1279 = vmor %vm1277, %vm1278
    %v1280 = vsel %vm1279, %v1272, %v1276
    %v1281 = vand.u32 2147483647, %v1271
    %vm1282 = vcmp.eq.f32.partialorder %v1281, 8.507059e+37
    %v1283 = vand.u32 %v1271, 2147483648
    %v1284 = vor.u32 1.1754944e-38, %v1283
    %v1285 = vsel %vm1282, %v1284, %v1280
    %v1286 = vmul.f32 1.0, %v1285
    %v1287 = vadd.f32 %v1225, %v1251
    %v1288 = vxor.u32 %v1287, 2147483648
    %v1289 = vmul.f32 %v1288, 1.442695
    %v1290 = vpow.pop %v1289
    %v1291 = vadd.f32 %v1290, 1.0
    %v1292 = vrcp.pop %v1291
    %v1293 = vmul.f32 %v1291, %v1292
    %v1294 = vsub.f32 1.0, %v1293
    %v1295 = vmul.f32 %v1292, %v1294
    %v1296 = vadd.f32 %v1292, %v1295
    %vm1297 = vweird.f32 %v1291
    %vm1298 = vweird.f32 %v1292
    %vm1299 = vmor %vm1297, %vm1298
    %v1300 = vsel %vm1299, %v1292, %v1296
    %v1301 = vand.u32 2147483647, %v1291
    %vm1302 = vcmp.eq.f32.partialorder %v1301, 8.507059e+37
    %v1303 = vand.u32 %v1291, 2147483648
    %v1304 = vor.u32 1.1754944e-38, %v1303
    %v1305 = vsel %vm1302, %v1304, %v1300
    %v1306 = vmul.f32 1.0, %v1305
    %v1307 = vadd.f32 %v1264, %v272
    %v1308 = vmul.f32 %v1286, %v1307
    %v1309 = vadd.f32 %v1226, %v1308
    %v1310 = vtanh.pop %v1309
    %v1311 = vsub.f32 1.0, %v1306
    %v1312 = vmul.f32 %v1311, %v1310
    %v1313 = vmul.f32 %v1306, %v1220
    %v1314 = vadd.f32 %v1312, %v1313
    %s1315 = scalar_lea.vmem [#allocation3], 88
    %1316 = vst [vmem:[%s1315] sm:$0xff] %v1314
    %s1317 = scalar_lea.vmem %s0, 288
    %v1318 = vld [vmem:[%s1317] sm:$0xff]
    %v1319 = vld [vmem:[%s1317 + $0x8] sm:$0xff]
    %v1320 = vld [vmem:[%s1317 + $0x10] sm:$0xff]
    %v1321 = vpack.c.bf16 %v1314, %v1314
    %1322 = vmatpush.bf16.msra.mxu0 %v165
    %1323 = vmatpush.bf16.msra.mxu0 %v162
    %1324 = vmatpush.bf16.msra.mxu0 %v159
    %1325 = vmatpush.bf16.msra.mxu0 %v156
    %1326 = vmatpush.bf16.msra.mxu0 %v153
    %1327 = vmatpush.bf16.msra.mxu0 %v150
    %1328 = vmatpush.bf16.msra.mxu0 %v147
    %1329 = vmatpush.bf16.msra.mxu0 %v144
    %1330 = vmatmul.bf16.gmra.mxu0 %v1321
    %v1331 = vpop.f32.mrf.mxu0
    %v1332 = vadd.f32 0.0, %v1331
    %v1333 = vpop.f32.mrf.mxu0
    %1334 = vdwg.mxu0
    %1335 = vmatpush.bf16.msra.mxu0 %v166
    %1336 = vmatpush.bf16.msra.mxu0 %v163
    %1337 = vmatpush.bf16.msra.mxu0 %v160
    %1338 = vmatpush.bf16.msra.mxu0 %v157
    %1339 = vmatpush.bf16.msra.mxu0 %v154
    %1340 = vmatpush.bf16.msra.mxu0 %v151
    %1341 = vmatpush.bf16.msra.mxu0 %v148
    %1342 = vmatpush.bf16.msra.mxu0 %v145
    %1343 = vmatmul.bf16.gmra.mxu0 %v1321
    %v1344 = vpop.f32.mrf.mxu0
    %v1345 = vadd.f32 0.0, %v1344
    %v1346 = vpop.f32.mrf.mxu0
    %1347 = vdwg.mxu0
    %1348 = vmatpush.bf16.msra.mxu0 %v167
    %1349 = vmatpush.bf16.msra.mxu0 %v164
    %1350 = vmatpush.bf16.msra.mxu0 %v161
    %1351 = vmatpush.bf16.msra.mxu0 %v158
    %1352 = vmatpush.bf16.msra.mxu0 %v155
    %1353 = vmatpush.bf16.msra.mxu0 %v152
    %1354 = vmatpush.bf16.msra.mxu0 %v149
    %1355 = vmatpush.bf16.msra.mxu0 %v146
    %1356 = vmatmul.bf16.gmra.mxu0 %v1321
    %v1357 = vpop.f32.mrf.mxu0
    %v1358 = vadd.f32 0.0, %v1357
    %v1359 = vpop.f32.mrf.mxu0
    %1360 = vdwg.mxu0
    %v1361 = vadd.f32 %v1318, %v1332
    %v1362 = vxor.u32 %v1361, 2147483648
    %v1363 = vmul.f32 %v1362, 1.442695
    %v1364 = vpow.pop %v1363
    %v1365 = vadd.f32 %v1364, 1.0
    %v1366 = vrcp.pop %v1365
    %v1367 = vmul.f32 %v1365, %v1366
    %v1368 = vsub.f32 1.0, %v1367
    %v1369 = vmul.f32 %v1366, %v1368
    %v1370 = vadd.f32 %v1366, %v1369
    %vm1371 = vweird.f32 %v1365
    %vm1372 = vweird.f32 %v1366
    %vm1373 = vmor %vm1371, %vm1372
    %v1374 = vsel %vm1373, %v1366, %v1370
    %v1375 = vand.u32 2147483647, %v1365
    %vm1376 = vcmp.eq.f32.partialorder %v1375, 8.507059e+37
    %v1377 = vand.u32 %v1365, 2147483648
    %v1378 = vor.u32 1.1754944e-38, %v1377
    %v1379 = vsel %vm1376, %v1378, %v1374
    %v1380 = vmul.f32 1.0, %v1379
    %v1381 = vadd.f32 %v1319, %v1345
    %v1382 = vxor.u32 %v1381, 2147483648
    %v1383 = vmul.f32 %v1382, 1.442695
    %v1384 = vpow.pop %v1383
    %v1385 = vadd.f32 %v1384, 1.0
    %v1386 = vrcp.pop %v1385
    %v1387 = vmul.f32 %v1385, %v1386
    %v1388 = vsub.f32 1.0, %v1387
    %v1389 = vmul.f32 %v1386, %v1388
    %v1390 = vadd.f32 %v1386, %v1389
    %vm1391 = vweird.f32 %v1385
    %vm1392 = vweird.f32 %v1386
    %vm1393 = vmor %vm1391, %vm1392
    %v1394 = vsel %vm1393, %v1386, %v1390
    %v1395 = vand.u32 2147483647, %v1385
    %vm1396 = vcmp.eq.f32.partialorder %v1395, 8.507059e+37
    %v1397 = vand.u32 %v1385, 2147483648
    %v1398 = vor.u32 1.1754944e-38, %v1397
    %v1399 = vsel %vm1396, %v1398, %v1394
    %v1400 = vmul.f32 1.0, %v1399
    %v1401 = vadd.f32 %v1358, %v272
    %v1402 = vmul.f32 %v1380, %v1401
    %v1403 = vadd.f32 %v1320, %v1402
    %v1404 = vtanh.pop %v1403
    %v1405 = vsub.f32 1.0, %v1400
    %v1406 = vmul.f32 %v1405, %v1404
    %v1407 = vmul.f32 %v1400, %v1314
    %v1408 = vadd.f32 %v1406, %v1407
    %s1409 = scalar_lea.vmem [#allocation3], 96
    %1410 = vst [vmem:[%s1409] sm:$0xff] %v1408
    %s1411 = scalar_lea.vmem %s0, 312
    %v1412 = vld [vmem:[%s1411] sm:$0xff]
    %v1413 = vld [vmem:[%s1411 + $0x8] sm:$0xff]
    %v1414 = vld [vmem:[%s1411 + $0x10] sm:$0xff]
    %v1415 = vpack.c.bf16 %v1408, %v1408
    %1416 = vmatpush.bf16.msra.mxu0 %v165
    %1417 = vmatpush.bf16.msra.mxu0 %v162
    %1418 = vmatpush.bf16.msra.mxu0 %v159
    %1419 = vmatpush.bf16.msra.mxu0 %v156
    %1420 = vmatpush.bf16.msra.mxu0 %v153
    %1421 = vmatpush.bf16.msra.mxu0 %v150
    %1422 = vmatpush.bf16.msra.mxu0 %v147
    %1423 = vmatpush.bf16.msra.mxu0 %v144
    %1424 = vmatmul.bf16.gmra.mxu0 %v1415
    %v1425 = vpop.f32.mrf.mxu0
    %v1426 = vadd.f32 0.0, %v1425
    %v1427 = vpop.f32.mrf.mxu0
    %1428 = vdwg.mxu0
    %1429 = vmatpush.bf16.msra.mxu0 %v166
    %1430 = vmatpush.bf16.msra.mxu0 %v163
    %1431 = vmatpush.bf16.msra.mxu0 %v160
    %1432 = vmatpush.bf16.msra.mxu0 %v157
    %1433 = vmatpush.bf16.msra.mxu0 %v154
    %1434 = vmatpush.bf16.msra.mxu0 %v151
    %1435 = vmatpush.bf16.msra.mxu0 %v148
    %1436 = vmatpush.bf16.msra.mxu0 %v145
    %1437 = vmatmul.bf16.gmra.mxu0 %v1415
    %v1438 = vpop.f32.mrf.mxu0
    %v1439 = vadd.f32 0.0, %v1438
    %v1440 = vpop.f32.mrf.mxu0
    %1441 = vdwg.mxu0
    %1442 = vmatpush.bf16.msra.mxu0 %v167
    %1443 = vmatpush.bf16.msra.mxu0 %v164
    %1444 = vmatpush.bf16.msra.mxu0 %v161
    %1445 = vmatpush.bf16.msra.mxu0 %v158
    %1446 = vmatpush.bf16.msra.mxu0 %v155
    %1447 = vmatpush.bf16.msra.mxu0 %v152
    %1448 = vmatpush.bf16.msra.mxu0 %v149
    %1449 = vmatpush.bf16.msra.mxu0 %v146
    %1450 = vmatmul.bf16.gmra.mxu0 %v1415
    %v1451 = vpop.f32.mrf.mxu0
    %v1452 = vadd.f32 0.0, %v1451
    %v1453 = vpop.f32.mrf.mxu0
    %1454 = vdwg.mxu0
    %v1455 = vadd.f32 %v1412, %v1426
    %v1456 = vxor.u32 %v1455, 2147483648
    %v1457 = vmul.f32 %v1456, 1.442695
    %v1458 = vpow.pop %v1457
    %v1459 = vadd.f32 %v1458, 1.0
    %v1460 = vrcp.pop %v1459
    %v1461 = vmul.f32 %v1459, %v1460
    %v1462 = vsub.f32 1.0, %v1461
    %v1463 = vmul.f32 %v1460, %v1462
    %v1464 = vadd.f32 %v1460, %v1463
    %vm1465 = vweird.f32 %v1459
    %vm1466 = vweird.f32 %v1460
    %vm1467 = vmor %vm1465, %vm1466
    %v1468 = vsel %vm1467, %v1460, %v1464
    %v1469 = vand.u32 2147483647, %v1459
    %vm1470 = vcmp.eq.f32.partialorder %v1469, 8.507059e+37
    %v1471 = vand.u32 %v1459, 2147483648
    %v1472 = vor.u32 1.1754944e-38, %v1471
    %v1473 = vsel %vm1470, %v1472, %v1468
    %v1474 = vmul.f32 1.0, %v1473
    %v1475 = vadd.f32 %v1413, %v1439
    %v1476 = vxor.u32 %v1475, 2147483648
    %v1477 = vmul.f32 %v1476, 1.442695
    %v1478 = vpow.pop %v1477
    %v1479 = vadd.f32 %v1478, 1.0
    %v1480 = vrcp.pop %v1479
    %v1481 = vmul.f32 %v1479, %v1480
    %v1482 = vsub.f32 1.0, %v1481
    %v1483 = vmul.f32 %v1480, %v1482
    %v1484 = vadd.f32 %v1480, %v1483
    %vm1485 = vweird.f32 %v1479
    %vm1486 = vweird.f32 %v1480
    %vm1487 = vmor %vm1485, %vm1486
    %v1488 = vsel %vm1487, %v1480, %v1484
    %v1489 = vand.u32 2147483647, %v1479
    %vm1490 = vcmp.eq.f32.partialorder %v1489, 8.507059e+37
    %v1491 = vand.u32 %v1479, 2147483648
    %v1492 = vor.u32 1.1754944e-38, %v1491
    %v1493 = vsel %vm1490, %v1492, %v1488
    %v1494 = vmul.f32 1.0, %v1493
    %v1495 = vadd.f32 %v1452, %v272
    %v1496 = vmul.f32 %v1474, %v1495
    %v1497 = vadd.f32 %v1414, %v1496
    %v1498 = vtanh.pop %v1497
    %v1499 = vsub.f32 1.0, %v1494
    %v1500 = vmul.f32 %v1499, %v1498
    %v1501 = vmul.f32 %v1494, %v1408
    %v1502 = vadd.f32 %v1500, %v1501
    %s1503 = scalar_lea.vmem [#allocation3], 104
    %1504 = vst [vmem:[%s1503] sm:$0xff] %v1502
    %s1505 = scalar_lea.vmem %s0, 336
    %v1506 = vld [vmem:[%s1505] sm:$0xff]
    %v1507 = vld [vmem:[%s1505 + $0x8] sm:$0xff]
    %v1508 = vld [vmem:[%s1505 + $0x10] sm:$0xff]
    %v1509 = vpack.c.bf16 %v1502, %v1502
    %1510 = vmatpush.bf16.msra.mxu0 %v165
    %1511 = vmatpush.bf16.msra.mxu0 %v162
    %1512 = vmatpush.bf16.msra.mxu0 %v159
    %1513 = vmatpush.bf16.msra.mxu0 %v156
    %1514 = vmatpush.bf16.msra.mxu0 %v153
    %1515 = vmatpush.bf16.msra.mxu0 %v150
    %1516 = vmatpush.bf16.msra.mxu0 %v147
    %1517 = vmatpush.bf16.msra.mxu0 %v144
    %1518 = vmatmul.bf16.gmra.mxu0 %v1509
    %v1519 = vpop.f32.mrf.mxu0
    %v1520 = vadd.f32 0.0, %v1519
    %v1521 = vpop.f32.mrf.mxu0
    %1522 = vdwg.mxu0
    %1523 = vmatpush.bf16.msra.mxu0 %v166
    %1524 = vmatpush.bf16.msra.mxu0 %v163
    %1525 = vmatpush.bf16.msra.mxu0 %v160
    %1526 = vmatpush.bf16.msra.mxu0 %v157
    %1527 = vmatpush.bf16.msra.mxu0 %v154
    %1528 = vmatpush.bf16.msra.mxu0 %v151
    %1529 = vmatpush.bf16.msra.mxu0 %v148
    %1530 = vmatpush.bf16.msra.mxu0 %v145
    %1531 = vmatmul.bf16.gmra.mxu0 %v1509
    %v1532 = vpop.f32.mrf.mxu0
    %v1533 = vadd.f32 0.0, %v1532
    %v1534 = vpop.f32.mrf.mxu0
    %1535 = vdwg.mxu0
    %1536 = vmatpush.bf16.msra.mxu0 %v167
    %1537 = vmatpush.bf16.msra.mxu0 %v164
    %1538 = vmatpush.bf16.msra.mxu0 %v161
    %1539 = vmatpush.bf16.msra.mxu0 %v158
    %1540 = vmatpush.bf16.msra.mxu0 %v155
    %1541 = vmatpush.bf16.msra.mxu0 %v152
    %1542 = vmatpush.bf16.msra.mxu0 %v149
    %1543 = vmatpush.bf16.msra.mxu0 %v146
    %1544 = vmatmul.bf16.gmra.mxu0 %v1509
    %v1545 = vpop.f32.mrf.mxu0
    %v1546 = vadd.f32 0.0, %v1545
    %v1547 = vpop.f32.mrf.mxu0
    %1548 = vdwg.mxu0
    %v1549 = vadd.f32 %v1506, %v1520
    %v1550 = vxor.u32 %v1549, 2147483648
    %v1551 = vmul.f32 %v1550, 1.442695
    %v1552 = vpow.pop %v1551
    %v1553 = vadd.f32 %v1552, 1.0
    %v1554 = vrcp.pop %v1553
    %v1555 = vmul.f32 %v1553, %v1554
    %v1556 = vsub.f32 1.0, %v1555
    %v1557 = vmul.f32 %v1554, %v1556
    %v1558 = vadd.f32 %v1554, %v1557
    %vm1559 = vweird.f32 %v1553
    %vm1560 = vweird.f32 %v1554
    %vm1561 = vmor %vm1559, %vm1560
    %v1562 = vsel %vm1561, %v1554, %v1558
    %v1563 = vand.u32 2147483647, %v1553
    %vm1564 = vcmp.eq.f32.partialorder %v1563, 8.507059e+37
    %v1565 = vand.u32 %v1553, 2147483648
    %v1566 = vor.u32 1.1754944e-38, %v1565
    %v1567 = vsel %vm1564, %v1566, %v1562
    %v1568 = vmul.f32 1.0, %v1567
    %v1569 = vadd.f32 %v1507, %v1533
    %v1570 = vxor.u32 %v1569, 2147483648
    %v1571 = vmul.f32 %v1570, 1.442695
    %v1572 = vpow.pop %v1571
    %v1573 = vadd.f32 %v1572, 1.0
    %v1574 = vrcp.pop %v1573
    %v1575 = vmul.f32 %v1573, %v1574
    %v1576 = vsub.f32 1.0, %v1575
    %v1577 = vmul.f32 %v1574, %v1576
    %v1578 = vadd.f32 %v1574, %v1577
    %vm1579 = vweird.f32 %v1573
    %vm1580 = vweird.f32 %v1574
    %vm1581 = vmor %vm1579, %vm1580
    %v1582 = vsel %vm1581, %v1574, %v1578
    %v1583 = vand.u32 2147483647, %v1573
    %vm1584 = vcmp.eq.f32.partialorder %v1583, 8.507059e+37
    %v1585 = vand.u32 %v1573, 2147483648
    %v1586 = vor.u32 1.1754944e-38, %v1585
    %v1587 = vsel %vm1584, %v1586, %v1582
    %v1588 = vmul.f32 1.0, %v1587
    %v1589 = vadd.f32 %v1546, %v272
    %v1590 = vmul.f32 %v1568, %v1589
    %v1591 = vadd.f32 %v1508, %v1590
    %v1592 = vtanh.pop %v1591
    %v1593 = vsub.f32 1.0, %v1588
    %v1594 = vmul.f32 %v1593, %v1592
    %v1595 = vmul.f32 %v1588, %v1502
    %v1596 = vadd.f32 %v1594, %v1595
    %s1597 = scalar_lea.vmem [#allocation3], 112
    %1598 = vst [vmem:[%s1597] sm:$0xff] %v1596
    %s1599 = scalar_lea.vmem %s0, 360
    %v1600 = vld [vmem:[%s1599] sm:$0xff]
    %v1601 = vld [vmem:[%s1599 + $0x8] sm:$0xff]
    %v1602 = vld [vmem:[%s1599 + $0x10] sm:$0xff]
    %v1603 = vpack.c.bf16 %v1596, %v1596
    %1604 = vmatpush.bf16.msra.mxu0 %v165
    %1605 = vmatpush.bf16.msra.mxu0 %v162
    %1606 = vmatpush.bf16.msra.mxu0 %v159
    %1607 = vmatpush.bf16.msra.mxu0 %v156
    %1608 = vmatpush.bf16.msra.mxu0 %v153
    %1609 = vmatpush.bf16.msra.mxu0 %v150
    %1610 = vmatpush.bf16.msra.mxu0 %v147
    %1611 = vmatpush.bf16.msra.mxu0 %v144
    %1612 = vmatmul.bf16.gmra.mxu0 %v1603
    %v1613 = vpop.f32.mrf.mxu0
    %v1614 = vadd.f32 0.0, %v1613
    %v1615 = vpop.f32.mrf.mxu0
    %1616 = vdwg.mxu0
    %1617 = vmatpush.bf16.msra.mxu0 %v166
    %1618 = vmatpush.bf16.msra.mxu0 %v163
    %1619 = vmatpush.bf16.msra.mxu0 %v160
    %1620 = vmatpush.bf16.msra.mxu0 %v157
    %1621 = vmatpush.bf16.msra.mxu0 %v154
    %1622 = vmatpush.bf16.msra.mxu0 %v151
    %1623 = vmatpush.bf16.msra.mxu0 %v148
    %1624 = vmatpush.bf16.msra.mxu0 %v145
    %1625 = vmatmul.bf16.gmra.mxu0 %v1603
    %v1626 = vpop.f32.mrf.mxu0
    %v1627 = vadd.f32 0.0, %v1626
    %v1628 = vpop.f32.mrf.mxu0
    %1629 = vdwg.mxu0
    %1630 = vmatpush.bf16.msra.mxu0 %v167
    %1631 = vmatpush.bf16.msra.mxu0 %v164
    %1632 = vmatpush.bf16.msra.mxu0 %v161
    %1633 = vmatpush.bf16.msra.mxu0 %v158
    %1634 = vmatpush.bf16.msra.mxu0 %v155
    %1635 = vmatpush.bf16.msra.mxu0 %v152
    %1636 = vmatpush.bf16.msra.mxu0 %v149
    %1637 = vmatpush.bf16.msra.mxu0 %v146
    %1638 = vmatmul.bf16.gmra.mxu0 %v1603
    %v1639 = vpop.f32.mrf.mxu0
    %v1640 = vadd.f32 0.0, %v1639
    %v1641 = vpop.f32.mrf.mxu0
    %1642 = vdwg.mxu0
    %v1643 = vadd.f32 %v1600, %v1614
    %v1644 = vxor.u32 %v1643, 2147483648
    %v1645 = vmul.f32 %v1644, 1.442695
    %v1646 = vpow.pop %v1645
    %v1647 = vadd.f32 %v1646, 1.0
    %v1648 = vrcp.pop %v1647
    %v1649 = vmul.f32 %v1647, %v1648
    %v1650 = vsub.f32 1.0, %v1649
    %v1651 = vmul.f32 %v1648, %v1650
    %v1652 = vadd.f32 %v1648, %v1651
    %vm1653 = vweird.f32 %v1647
    %vm1654 = vweird.f32 %v1648
    %vm1655 = vmor %vm1653, %vm1654
    %v1656 = vsel %vm1655, %v1648, %v1652
    %v1657 = vand.u32 2147483647, %v1647
    %vm1658 = vcmp.eq.f32.partialorder %v1657, 8.507059e+37
    %v1659 = vand.u32 %v1647, 2147483648
    %v1660 = vor.u32 1.1754944e-38, %v1659
    %v1661 = vsel %vm1658, %v1660, %v1656
    %v1662 = vmul.f32 1.0, %v1661
    %v1663 = vadd.f32 %v1601, %v1627
    %v1664 = vxor.u32 %v1663, 2147483648
    %v1665 = vmul.f32 %v1664, 1.442695
    %v1666 = vpow.pop %v1665
    %v1667 = vadd.f32 %v1666, 1.0
    %v1668 = vrcp.pop %v1667
    %v1669 = vmul.f32 %v1667, %v1668
    %v1670 = vsub.f32 1.0, %v1669
    %v1671 = vmul.f32 %v1668, %v1670
    %v1672 = vadd.f32 %v1668, %v1671
    %vm1673 = vweird.f32 %v1667
    %vm1674 = vweird.f32 %v1668
    %vm1675 = vmor %vm1673, %vm1674
    %v1676 = vsel %vm1675, %v1668, %v1672
    %v1677 = vand.u32 2147483647, %v1667
    %vm1678 = vcmp.eq.f32.partialorder %v1677, 8.507059e+37
    %v1679 = vand.u32 %v1667, 2147483648
    %v1680 = vor.u32 1.1754944e-38, %v1679
    %v1681 = vsel %vm1678, %v1680, %v1676
    %v1682 = vmul.f32 1.0, %v1681
    %v1683 = vadd.f32 %v1640, %v272
    %v1684 = vmul.f32 %v1662, %v1683
    %v1685 = vadd.f32 %v1602, %v1684
    %v1686 = vtanh.pop %v1685
    %v1687 = vsub.f32 1.0, %v1682
    %v1688 = vmul.f32 %v1687, %v1686
    %v1689 = vmul.f32 %v1682, %v1596
    %v1690 = vadd.f32 %v1688, %v1689
    %s1691 = scalar_lea.vmem [#allocation3], 120
    %1692 = vst [vmem:[%s1691] sm:$0xff] %v1690
    %1693 = vst [vmem:[#allocation2] sm:$0xff] %v1690
    %1694 = vst [vmem:[%s5] sm:$0xff] %v1690
    // Predicated region
    $region22: #{gru_encoder_forward.7} parent=1 // pred_check
      _
    $region23: #{gru_encoder_forward.7} parent=1 // pred_check_branch
      %1696 = sbr.rel (0) target = $region25
    $region24: #{gru_encoder_forward.7} parent=1 // pred_region
      %1698 = vsyncadd [#allocation4], 0
      %s1699 = sshll.u32 [#allocation3], 4
      %s1700 = int_to_ptr.vmem [resolvable:$true] %s1699
      %s1701 = sshll.u32 %s4, 4
      %s1702 = int_to_ptr.hbm [resolvable:$true] %s1701
      %1707 = dma.vmem_to_hbm [thread:$0]  %s1700, 2048, %s1702, [#allocation4], 128, 128, 8
    $region25: #{gru_encoder_forward.7} parent=1 // pred_fallthru
      _
    // Predicated region
    $region26: #{gru_encoder_forward.7} parent=1 // pred_check
      _
    $region27: #{gru_encoder_forward.7} parent=1 // pred_check_branch
      %1709 = sbr.rel (0) target = $region29
    $region28: #{gru_encoder_forward.7} parent=1 // pred_region
      _
    $region29: #{gru_encoder_forward.7} parent=1 // pred_fallthru
      _
    // Predicated region
    $region30: #{gru_encoder_forward.7} parent=1 // pred_check
      _
    $region31: #{gru_encoder_forward.7} parent=1 // pred_check_branch
      %1711 = sbr.rel (0) target = $region33
    $region32: #{gru_encoder_forward.7} parent=1 // pred_region
      %1713 = dma.done [#allocation4], 2048
    $region33: #{gru_encoder_forward.7} parent=1 // pred_fallthru
      _
    // Predicated region
    $region34: #{gru_encoder_forward.7} parent=1 // pred_check
      _
    $region35: #{gru_encoder_forward.7} parent=1 // pred_check_branch
      %1715 = sbr.rel (0) target = $region37
    $region36: #{gru_encoder_forward.7} parent=1 // pred_region
      _
    $region37: #{gru_encoder_forward.7} parent=1 // pred_fallthru
      _
    %1716 = vsyncpa [#allocation4], 1

</llo_original>
